<compile_context>
chip_gen: v7x
topology: tpu7x:2x2x1
jax: 0.10.0
libtpu: 0.0.40
codegen_flags: <defaults>
</compile_context>

<pallas_src>
import functools

import jax
import jax.numpy as jnp
from jax.experimental import pallas as pl
from jax.experimental.pallas import tpu as pltpu


def _mlp_dot_kernel(num_layers, *refs):
    # refs = (xi_ref, xj_ref, W0, b0, W1, b1, ..., sel_ref, out_ref)
    xi_ref, xj_ref = refs[0], refs[1]
    param_refs = refs[2:2 + 2 * num_layers]
    sel_ref = refs[2 + 2 * num_layers]
    out_ref = refs[3 + 2 * num_layers]

    cdt = param_refs[0].dtype   # compute dtype (bf16 fast path / f32 exact path)
    mm_prec = (jax.lax.Precision.HIGHEST if cdt == jnp.float32
               else jax.lax.Precision.DEFAULT)

    def run_stream(x_ref):
        # Cast happens here (in VMEM) -> the HBM read stays f32, done once.
        act = x_ref[...].astype(cdt)                       # [rows, C*pack]
        for l in range(num_layers):
            w = param_refs[2 * l][...]                     # [Cin*pack, Cout*pack] block-diag
            b = param_refs[2 * l + 1][...]                 # [1, Cout*pack] f32
            h = jnp.dot(act, w, preferred_element_type=jnp.float32,
                        precision=mm_prec)                 # f32 accumulate
            h = jnp.maximum(h + b, 0.0)                    # bias + ReLU in f32
            # keep last-layer activations in f32 for the dot-product epilogue
            act = h if l + 1 == num_layers else h.astype(cdt)
        return act                                         # [rows, H*pack] f32

    prod = run_stream(xi_ref) * run_stream(xj_ref)         # [rows, H*pack] f32
    # Segmented sum over each H-lane group == per-logical-row dot product.
    # Done on the (idle) MXU against a constant 0/1 selector, HIGHEST f32.
    out_ref[...] = jnp.dot(prod, sel_ref[...],
                           preferred_element_type=jnp.float32,
                           precision=jax.lax.Precision.HIGHEST)


def mlp_dot_predictor(x_i, x_j, weights, biases, *, compute_dtype=jnp.bfloat16,
                      phys_block_rows=None, pack=None):
    """weights[l]: [C_in_l, C_out_l] (torch weight transposed); biases[l]: [C_out_l] or [1, C_out_l]."""
    assert x_i.shape == x_j.shape and x_i.ndim == 2
    N, C = x_i.shape
    num_layers = len(weights)
    widths = [C] + [int(jnp.asarray(w).shape[1]) for w in weights]
    h_last = widths[-1]

    # --- packing factor: pack logical rows per physical row so every vreg is
    #     lane-dense; widest (replicated) layer capped at 256 lanes.
    if pack is None:
        pack = 1
        while pack < 16 and max(widths) * pack * 2 <= 256:
            pack *= 2

    # Pad N to a multiple of pack (copies only when N % pack != 0).
    xi, xj = x_i, x_j
    n_lead = (-N) % pack
    if n_lead:
        padcfg = ((0, n_lead), (0, 0))
        xi = jnp.pad(xi, padcfg)
        xj = jnp.pad(xj, padcfg)
    n_pack = (N + n_lead) // pack
    # Free, row-major reshape: logical row n -> (physical row n//pack, slot n%pack).
    xi = xi.reshape(n_pack, C * pack)
    xj = xj.reshape(n_pack, C * pack)

    # --- block-diagonal replicated parameters (tiny, built once by XLA).
    cdt = jnp.dtype(compute_dtype)
    eye = jnp.eye(pack, dtype=jnp.float32)
    ws, bs = [], []
    for w, b in zip(weights, biases):
        wf = jnp.asarray(w, jnp.float32)                          # [Cin, Cout]
        bf = jnp.asarray(b, jnp.float32).reshape(1, -1)           # [1, Cout]
        ws.append(jnp.kron(eye, wf).astype(cdt))                  # [Cin*pack, Cout*pack]
        bs.append(jnp.tile(bf, (1, pack)))                        # [1, Cout*pack] f32
    # 0/1 selector: sel[c, s] = 1 iff channel c belongs to logical slot s.
    sel = jnp.kron(eye, jnp.ones((h_last, 1), jnp.float32))       # [h_last*pack, pack]

    # --- block heuristic: >= 4 grid steps when possible (2 per v7x TC), capped
    #     so per-step VMEM stays small on v5e's 16 MiB scoped default.
    if phys_block_rows is None:
        quarter = -(-n_pack // 4)
        phys_block_rows = max(8, min(1024, ((quarter + 7) // 8) * 8))
    assert phys_block_rows % 8 == 0, "physical block rows must be a multiple of 8"
    n_blocks = -(-n_pack // phys_block_rows)

    kernel = functools.partial(_mlp_dot_kernel, num_layers)

    row_spec = pl.BlockSpec((phys_block_rows, C * pack), lambda i: (i, 0))
    param_specs, params = [], []
    for w, b in zip(ws, bs):
        # constant index_map -> params stay resident in VMEM across grid steps
        param_specs.append(pl.BlockSpec(w.shape, lambda i: (0, 0)))
        param_specs.append(pl.BlockSpec(b.shape, lambda i: (0, 0)))
        params += [w, b]
    sel_spec = pl.BlockSpec(sel.shape, lambda i: (0, 0))
    out_spec = pl.BlockSpec((phys_block_rows, pack), lambda i: (i, 0))

    out = pl.pallas_call(
        kernel,
        out_shape=jax.ShapeDtypeStruct((n_pack, pack), jnp.float32),
        grid_spec=pltpu.PrefetchScalarGridSpec(
            num_scalar_prefetch=0,
            grid=(n_blocks,),
            in_specs=[row_spec, row_spec] + param_specs + [sel_spec],
            out_specs=out_spec,
        ),
        compiler_params=pltpu.CompilerParams(
            dimension_semantics=("parallel",)),
    )(xi, xj, *params, sel)

    # Row-major flatten of [n_pack, pack] is exactly logical-row order.
    return out.reshape(-1)[:N]


def mlp_dot_predictor_ref(x_i, x_j, weights, biases, compute_dtype=jnp.float32):
    """Pure-JAX reference with the same cast pattern as the kernel."""
    xi = x_i.astype(jnp.float32)
    xj = x_j.astype(jnp.float32)
    for w, b in zip(weights, biases):
        wc = jnp.asarray(w).astype(compute_dtype)
        bc = jnp.asarray(b, jnp.float32).reshape(1, -1)
        xi = jnp.maximum(
            jnp.dot(xi.astype(compute_dtype), wc,
                    preferred_element_type=jnp.float32,
                    precision=jax.lax.Precision.HIGHEST) + bc, 0.0)
        xj = jnp.maximum(
            jnp.dot(xj.astype(compute_dtype), wc,
                    preferred_element_type=jnp.float32,
                    precision=jax.lax.Precision.HIGHEST) + bc, 0.0)
    return jnp.sum(xi * xj, axis=-1)


if __name__ == "__main__":
    # Module config: MLPDotPredictor(in_channels=16, hidden_channels=32,
    #                                num_layers=2, dropout=0.0)
    in_channels = 16
    hidden_channels = 32
    num_layers = 2
    N = 1000  # not a tile multiple -> exercises the ragged last block

    key = jax.random.PRNGKey(0)
    k_xi, k_xj, k_p = jax.random.split(key, 3)
    x_i = jax.random.normal(k_xi, (N, in_channels), dtype=jnp.float32)
    x_j = jax.random.normal(k_xj, (N, in_channels), dtype=jnp.float32)

    # Deterministic parameter init (Kaiming-uniform-ish, like nn.Linear defaults).
    weights, biases = [], []
    fan_ins = [in_channels] + [hidden_channels] * (num_layers - 1)
    fan_outs = [hidden_channels] * num_layers
    for fi, fo in zip(fan_ins, fan_outs):
        k_p, kw, kb = jax.random.split(k_p, 3)
        bound = 1.0 / float(fi) ** 0.5
        # stored as [C_in, C_out] == torch weight [out, in] transposed
        weights.append(jax.random.uniform(kw, (fi, fo), jnp.float32, -bound, bound))
        biases.append(jax.random.uniform(kb, (1, fo), jnp.float32, -bound, bound))

    # 1) Exact-semantics path (f32 end-to-end, HIGHEST precision) vs f32 reference.
    out_f32 = jax.block_until_ready(
        mlp_dot_predictor(x_i, x_j, weights, biases, compute_dtype=jnp.float32))
    ref_f32 = mlp_dot_predictor_ref(x_i, x_j, weights, biases,
                                    compute_dtype=jnp.float32)
    assert out_f32.shape == (N,)
    assert jnp.allclose(out_f32, ref_f32, atol=2e-3, rtol=2e-3), \
        "f32 kernel mismatch vs JAX reference"

    # 2) Fast path (bf16 operands on the MXU, f32 accumulate) vs a matched ref.
    out_bf16 = jax.block_until_ready(
        mlp_dot_predictor(x_i, x_j, weights, biases, compute_dtype=jnp.bfloat16))
    ref_bf16 = mlp_dot_predictor_ref(x_i, x_j, weights, biases,
                                     compute_dtype=jnp.bfloat16)
    assert out_bf16.shape == (N,)
    assert jnp.allclose(out_bf16, ref_bf16, atol=1e-2, rtol=1e-2), \
        "bf16 kernel mismatch vs matched mixed-precision reference"

    print("KERNEL_OK")
</pallas_src>

<mosaic_0001>
module attributes {stable_mosaic.version = 11 : i64} {
  func.func @_mlp_dot_kernel(%arg0: i32, %arg1: memref<32x128xf32, #tpu.memory_space<vmem>>, %arg2: memref<32x128xf32, #tpu.memory_space<vmem>>, %arg3: memref<128x256xf32, #tpu.memory_space<vmem>>, %arg4: memref<1x256xf32, #tpu.memory_space<vmem>>, %arg5: memref<256x256xf32, #tpu.memory_space<vmem>>, %arg6: memref<1x256xf32, #tpu.memory_space<vmem>>, %arg7: memref<256x8xf32, #tpu.memory_space<vmem>>, %arg8: memref<32x8xf32, #tpu.memory_space<vmem>>) attributes {dimension_semantics = [#tpu.dimension_semantics<parallel>], iteration_bounds = array<i64: 4>, scalar_prefetch = 0 : i64, scratch_operands = 0 : i64, tpu.core_type = #tpu.core_type<tc>, window_params = [{transform_indices = @transform_0, window_bounds = array<i64: 32, 128>}, {transform_indices = @transform_1, window_bounds = array<i64: 32, 128>}, {pipeline_mode = #tpu.pipeline_mode<synchronous>, transform_indices = @transform_2, window_bounds = array<i64: 128, 256>}, {pipeline_mode = #tpu.pipeline_mode<synchronous>, transform_indices = @transform_3, window_bounds = array<i64: 1, 256>}, {pipeline_mode = #tpu.pipeline_mode<synchronous>, transform_indices = @transform_4, window_bounds = array<i64: 256, 256>}, {pipeline_mode = #tpu.pipeline_mode<synchronous>, transform_indices = @transform_5, window_bounds = array<i64: 1, 256>}, {pipeline_mode = #tpu.pipeline_mode<synchronous>, transform_indices = @transform_6, window_bounds = array<i64: 256, 8>}, {transform_indices = @transform_7, window_bounds = array<i64: 32, 8>}]} {
    %c0 = arith.constant 0 : index
    %c0_0 = arith.constant 0 : index
    %0 = vector.load %arg1[%c0, %c0_0] : memref<32x128xf32, #tpu.memory_space<vmem>>, vector<32x128xf32>
    %c0_1 = arith.constant 0 : index
    %c0_2 = arith.constant 0 : index
    %1 = vector.load %arg3[%c0_1, %c0_2] : memref<128x256xf32, #tpu.memory_space<vmem>>, vector<128x256xf32>
    %c0_3 = arith.constant 0 : index
    %c0_4 = arith.constant 0 : index
    %2 = vector.load %arg4[%c0_3, %c0_4] : memref<1x256xf32, #tpu.memory_space<vmem>>, vector<1x256xf32>
    %cst = arith.constant dense<0.000000e+00> : vector<32x256xf32>
    %3 = tpu.matmul %0, %1, %cst {dimension_numbers = #tpu.dot_dimension_numbers<[1], [0], [0], [1], [0, 0, 1, 1], [], []>, precision = #tpu.contract_precision<fp32>} : vector<32x128xf32>, vector<128x256xf32>, vector<32x256xf32> -> vector<32x256xf32>
    %4 = vector.broadcast %2 : vector<1x256xf32> to vector<32x256xf32>
    %5 = arith.addf %3, %4 : vector<32x256xf32>
    %cst_5 = arith.constant 0.000000e+00 : f32
    %6 = vector.broadcast %cst_5 : f32 to vector<32x256xf32>
    %7 = arith.maximumf %5, %6 : vector<32x256xf32>
    %c0_6 = arith.constant 0 : index
    %c0_7 = arith.constant 0 : index
    %8 = vector.load %arg5[%c0_6, %c0_7] : memref<256x256xf32, #tpu.memory_space<vmem>>, vector<256x256xf32>
    %c0_8 = arith.constant 0 : index
    %c0_9 = arith.constant 0 : index
    %9 = vector.load %arg6[%c0_8, %c0_9] : memref<1x256xf32, #tpu.memory_space<vmem>>, vector<1x256xf32>
    %cst_10 = arith.constant dense<0.000000e+00> : vector<32x256xf32>
    %10 = tpu.matmul %7, %8, %cst_10 {dimension_numbers = #tpu.dot_dimension_numbers<[1], [0], [0], [1], [0, 0, 1, 1], [], []>, precision = #tpu.contract_precision<fp32>} : vector<32x256xf32>, vector<256x256xf32>, vector<32x256xf32> -> vector<32x256xf32>
    %11 = vector.broadcast %9 : vector<1x256xf32> to vector<32x256xf32>
    %12 = arith.addf %10, %11 : vector<32x256xf32>
    %cst_11 = arith.constant 0.000000e+00 : f32
    %13 = vector.broadcast %cst_11 : f32 to vector<32x256xf32>
    %14 = arith.maximumf %12, %13 : vector<32x256xf32>
    %c0_12 = arith.constant 0 : index
    %c0_13 = arith.constant 0 : index
    %15 = vector.load %arg2[%c0_12, %c0_13] : memref<32x128xf32, #tpu.memory_space<vmem>>, vector<32x128xf32>
    %c0_14 = arith.constant 0 : index
    %c0_15 = arith.constant 0 : index
    %16 = vector.load %arg3[%c0_14, %c0_15] : memref<128x256xf32, #tpu.memory_space<vmem>>, vector<128x256xf32>
    %c0_16 = arith.constant 0 : index
    %c0_17 = arith.constant 0 : index
    %17 = vector.load %arg4[%c0_16, %c0_17] : memref<1x256xf32, #tpu.memory_space<vmem>>, vector<1x256xf32>
    %cst_18 = arith.constant dense<0.000000e+00> : vector<32x256xf32>
    %18 = tpu.matmul %15, %16, %cst_18 {dimension_numbers = #tpu.dot_dimension_numbers<[1], [0], [0], [1], [0, 0, 1, 1], [], []>, precision = #tpu.contract_precision<fp32>} : vector<32x128xf32>, vector<128x256xf32>, vector<32x256xf32> -> vector<32x256xf32>
    %19 = vector.broadcast %17 : vector<1x256xf32> to vector<32x256xf32>
    %20 = arith.addf %18, %19 : vector<32x256xf32>
    %cst_19 = arith.constant 0.000000e+00 : f32
    %21 = vector.broadcast %cst_19 : f32 to vector<32x256xf32>
    %22 = arith.maximumf %20, %21 : vector<32x256xf32>
    %c0_20 = arith.constant 0 : index
    %c0_21 = arith.constant 0 : index
    %23 = vector.load %arg5[%c0_20, %c0_21] : memref<256x256xf32, #tpu.memory_space<vmem>>, vector<256x256xf32>
    %c0_22 = arith.constant 0 : index
    %c0_23 = arith.constant 0 : index
    %24 = vector.load %arg6[%c0_22, %c0_23] : memref<1x256xf32, #tpu.memory_space<vmem>>, vector<1x256xf32>
    %cst_24 = arith.constant dense<0.000000e+00> : vector<32x256xf32>
    %25 = tpu.matmul %22, %23, %cst_24 {dimension_numbers = #tpu.dot_dimension_numbers<[1], [0], [0], [1], [0, 0, 1, 1], [], []>, precision = #tpu.contract_precision<fp32>} : vector<32x256xf32>, vector<256x256xf32>, vector<32x256xf32> -> vector<32x256xf32>
    %26 = vector.broadcast %24 : vector<1x256xf32> to vector<32x256xf32>
    %27 = arith.addf %25, %26 : vector<32x256xf32>
    %cst_25 = arith.constant 0.000000e+00 : f32
    %28 = vector.broadcast %cst_25 : f32 to vector<32x256xf32>
    %29 = arith.maximumf %27, %28 : vector<32x256xf32>
    %30 = arith.mulf %14, %29 : vector<32x256xf32>
    %c0_26 = arith.constant 0 : index
    %c0_27 = arith.constant 0 : index
    %31 = vector.load %arg7[%c0_26, %c0_27] : memref<256x8xf32, #tpu.memory_space<vmem>>, vector<256x8xf32>
    %cst_28 = arith.constant dense<0.000000e+00> : vector<32x8xf32>
    %32 = tpu.matmul %30, %31, %cst_28 {dimension_numbers = #tpu.dot_dimension_numbers<[1], [0], [0], [1], [0, 0, 1, 1], [], []>, precision = #tpu.contract_precision<fp32>} : vector<32x256xf32>, vector<256x8xf32>, vector<32x8xf32> -> vector<32x8xf32>
    %c0_29 = arith.constant 0 : index
    %c0_30 = arith.constant 0 : index
    %33 = vector.load %arg8[%c0_29, %c0_30] : memref<32x8xf32, #tpu.memory_space<vmem>>, vector<32x8xf32>
    tpu.vector_store %arg8[%c0_29, %c0_30], %32 {strides = array<i32>} : memref<32x8xf32, #tpu.memory_space<vmem>>, vector<32x8xf32>,
    return
  }
  func.func @transform_0(%arg0: i32) -> (i32, i32) {
    %c0_i32 = arith.constant 0 : i32
    %c0_i32_0 = arith.constant 0 : i32
    return %arg0, %c0_i32 : i32, i32
  }
  func.func @transform_1(%arg0: i32) -> (i32, i32) {
    %c0_i32 = arith.constant 0 : i32
    %c0_i32_0 = arith.constant 0 : i32
    return %arg0, %c0_i32 : i32, i32
  }
  func.func @transform_2(%arg0: i32) -> (i32, i32) {
    %c0_i32 = arith.constant 0 : i32
    %c0_i32_0 = arith.constant 0 : i32
    %c0_i32_1 = arith.constant 0 : i32
    return %c0_i32, %c0_i32_0 : i32, i32
  }
  func.func @transform_3(%arg0: i32) -> (i32, i32) {
    %c0_i32 = arith.constant 0 : i32
    %c0_i32_0 = arith.constant 0 : i32
    %c0_i32_1 = arith.constant 0 : i32
    return %c0_i32, %c0_i32_0 : i32, i32
  }
  func.func @transform_4(%arg0: i32) -> (i32, i32) {
    %c0_i32 = arith.constant 0 : i32
    %c0_i32_0 = arith.constant 0 : i32
    %c0_i32_1 = arith.constant 0 : i32
    return %c0_i32, %c0_i32_0 : i32, i32
  }
  func.func @transform_5(%arg0: i32) -> (i32, i32) {
    %c0_i32 = arith.constant 0 : i32
    %c0_i32_0 = arith.constant 0 : i32
    %c0_i32_1 = arith.constant 0 : i32
    return %c0_i32, %c0_i32_0 : i32, i32
  }
  func.func @transform_6(%arg0: i32) -> (i32, i32) {
    %c0_i32 = arith.constant 0 : i32
    %c0_i32_0 = arith.constant 0 : i32
    %c0_i32_1 = arith.constant 0 : i32
    return %c0_i32, %c0_i32_0 : i32, i32
  }
  func.func @transform_7(%arg0: i32) -> (i32, i32) {
    %c0_i32 = arith.constant 0 : i32
    %c0_i32_0 = arith.constant 0 : i32
    return %arg0, %c0_i32 : i32, i32
  }
}

</mosaic_0001>

<llo_original>
// kernel: tpu_custom_call.1
$region0: #{tpu_custom_call.1}
  #allocation0 [shape = 'u32[]', space=smem, size = 0x4, offset = 0x4, fixed_abs, tag = 'smem constant byte address 0x4 - core index']
  #allocation1 [shape = 'u32[144,128]{1,0:T(1,128)}', space=vmem, size = 0x12000, scoped, tag = 'internal scratch']
  %s0 = inlined_call_operand.hbm [shape: f32[125,128], index: 0, kind: input, shape index: {}]
  %s1 = inlined_call_operand.hbm [shape: f32[125,128], index: 1, kind: input, shape index: {}]
  %s2 = inlined_call_operand.vmem [shape: f32[128,256], index: 2, kind: input, shape index: {}]
  %s3 = inlined_call_operand.vmem [shape: f32[1,256], index: 3, kind: input, shape index: {}]
  %s4 = inlined_call_operand.hbm [shape: f32[256,256], index: 4, kind: input, shape index: {}]
  %s5 = inlined_call_operand.vmem [shape: f32[1,256], index: 5, kind: input, shape index: {}]
  %s6 = inlined_call_operand.vmem [shape: f32[256,8], index: 6, kind: input, shape index: {}]
  %s7 = inlined_call_operand.vmem [shape: f32[125,8], index: 7, kind: output, shape index: {}]
  %s8 = sld [smem:[#allocation0]]
  $region73: #{tpu_custom_call.1} parent=0
    _
  %s10 = ssub.s32 1, %s8
  %s11 = scalar_select 0, %s10, %s8
  $region1: #{tpu_custom_call.1} parent=0
    #allocation2 [shape = 'u8[32768]{0}', space=vmem, size = 0x8000, scoped, tag = 'input window, operand 0']
    #allocation3 [shape = 's32[2]{0}', space=sflag, size = 0x8, scoped, tag = 'scoped memory for tpu_custom_call.1']
    #allocation4 [shape = 'u8[32768]{0}', space=vmem, size = 0x8000, scoped, tag = 'input window, operand 1']
    #allocation5 [shape = 's32[2]{0}', space=sflag, size = 0x8, scoped, tag = 'scoped memory for tpu_custom_call.1']
    #allocation6 [shape = 'u8[262144]{0}', space=vmem, size = 0x40000, scoped, tag = 'input window, operand 4, single buffered']
    %12 = vsyncpa [#allocation3], 0
    %s13 = scalar_lea.sflag [#allocation3], 1
    %14 = vsyncpa %s13, 0
    %15 = vsyncpa [#allocation5], 0
    %s16 = scalar_lea.sflag [#allocation5], 1
    %17 = vsyncpa %s16, 0
    loop: start=0, step=1, limit=6
    $region2: #{tpu_custom_call.1} parent=1 // loop_pre_header
      _
    $region3: #{tpu_custom_call.1} parent=1 // loop_header
      %s19 = sphi 0, %s23
      %p20 = scmp.ge.s32.totalorder %s19, 6
      %s29 = sphi 0, %s31
      %s32 = sphi 0, %s29
      %s33 = sphi 0, %s32
      %s49 = sphi 0, %s33
      %s55 = sphi 0, %s57
      %s58 = sphi 0, %s55
      %s59 = sphi 0, %s58
      %s75 = sphi 0, %s59
      %s79 = sphi 0, %s79
      %s81 = sphi 0, %s79
      %s82 = sphi 0, %s81
      %s96 = sphi 0, %s82
      %s100 = sphi 0, %s100
      %s102 = sphi 0, %s100
      %s103 = sphi 0, %s102
      %s117 = sphi 0, %s103
      %s121 = sphi 0, %s121
      %s123 = sphi 0, %s121
      %s124 = sphi 0, %s123
      %s138 = sphi 0, %s124
      %s142 = sphi 0, %s142
      %s144 = sphi 0, %s142
      %s145 = sphi 0, %s144
      %s159 = sphi 0, %s145
      %s163 = sphi 0, %s163
      %s165 = sphi 0, %s163
      %s166 = sphi 0, %s165
      %s180 = sphi 0, %s166
      %s186 = sphi 0, %s188
      %s189 = sphi 0, %s186
      %s190 = sphi 0, %s189
      %s206 = sphi 0, %s190
    $region4: #{tpu_custom_call.1} parent=1 // loop_header_branch
      %22 = sbr.rel (%p20) target = $region8
    $region5: #{tpu_custom_call.1} parent=1 // loop_body
      %s24 = ssub.s32 %s19, 1
      %s25 = ssub.s32 %s19, 2
      %s26 = sadd.s32 %s19, 1
      %s27 = ssub.s32 %s19, %s26
      %p28 = scmp.eq.s32.totalorder %s27, 0
      %s30 = sadd.s32 %s29, 1
      %s31 = scalar_select %p28, %s29, %s30
      %p34 = pneg %p28
      %p35 = scmp.eq.s32.totalorder %s19, 3
      %p36 = por %p34, %p35
      %p37 = scmp.ne.s32.totalorder %s29, %s32
      %p38 = scmp.eq.s32.totalorder %s19, 0
      %p39 = por %p37, %p38
      %p40 = scmp.ne.s32.totalorder %s29, %s32
      %p41 = scmp.eq.s32.totalorder %s24, 3
      %p42 = por %p40, %p41
      %p43 = scmp.ne.s32.totalorder %s32, %s33
      %p44 = scmp.eq.s32.totalorder %s24, 0
      %p45 = por %p43, %p44
      %p46 = scmp.ne.s32.totalorder %s32, %s33
      %p47 = scmp.eq.s32.totalorder %s25, 3
      %p48 = por %p46, %p47
      %p50 = scmp.ne.s32.totalorder %s33, %s49
      %p51 = scmp.eq.s32.totalorder %s25, 0
      %p52 = por %p50, %p51
      %s53 = ssub.s32 %s19, %s26
      %p54 = scmp.eq.s32.totalorder %s53, 0
      %s56 = sadd.s32 %s55, 1
      %s57 = scalar_select %p54, %s55, %s56
      %p60 = pneg %p54
      %p61 = scmp.eq.s32.totalorder %s19, 3
      %p62 = por %p60, %p61
      %p63 = scmp.ne.s32.totalorder %s55, %s58
      %p64 = scmp.eq.s32.totalorder %s19, 0
      %p65 = por %p63, %p64
      %p66 = scmp.ne.s32.totalorder %s55, %s58
      %p67 = scmp.eq.s32.totalorder %s24, 3
      %p68 = por %p66, %p67
      %p69 = scmp.ne.s32.totalorder %s58, %s59
      %p70 = scmp.eq.s32.totalorder %s24, 0
      %p71 = por %p69, %p70
      %p72 = scmp.ne.s32.totalorder %s58, %s59
      %p73 = scmp.eq.s32.totalorder %s25, 3
      %p74 = por %p72, %p73
      %p76 = scmp.ne.s32.totalorder %s59, %s75
      %p77 = scmp.eq.s32.totalorder %s25, 0
      %p78 = por %p76, %p77
      %s80 = sadd.s32 %s79, 1
      %p83 = scmp.eq.s32.totalorder %s19, 3
      %p84 = scmp.ne.s32.totalorder %s79, %s81
      %p85 = scmp.eq.s32.totalorder %s19, 0
      %p86 = por %p84, %p85
      %p87 = scmp.ne.s32.totalorder %s79, %s81
      %p88 = scmp.eq.s32.totalorder %s24, 3
      %p89 = por %p87, %p88
      %p90 = scmp.ne.s32.totalorder %s81, %s82
      %p91 = scmp.eq.s32.totalorder %s24, 0
      %p92 = por %p90, %p91
      %p93 = scmp.ne.s32.totalorder %s81, %s82
      %p94 = scmp.eq.s32.totalorder %s25, 3
      %p95 = por %p93, %p94
      %p97 = scmp.ne.s32.totalorder %s82, %s96
      %p98 = scmp.eq.s32.totalorder %s25, 0
      %p99 = por %p97, %p98
      %s101 = sadd.s32 %s100, 1
      %p104 = scmp.eq.s32.totalorder %s19, 3
      %p105 = scmp.ne.s32.totalorder %s100, %s102
      %p106 = scmp.eq.s32.totalorder %s19, 0
      %p107 = por %p105, %p106
      %p108 = scmp.ne.s32.totalorder %s100, %s102
      %p109 = scmp.eq.s32.totalorder %s24, 3
      %p110 = por %p108, %p109
      %p111 = scmp.ne.s32.totalorder %s102, %s103
      %p112 = scmp.eq.s32.totalorder %s24, 0
      %p113 = por %p111, %p112
      %p114 = scmp.ne.s32.totalorder %s102, %s103
      %p115 = scmp.eq.s32.totalorder %s25, 3
      %p116 = por %p114, %p115
      %p118 = scmp.ne.s32.totalorder %s103, %s117
      %p119 = scmp.eq.s32.totalorder %s25, 0
      %p120 = por %p118, %p119
      %s122 = sadd.s32 %s121, 1
      %p125 = scmp.eq.s32.totalorder %s19, 3
      %p126 = scmp.ne.s32.totalorder %s121, %s123
      %p127 = scmp.eq.s32.totalorder %s19, 0
      %p128 = por %p126, %p127
      %p129 = scmp.ne.s32.totalorder %s121, %s123
      %p130 = scmp.eq.s32.totalorder %s24, 3
      %p131 = por %p129, %p130
      %p132 = scmp.ne.s32.totalorder %s123, %s124
      %p133 = scmp.eq.s32.totalorder %s24, 0
      %p134 = por %p132, %p133
      %p135 = scmp.ne.s32.totalorder %s123, %s124
      %p136 = scmp.eq.s32.totalorder %s25, 3
      %p137 = por %p135, %p136
      %p139 = scmp.ne.s32.totalorder %s124, %s138
      %p140 = scmp.eq.s32.totalorder %s25, 0
      %p141 = por %p139, %p140
      %s143 = sadd.s32 %s142, 1
      %p146 = scmp.eq.s32.totalorder %s19, 3
      %p147 = scmp.ne.s32.totalorder %s142, %s144
      %p148 = scmp.eq.s32.totalorder %s19, 0
      %p149 = por %p147, %p148
      %p150 = scmp.ne.s32.totalorder %s142, %s144
      %p151 = scmp.eq.s32.totalorder %s24, 3
      %p152 = por %p150, %p151
      %p153 = scmp.ne.s32.totalorder %s144, %s145
      %p154 = scmp.eq.s32.totalorder %s24, 0
      %p155 = por %p153, %p154
      %p156 = scmp.ne.s32.totalorder %s144, %s145
      %p157 = scmp.eq.s32.totalorder %s25, 3
      %p158 = por %p156, %p157
      %p160 = scmp.ne.s32.totalorder %s145, %s159
      %p161 = scmp.eq.s32.totalorder %s25, 0
      %p162 = por %p160, %p161
      %s164 = sadd.s32 %s163, 1
      %p167 = scmp.eq.s32.totalorder %s19, 3
      %p168 = scmp.ne.s32.totalorder %s163, %s165
      %p169 = scmp.eq.s32.totalorder %s19, 0
      %p170 = por %p168, %p169
      %p171 = scmp.ne.s32.totalorder %s163, %s165
      %p172 = scmp.eq.s32.totalorder %s24, 3
      %p173 = por %p171, %p172
      %p174 = scmp.ne.s32.totalorder %s165, %s166
      %p175 = scmp.eq.s32.totalorder %s24, 0
      %p176 = por %p174, %p175
      %p177 = scmp.ne.s32.totalorder %s165, %s166
      %p178 = scmp.eq.s32.totalorder %s25, 3
      %p179 = por %p177, %p178
      %p181 = scmp.ne.s32.totalorder %s166, %s180
      %p182 = scmp.eq.s32.totalorder %s25, 0
      %p183 = por %p181, %p182
      %s184 = ssub.s32 %s19, %s26
      %p185 = scmp.eq.s32.totalorder %s184, 0
      %s187 = sadd.s32 %s186, 1
      %s188 = scalar_select %p185, %s186, %s187
      %p191 = pneg %p185
      %p192 = scmp.eq.s32.totalorder %s19, 3
      %p193 = por %p191, %p192
      %p194 = scmp.ne.s32.totalorder %s186, %s189
      %p195 = scmp.eq.s32.totalorder %s19, 0
      %p196 = por %p194, %p195
      %p197 = scmp.ne.s32.totalorder %s186, %s189
      %p198 = scmp.eq.s32.totalorder %s24, 3
      %p199 = por %p197, %p198
      %p200 = scmp.ne.s32.totalorder %s189, %s190
      %p201 = scmp.eq.s32.totalorder %s24, 0
      %p202 = por %p200, %p201
      %p203 = scmp.ne.s32.totalorder %s189, %s190
      %p204 = scmp.eq.s32.totalorder %s25, 3
      %p205 = por %p203, %p204
      %p207 = scmp.ne.s32.totalorder %s190, %s206
      %p208 = scmp.eq.s32.totalorder %s25, 0
      %p209 = por %p207, %p208
      %p210 = scmp.le.s32.totalorder 1, %s19
      %p211 = scmp.lt.s32.totalorder %s19, 5
      %p212 = pnand %p210, %p211
      %p213 = pneg %p212
      // Predicated region
      $region9: #{tpu_custom_call.1} parent=5 // pred_check
        _
      $region10: #{tpu_custom_call.1} parent=5 // pred_check_branch
        %215 = sbr.rel (%p212) target = $region12
      $region11: #{tpu_custom_call.1} parent=5 // pred_region
        %s216 = ssub.s32 %s19, 1
        // Predicated region
        $region13: #{tpu_custom_call.1} parent=11 // pred_check
          %p217 = pneg %p92
        $region14: #{tpu_custom_call.1} parent=11 // pred_check_branch
          %219 = sbr.rel (%p217) target = $region16
        $region15: #{tpu_custom_call.1} parent=11 // pred_region
          _
        $region16: #{tpu_custom_call.1} parent=11 // pred_fallthru
          _
        // Predicated region
        $region17: #{tpu_custom_call.1} parent=11 // pred_check
          %p220 = pneg %p113
        $region18: #{tpu_custom_call.1} parent=11 // pred_check_branch
          %222 = sbr.rel (%p220) target = $region20
        $region19: #{tpu_custom_call.1} parent=11 // pred_region
          _
        $region20: #{tpu_custom_call.1} parent=11 // pred_fallthru
          _
        // Predicated region
        $region21: #{tpu_custom_call.1} parent=11 // pred_check
          %p223 = pneg %p134
        $region22: #{tpu_custom_call.1} parent=11 // pred_check_branch
          %225 = sbr.rel (%p223) target = $region24
        $region23: #{tpu_custom_call.1} parent=11 // pred_region
          %s227 = ssub.s32 8192, 8192
          %228 = vsyncadd [#allocation5], %s227
          %s229 = sshll.u32 [#allocation6], 4
          %s230 = int_to_ptr.vmem [resolvable:$true] %s229
          %235 = dma.hbm_to_vmem [thread:$0]  %s4, 8192, %s230, [#allocation5], 256, 256, 16
        $region24: #{tpu_custom_call.1} parent=11 // pred_fallthru
          _
        // Predicated region
        $region25: #{tpu_custom_call.1} parent=11 // pred_check
          %p236 = pneg %p155
        $region26: #{tpu_custom_call.1} parent=11 // pred_check_branch
          %238 = sbr.rel (%p236) target = $region28
        $region27: #{tpu_custom_call.1} parent=11 // pred_region
          _
        $region28: #{tpu_custom_call.1} parent=11 // pred_fallthru
          _
        // Predicated region
        $region29: #{tpu_custom_call.1} parent=11 // pred_check
          %p239 = pneg %p176
        $region30: #{tpu_custom_call.1} parent=11 // pred_check_branch
          %241 = sbr.rel (%p239) target = $region32
        $region31: #{tpu_custom_call.1} parent=11 // pred_region
          _
        $region32: #{tpu_custom_call.1} parent=11 // pred_fallthru
          _
      $region12: #{tpu_custom_call.1} parent=5 // pred_fallthru
        _
      %p242 = scmp.lt.s32.totalorder %s19, 4
      // Predicated region
      $region33: #{tpu_custom_call.1} parent=5 // pred_check
        %p243 = pneg %p242
      $region34: #{tpu_custom_call.1} parent=5 // pred_check_branch
        %245 = sbr.rel (%p243) target = $region36
      $region35: #{tpu_custom_call.1} parent=5 // pred_region
        // Predicated region
        $region37: #{tpu_custom_call.1} parent=35 // pred_check
          %p246 = pneg %p39
        $region38: #{tpu_custom_call.1} parent=35 // pred_check_branch
          %248 = sbr.rel (%p246) target = $region40
        $region39: #{tpu_custom_call.1} parent=35 // pred_region
          %s249 = sand.u32 %s29, 1
          %s250 = scalar_lea.sflag [#allocation3], %s249
          %s251 = sand.u32 %s29, 1
          %s252 = smul.addr %s251, 32
          %s253 = scalar_lea.vmem [#allocation2], %s252
          %s254 = smul.u32 4, %s19
          %s256 = ssub.s32 512, 512
          %257 = vsyncadd %s250, %s256
          %s258 = smul.addr %s254, 128
          %s259 = scalar_lea.hbm %s0, %s258
          %s260 = sshll.u32 %s253, 4
          %s261 = int_to_ptr.vmem [resolvable:$true] %s260
          %266 = dma.hbm_to_vmem [thread:$0]  %s259, 512, %s261, %s250, 128, 128, 8
        $region40: #{tpu_custom_call.1} parent=35 // pred_fallthru
          _
        // Predicated region
        $region41: #{tpu_custom_call.1} parent=35 // pred_check
          %p267 = pneg %p65
        $region42: #{tpu_custom_call.1} parent=35 // pred_check_branch
          %269 = sbr.rel (%p267) target = $region44
        $region43: #{tpu_custom_call.1} parent=35 // pred_region
          %s270 = sand.u32 %s19, 1
          %s271 = scalar_lea.sflag [#allocation5], %s270
          %s272 = sand.u32 %s55, 1
          %s273 = smul.addr %s272, 32
          %s274 = scalar_lea.vmem [#allocation4], %s273
          %s275 = smul.u32 4, %s19
          %s277 = ssub.s32 512, 512
          %278 = vsyncadd %s271, %s277
          %s279 = smul.addr %s275, 128
          %s280 = scalar_lea.hbm %s1, %s279
          %s281 = sshll.u32 %s274, 4
          %s282 = int_to_ptr.vmem [resolvable:$true] %s281
          %287 = dma.hbm_to_vmem [thread:$0]  %s280, 512, %s282, %s271, 128, 128, 8
        $region44: #{tpu_custom_call.1} parent=35 // pred_fallthru
          _
      $region36: #{tpu_custom_call.1} parent=5 // pred_fallthru
        _
      %p288 = scmp.le.s32.totalorder 1, %s19
      %p289 = scmp.lt.s32.totalorder %s19, 5
      %p290 = pnand %p288, %p289
      %p291 = pneg %p290
      // Predicated region
      $region45: #{tpu_custom_call.1} parent=5 // pred_check
        _
      $region46: #{tpu_custom_call.1} parent=5 // pred_check_branch
        %293 = sbr.rel (%p290) target = $region48
      $region47: #{tpu_custom_call.1} parent=5 // pred_region
        %s294 = ssub.s32 %s19, 1
        %s295 = sand.u32 %s32, 1
        %s296 = scalar_lea.sflag [#allocation3], %s295
        %s297 = sand.u32 %s32, 1
        %s298 = smul.addr %s297, 32
        %s299 = scalar_lea.vmem [#allocation2], %s298
        // Predicated region
        $region49: #{tpu_custom_call.1} parent=47 // pred_check
          %p300 = pneg %p45
        $region50: #{tpu_custom_call.1} parent=47 // pred_check_branch
          %302 = sbr.rel (%p300) target = $region52
        $region51: #{tpu_custom_call.1} parent=47 // pred_region
          %303 = dma.done %s296, 512
        $region52: #{tpu_custom_call.1} parent=47 // pred_fallthru
          _
        %s304 = sand.u32 %s24, 1
        %s305 = scalar_lea.sflag [#allocation5], %s304
        %s306 = sand.u32 %s58, 1
        %s307 = smul.addr %s306, 32
        %s308 = scalar_lea.vmem [#allocation4], %s307
        // Predicated region
        $region53: #{tpu_custom_call.1} parent=47 // pred_check
          %p309 = pneg %p71
        $region54: #{tpu_custom_call.1} parent=47 // pred_check_branch
          %311 = sbr.rel (%p309) target = $region56
        $region55: #{tpu_custom_call.1} parent=47 // pred_region
          %312 = dma.done %s305, 512
        $region56: #{tpu_custom_call.1} parent=47 // pred_fallthru
          _
        // Predicated region
        $region57: #{tpu_custom_call.1} parent=47 // pred_check
          %p313 = pneg %p134
        $region58: #{tpu_custom_call.1} parent=47 // pred_check_branch
          %315 = sbr.rel (%p313) target = $region60
        $region59: #{tpu_custom_call.1} parent=47 // pred_region
          %316 = dma.done [#allocation5], 8192
        $region60: #{tpu_custom_call.1} parent=47 // pred_fallthru
          _
        %s317 = sand.u32 %s32, 1
        %s318 = scalar_lea.sflag [#allocation3], %s317
        %s319 = sand.u32 %s32, 1
        %s320 = smul.addr %s319, 32
        %s321 = scalar_lea.vmem [#allocation2], %s320
        %p322 = pneg %p45
        %p323 = pneg %p42
        %s324 = sand.u32 %s24, 1
        %s325 = scalar_lea.sflag [#allocation5], %s324
        %s326 = sand.u32 %s58, 1
        %s327 = smul.addr %s326, 32
        %s328 = scalar_lea.vmem [#allocation4], %s327
        %p329 = pneg %p71
        %p330 = pneg %p68
        %p331 = pneg %p92
        %p332 = pneg %p89
        %p333 = pneg %p113
        %p334 = pneg %p110
        %p335 = pneg %p134
        %p336 = pneg %p131
        %p337 = pneg %p155
        %p338 = pneg %p152
        %p339 = pneg %p176
        %p340 = pneg %p173
        %p341 = pneg %p202
        %p342 = pneg %p199
        %s343 = smul.u32 4, %s24
        %p344 = scmp.lt.s32.totalorder %s343, 15
        %s345 = scalar_select %p344, %s343, 15
        %s346 = smul.addr %s345, 8
        %s347 = scalar_lea.vmem %s7, %s346
        %s348 = smul.u32 4, %s24
        %s349 = smul.u32 4, %s24
        %s350 = smul.u32 4, %s24
        %p351 = scmp.lt.s32.totalorder %s350, 15
        %s352 = scalar_select %p351, %s350, 15
        %s353 = smul.addr %s352, 8
        %s354 = scalar_lea.vmem %s7, %s353
        %s355 = smul.u32 4, %s24
        %v356 = vld [vmem:[%s299] sm:$0xff]
        %v357 = vld [vmem:[%s299 + $0x8] sm:$0xff]
        %v358 = vld [vmem:[%s299 + $0x10] sm:$0xff]
        %v359 = vld [vmem:[%s299 + $0x18] sm:$0xff]
        %v360 = vld [vmem:[%s2] sm:$0xff]
        %v361 = vld [vmem:[%s2 + $0x8] sm:$0xff]
        %v362 = vld [vmem:[%s2 + $0x10] sm:$0xff]
        %v363 = vld [vmem:[%s2 + $0x18] sm:$0xff]
        %v364 = vld [vmem:[%s2 + $0x20] sm:$0xff]
        %v365 = vld [vmem:[%s2 + $0x28] sm:$0xff]
        %v366 = vld [vmem:[%s2 + $0x30] sm:$0xff]
        %v367 = vld [vmem:[%s2 + $0x38] sm:$0xff]
        %v368 = vld [vmem:[%s2 + $0x40] sm:$0xff]
        %v369 = vld [vmem:[%s2 + $0x48] sm:$0xff]
        %v370 = vld [vmem:[%s2 + $0x50] sm:$0xff]
        %v371 = vld [vmem:[%s2 + $0x58] sm:$0xff]
        %v372 = vld [vmem:[%s2 + $0x60] sm:$0xff]
        %v373 = vld [vmem:[%s2 + $0x68] sm:$0xff]
        %v374 = vld [vmem:[%s2 + $0x70] sm:$0xff]
        %v375 = vld [vmem:[%s2 + $0x78] sm:$0xff]
        %v376 = vld [vmem:[%s2 + $0x80] sm:$0xff]
        %v377 = vld [vmem:[%s2 + $0x88] sm:$0xff]
        %v378 = vld [vmem:[%s2 + $0x90] sm:$0xff]
        %v379 = vld [vmem:[%s2 + $0x98] sm:$0xff]
        %v380 = vld [vmem:[%s2 + $0xa0] sm:$0xff]
        %v381 = vld [vmem:[%s2 + $0xa8] sm:$0xff]
        %v382 = vld [vmem:[%s2 + $0xb0] sm:$0xff]
        %v383 = vld [vmem:[%s2 + $0xb8] sm:$0xff]
        %v384 = vld [vmem:[%s2 + $0xc0] sm:$0xff]
        %v385 = vld [vmem:[%s2 + $0xc8] sm:$0xff]
        %v386 = vld [vmem:[%s2 + $0xd0] sm:$0xff]
        %v387 = vld [vmem:[%s2 + $0xd8] sm:$0xff]
        %v388 = vld [vmem:[%s2 + $0xe0] sm:$0xff]
        %v389 = vld [vmem:[%s2 + $0xe8] sm:$0xff]
        %v390 = vld [vmem:[%s2 + $0xf0] sm:$0xff]
        %v391 = vld [vmem:[%s2 + $0xf8] sm:$0xff]
        %v392 = vld [vmem:[%s3] sm:$0x3]
        %v394 = vlaneseq
        %v395 = vshrl.u32 %v394, 7
        %v396 = vsub.s32 0, %v395
        %v397 = vrot.slane %v392, %v396
        %v398 = vlaneseq
        %v399 = vshrl.u32 %v398, 7
        %v400 = vsub.s32 1, %v399
        %v401 = vrot.slane %v392, %v400
        %v404 = vand.u32 %v361, 4294901760
        %405 = vmatprep.subr.mxu0 %v404
        %v406 = vand.u32 %v360, 4294901760
        %407 = vmatpush1.msra.mxu0 %v406
        %v408 = vand.u32 %v363, 4294901760
        %409 = vmatprep.subr.mxu0 %v408
        %v410 = vand.u32 %v362, 4294901760
        %411 = vmatpush1.msra.mxu0 %v410
        %v412 = vand.u32 %v365, 4294901760
        %413 = vmatprep.subr.mxu0 %v412
        %v414 = vand.u32 %v364, 4294901760
        %415 = vmatpush1.msra.mxu0 %v414
        %v416 = vand.u32 %v367, 4294901760
        %417 = vmatprep.subr.mxu0 %v416
        %v418 = vand.u32 %v366, 4294901760
        %419 = vmatpush1.msra.mxu0 %v418
        %v420 = vand.u32 %v369, 4294901760
        %421 = vmatprep.subr.mxu0 %v420
        %v422 = vand.u32 %v368, 4294901760
        %423 = vmatpush1.msra.mxu0 %v422
        %v424 = vand.u32 %v371, 4294901760
        %425 = vmatprep.subr.mxu0 %v424
        %v426 = vand.u32 %v370, 4294901760
        %427 = vmatpush1.msra.mxu0 %v426
        %v428 = vand.u32 %v373, 4294901760
        %429 = vmatprep.subr.mxu0 %v428
        %v430 = vand.u32 %v372, 4294901760
        %431 = vmatpush1.msra.mxu0 %v430
        %v432 = vand.u32 %v375, 4294901760
        %433 = vmatprep.subr.mxu0 %v432
        %v434 = vand.u32 %v374, 4294901760
        %435 = vmatpush1.msra.mxu0 %v434
        %v436 = vand.u32 %v377, 4294901760
        %437 = vmatprep.subr.mxu0 %v436
        %v438 = vand.u32 %v376, 4294901760
        %439 = vmatpush1.msra.mxu0 %v438
        %v440 = vand.u32 %v379, 4294901760
        %441 = vmatprep.subr.mxu0 %v440
        %v442 = vand.u32 %v378, 4294901760
        %443 = vmatpush1.msra.mxu0 %v442
        %v444 = vand.u32 %v381, 4294901760
        %445 = vmatprep.subr.mxu0 %v444
        %v446 = vand.u32 %v380, 4294901760
        %447 = vmatpush1.msra.mxu0 %v446
        %v448 = vand.u32 %v383, 4294901760
        %449 = vmatprep.subr.mxu0 %v448
        %v450 = vand.u32 %v382, 4294901760
        %451 = vmatpush1.msra.mxu0 %v450
        %v452 = vand.u32 %v385, 4294901760
        %453 = vmatprep.subr.mxu0 %v452
        %v454 = vand.u32 %v384, 4294901760
        %455 = vmatpush1.msra.mxu0 %v454
        %v456 = vand.u32 %v387, 4294901760
        %457 = vmatprep.subr.mxu0 %v456
        %v458 = vand.u32 %v386, 4294901760
        %459 = vmatpush1.msra.mxu0 %v458
        %v460 = vand.u32 %v389, 4294901760
        %461 = vmatprep.subr.mxu0 %v460
        %v462 = vand.u32 %v388, 4294901760
        %463 = vmatpush1.msra.mxu0 %v462
        %v464 = vand.u32 %v391, 4294901760
        %465 = vmatprep.subr.mxu0 %v464
        %v466 = vand.u32 %v390, 4294901760
        %467 = vmatpush1.msra.mxu0 %v466
        %468 = vmatprep.subr.mxu0 0.0
        %469 = vmatpush1.msra.mxu0 0.0
        %470 = vmatprep.subr.mxu0 0.0
        %471 = vmatpush1.msra.mxu0 0.0
        %472 = vmatprep.subr.mxu0 0.0
        %473 = vmatpush1.msra.mxu0 0.0
        %474 = vmatprep.subr.mxu0 0.0
        %475 = vmatpush1.msra.mxu0 0.0
        %476 = vmatprep.subr.mxu0 0.0
        %477 = vmatpush1.msra.mxu0 0.0
        %478 = vmatprep.subr.mxu0 0.0
        %479 = vmatpush1.msra.mxu0 0.0
        %480 = vmatprep.subr.mxu0 0.0
        %481 = vmatpush1.msra.mxu0 0.0
        %482 = vmatprep.subr.mxu0 0.0
        %483 = vmatpush1.msra.mxu0 0.0
        %484 = vmatprep.subr.mxu0 0.0
        %485 = vmatpush1.msra.mxu0 0.0
        %486 = vmatprep.subr.mxu0 0.0
        %487 = vmatpush1.msra.mxu0 0.0
        %488 = vmatprep.subr.mxu0 0.0
        %489 = vmatpush1.msra.mxu0 0.0
        %490 = vmatprep.subr.mxu0 0.0
        %491 = vmatpush1.msra.mxu0 0.0
        %492 = vmatprep.subr.mxu0 0.0
        %493 = vmatpush1.msra.mxu0 0.0
        %494 = vmatprep.subr.mxu0 0.0
        %495 = vmatpush1.msra.mxu0 0.0
        %496 = vmatprep.subr.mxu0 0.0
        %497 = vmatpush1.msra.mxu0 0.0
        %498 = vmatprep.subr.mxu0 0.0
        %499 = vmatpush1.msra.mxu0 0.0
        %500 = vmatprep.mubr.f32.mxu0 0.0
        %v501 = vand.u32 %v356, 4294901760
        %v502 = vsub.f32 %v356, %v501
        %v503 = vand.u32 %v502, 4294901760
        %v504 = vsub.f32 %v502, %v503
        %v505 = vand.u32 %v504, 4294901760
        %506 = vmatmul.mubr.f32.gmra.mrb[0].mxu0 %v505
        %v507 = vpop.f32.mrb[0].mxu0
        %v508 = vadd.f32 %v397, %v507
        %v509 = vpop.f32.mrb[0].mxu0
        %v510 = vadd.f32 %v401, %v509
        %511 = vmatprep.mubr.f32.mxu0 0.0
        %v512 = vand.u32 %v357, 4294901760
        %v513 = vsub.f32 %v357, %v512
        %v514 = vand.u32 %v513, 4294901760
        %v515 = vsub.f32 %v513, %v514
        %v516 = vand.u32 %v515, 4294901760
        %517 = vmatmul.mubr.f32.gmra.mrb[0].mxu0 %v516
        %v518 = vpop.f32.mrb[0].mxu0
        %v519 = vadd.f32 %v397, %v518
        %v520 = vpop.f32.mrb[0].mxu0
        %v521 = vadd.f32 %v401, %v520
        %522 = vmatprep.mubr.f32.mxu0 0.0
        %v523 = vand.u32 %v358, 4294901760
        %v524 = vsub.f32 %v358, %v523
        %v525 = vand.u32 %v524, 4294901760
        %v526 = vsub.f32 %v524, %v525
        %v527 = vand.u32 %v526, 4294901760
        %528 = vmatmul.mubr.f32.gmra.mrb[0].mxu0 %v527
        %v529 = vpop.f32.mrb[0].mxu0
        %v530 = vadd.f32 %v397, %v529
        %v531 = vpop.f32.mrb[0].mxu0
        %v532 = vadd.f32 %v401, %v531
        %533 = vmatprep.mubr.f32.mxu0 0.0
        %v534 = vand.u32 %v359, 4294901760
        %v535 = vsub.f32 %v359, %v534
        %v536 = vand.u32 %v535, 4294901760
        %v537 = vsub.f32 %v535, %v536
        %v538 = vand.u32 %v537, 4294901760
        %539 = vmatmul.mubr.f32.gmra.mrb[0].mxu0 %v538
        %v540 = vpop.f32.mrb[0].mxu0
        %v541 = vadd.f32 %v397, %v540
        %v542 = vpop.f32.mrb[0].mxu0
        %v543 = vadd.f32 %v401, %v542
        %544 = vdwg.mxu0
        %v545 = vand.u32 %v361, 4294901760
        %v546 = vsub.f32 %v361, %v545
        %v547 = vand.u32 %v546, 4294901760
        %v548 = vsub.f32 %v546, %v547
        %v549 = vand.u32 %v548, 4294901760
        %550 = vmatprep.subr.mxu0 %v549
        %v551 = vand.u32 %v360, 4294901760
        %v552 = vsub.f32 %v360, %v551
        %v553 = vand.u32 %v552, 4294901760
        %v554 = vsub.f32 %v552, %v553
        %v555 = vand.u32 %v554, 4294901760
        %556 = vmatpush1.msra.mxu0 %v555
        %v557 = vand.u32 %v363, 4294901760
        %v558 = vsub.f32 %v363, %v557
        %v559 = vand.u32 %v558, 4294901760
        %v560 = vsub.f32 %v558, %v559
        %v561 = vand.u32 %v560, 4294901760
        %562 = vmatprep.subr.mxu0 %v561
        %v563 = vand.u32 %v362, 4294901760
        %v564 = vsub.f32 %v362, %v563
        %v565 = vand.u32 %v564, 4294901760
        %v566 = vsub.f32 %v564, %v565
        %v567 = vand.u32 %v566, 4294901760
        %568 = vmatpush1.msra.mxu0 %v567
        %v569 = vand.u32 %v365, 4294901760
        %v570 = vsub.f32 %v365, %v569
        %v571 = vand.u32 %v570, 4294901760
        %v572 = vsub.f32 %v570, %v571
        %v573 = vand.u32 %v572, 4294901760
        %574 = vmatprep.subr.mxu0 %v573
        %v575 = vand.u32 %v364, 4294901760
        %v576 = vsub.f32 %v364, %v575
        %v577 = vand.u32 %v576, 4294901760
        %v578 = vsub.f32 %v576, %v577
        %v579 = vand.u32 %v578, 4294901760
        %580 = vmatpush1.msra.mxu0 %v579
        %v581 = vand.u32 %v367, 4294901760
        %v582 = vsub.f32 %v367, %v581
        %v583 = vand.u32 %v582, 4294901760
        %v584 = vsub.f32 %v582, %v583
        %v585 = vand.u32 %v584, 4294901760
        %586 = vmatprep.subr.mxu0 %v585
        %v587 = vand.u32 %v366, 4294901760
        %v588 = vsub.f32 %v366, %v587
        %v589 = vand.u32 %v588, 4294901760
        %v590 = vsub.f32 %v588, %v589
        %v591 = vand.u32 %v590, 4294901760
        %592 = vmatpush1.msra.mxu0 %v591
        %v593 = vand.u32 %v369, 4294901760
        %v594 = vsub.f32 %v369, %v593
        %v595 = vand.u32 %v594, 4294901760
        %v596 = vsub.f32 %v594, %v595
        %v597 = vand.u32 %v596, 4294901760
        %598 = vmatprep.subr.mxu0 %v597
        %v599 = vand.u32 %v368, 4294901760
        %v600 = vsub.f32 %v368, %v599
        %v601 = vand.u32 %v600, 4294901760
        %v602 = vsub.f32 %v600, %v601
        %v603 = vand.u32 %v602, 4294901760
        %604 = vmatpush1.msra.mxu0 %v603
        %v605 = vand.u32 %v371, 4294901760
        %v606 = vsub.f32 %v371, %v605
        %v607 = vand.u32 %v606, 4294901760
        %v608 = vsub.f32 %v606, %v607
        %v609 = vand.u32 %v608, 4294901760
        %610 = vmatprep.subr.mxu0 %v609
        %v611 = vand.u32 %v370, 4294901760
        %v612 = vsub.f32 %v370, %v611
        %v613 = vand.u32 %v612, 4294901760
        %v614 = vsub.f32 %v612, %v613
        %v615 = vand.u32 %v614, 4294901760
        %616 = vmatpush1.msra.mxu0 %v615
        %v617 = vand.u32 %v373, 4294901760
        %v618 = vsub.f32 %v373, %v617
        %v619 = vand.u32 %v618, 4294901760
        %v620 = vsub.f32 %v618, %v619
        %v621 = vand.u32 %v620, 4294901760
        %622 = vmatprep.subr.mxu0 %v621
        %v623 = vand.u32 %v372, 4294901760
        %v624 = vsub.f32 %v372, %v623
        %v625 = vand.u32 %v624, 4294901760
        %v626 = vsub.f32 %v624, %v625
        %v627 = vand.u32 %v626, 4294901760
        %628 = vmatpush1.msra.mxu0 %v627
        %v629 = vand.u32 %v375, 4294901760
        %v630 = vsub.f32 %v375, %v629
        %v631 = vand.u32 %v630, 4294901760
        %v632 = vsub.f32 %v630, %v631
        %v633 = vand.u32 %v632, 4294901760
        %634 = vmatprep.subr.mxu0 %v633
        %v635 = vand.u32 %v374, 4294901760
        %v636 = vsub.f32 %v374, %v635
        %v637 = vand.u32 %v636, 4294901760
        %v638 = vsub.f32 %v636, %v637
        %v639 = vand.u32 %v638, 4294901760
        %640 = vmatpush1.msra.mxu0 %v639
        %v641 = vand.u32 %v377, 4294901760
        %v642 = vsub.f32 %v377, %v641
        %v643 = vand.u32 %v642, 4294901760
        %v644 = vsub.f32 %v642, %v643
        %v645 = vand.u32 %v644, 4294901760
        %646 = vmatprep.subr.mxu0 %v645
        %v647 = vand.u32 %v376, 4294901760
        %v648 = vsub.f32 %v376, %v647
        %v649 = vand.u32 %v648, 4294901760
        %v650 = vsub.f32 %v648, %v649
        %v651 = vand.u32 %v650, 4294901760
        %652 = vmatpush1.msra.mxu0 %v651
        %v653 = vand.u32 %v379, 4294901760
        %v654 = vsub.f32 %v379, %v653
        %v655 = vand.u32 %v654, 4294901760
        %v656 = vsub.f32 %v654, %v655
        %v657 = vand.u32 %v656, 4294901760
        %658 = vmatprep.subr.mxu0 %v657
        %v659 = vand.u32 %v378, 4294901760
        %v660 = vsub.f32 %v378, %v659
        %v661 = vand.u32 %v660, 4294901760
        %v662 = vsub.f32 %v660, %v661
        %v663 = vand.u32 %v662, 4294901760
        %664 = vmatpush1.msra.mxu0 %v663
        %v665 = vand.u32 %v381, 4294901760
        %v666 = vsub.f32 %v381, %v665
        %v667 = vand.u32 %v666, 4294901760
        %v668 = vsub.f32 %v666, %v667
        %v669 = vand.u32 %v668, 4294901760
        %670 = vmatprep.subr.mxu0 %v669
        %v671 = vand.u32 %v380, 4294901760
        %v672 = vsub.f32 %v380, %v671
        %v673 = vand.u32 %v672, 4294901760
        %v674 = vsub.f32 %v672, %v673
        %v675 = vand.u32 %v674, 4294901760
        %676 = vmatpush1.msra.mxu0 %v675
        %v677 = vand.u32 %v383, 4294901760
        %v678 = vsub.f32 %v383, %v677
        %v679 = vand.u32 %v678, 4294901760
        %v680 = vsub.f32 %v678, %v679
        %v681 = vand.u32 %v680, 4294901760
        %682 = vmatprep.subr.mxu0 %v681
        %v683 = vand.u32 %v382, 4294901760
        %v684 = vsub.f32 %v382, %v683
        %v685 = vand.u32 %v684, 4294901760
        %v686 = vsub.f32 %v684, %v685
        %v687 = vand.u32 %v686, 4294901760
        %688 = vmatpush1.msra.mxu0 %v687
        %v689 = vand.u32 %v385, 4294901760
        %v690 = vsub.f32 %v385, %v689
        %v691 = vand.u32 %v690, 4294901760
        %v692 = vsub.f32 %v690, %v691
        %v693 = vand.u32 %v692, 4294901760
        %694 = vmatprep.subr.mxu0 %v693
        %v695 = vand.u32 %v384, 4294901760
        %v696 = vsub.f32 %v384, %v695
        %v697 = vand.u32 %v696, 4294901760
        %v698 = vsub.f32 %v696, %v697
        %v699 = vand.u32 %v698, 4294901760
        %700 = vmatpush1.msra.mxu0 %v699
        %v701 = vand.u32 %v387, 4294901760
        %v702 = vsub.f32 %v387, %v701
        %v703 = vand.u32 %v702, 4294901760
        %v704 = vsub.f32 %v702, %v703
        %v705 = vand.u32 %v704, 4294901760
        %706 = vmatprep.subr.mxu0 %v705
        %v707 = vand.u32 %v386, 4294901760
        %v708 = vsub.f32 %v386, %v707
        %v709 = vand.u32 %v708, 4294901760
        %v710 = vsub.f32 %v708, %v709
        %v711 = vand.u32 %v710, 4294901760
        %712 = vmatpush1.msra.mxu0 %v711
        %v713 = vand.u32 %v389, 4294901760
        %v714 = vsub.f32 %v389, %v713
        %v715 = vand.u32 %v714, 4294901760
        %v716 = vsub.f32 %v714, %v715
        %v717 = vand.u32 %v716, 4294901760
        %718 = vmatprep.subr.mxu0 %v717
        %v719 = vand.u32 %v388, 4294901760
        %v720 = vsub.f32 %v388, %v719
        %v721 = vand.u32 %v720, 4294901760
        %v722 = vsub.f32 %v720, %v721
        %v723 = vand.u32 %v722, 4294901760
        %724 = vmatpush1.msra.mxu0 %v723
        %v725 = vand.u32 %v391, 4294901760
        %v726 = vsub.f32 %v391, %v725
        %v727 = vand.u32 %v726, 4294901760
        %v728 = vsub.f32 %v726, %v727
        %v729 = vand.u32 %v728, 4294901760
        %730 = vmatprep.subr.mxu0 %v729
        %v731 = vand.u32 %v390, 4294901760
        %v732 = vsub.f32 %v390, %v731
        %v733 = vand.u32 %v732, 4294901760
        %v734 = vsub.f32 %v732, %v733
        %v735 = vand.u32 %v734, 4294901760
        %736 = vmatpush1.msra.mxu0 %v735
        %737 = vmatprep.subr.mxu0 0.0
        %738 = vmatpush1.msra.mxu0 0.0
        %739 = vmatprep.subr.mxu0 0.0
        %740 = vmatpush1.msra.mxu0 0.0
        %741 = vmatprep.subr.mxu0 0.0
        %742 = vmatpush1.msra.mxu0 0.0
        %743 = vmatprep.subr.mxu0 0.0
        %744 = vmatpush1.msra.mxu0 0.0
        %745 = vmatprep.subr.mxu0 0.0
        %746 = vmatpush1.msra.mxu0 0.0
        %747 = vmatprep.subr.mxu0 0.0
        %748 = vmatpush1.msra.mxu0 0.0
        %749 = vmatprep.subr.mxu0 0.0
        %750 = vmatpush1.msra.mxu0 0.0
        %751 = vmatprep.subr.mxu0 0.0
        %752 = vmatpush1.msra.mxu0 0.0
        %753 = vmatprep.subr.mxu0 0.0
        %754 = vmatpush1.msra.mxu0 0.0
        %755 = vmatprep.subr.mxu0 0.0
        %756 = vmatpush1.msra.mxu0 0.0
        %757 = vmatprep.subr.mxu0 0.0
        %758 = vmatpush1.msra.mxu0 0.0
        %759 = vmatprep.subr.mxu0 0.0
        %760 = vmatpush1.msra.mxu0 0.0
        %761 = vmatprep.subr.mxu0 0.0
        %762 = vmatpush1.msra.mxu0 0.0
        %763 = vmatprep.subr.mxu0 0.0
        %764 = vmatpush1.msra.mxu0 0.0
        %765 = vmatprep.subr.mxu0 0.0
        %766 = vmatpush1.msra.mxu0 0.0
        %767 = vmatprep.subr.mxu0 0.0
        %768 = vmatpush1.msra.mxu0 0.0
        %769 = vmatprep.mubr.f32.mxu0 0.0
        %v770 = vand.u32 %v356, 4294901760
        %771 = vmatmul.mubr.f32.gmra.mrb[0].mxu0 %v770
        %v772 = vpop.f32.mrb[0].mxu0
        %v773 = vadd.f32 %v508, %v772
        %v774 = vpop.f32.mrb[0].mxu0
        %v775 = vadd.f32 %v510, %v774
        %776 = vmatprep.mubr.f32.mxu0 0.0
        %v777 = vand.u32 %v357, 4294901760
        %778 = vmatmul.mubr.f32.gmra.mrb[0].mxu0 %v777
        %v779 = vpop.f32.mrb[0].mxu0
        %v780 = vadd.f32 %v519, %v779
        %v781 = vpop.f32.mrb[0].mxu0
        %v782 = vadd.f32 %v521, %v781
        %783 = vmatprep.mubr.f32.mxu0 0.0
        %v784 = vand.u32 %v358, 4294901760
        %785 = vmatmul.mubr.f32.gmra.mrb[0].mxu0 %v784
        %v786 = vpop.f32.mrb[0].mxu0
        %v787 = vadd.f32 %v530, %v786
        %v788 = vpop.f32.mrb[0].mxu0
        %v789 = vadd.f32 %v532, %v788
        %790 = vmatprep.mubr.f32.mxu0 0.0
        %v791 = vand.u32 %v359, 4294901760
        %792 = vmatmul.mubr.f32.gmra.mrb[0].mxu0 %v791
        %v793 = vpop.f32.mrb[0].mxu0
        %v794 = vadd.f32 %v541, %v793
        %v795 = vpop.f32.mrb[0].mxu0
        %v796 = vadd.f32 %v543, %v795
        %797 = vdwg.mxu0
        %v798 = vand.u32 %v361, 4294901760
        %v799 = vsub.f32 %v361, %v798
        %800 = vmatprep.subr.mxu0 %v799
        %v801 = vand.u32 %v360, 4294901760
        %v802 = vsub.f32 %v360, %v801
        %803 = vmatpush1.msra.mxu0 %v802
        %v804 = vand.u32 %v363, 4294901760
        %v805 = vsub.f32 %v363, %v804
        %806 = vmatprep.subr.mxu0 %v805
        %v807 = vand.u32 %v362, 4294901760
        %v808 = vsub.f32 %v362, %v807
        %809 = vmatpush1.msra.mxu0 %v808
        %v810 = vand.u32 %v365, 4294901760
        %v811 = vsub.f32 %v365, %v810
        %812 = vmatprep.subr.mxu0 %v811
        %v813 = vand.u32 %v364, 4294901760
        %v814 = vsub.f32 %v364, %v813
        %815 = vmatpush1.msra.mxu0 %v814
        %v816 = vand.u32 %v367, 4294901760
        %v817 = vsub.f32 %v367, %v816
        %818 = vmatprep.subr.mxu0 %v817
        %v819 = vand.u32 %v366, 4294901760
        %v820 = vsub.f32 %v366, %v819
        %821 = vmatpush1.msra.mxu0 %v820
        %v822 = vand.u32 %v369, 4294901760
        %v823 = vsub.f32 %v369, %v822
        %824 = vmatprep.subr.mxu0 %v823
        %v825 = vand.u32 %v368, 4294901760
        %v826 = vsub.f32 %v368, %v825
        %827 = vmatpush1.msra.mxu0 %v826
        %v828 = vand.u32 %v371, 4294901760
        %v829 = vsub.f32 %v371, %v828
        %830 = vmatprep.subr.mxu0 %v829
        %v831 = vand.u32 %v370, 4294901760
        %v832 = vsub.f32 %v370, %v831
        %833 = vmatpush1.msra.mxu0 %v832
        %v834 = vand.u32 %v373, 4294901760
        %v835 = vsub.f32 %v373, %v834
        %836 = vmatprep.subr.mxu0 %v835
        %v837 = vand.u32 %v372, 4294901760
        %v838 = vsub.f32 %v372, %v837
        %839 = vmatpush1.msra.mxu0 %v838
        %v840 = vand.u32 %v375, 4294901760
        %v841 = vsub.f32 %v375, %v840
        %842 = vmatprep.subr.mxu0 %v841
        %v843 = vand.u32 %v374, 4294901760
        %v844 = vsub.f32 %v374, %v843
        %845 = vmatpush1.msra.mxu0 %v844
        %v846 = vand.u32 %v377, 4294901760
        %v847 = vsub.f32 %v377, %v846
        %848 = vmatprep.subr.mxu0 %v847
        %v849 = vand.u32 %v376, 4294901760
        %v850 = vsub.f32 %v376, %v849
        %851 = vmatpush1.msra.mxu0 %v850
        %v852 = vand.u32 %v379, 4294901760
        %v853 = vsub.f32 %v379, %v852
        %854 = vmatprep.subr.mxu0 %v853
        %v855 = vand.u32 %v378, 4294901760
        %v856 = vsub.f32 %v378, %v855
        %857 = vmatpush1.msra.mxu0 %v856
        %v858 = vand.u32 %v381, 4294901760
        %v859 = vsub.f32 %v381, %v858
        %860 = vmatprep.subr.mxu0 %v859
        %v861 = vand.u32 %v380, 4294901760
        %v862 = vsub.f32 %v380, %v861
        %863 = vmatpush1.msra.mxu0 %v862
        %v864 = vand.u32 %v383, 4294901760
        %v865 = vsub.f32 %v383, %v864
        %866 = vmatprep.subr.mxu0 %v865
        %v867 = vand.u32 %v382, 4294901760
        %v868 = vsub.f32 %v382, %v867
        %869 = vmatpush1.msra.mxu0 %v868
        %v870 = vand.u32 %v385, 4294901760
        %v871 = vsub.f32 %v385, %v870
        %872 = vmatprep.subr.mxu0 %v871
        %v873 = vand.u32 %v384, 4294901760
        %v874 = vsub.f32 %v384, %v873
        %875 = vmatpush1.msra.mxu0 %v874
        %v876 = vand.u32 %v387, 4294901760
        %v877 = vsub.f32 %v387, %v876
        %878 = vmatprep.subr.mxu0 %v877
        %v879 = vand.u32 %v386, 4294901760
        %v880 = vsub.f32 %v386, %v879
        %881 = vmatpush1.msra.mxu0 %v880
        %v882 = vand.u32 %v389, 4294901760
        %v883 = vsub.f32 %v389, %v882
        %884 = vmatprep.subr.mxu0 %v883
        %v885 = vand.u32 %v388, 4294901760
        %v886 = vsub.f32 %v388, %v885
        %887 = vmatpush1.msra.mxu0 %v886
        %v888 = vand.u32 %v391, 4294901760
        %v889 = vsub.f32 %v391, %v888
        %890 = vmatprep.subr.mxu0 %v889
        %v891 = vand.u32 %v390, 4294901760
        %v892 = vsub.f32 %v390, %v891
        %893 = vmatpush1.msra.mxu0 %v892
        %894 = vmatprep.subr.mxu0 0.0
        %895 = vmatpush1.msra.mxu0 0.0
        %896 = vmatprep.subr.mxu0 0.0
        %897 = vmatpush1.msra.mxu0 0.0
        %898 = vmatprep.subr.mxu0 0.0
        %899 = vmatpush1.msra.mxu0 0.0
        %900 = vmatprep.subr.mxu0 0.0
        %901 = vmatpush1.msra.mxu0 0.0
        %902 = vmatprep.subr.mxu0 0.0
        %903 = vmatpush1.msra.mxu0 0.0
        %904 = vmatprep.subr.mxu0 0.0
        %905 = vmatpush1.msra.mxu0 0.0
        %906 = vmatprep.subr.mxu0 0.0
        %907 = vmatpush1.msra.mxu0 0.0
        %908 = vmatprep.subr.mxu0 0.0
        %909 = vmatpush1.msra.mxu0 0.0
        %910 = vmatprep.subr.mxu0 0.0
        %911 = vmatpush1.msra.mxu0 0.0
        %912 = vmatprep.subr.mxu0 0.0
        %913 = vmatpush1.msra.mxu0 0.0
        %914 = vmatprep.subr.mxu0 0.0
        %915 = vmatpush1.msra.mxu0 0.0
        %916 = vmatprep.subr.mxu0 0.0
        %917 = vmatpush1.msra.mxu0 0.0
        %918 = vmatprep.subr.mxu0 0.0
        %919 = vmatpush1.msra.mxu0 0.0
        %920 = vmatprep.subr.mxu0 0.0
        %921 = vmatpush1.msra.mxu0 0.0
        %922 = vmatprep.subr.mxu0 0.0
        %923 = vmatpush1.msra.mxu0 0.0
        %924 = vmatprep.subr.mxu0 0.0
        %925 = vmatpush1.msra.mxu0 0.0
        %926 = vmatprep.mubr.f32.mxu0 0.0
        %v927 = vand.u32 %v356, 4294901760
        %v928 = vsub.f32 %v356, %v927
        %929 = vmatmul.mubr.f32.gmra.mrb[0].mxu0 %v928
        %v930 = vpop.f32.mrb[0].mxu0
        %v931 = vadd.f32 %v773, %v930
        %v932 = vpop.f32.mrb[0].mxu0
        %v933 = vadd.f32 %v775, %v932
        %934 = vmatprep.mubr.f32.mxu0 0.0
        %v935 = vand.u32 %v357, 4294901760
        %v936 = vsub.f32 %v357, %v935
        %937 = vmatmul.mubr.f32.gmra.mrb[0].mxu0 %v936
        %v938 = vpop.f32.mrb[0].mxu0
        %v939 = vadd.f32 %v780, %v938
        %v940 = vpop.f32.mrb[0].mxu0
        %v941 = vadd.f32 %v782, %v940
        %942 = vmatprep.mubr.f32.mxu0 0.0
        %v943 = vand.u32 %v358, 4294901760
        %v944 = vsub.f32 %v358, %v943
        %945 = vmatmul.mubr.f32.gmra.mrb[0].mxu0 %v944
        %v946 = vpop.f32.mrb[0].mxu0
        %v947 = vadd.f32 %v787, %v946
        %v948 = vpop.f32.mrb[0].mxu0
        %v949 = vadd.f32 %v789, %v948
        %950 = vmatprep.mubr.f32.mxu0 0.0
        %v951 = vand.u32 %v359, 4294901760
        %v952 = vsub.f32 %v359, %v951
        %953 = vmatmul.mubr.f32.gmra.mrb[0].mxu0 %v952
        %v954 = vpop.f32.mrb[0].mxu0
        %v955 = vadd.f32 %v794, %v954
        %v956 = vpop.f32.mrb[0].mxu0
        %v957 = vadd.f32 %v796, %v956
        %958 = vdwg.mxu0
        %v959 = vand.u32 %v361, 4294901760
        %960 = vmatprep.subr.mxu0 %v959
        %v961 = vand.u32 %v360, 4294901760
        %962 = vmatpush1.msra.mxu0 %v961
        %v963 = vand.u32 %v363, 4294901760
        %964 = vmatprep.subr.mxu0 %v963
        %v965 = vand.u32 %v362, 4294901760
        %966 = vmatpush1.msra.mxu0 %v965
        %v967 = vand.u32 %v365, 4294901760
        %968 = vmatprep.subr.mxu0 %v967
        %v969 = vand.u32 %v364, 4294901760
        %970 = vmatpush1.msra.mxu0 %v969
        %v971 = vand.u32 %v367, 4294901760
        %972 = vmatprep.subr.mxu0 %v971
        %v973 = vand.u32 %v366, 4294901760
        %974 = vmatpush1.msra.mxu0 %v973
        %v975 = vand.u32 %v369, 4294901760
        %976 = vmatprep.subr.mxu0 %v975
        %v977 = vand.u32 %v368, 4294901760
        %978 = vmatpush1.msra.mxu0 %v977
        %v979 = vand.u32 %v371, 4294901760
        %980 = vmatprep.subr.mxu0 %v979
        %v981 = vand.u32 %v370, 4294901760
        %982 = vmatpush1.msra.mxu0 %v981
        %v983 = vand.u32 %v373, 4294901760
        %984 = vmatprep.subr.mxu0 %v983
        %v985 = vand.u32 %v372, 4294901760
        %986 = vmatpush1.msra.mxu0 %v985
        %v987 = vand.u32 %v375, 4294901760
        %988 = vmatprep.subr.mxu0 %v987
        %v989 = vand.u32 %v374, 4294901760
        %990 = vmatpush1.msra.mxu0 %v989
        %v991 = vand.u32 %v377, 4294901760
        %992 = vmatprep.subr.mxu0 %v991
        %v993 = vand.u32 %v376, 4294901760
        %994 = vmatpush1.msra.mxu0 %v993
        %v995 = vand.u32 %v379, 4294901760
        %996 = vmatprep.subr.mxu0 %v995
        %v997 = vand.u32 %v378, 4294901760
        %998 = vmatpush1.msra.mxu0 %v997
        %v999 = vand.u32 %v381, 4294901760
        %1000 = vmatprep.subr.mxu0 %v999
        %v1001 = vand.u32 %v380, 4294901760
        %1002 = vmatpush1.msra.mxu0 %v1001
        %v1003 = vand.u32 %v383, 4294901760
        %1004 = vmatprep.subr.mxu0 %v1003
        %v1005 = vand.u32 %v382, 4294901760
        %1006 = vmatpush1.msra.mxu0 %v1005
        %v1007 = vand.u32 %v385, 4294901760
        %1008 = vmatprep.subr.mxu0 %v1007
        %v1009 = vand.u32 %v384, 4294901760
        %1010 = vmatpush1.msra.mxu0 %v1009
        %v1011 = vand.u32 %v387, 4294901760
        %1012 = vmatprep.subr.mxu0 %v1011
        %v1013 = vand.u32 %v386, 4294901760
        %1014 = vmatpush1.msra.mxu0 %v1013
        %v1015 = vand.u32 %v389, 4294901760
        %1016 = vmatprep.subr.mxu0 %v1015
        %v1017 = vand.u32 %v388, 4294901760
        %1018 = vmatpush1.msra.mxu0 %v1017
        %v1019 = vand.u32 %v391, 4294901760
        %1020 = vmatprep.subr.mxu0 %v1019
        %v1021 = vand.u32 %v390, 4294901760
        %1022 = vmatpush1.msra.mxu0 %v1021
        %1023 = vmatprep.subr.mxu0 0.0
        %1024 = vmatpush1.msra.mxu0 0.0
        %1025 = vmatprep.subr.mxu0 0.0
        %1026 = vmatpush1.msra.mxu0 0.0
        %1027 = vmatprep.subr.mxu0 0.0
        %1028 = vmatpush1.msra.mxu0 0.0
        %1029 = vmatprep.subr.mxu0 0.0
        %1030 = vmatpush1.msra.mxu0 0.0
        %1031 = vmatprep.subr.mxu0 0.0
        %1032 = vmatpush1.msra.mxu0 0.0
        %1033 = vmatprep.subr.mxu0 0.0
        %1034 = vmatpush1.msra.mxu0 0.0
        %1035 = vmatprep.subr.mxu0 0.0
        %1036 = vmatpush1.msra.mxu0 0.0
        %1037 = vmatprep.subr.mxu0 0.0
        %1038 = vmatpush1.msra.mxu0 0.0
        %1039 = vmatprep.subr.mxu0 0.0
        %1040 = vmatpush1.msra.mxu0 0.0
        %1041 = vmatprep.subr.mxu0 0.0
        %1042 = vmatpush1.msra.mxu0 0.0
        %1043 = vmatprep.subr.mxu0 0.0
        %1044 = vmatpush1.msra.mxu0 0.0
        %1045 = vmatprep.subr.mxu0 0.0
        %1046 = vmatpush1.msra.mxu0 0.0
        %1047 = vmatprep.subr.mxu0 0.0
        %1048 = vmatpush1.msra.mxu0 0.0
        %1049 = vmatprep.subr.mxu0 0.0
        %1050 = vmatpush1.msra.mxu0 0.0
        %1051 = vmatprep.subr.mxu0 0.0
        %1052 = vmatpush1.msra.mxu0 0.0
        %1053 = vmatprep.subr.mxu0 0.0
        %1054 = vmatpush1.msra.mxu0 0.0
        %1055 = vmatprep.mubr.f32.mxu0 0.0
        %v1056 = vand.u32 %v356, 4294901760
        %v1057 = vsub.f32 %v356, %v1056
        %v1058 = vand.u32 %v1057, 4294901760
        %1059 = vmatmul.mubr.f32.gmra.mrb[0].mxu0 %v1058
        %v1060 = vpop.f32.mrb[0].mxu0
        %v1061 = vadd.f32 %v931, %v1060
        %v1062 = vpop.f32.mrb[0].mxu0
        %v1063 = vadd.f32 %v933, %v1062
        %1064 = vmatprep.mubr.f32.mxu0 0.0
        %v1065 = vand.u32 %v357, 4294901760
        %v1066 = vsub.f32 %v357, %v1065
        %v1067 = vand.u32 %v1066, 4294901760
        %1068 = vmatmul.mubr.f32.gmra.mrb[0].mxu0 %v1067
        %v1069 = vpop.f32.mrb[0].mxu0
        %v1070 = vadd.f32 %v939, %v1069
        %v1071 = vpop.f32.mrb[0].mxu0
        %v1072 = vadd.f32 %v941, %v1071
        %1073 = vmatprep.mubr.f32.mxu0 0.0
        %v1074 = vand.u32 %v358, 4294901760
        %v1075 = vsub.f32 %v358, %v1074
        %v1076 = vand.u32 %v1075, 4294901760
        %1077 = vmatmul.mubr.f32.gmra.mrb[0].mxu0 %v1076
        %v1078 = vpop.f32.mrb[0].mxu0
        %v1079 = vadd.f32 %v947, %v1078
        %v1080 = vpop.f32.mrb[0].mxu0
        %v1081 = vadd.f32 %v949, %v1080
        %1082 = vmatprep.mubr.f32.mxu0 0.0
        %v1083 = vand.u32 %v359, 4294901760
        %v1084 = vsub.f32 %v359, %v1083
        %v1085 = vand.u32 %v1084, 4294901760
        %1086 = vmatmul.mubr.f32.gmra.mrb[0].mxu0 %v1085
        %v1087 = vpop.f32.mrb[0].mxu0
        %v1088 = vadd.f32 %v955, %v1087
        %v1089 = vpop.f32.mrb[0].mxu0
        %v1090 = vadd.f32 %v957, %v1089
        %1091 = vdwg.mxu0
        %v1092 = vand.u32 %v361, 4294901760
        %v1093 = vsub.f32 %v361, %v1092
        %v1094 = vand.u32 %v1093, 4294901760
        %1095 = vmatprep.subr.mxu0 %v1094
        %v1096 = vand.u32 %v360, 4294901760
        %v1097 = vsub.f32 %v360, %v1096
        %v1098 = vand.u32 %v1097, 4294901760
        %1099 = vmatpush1.msra.mxu0 %v1098
        %v1100 = vand.u32 %v363, 4294901760
        %v1101 = vsub.f32 %v363, %v1100
        %v1102 = vand.u32 %v1101, 4294901760
        %1103 = vmatprep.subr.mxu0 %v1102
        %v1104 = vand.u32 %v362, 4294901760
        %v1105 = vsub.f32 %v362, %v1104
        %v1106 = vand.u32 %v1105, 4294901760
        %1107 = vmatpush1.msra.mxu0 %v1106
        %v1108 = vand.u32 %v365, 4294901760
        %v1109 = vsub.f32 %v365, %v1108
        %v1110 = vand.u32 %v1109, 4294901760
        %1111 = vmatprep.subr.mxu0 %v1110
        %v1112 = vand.u32 %v364, 4294901760
        %v1113 = vsub.f32 %v364, %v1112
        %v1114 = vand.u32 %v1113, 4294901760
        %1115 = vmatpush1.msra.mxu0 %v1114
        %v1116 = vand.u32 %v367, 4294901760
        %v1117 = vsub.f32 %v367, %v1116
        %v1118 = vand.u32 %v1117, 4294901760
        %1119 = vmatprep.subr.mxu0 %v1118
        %v1120 = vand.u32 %v366, 4294901760
        %v1121 = vsub.f32 %v366, %v1120
        %v1122 = vand.u32 %v1121, 4294901760
        %1123 = vmatpush1.msra.mxu0 %v1122
        %v1124 = vand.u32 %v369, 4294901760
        %v1125 = vsub.f32 %v369, %v1124
        %v1126 = vand.u32 %v1125, 4294901760
        %1127 = vmatprep.subr.mxu0 %v1126
        %v1128 = vand.u32 %v368, 4294901760
        %v1129 = vsub.f32 %v368, %v1128
        %v1130 = vand.u32 %v1129, 4294901760
        %1131 = vmatpush1.msra.mxu0 %v1130
        %v1132 = vand.u32 %v371, 4294901760
        %v1133 = vsub.f32 %v371, %v1132
        %v1134 = vand.u32 %v1133, 4294901760
        %1135 = vmatprep.subr.mxu0 %v1134
        %v1136 = vand.u32 %v370, 4294901760
        %v1137 = vsub.f32 %v370, %v1136
        %v1138 = vand.u32 %v1137, 4294901760
        %1139 = vmatpush1.msra.mxu0 %v1138
        %v1140 = vand.u32 %v373, 4294901760
        %v1141 = vsub.f32 %v373, %v1140
        %v1142 = vand.u32 %v1141, 4294901760
        %1143 = vmatprep.subr.mxu0 %v1142
        %v1144 = vand.u32 %v372, 4294901760
        %v1145 = vsub.f32 %v372, %v1144
        %v1146 = vand.u32 %v1145, 4294901760
        %1147 = vmatpush1.msra.mxu0 %v1146
        %v1148 = vand.u32 %v375, 4294901760
        %v1149 = vsub.f32 %v375, %v1148
        %v1150 = vand.u32 %v1149, 4294901760
        %1151 = vmatprep.subr.mxu0 %v1150
        %v1152 = vand.u32 %v374, 4294901760
        %v1153 = vsub.f32 %v374, %v1152
        %v1154 = vand.u32 %v1153, 4294901760
        %1155 = vmatpush1.msra.mxu0 %v1154
        %v1156 = vand.u32 %v377, 4294901760
        %v1157 = vsub.f32 %v377, %v1156
        %v1158 = vand.u32 %v1157, 4294901760
        %1159 = vmatprep.subr.mxu0 %v1158
        %v1160 = vand.u32 %v376, 4294901760
        %v1161 = vsub.f32 %v376, %v1160
        %v1162 = vand.u32 %v1161, 4294901760
        %1163 = vmatpush1.msra.mxu0 %v1162
        %v1164 = vand.u32 %v379, 4294901760
        %v1165 = vsub.f32 %v379, %v1164
        %v1166 = vand.u32 %v1165, 4294901760
        %1167 = vmatprep.subr.mxu0 %v1166
        %v1168 = vand.u32 %v378, 4294901760
        %v1169 = vsub.f32 %v378, %v1168
        %v1170 = vand.u32 %v1169, 4294901760
        %1171 = vmatpush1.msra.mxu0 %v1170
        %v1172 = vand.u32 %v381, 4294901760
        %v1173 = vsub.f32 %v381, %v1172
        %v1174 = vand.u32 %v1173, 4294901760
        %1175 = vmatprep.subr.mxu0 %v1174
        %v1176 = vand.u32 %v380, 4294901760
        %v1177 = vsub.f32 %v380, %v1176
        %v1178 = vand.u32 %v1177, 4294901760
        %1179 = vmatpush1.msra.mxu0 %v1178
        %v1180 = vand.u32 %v383, 4294901760
        %v1181 = vsub.f32 %v383, %v1180
        %v1182 = vand.u32 %v1181, 4294901760
        %1183 = vmatprep.subr.mxu0 %v1182
        %v1184 = vand.u32 %v382, 4294901760
        %v1185 = vsub.f32 %v382, %v1184
        %v1186 = vand.u32 %v1185, 4294901760
        %1187 = vmatpush1.msra.mxu0 %v1186
        %v1188 = vand.u32 %v385, 4294901760
        %v1189 = vsub.f32 %v385, %v1188
        %v1190 = vand.u32 %v1189, 4294901760
        %1191 = vmatprep.subr.mxu0 %v1190
        %v1192 = vand.u32 %v384, 4294901760
        %v1193 = vsub.f32 %v384, %v1192
        %v1194 = vand.u32 %v1193, 4294901760
        %1195 = vmatpush1.msra.mxu0 %v1194
        %v1196 = vand.u32 %v387, 4294901760
        %v1197 = vsub.f32 %v387, %v1196
        %v1198 = vand.u32 %v1197, 4294901760
        %1199 = vmatprep.subr.mxu0 %v1198
        %v1200 = vand.u32 %v386, 4294901760
        %v1201 = vsub.f32 %v386, %v1200
        %v1202 = vand.u32 %v1201, 4294901760
        %1203 = vmatpush1.msra.mxu0 %v1202
        %v1204 = vand.u32 %v389, 4294901760
        %v1205 = vsub.f32 %v389, %v1204
        %v1206 = vand.u32 %v1205, 4294901760
        %1207 = vmatprep.subr.mxu0 %v1206
        %v1208 = vand.u32 %v388, 4294901760
        %v1209 = vsub.f32 %v388, %v1208
        %v1210 = vand.u32 %v1209, 4294901760
        %1211 = vmatpush1.msra.mxu0 %v1210
        %v1212 = vand.u32 %v391, 4294901760
        %v1213 = vsub.f32 %v391, %v1212
        %v1214 = vand.u32 %v1213, 4294901760
        %1215 = vmatprep.subr.mxu0 %v1214
        %v1216 = vand.u32 %v390, 4294901760
        %v1217 = vsub.f32 %v390, %v1216
        %v1218 = vand.u32 %v1217, 4294901760
        %1219 = vmatpush1.msra.mxu0 %v1218
        %1220 = vmatprep.subr.mxu0 0.0
        %1221 = vmatpush1.msra.mxu0 0.0
        %1222 = vmatprep.subr.mxu0 0.0
        %1223 = vmatpush1.msra.mxu0 0.0
        %1224 = vmatprep.subr.mxu0 0.0
        %1225 = vmatpush1.msra.mxu0 0.0
        %1226 = vmatprep.subr.mxu0 0.0
        %1227 = vmatpush1.msra.mxu0 0.0
        %1228 = vmatprep.subr.mxu0 0.0
        %1229 = vmatpush1.msra.mxu0 0.0
        %1230 = vmatprep.subr.mxu0 0.0
        %1231 = vmatpush1.msra.mxu0 0.0
        %1232 = vmatprep.subr.mxu0 0.0
        %1233 = vmatpush1.msra.mxu0 0.0
        %1234 = vmatprep.subr.mxu0 0.0
        %1235 = vmatpush1.msra.mxu0 0.0
        %1236 = vmatprep.subr.mxu0 0.0
        %1237 = vmatpush1.msra.mxu0 0.0
        %1238 = vmatprep.subr.mxu0 0.0
        %1239 = vmatpush1.msra.mxu0 0.0
        %1240 = vmatprep.subr.mxu0 0.0
        %1241 = vmatpush1.msra.mxu0 0.0
        %1242 = vmatprep.subr.mxu0 0.0
        %1243 = vmatpush1.msra.mxu0 0.0
        %1244 = vmatprep.subr.mxu0 0.0
        %1245 = vmatpush1.msra.mxu0 0.0
        %1246 = vmatprep.subr.mxu0 0.0
        %1247 = vmatpush1.msra.mxu0 0.0
        %1248 = vmatprep.subr.mxu0 0.0
        %1249 = vmatpush1.msra.mxu0 0.0
        %1250 = vmatprep.subr.mxu0 0.0
        %1251 = vmatpush1.msra.mxu0 0.0
        %1252 = vmatprep.mubr.f32.mxu0 0.0
        %v1253 = vand.u32 %v356, 4294901760
        %1254 = vmatmul.mubr.f32.gmra.mrb[0].mxu0 %v1253
        %v1255 = vpop.f32.mrb[0].mxu0
        %v1256 = vadd.f32 %v1061, %v1255
        %v1257 = vpop.f32.mrb[0].mxu0
        %v1258 = vadd.f32 %v1063, %v1257
        %1259 = vmatprep.mubr.f32.mxu0 0.0
        %v1260 = vand.u32 %v357, 4294901760
        %1261 = vmatmul.mubr.f32.gmra.mrb[0].mxu0 %v1260
        %v1262 = vpop.f32.mrb[0].mxu0
        %v1263 = vadd.f32 %v1070, %v1262
        %v1264 = vpop.f32.mrb[0].mxu0
        %v1265 = vadd.f32 %v1072, %v1264
        %1266 = vmatprep.mubr.f32.mxu0 0.0
        %v1267 = vand.u32 %v358, 4294901760
        %1268 = vmatmul.mubr.f32.gmra.mrb[0].mxu0 %v1267
        %v1269 = vpop.f32.mrb[0].mxu0
        %v1270 = vadd.f32 %v1079, %v1269
        %v1271 = vpop.f32.mrb[0].mxu0
        %v1272 = vadd.f32 %v1081, %v1271
        %1273 = vmatprep.mubr.f32.mxu0 0.0
        %v1274 = vand.u32 %v359, 4294901760
        %1275 = vmatmul.mubr.f32.gmra.mrb[0].mxu0 %v1274
        %v1276 = vpop.f32.mrb[0].mxu0
        %v1277 = vadd.f32 %v1088, %v1276
        %v1278 = vpop.f32.mrb[0].mxu0
        %v1279 = vadd.f32 %v1090, %v1278
        %1280 = vdwg.mxu0
        %v1281 = vand.u32 %v361, 4294901760
        %1282 = vmatprep.subr.mxu0 %v1281
        %v1283 = vand.u32 %v360, 4294901760
        %1284 = vmatpush1.msra.mxu0 %v1283
        %v1285 = vand.u32 %v363, 4294901760
        %1286 = vmatprep.subr.mxu0 %v1285
        %v1287 = vand.u32 %v362, 4294901760
        %1288 = vmatpush1.msra.mxu0 %v1287
        %v1289 = vand.u32 %v365, 4294901760
        %1290 = vmatprep.subr.mxu0 %v1289
        %v1291 = vand.u32 %v364, 4294901760
        %1292 = vmatpush1.msra.mxu0 %v1291
        %v1293 = vand.u32 %v367, 4294901760
        %1294 = vmatprep.subr.mxu0 %v1293
        %v1295 = vand.u32 %v366, 4294901760
        %1296 = vmatpush1.msra.mxu0 %v1295
        %v1297 = vand.u32 %v369, 4294901760
        %1298 = vmatprep.subr.mxu0 %v1297
        %v1299 = vand.u32 %v368, 4294901760
        %1300 = vmatpush1.msra.mxu0 %v1299
        %v1301 = vand.u32 %v371, 4294901760
        %1302 = vmatprep.subr.mxu0 %v1301
        %v1303 = vand.u32 %v370, 4294901760
        %1304 = vmatpush1.msra.mxu0 %v1303
        %v1305 = vand.u32 %v373, 4294901760
        %1306 = vmatprep.subr.mxu0 %v1305
        %v1307 = vand.u32 %v372, 4294901760
        %1308 = vmatpush1.msra.mxu0 %v1307
        %v1309 = vand.u32 %v375, 4294901760
        %1310 = vmatprep.subr.mxu0 %v1309
        %v1311 = vand.u32 %v374, 4294901760
        %1312 = vmatpush1.msra.mxu0 %v1311
        %v1313 = vand.u32 %v377, 4294901760
        %1314 = vmatprep.subr.mxu0 %v1313
        %v1315 = vand.u32 %v376, 4294901760
        %1316 = vmatpush1.msra.mxu0 %v1315
        %v1317 = vand.u32 %v379, 4294901760
        %1318 = vmatprep.subr.mxu0 %v1317
        %v1319 = vand.u32 %v378, 4294901760
        %1320 = vmatpush1.msra.mxu0 %v1319
        %v1321 = vand.u32 %v381, 4294901760
        %1322 = vmatprep.subr.mxu0 %v1321
        %v1323 = vand.u32 %v380, 4294901760
        %1324 = vmatpush1.msra.mxu0 %v1323
        %v1325 = vand.u32 %v383, 4294901760
        %1326 = vmatprep.subr.mxu0 %v1325
        %v1327 = vand.u32 %v382, 4294901760
        %1328 = vmatpush1.msra.mxu0 %v1327
        %v1329 = vand.u32 %v385, 4294901760
        %1330 = vmatprep.subr.mxu0 %v1329
        %v1331 = vand.u32 %v384, 4294901760
        %1332 = vmatpush1.msra.mxu0 %v1331
        %v1333 = vand.u32 %v387, 4294901760
        %1334 = vmatprep.subr.mxu0 %v1333
        %v1335 = vand.u32 %v386, 4294901760
        %1336 = vmatpush1.msra.mxu0 %v1335
        %v1337 = vand.u32 %v389, 4294901760
        %1338 = vmatprep.subr.mxu0 %v1337
        %v1339 = vand.u32 %v388, 4294901760
        %1340 = vmatpush1.msra.mxu0 %v1339
        %v1341 = vand.u32 %v391, 4294901760
        %1342 = vmatprep.subr.mxu0 %v1341
        %v1343 = vand.u32 %v390, 4294901760
        %1344 = vmatpush1.msra.mxu0 %v1343
        %1345 = vmatprep.subr.mxu0 0.0
        %1346 = vmatpush1.msra.mxu0 0.0
        %1347 = vmatprep.subr.mxu0 0.0
        %1348 = vmatpush1.msra.mxu0 0.0
        %1349 = vmatprep.subr.mxu0 0.0
        %1350 = vmatpush1.msra.mxu0 0.0
        %1351 = vmatprep.subr.mxu0 0.0
        %1352 = vmatpush1.msra.mxu0 0.0
        %1353 = vmatprep.subr.mxu0 0.0
        %1354 = vmatpush1.msra.mxu0 0.0
        %1355 = vmatprep.subr.mxu0 0.0
        %1356 = vmatpush1.msra.mxu0 0.0
        %1357 = vmatprep.subr.mxu0 0.0
        %1358 = vmatpush1.msra.mxu0 0.0
        %1359 = vmatprep.subr.mxu0 0.0
        %1360 = vmatpush1.msra.mxu0 0.0
        %1361 = vmatprep.subr.mxu0 0.0
        %1362 = vmatpush1.msra.mxu0 0.0
        %1363 = vmatprep.subr.mxu0 0.0
        %1364 = vmatpush1.msra.mxu0 0.0
        %1365 = vmatprep.subr.mxu0 0.0
        %1366 = vmatpush1.msra.mxu0 0.0
        %1367 = vmatprep.subr.mxu0 0.0
        %1368 = vmatpush1.msra.mxu0 0.0
        %1369 = vmatprep.subr.mxu0 0.0
        %1370 = vmatpush1.msra.mxu0 0.0
        %1371 = vmatprep.subr.mxu0 0.0
        %1372 = vmatpush1.msra.mxu0 0.0
        %1373 = vmatprep.subr.mxu0 0.0
        %1374 = vmatpush1.msra.mxu0 0.0
        %1375 = vmatprep.subr.mxu0 0.0
        %1376 = vmatpush1.msra.mxu0 0.0
        %1377 = vmatprep.mubr.f32.mxu0 0.0
        %v1378 = vand.u32 %v356, 4294901760
        %1379 = vmatmul.mubr.f32.gmra.mrb[0].mxu0 %v1378
        %v1380 = vpop.f32.mrb[0].mxu0
        %v1381 = vadd.f32 %v1256, %v1380
        %v1382 = vpop.f32.mrb[0].mxu0
        %v1383 = vadd.f32 %v1258, %v1382
        %1384 = vmatprep.mubr.f32.mxu0 0.0
        %v1385 = vand.u32 %v357, 4294901760
        %1386 = vmatmul.mubr.f32.gmra.mrb[0].mxu0 %v1385
        %v1387 = vpop.f32.mrb[0].mxu0
        %v1388 = vadd.f32 %v1263, %v1387
        %v1389 = vpop.f32.mrb[0].mxu0
        %v1390 = vadd.f32 %v1265, %v1389
        %1391 = vmatprep.mubr.f32.mxu0 0.0
        %v1392 = vand.u32 %v358, 4294901760
        %1393 = vmatmul.mubr.f32.gmra.mrb[0].mxu0 %v1392
        %v1394 = vpop.f32.mrb[0].mxu0
        %v1395 = vadd.f32 %v1270, %v1394
        %v1396 = vpop.f32.mrb[0].mxu0
        %v1397 = vadd.f32 %v1272, %v1396
        %1398 = vmatprep.mubr.f32.mxu0 0.0
        %v1399 = vand.u32 %v359, 4294901760
        %1400 = vmatmul.mubr.f32.gmra.mrb[0].mxu0 %v1399
        %v1401 = vpop.f32.mrb[0].mxu0
        %v1402 = vadd.f32 %v1277, %v1401
        %v1403 = vpop.f32.mrb[0].mxu0
        %v1404 = vadd.f32 %v1279, %v1403
        %1405 = vdwg.mxu0
        %v1406 = vmax.f32 %v1381, 0.0
        %v1407 = vmax.f32 %v1383, 0.0
        %v1408 = vmax.f32 %v1388, 0.0
        %v1409 = vmax.f32 %v1390, 0.0
        %v1410 = vmax.f32 %v1395, 0.0
        %v1411 = vmax.f32 %v1397, 0.0
        %v1412 = vmax.f32 %v1402, 0.0
        %v1413 = vmax.f32 %v1404, 0.0
        %v1414 = vld [vmem:[#allocation6] sm:$0xff]
        %v1415 = vld [vmem:[#allocation6 + $0x8] sm:$0xff]
        %v1416 = vld [vmem:[#allocation6 + $0x10] sm:$0xff]
        %v1417 = vld [vmem:[#allocation6 + $0x18] sm:$0xff]
        %v1418 = vld [vmem:[#allocation6 + $0x20] sm:$0xff]
        %v1419 = vld [vmem:[#allocation6 + $0x28] sm:$0xff]
        %v1420 = vld [vmem:[#allocation6 + $0x30] sm:$0xff]
        %v1421 = vld [vmem:[#allocation6 + $0x38] sm:$0xff]
        %v1422 = vld [vmem:[#allocation6 + $0x40] sm:$0xff]
        %v1423 = vld [vmem:[#allocation6 + $0x48] sm:$0xff]
        %v1424 = vld [vmem:[#allocation6 + $0x50] sm:$0xff]
        %v1425 = vld [vmem:[#allocation6 + $0x58] sm:$0xff]
        %v1426 = vld [vmem:[#allocation6 + $0x60] sm:$0xff]
        %v1427 = vld [vmem:[#allocation6 + $0x68] sm:$0xff]
        %v1428 = vld [vmem:[#allocation6 + $0x70] sm:$0xff]
        %v1429 = vld [vmem:[#allocation6 + $0x78] sm:$0xff]
        %v1430 = vld [vmem:[#allocation6 + $0x80] sm:$0xff]
        %v1431 = vld [vmem:[#allocation6 + $0x88] sm:$0xff]
        %v1432 = vld [vmem:[#allocation6 + $0x90] sm:$0xff]
        %v1433 = vld [vmem:[#allocation6 + $0x98] sm:$0xff]
        %v1434 = vld [vmem:[#allocation6 + $0xa0] sm:$0xff]
        %v1435 = vld [vmem:[#allocation6 + $0xa8] sm:$0xff]
        %v1436 = vld [vmem:[#allocation6 + $0xb0] sm:$0xff]
        %v1437 = vld [vmem:[#allocation6 + $0xb8] sm:$0xff]
        %v1438 = vld [vmem:[#allocation6 + $0xc0] sm:$0xff]
        %v1439 = vld [vmem:[#allocation6 + $0xc8] sm:$0xff]
        %v1440 = vld [vmem:[#allocation6 + $0xd0] sm:$0xff]
        %v1441 = vld [vmem:[#allocation6 + $0xd8] sm:$0xff]
        %v1442 = vld [vmem:[#allocation6 + $0xe0] sm:$0xff]
        %v1443 = vld [vmem:[#allocation6 + $0xe8] sm:$0xff]
        %v1444 = vld [vmem:[#allocation6 + $0xf0] sm:$0xff]
        %v1445 = vld [vmem:[#allocation6 + $0xf8] sm:$0xff]
        %v1446 = vld [vmem:[#allocation6 + $0x100] sm:$0xff]
        %v1447 = vld [vmem:[#allocation6 + $0x108] sm:$0xff]
        %v1448 = vld [vmem:[#allocation6 + $0x110] sm:$0xff]
        %v1449 = vld [vmem:[#allocation6 + $0x118] sm:$0xff]
        %v1450 = vld [vmem:[#allocation6 + $0x120] sm:$0xff]
        %v1451 = vld [vmem:[#allocation6 + $0x128] sm:$0xff]
        %v1452 = vld [vmem:[#allocation6 + $0x130] sm:$0xff]
        %v1453 = vld [vmem:[#allocation6 + $0x138] sm:$0xff]
        %v1454 = vld [vmem:[#allocation6 + $0x140] sm:$0xff]
        %v1455 = vld [vmem:[#allocation6 + $0x148] sm:$0xff]
        %v1456 = vld [vmem:[#allocation6 + $0x150] sm:$0xff]
        %v1457 = vld [vmem:[#allocation6 + $0x158] sm:$0xff]
        %v1458 = vld [vmem:[#allocation6 + $0x160] sm:$0xff]
        %v1459 = vld [vmem:[#allocation6 + $0x168] sm:$0xff]
        %v1460 = vld [vmem:[#allocation6 + $0x170] sm:$0xff]
        %v1461 = vld [vmem:[#allocation6 + $0x178] sm:$0xff]
        %v1462 = vld [vmem:[#allocation6 + $0x180] sm:$0xff]
        %v1463 = vld [vmem:[#allocation6 + $0x188] sm:$0xff]
        %v1464 = vld [vmem:[#allocation6 + $0x190] sm:$0xff]
        %v1465 = vld [vmem:[#allocation6 + $0x198] sm:$0xff]
        %v1466 = vld [vmem:[#allocation6 + $0x1a0] sm:$0xff]
        %v1467 = vld [vmem:[#allocation6 + $0x1a8] sm:$0xff]
        %v1468 = vld [vmem:[#allocation6 + $0x1b0] sm:$0xff]
        %v1469 = vld [vmem:[#allocation6 + $0x1b8] sm:$0xff]
        %v1470 = vld [vmem:[#allocation6 + $0x1c0] sm:$0xff]
        %v1471 = vld [vmem:[#allocation6 + $0x1c8] sm:$0xff]
        %v1472 = vld [vmem:[#allocation6 + $0x1d0] sm:$0xff]
        %v1473 = vld [vmem:[#allocation6 + $0x1d8] sm:$0xff]
        %v1474 = vld [vmem:[#allocation6 + $0x1e0] sm:$0xff]
        %v1475 = vld [vmem:[#allocation6 + $0x1e8] sm:$0xff]
        %v1476 = vld [vmem:[#allocation6 + $0x1f0] sm:$0xff]
        %v1477 = vld [vmem:[#allocation6 + $0x1f8] sm:$0xff]
        %v1478 = vld [vmem:[%s5] sm:$0x3]
        %v1480 = vlaneseq
        %v1481 = vshrl.u32 %v1480, 7
        %v1482 = vsub.s32 0, %v1481
        %v1483 = vrot.slane %v1478, %v1482
        %v1484 = vlaneseq
        %v1485 = vshrl.u32 %v1484, 7
        %v1486 = vsub.s32 1, %v1485
        %v1487 = vrot.slane %v1478, %v1486
        %v1490 = vand.u32 %v1415, 4294901760
        %1491 = vmatprep.subr.mxu0 %v1490
        %v1492 = vand.u32 %v1414, 4294901760
        %1493 = vmatpush1.msra.mxu0 %v1492
        %v1494 = vand.u32 %v1417, 4294901760
        %1495 = vmatprep.subr.mxu0 %v1494
        %v1496 = vand.u32 %v1416, 4294901760
        %1497 = vmatpush1.msra.mxu0 %v1496
        %v1498 = vand.u32 %v1419, 4294901760
        %1499 = vmatprep.subr.mxu0 %v1498
        %v1500 = vand.u32 %v1418, 4294901760
        %1501 = vmatpush1.msra.mxu0 %v1500
        %v1502 = vand.u32 %v1421, 4294901760
        %1503 = vmatprep.subr.mxu0 %v1502
        %v1504 = vand.u32 %v1420, 4294901760
        %1505 = vmatpush1.msra.mxu0 %v1504
        %v1506 = vand.u32 %v1423, 4294901760
        %1507 = vmatprep.subr.mxu0 %v1506
        %v1508 = vand.u32 %v1422, 4294901760
        %1509 = vmatpush1.msra.mxu0 %v1508
        %v1510 = vand.u32 %v1425, 4294901760
        %1511 = vmatprep.subr.mxu0 %v1510
        %v1512 = vand.u32 %v1424, 4294901760
        %1513 = vmatpush1.msra.mxu0 %v1512
        %v1514 = vand.u32 %v1427, 4294901760
        %1515 = vmatprep.subr.mxu0 %v1514
        %v1516 = vand.u32 %v1426, 4294901760
        %1517 = vmatpush1.msra.mxu0 %v1516
        %v1518 = vand.u32 %v1429, 4294901760
        %1519 = vmatprep.subr.mxu0 %v1518
        %v1520 = vand.u32 %v1428, 4294901760
        %1521 = vmatpush1.msra.mxu0 %v1520
        %v1522 = vand.u32 %v1431, 4294901760
        %1523 = vmatprep.subr.mxu0 %v1522
        %v1524 = vand.u32 %v1430, 4294901760
        %1525 = vmatpush1.msra.mxu0 %v1524
        %v1526 = vand.u32 %v1433, 4294901760
        %1527 = vmatprep.subr.mxu0 %v1526
        %v1528 = vand.u32 %v1432, 4294901760
        %1529 = vmatpush1.msra.mxu0 %v1528
        %v1530 = vand.u32 %v1435, 4294901760
        %1531 = vmatprep.subr.mxu0 %v1530
        %v1532 = vand.u32 %v1434, 4294901760
        %1533 = vmatpush1.msra.mxu0 %v1532
        %v1534 = vand.u32 %v1437, 4294901760
        %1535 = vmatprep.subr.mxu0 %v1534
        %v1536 = vand.u32 %v1436, 4294901760
        %1537 = vmatpush1.msra.mxu0 %v1536
        %v1538 = vand.u32 %v1439, 4294901760
        %1539 = vmatprep.subr.mxu0 %v1538
        %v1540 = vand.u32 %v1438, 4294901760
        %1541 = vmatpush1.msra.mxu0 %v1540
        %v1542 = vand.u32 %v1441, 4294901760
        %1543 = vmatprep.subr.mxu0 %v1542
        %v1544 = vand.u32 %v1440, 4294901760
        %1545 = vmatpush1.msra.mxu0 %v1544
        %v1546 = vand.u32 %v1443, 4294901760
        %1547 = vmatprep.subr.mxu0 %v1546
        %v1548 = vand.u32 %v1442, 4294901760
        %1549 = vmatpush1.msra.mxu0 %v1548
        %v1550 = vand.u32 %v1445, 4294901760
        %1551 = vmatprep.subr.mxu0 %v1550
        %v1552 = vand.u32 %v1444, 4294901760
        %1553 = vmatpush1.msra.mxu0 %v1552
        %v1554 = vand.u32 %v1447, 4294901760
        %1555 = vmatprep.subr.mxu0 %v1554
        %v1556 = vand.u32 %v1446, 4294901760
        %1557 = vmatpush1.msra.mxu0 %v1556
        %v1558 = vand.u32 %v1449, 4294901760
        %1559 = vmatprep.subr.mxu0 %v1558
        %v1560 = vand.u32 %v1448, 4294901760
        %1561 = vmatpush1.msra.mxu0 %v1560
        %v1562 = vand.u32 %v1451, 4294901760
        %1563 = vmatprep.subr.mxu0 %v1562
        %v1564 = vand.u32 %v1450, 4294901760
        %1565 = vmatpush1.msra.mxu0 %v1564
        %v1566 = vand.u32 %v1453, 4294901760
        %1567 = vmatprep.subr.mxu0 %v1566
        %v1568 = vand.u32 %v1452, 4294901760
        %1569 = vmatpush1.msra.mxu0 %v1568
        %v1570 = vand.u32 %v1455, 4294901760
        %1571 = vmatprep.subr.mxu0 %v1570
        %v1572 = vand.u32 %v1454, 4294901760
        %1573 = vmatpush1.msra.mxu0 %v1572
        %v1574 = vand.u32 %v1457, 4294901760
        %1575 = vmatprep.subr.mxu0 %v1574
        %v1576 = vand.u32 %v1456, 4294901760
        %1577 = vmatpush1.msra.mxu0 %v1576
        %v1578 = vand.u32 %v1459, 4294901760
        %1579 = vmatprep.subr.mxu0 %v1578
        %v1580 = vand.u32 %v1458, 4294901760
        %1581 = vmatpush1.msra.mxu0 %v1580
        %v1582 = vand.u32 %v1461, 4294901760
        %1583 = vmatprep.subr.mxu0 %v1582
        %v1584 = vand.u32 %v1460, 4294901760
        %1585 = vmatpush1.msra.mxu0 %v1584
        %v1586 = vand.u32 %v1463, 4294901760
        %1587 = vmatprep.subr.mxu0 %v1586
        %v1588 = vand.u32 %v1462, 4294901760
        %1589 = vmatpush1.msra.mxu0 %v1588
        %v1590 = vand.u32 %v1465, 4294901760
        %1591 = vmatprep.subr.mxu0 %v1590
        %v1592 = vand.u32 %v1464, 4294901760
        %1593 = vmatpush1.msra.mxu0 %v1592
        %v1594 = vand.u32 %v1467, 4294901760
        %1595 = vmatprep.subr.mxu0 %v1594
        %v1596 = vand.u32 %v1466, 4294901760
        %1597 = vmatpush1.msra.mxu0 %v1596
        %v1598 = vand.u32 %v1469, 4294901760
        %1599 = vmatprep.subr.mxu0 %v1598
        %v1600 = vand.u32 %v1468, 4294901760
        %1601 = vmatpush1.msra.mxu0 %v1600
        %v1602 = vand.u32 %v1471, 4294901760
        %1603 = vmatprep.subr.mxu0 %v1602
        %v1604 = vand.u32 %v1470, 4294901760
        %1605 = vmatpush1.msra.mxu0 %v1604
        %v1606 = vand.u32 %v1473, 4294901760
        %1607 = vmatprep.subr.mxu0 %v1606
        %v1608 = vand.u32 %v1472, 4294901760
        %1609 = vmatpush1.msra.mxu0 %v1608
        %v1610 = vand.u32 %v1475, 4294901760
        %1611 = vmatprep.subr.mxu0 %v1610
        %v1612 = vand.u32 %v1474, 4294901760
        %1613 = vmatpush1.msra.mxu0 %v1612
        %v1614 = vand.u32 %v1477, 4294901760
        %1615 = vmatprep.subr.mxu0 %v1614
        %v1616 = vand.u32 %v1476, 4294901760
        %1617 = vmatpush1.msra.mxu0 %v1616
        %v1618 = vand.u32 %v1407, 4294901760
        %v1619 = vsub.f32 %v1407, %v1618
        %v1620 = vand.u32 %v1619, 4294901760
        %v1621 = vsub.f32 %v1619, %v1620
        %v1622 = vand.u32 %v1621, 4294901760
        %1623 = vmatprep.mubr.f32.mxu0 %v1622
        %v1624 = vand.u32 %v1406, 4294901760
        %v1625 = vsub.f32 %v1406, %v1624
        %v1626 = vand.u32 %v1625, 4294901760
        %v1627 = vsub.f32 %v1625, %v1626
        %v1628 = vand.u32 %v1627, 4294901760
        %1629 = vmatmul.mubr.f32.gmra.mrb[0].mxu0 %v1628
        %v1630 = vpop.f32.mrb[0].mxu0
        %v1631 = vadd.f32 %v1483, %v1630
        %v1632 = vpop.f32.mrb[0].mxu0
        %v1633 = vadd.f32 %v1487, %v1632
        %v1634 = vand.u32 %v1409, 4294901760
        %v1635 = vsub.f32 %v1409, %v1634
        %v1636 = vand.u32 %v1635, 4294901760
        %v1637 = vsub.f32 %v1635, %v1636
        %v1638 = vand.u32 %v1637, 4294901760
        %1639 = vmatprep.mubr.f32.mxu0 %v1638
        %v1640 = vand.u32 %v1408, 4294901760
        %v1641 = vsub.f32 %v1408, %v1640
        %v1642 = vand.u32 %v1641, 4294901760
        %v1643 = vsub.f32 %v1641, %v1642
        %v1644 = vand.u32 %v1643, 4294901760
        %1645 = vmatmul.mubr.f32.gmra.mrb[0].mxu0 %v1644
        %v1646 = vpop.f32.mrb[0].mxu0
        %v1647 = vadd.f32 %v1483, %v1646
        %v1648 = vpop.f32.mrb[0].mxu0
        %v1649 = vadd.f32 %v1487, %v1648
        %v1650 = vand.u32 %v1411, 4294901760
        %v1651 = vsub.f32 %v1411, %v1650
        %v1652 = vand.u32 %v1651, 4294901760
        %v1653 = vsub.f32 %v1651, %v1652
        %v1654 = vand.u32 %v1653, 4294901760
        %1655 = vmatprep.mubr.f32.mxu0 %v1654
        %v1656 = vand.u32 %v1410, 4294901760
        %v1657 = vsub.f32 %v1410, %v1656
        %v1658 = vand.u32 %v1657, 4294901760
        %v1659 = vsub.f32 %v1657, %v1658
        %v1660 = vand.u32 %v1659, 4294901760
        %1661 = vmatmul.mubr.f32.gmra.mrb[0].mxu0 %v1660
        %v1662 = vpop.f32.mrb[0].mxu0
        %v1663 = vadd.f32 %v1483, %v1662
        %v1664 = vpop.f32.mrb[0].mxu0
        %v1665 = vadd.f32 %v1487, %v1664
        %v1666 = vand.u32 %v1413, 4294901760
        %v1667 = vsub.f32 %v1413, %v1666
        %v1668 = vand.u32 %v1667, 4294901760
        %v1669 = vsub.f32 %v1667, %v1668
        %v1670 = vand.u32 %v1669, 4294901760
        %1671 = vmatprep.mubr.f32.mxu0 %v1670
        %v1672 = vand.u32 %v1412, 4294901760
        %v1673 = vsub.f32 %v1412, %v1672
        %v1674 = vand.u32 %v1673, 4294901760
        %v1675 = vsub.f32 %v1673, %v1674
        %v1676 = vand.u32 %v1675, 4294901760
        %1677 = vmatmul.mubr.f32.gmra.mrb[0].mxu0 %v1676
        %v1678 = vpop.f32.mrb[0].mxu0
        %v1679 = vadd.f32 %v1483, %v1678
        %v1680 = vpop.f32.mrb[0].mxu0
        %v1681 = vadd.f32 %v1487, %v1680
        %1682 = vdwg.mxu0
        %v1683 = vand.u32 %v1415, 4294901760
        %v1684 = vsub.f32 %v1415, %v1683
        %v1685 = vand.u32 %v1684, 4294901760
        %v1686 = vsub.f32 %v1684, %v1685
        %v1687 = vand.u32 %v1686, 4294901760
        %1688 = vmatprep.subr.mxu0 %v1687
        %v1689 = vand.u32 %v1414, 4294901760
        %v1690 = vsub.f32 %v1414, %v1689
        %v1691 = vand.u32 %v1690, 4294901760
        %v1692 = vsub.f32 %v1690, %v1691
        %v1693 = vand.u32 %v1692, 4294901760
        %1694 = vmatpush1.msra.mxu0 %v1693
        %v1695 = vand.u32 %v1417, 4294901760
        %v1696 = vsub.f32 %v1417, %v1695
        %v1697 = vand.u32 %v1696, 4294901760
        %v1698 = vsub.f32 %v1696, %v1697
        %v1699 = vand.u32 %v1698, 4294901760
        %1700 = vmatprep.subr.mxu0 %v1699
        %v1701 = vand.u32 %v1416, 4294901760
        %v1702 = vsub.f32 %v1416, %v1701
        %v1703 = vand.u32 %v1702, 4294901760
        %v1704 = vsub.f32 %v1702, %v1703
        %v1705 = vand.u32 %v1704, 4294901760
        %1706 = vmatpush1.msra.mxu0 %v1705
        %v1707 = vand.u32 %v1419, 4294901760
        %v1708 = vsub.f32 %v1419, %v1707
        %v1709 = vand.u32 %v1708, 4294901760
        %v1710 = vsub.f32 %v1708, %v1709
        %v1711 = vand.u32 %v1710, 4294901760
        %1712 = vmatprep.subr.mxu0 %v1711
        %v1713 = vand.u32 %v1418, 4294901760
        %v1714 = vsub.f32 %v1418, %v1713
        %v1715 = vand.u32 %v1714, 4294901760
        %v1716 = vsub.f32 %v1714, %v1715
        %v1717 = vand.u32 %v1716, 4294901760
        %1718 = vmatpush1.msra.mxu0 %v1717
        %v1719 = vand.u32 %v1421, 4294901760
        %v1720 = vsub.f32 %v1421, %v1719
        %v1721 = vand.u32 %v1720, 4294901760
        %v1722 = vsub.f32 %v1720, %v1721
        %v1723 = vand.u32 %v1722, 4294901760
        %1724 = vmatprep.subr.mxu0 %v1723
        %v1725 = vand.u32 %v1420, 4294901760
        %v1726 = vsub.f32 %v1420, %v1725
        %v1727 = vand.u32 %v1726, 4294901760
        %v1728 = vsub.f32 %v1726, %v1727
        %v1729 = vand.u32 %v1728, 4294901760
        %1730 = vmatpush1.msra.mxu0 %v1729
        %v1731 = vand.u32 %v1423, 4294901760
        %v1732 = vsub.f32 %v1423, %v1731
        %v1733 = vand.u32 %v1732, 4294901760
        %v1734 = vsub.f32 %v1732, %v1733
        %v1735 = vand.u32 %v1734, 4294901760
        %1736 = vmatprep.subr.mxu0 %v1735
        %v1737 = vand.u32 %v1422, 4294901760
        %v1738 = vsub.f32 %v1422, %v1737
        %v1739 = vand.u32 %v1738, 4294901760
        %v1740 = vsub.f32 %v1738, %v1739
        %v1741 = vand.u32 %v1740, 4294901760
        %1742 = vmatpush1.msra.mxu0 %v1741
        %v1743 = vand.u32 %v1425, 4294901760
        %v1744 = vsub.f32 %v1425, %v1743
        %v1745 = vand.u32 %v1744, 4294901760
        %v1746 = vsub.f32 %v1744, %v1745
        %v1747 = vand.u32 %v1746, 4294901760
        %1748 = vmatprep.subr.mxu0 %v1747
        %v1749 = vand.u32 %v1424, 4294901760
        %v1750 = vsub.f32 %v1424, %v1749
        %v1751 = vand.u32 %v1750, 4294901760
        %v1752 = vsub.f32 %v1750, %v1751
        %v1753 = vand.u32 %v1752, 4294901760
        %1754 = vmatpush1.msra.mxu0 %v1753
        %v1755 = vand.u32 %v1427, 4294901760
        %v1756 = vsub.f32 %v1427, %v1755
        %v1757 = vand.u32 %v1756, 4294901760
        %v1758 = vsub.f32 %v1756, %v1757
        %v1759 = vand.u32 %v1758, 4294901760
        %1760 = vmatprep.subr.mxu0 %v1759
        %v1761 = vand.u32 %v1426, 4294901760
        %v1762 = vsub.f32 %v1426, %v1761
        %v1763 = vand.u32 %v1762, 4294901760
        %v1764 = vsub.f32 %v1762, %v1763
        %v1765 = vand.u32 %v1764, 4294901760
        %1766 = vmatpush1.msra.mxu0 %v1765
        %v1767 = vand.u32 %v1429, 4294901760
        %v1768 = vsub.f32 %v1429, %v1767
        %v1769 = vand.u32 %v1768, 4294901760
        %v1770 = vsub.f32 %v1768, %v1769
        %v1771 = vand.u32 %v1770, 4294901760
        %1772 = vmatprep.subr.mxu0 %v1771
        %v1773 = vand.u32 %v1428, 4294901760
        %v1774 = vsub.f32 %v1428, %v1773
        %v1775 = vand.u32 %v1774, 4294901760
        %v1776 = vsub.f32 %v1774, %v1775
        %v1777 = vand.u32 %v1776, 4294901760
        %1778 = vmatpush1.msra.mxu0 %v1777
        %v1779 = vand.u32 %v1431, 4294901760
        %v1780 = vsub.f32 %v1431, %v1779
        %v1781 = vand.u32 %v1780, 4294901760
        %v1782 = vsub.f32 %v1780, %v1781
        %v1783 = vand.u32 %v1782, 4294901760
        %1784 = vmatprep.subr.mxu0 %v1783
        %v1785 = vand.u32 %v1430, 4294901760
        %v1786 = vsub.f32 %v1430, %v1785
        %v1787 = vand.u32 %v1786, 4294901760
        %v1788 = vsub.f32 %v1786, %v1787
        %v1789 = vand.u32 %v1788, 4294901760
        %1790 = vmatpush1.msra.mxu0 %v1789
        %v1791 = vand.u32 %v1433, 4294901760
        %v1792 = vsub.f32 %v1433, %v1791
        %v1793 = vand.u32 %v1792, 4294901760
        %v1794 = vsub.f32 %v1792, %v1793
        %v1795 = vand.u32 %v1794, 4294901760
        %1796 = vmatprep.subr.mxu0 %v1795
        %v1797 = vand.u32 %v1432, 4294901760
        %v1798 = vsub.f32 %v1432, %v1797
        %v1799 = vand.u32 %v1798, 4294901760
        %v1800 = vsub.f32 %v1798, %v1799
        %v1801 = vand.u32 %v1800, 4294901760
        %1802 = vmatpush1.msra.mxu0 %v1801
        %v1803 = vand.u32 %v1435, 4294901760
        %v1804 = vsub.f32 %v1435, %v1803
        %v1805 = vand.u32 %v1804, 4294901760
        %v1806 = vsub.f32 %v1804, %v1805
        %v1807 = vand.u32 %v1806, 4294901760
        %1808 = vmatprep.subr.mxu0 %v1807
        %v1809 = vand.u32 %v1434, 4294901760
        %v1810 = vsub.f32 %v1434, %v1809
        %v1811 = vand.u32 %v1810, 4294901760
        %v1812 = vsub.f32 %v1810, %v1811
        %v1813 = vand.u32 %v1812, 4294901760
        %1814 = vmatpush1.msra.mxu0 %v1813
        %v1815 = vand.u32 %v1437, 4294901760
        %v1816 = vsub.f32 %v1437, %v1815
        %v1817 = vand.u32 %v1816, 4294901760
        %v1818 = vsub.f32 %v1816, %v1817
        %v1819 = vand.u32 %v1818, 4294901760
        %1820 = vmatprep.subr.mxu0 %v1819
        %v1821 = vand.u32 %v1436, 4294901760
        %v1822 = vsub.f32 %v1436, %v1821
        %v1823 = vand.u32 %v1822, 4294901760
        %v1824 = vsub.f32 %v1822, %v1823
        %v1825 = vand.u32 %v1824, 4294901760
        %1826 = vmatpush1.msra.mxu0 %v1825
        %v1827 = vand.u32 %v1439, 4294901760
        %v1828 = vsub.f32 %v1439, %v1827
        %v1829 = vand.u32 %v1828, 4294901760
        %v1830 = vsub.f32 %v1828, %v1829
        %v1831 = vand.u32 %v1830, 4294901760
        %1832 = vmatprep.subr.mxu0 %v1831
        %v1833 = vand.u32 %v1438, 4294901760
        %v1834 = vsub.f32 %v1438, %v1833
        %v1835 = vand.u32 %v1834, 4294901760
        %v1836 = vsub.f32 %v1834, %v1835
        %v1837 = vand.u32 %v1836, 4294901760
        %1838 = vmatpush1.msra.mxu0 %v1837
        %v1839 = vand.u32 %v1441, 4294901760
        %v1840 = vsub.f32 %v1441, %v1839
        %v1841 = vand.u32 %v1840, 4294901760
        %v1842 = vsub.f32 %v1840, %v1841
        %v1843 = vand.u32 %v1842, 4294901760
        %1844 = vmatprep.subr.mxu0 %v1843
        %v1845 = vand.u32 %v1440, 4294901760
        %v1846 = vsub.f32 %v1440, %v1845
        %v1847 = vand.u32 %v1846, 4294901760
        %v1848 = vsub.f32 %v1846, %v1847
        %v1849 = vand.u32 %v1848, 4294901760
        %1850 = vmatpush1.msra.mxu0 %v1849
        %v1851 = vand.u32 %v1443, 4294901760
        %v1852 = vsub.f32 %v1443, %v1851
        %v1853 = vand.u32 %v1852, 4294901760
        %v1854 = vsub.f32 %v1852, %v1853
        %v1855 = vand.u32 %v1854, 4294901760
        %1856 = vmatprep.subr.mxu0 %v1855
        %v1857 = vand.u32 %v1442, 4294901760
        %v1858 = vsub.f32 %v1442, %v1857
        %v1859 = vand.u32 %v1858, 4294901760
        %v1860 = vsub.f32 %v1858, %v1859
        %v1861 = vand.u32 %v1860, 4294901760
        %1862 = vmatpush1.msra.mxu0 %v1861
        %v1863 = vand.u32 %v1445, 4294901760
        %v1864 = vsub.f32 %v1445, %v1863
        %v1865 = vand.u32 %v1864, 4294901760
        %v1866 = vsub.f32 %v1864, %v1865
        %v1867 = vand.u32 %v1866, 4294901760
        %1868 = vmatprep.subr.mxu0 %v1867
        %v1869 = vand.u32 %v1444, 4294901760
        %v1870 = vsub.f32 %v1444, %v1869
        %v1871 = vand.u32 %v1870, 4294901760
        %v1872 = vsub.f32 %v1870, %v1871
        %v1873 = vand.u32 %v1872, 4294901760
        %1874 = vmatpush1.msra.mxu0 %v1873
        %v1875 = vand.u32 %v1447, 4294901760
        %v1876 = vsub.f32 %v1447, %v1875
        %v1877 = vand.u32 %v1876, 4294901760
        %v1878 = vsub.f32 %v1876, %v1877
        %v1879 = vand.u32 %v1878, 4294901760
        %1880 = vmatprep.subr.mxu0 %v1879
        %v1881 = vand.u32 %v1446, 4294901760
        %v1882 = vsub.f32 %v1446, %v1881
        %v1883 = vand.u32 %v1882, 4294901760
        %v1884 = vsub.f32 %v1882, %v1883
        %v1885 = vand.u32 %v1884, 4294901760
        %1886 = vmatpush1.msra.mxu0 %v1885
        %v1887 = vand.u32 %v1449, 4294901760
        %v1888 = vsub.f32 %v1449, %v1887
        %v1889 = vand.u32 %v1888, 4294901760
        %v1890 = vsub.f32 %v1888, %v1889
        %v1891 = vand.u32 %v1890, 4294901760
        %1892 = vmatprep.subr.mxu0 %v1891
        %v1893 = vand.u32 %v1448, 4294901760
        %v1894 = vsub.f32 %v1448, %v1893
        %v1895 = vand.u32 %v1894, 4294901760
        %v1896 = vsub.f32 %v1894, %v1895
        %v1897 = vand.u32 %v1896, 4294901760
        %1898 = vmatpush1.msra.mxu0 %v1897
        %v1899 = vand.u32 %v1451, 4294901760
        %v1900 = vsub.f32 %v1451, %v1899
        %v1901 = vand.u32 %v1900, 4294901760
        %v1902 = vsub.f32 %v1900, %v1901
        %v1903 = vand.u32 %v1902, 4294901760
        %1904 = vmatprep.subr.mxu0 %v1903
        %v1905 = vand.u32 %v1450, 4294901760
        %v1906 = vsub.f32 %v1450, %v1905
        %v1907 = vand.u32 %v1906, 4294901760
        %v1908 = vsub.f32 %v1906, %v1907
        %v1909 = vand.u32 %v1908, 4294901760
        %1910 = vmatpush1.msra.mxu0 %v1909
        %v1911 = vand.u32 %v1453, 4294901760
        %v1912 = vsub.f32 %v1453, %v1911
        %v1913 = vand.u32 %v1912, 4294901760
        %v1914 = vsub.f32 %v1912, %v1913
        %v1915 = vand.u32 %v1914, 4294901760
        %1916 = vmatprep.subr.mxu0 %v1915
        %v1917 = vand.u32 %v1452, 4294901760
        %v1918 = vsub.f32 %v1452, %v1917
        %v1919 = vand.u32 %v1918, 4294901760
        %v1920 = vsub.f32 %v1918, %v1919
        %v1921 = vand.u32 %v1920, 4294901760
        %1922 = vmatpush1.msra.mxu0 %v1921
        %v1923 = vand.u32 %v1455, 4294901760
        %v1924 = vsub.f32 %v1455, %v1923
        %v1925 = vand.u32 %v1924, 4294901760
        %v1926 = vsub.f32 %v1924, %v1925
        %v1927 = vand.u32 %v1926, 4294901760
        %1928 = vmatprep.subr.mxu0 %v1927
        %v1929 = vand.u32 %v1454, 4294901760
        %v1930 = vsub.f32 %v1454, %v1929
        %v1931 = vand.u32 %v1930, 4294901760
        %v1932 = vsub.f32 %v1930, %v1931
        %v1933 = vand.u32 %v1932, 4294901760
        %1934 = vmatpush1.msra.mxu0 %v1933
        %v1935 = vand.u32 %v1457, 4294901760
        %v1936 = vsub.f32 %v1457, %v1935
        %v1937 = vand.u32 %v1936, 4294901760
        %v1938 = vsub.f32 %v1936, %v1937
        %v1939 = vand.u32 %v1938, 4294901760
        %1940 = vmatprep.subr.mxu0 %v1939
        %v1941 = vand.u32 %v1456, 4294901760
        %v1942 = vsub.f32 %v1456, %v1941
        %v1943 = vand.u32 %v1942, 4294901760
        %v1944 = vsub.f32 %v1942, %v1943
        %v1945 = vand.u32 %v1944, 4294901760
        %1946 = vmatpush1.msra.mxu0 %v1945
        %v1947 = vand.u32 %v1459, 4294901760
        %v1948 = vsub.f32 %v1459, %v1947
        %v1949 = vand.u32 %v1948, 4294901760
        %v1950 = vsub.f32 %v1948, %v1949
        %v1951 = vand.u32 %v1950, 4294901760
        %1952 = vmatprep.subr.mxu0 %v1951
        %v1953 = vand.u32 %v1458, 4294901760
        %v1954 = vsub.f32 %v1458, %v1953
        %v1955 = vand.u32 %v1954, 4294901760
        %v1956 = vsub.f32 %v1954, %v1955
        %v1957 = vand.u32 %v1956, 4294901760
        %1958 = vmatpush1.msra.mxu0 %v1957
        %v1959 = vand.u32 %v1461, 4294901760
        %v1960 = vsub.f32 %v1461, %v1959
        %v1961 = vand.u32 %v1960, 4294901760
        %v1962 = vsub.f32 %v1960, %v1961
        %v1963 = vand.u32 %v1962, 4294901760
        %1964 = vmatprep.subr.mxu0 %v1963
        %v1965 = vand.u32 %v1460, 4294901760
        %v1966 = vsub.f32 %v1460, %v1965
        %v1967 = vand.u32 %v1966, 4294901760
        %v1968 = vsub.f32 %v1966, %v1967
        %v1969 = vand.u32 %v1968, 4294901760
        %1970 = vmatpush1.msra.mxu0 %v1969
        %v1971 = vand.u32 %v1463, 4294901760
        %v1972 = vsub.f32 %v1463, %v1971
        %v1973 = vand.u32 %v1972, 4294901760
        %v1974 = vsub.f32 %v1972, %v1973
        %v1975 = vand.u32 %v1974, 4294901760
        %1976 = vmatprep.subr.mxu0 %v1975
        %v1977 = vand.u32 %v1462, 4294901760
        %v1978 = vsub.f32 %v1462, %v1977
        %v1979 = vand.u32 %v1978, 4294901760
        %v1980 = vsub.f32 %v1978, %v1979
        %v1981 = vand.u32 %v1980, 4294901760
        %1982 = vmatpush1.msra.mxu0 %v1981
        %v1983 = vand.u32 %v1465, 4294901760
        %v1984 = vsub.f32 %v1465, %v1983
        %v1985 = vand.u32 %v1984, 4294901760
        %v1986 = vsub.f32 %v1984, %v1985
        %v1987 = vand.u32 %v1986, 4294901760
        %1988 = vmatprep.subr.mxu0 %v1987
        %v1989 = vand.u32 %v1464, 4294901760
        %v1990 = vsub.f32 %v1464, %v1989
        %v1991 = vand.u32 %v1990, 4294901760
        %v1992 = vsub.f32 %v1990, %v1991
        %v1993 = vand.u32 %v1992, 4294901760
        %1994 = vmatpush1.msra.mxu0 %v1993
        %v1995 = vand.u32 %v1467, 4294901760
        %v1996 = vsub.f32 %v1467, %v1995
        %v1997 = vand.u32 %v1996, 4294901760
        %v1998 = vsub.f32 %v1996, %v1997
        %v1999 = vand.u32 %v1998, 4294901760
        %2000 = vmatprep.subr.mxu0 %v1999
        %v2001 = vand.u32 %v1466, 4294901760
        %v2002 = vsub.f32 %v1466, %v2001
        %v2003 = vand.u32 %v2002, 4294901760
        %v2004 = vsub.f32 %v2002, %v2003
        %v2005 = vand.u32 %v2004, 4294901760
        %2006 = vmatpush1.msra.mxu0 %v2005
        %v2007 = vand.u32 %v1469, 4294901760
        %v2008 = vsub.f32 %v1469, %v2007
        %v2009 = vand.u32 %v2008, 4294901760
        %v2010 = vsub.f32 %v2008, %v2009
        %v2011 = vand.u32 %v2010, 4294901760
        %2012 = vmatprep.subr.mxu0 %v2011
        %v2013 = vand.u32 %v1468, 4294901760
        %v2014 = vsub.f32 %v1468, %v2013
        %v2015 = vand.u32 %v2014, 4294901760
        %v2016 = vsub.f32 %v2014, %v2015
        %v2017 = vand.u32 %v2016, 4294901760
        %2018 = vmatpush1.msra.mxu0 %v2017
        %v2019 = vand.u32 %v1471, 4294901760
        %v2020 = vsub.f32 %v1471, %v2019
        %v2021 = vand.u32 %v2020, 4294901760
        %v2022 = vsub.f32 %v2020, %v2021
        %v2023 = vand.u32 %v2022, 4294901760
        %2024 = vmatprep.subr.mxu0 %v2023
        %v2025 = vand.u32 %v1470, 4294901760
        %v2026 = vsub.f32 %v1470, %v2025
        %v2027 = vand.u32 %v2026, 4294901760
        %v2028 = vsub.f32 %v2026, %v2027
        %v2029 = vand.u32 %v2028, 4294901760
        %2030 = vmatpush1.msra.mxu0 %v2029
        %v2031 = vand.u32 %v1473, 4294901760
        %v2032 = vsub.f32 %v1473, %v2031
        %v2033 = vand.u32 %v2032, 4294901760
        %v2034 = vsub.f32 %v2032, %v2033
        %v2035 = vand.u32 %v2034, 4294901760
        %2036 = vmatprep.subr.mxu0 %v2035
        %v2037 = vand.u32 %v1472, 4294901760
        %v2038 = vsub.f32 %v1472, %v2037
        %v2039 = vand.u32 %v2038, 4294901760
        %v2040 = vsub.f32 %v2038, %v2039
        %v2041 = vand.u32 %v2040, 4294901760
        %2042 = vmatpush1.msra.mxu0 %v2041
        %v2043 = vand.u32 %v1475, 4294901760
        %v2044 = vsub.f32 %v1475, %v2043
        %v2045 = vand.u32 %v2044, 4294901760
        %v2046 = vsub.f32 %v2044, %v2045
        %v2047 = vand.u32 %v2046, 4294901760
        %2048 = vmatprep.subr.mxu0 %v2047
        %v2049 = vand.u32 %v1474, 4294901760
        %v2050 = vsub.f32 %v1474, %v2049
        %v2051 = vand.u32 %v2050, 4294901760
        %v2052 = vsub.f32 %v2050, %v2051
        %v2053 = vand.u32 %v2052, 4294901760
        %2054 = vmatpush1.msra.mxu0 %v2053
        %v2055 = vand.u32 %v1477, 4294901760
        %v2056 = vsub.f32 %v1477, %v2055
        %v2057 = vand.u32 %v2056, 4294901760
        %v2058 = vsub.f32 %v2056, %v2057
        %v2059 = vand.u32 %v2058, 4294901760
        %2060 = vmatprep.subr.mxu0 %v2059
        %v2061 = vand.u32 %v1476, 4294901760
        %v2062 = vsub.f32 %v1476, %v2061
        %v2063 = vand.u32 %v2062, 4294901760
        %v2064 = vsub.f32 %v2062, %v2063
        %v2065 = vand.u32 %v2064, 4294901760
        %2066 = vmatpush1.msra.mxu0 %v2065
        %v2067 = vand.u32 %v1407, 4294901760
        %2068 = vmatprep.mubr.f32.mxu0 %v2067
        %v2069 = vand.u32 %v1406, 4294901760
        %2070 = vmatmul.mubr.f32.gmra.mrb[0].mxu0 %v2069
        %v2071 = vpop.f32.mrb[0].mxu0
        %v2072 = vadd.f32 %v1631, %v2071
        %v2073 = vpop.f32.mrb[0].mxu0
        %v2074 = vadd.f32 %v1633, %v2073
        %v2075 = vand.u32 %v1409, 4294901760
        %2076 = vmatprep.mubr.f32.mxu0 %v2075
        %v2077 = vand.u32 %v1408, 4294901760
        %2078 = vmatmul.mubr.f32.gmra.mrb[0].mxu0 %v2077
        %v2079 = vpop.f32.mrb[0].mxu0
        %v2080 = vadd.f32 %v1647, %v2079
        %v2081 = vpop.f32.mrb[0].mxu0
        %v2082 = vadd.f32 %v1649, %v2081
        %v2083 = vand.u32 %v1411, 4294901760
        %2084 = vmatprep.mubr.f32.mxu0 %v2083
        %v2085 = vand.u32 %v1410, 4294901760
        %2086 = vmatmul.mubr.f32.gmra.mrb[0].mxu0 %v2085
        %v2087 = vpop.f32.mrb[0].mxu0
        %v2088 = vadd.f32 %v1663, %v2087
        %v2089 = vpop.f32.mrb[0].mxu0
        %v2090 = vadd.f32 %v1665, %v2089
        %v2091 = vand.u32 %v1413, 4294901760
        %2092 = vmatprep.mubr.f32.mxu0 %v2091
        %v2093 = vand.u32 %v1412, 4294901760
        %2094 = vmatmul.mubr.f32.gmra.mrb[0].mxu0 %v2093
        %v2095 = vpop.f32.mrb[0].mxu0
        %v2096 = vadd.f32 %v1679, %v2095
        %v2097 = vpop.f32.mrb[0].mxu0
        %v2098 = vadd.f32 %v1681, %v2097
        %2099 = vdwg.mxu0
        %v2100 = vand.u32 %v1415, 4294901760
        %v2101 = vsub.f32 %v1415, %v2100
        %2102 = vmatprep.subr.mxu0 %v2101
        %v2103 = vand.u32 %v1414, 4294901760
        %v2104 = vsub.f32 %v1414, %v2103
        %2105 = vmatpush1.msra.mxu0 %v2104
        %v2106 = vand.u32 %v1417, 4294901760
        %v2107 = vsub.f32 %v1417, %v2106
        %2108 = vmatprep.subr.mxu0 %v2107
        %v2109 = vand.u32 %v1416, 4294901760
        %v2110 = vsub.f32 %v1416, %v2109
        %2111 = vmatpush1.msra.mxu0 %v2110
        %v2112 = vand.u32 %v1419, 4294901760
        %v2113 = vsub.f32 %v1419, %v2112
        %2114 = vmatprep.subr.mxu0 %v2113
        %v2115 = vand.u32 %v1418, 4294901760
        %v2116 = vsub.f32 %v1418, %v2115
        %2117 = vmatpush1.msra.mxu0 %v2116
        %v2118 = vand.u32 %v1421, 4294901760
        %v2119 = vsub.f32 %v1421, %v2118
        %2120 = vmatprep.subr.mxu0 %v2119
        %v2121 = vand.u32 %v1420, 4294901760
        %v2122 = vsub.f32 %v1420, %v2121
        %2123 = vmatpush1.msra.mxu0 %v2122
        %v2124 = vand.u32 %v1423, 4294901760
        %v2125 = vsub.f32 %v1423, %v2124
        %2126 = vmatprep.subr.mxu0 %v2125
        %v2127 = vand.u32 %v1422, 4294901760
        %v2128 = vsub.f32 %v1422, %v2127
        %2129 = vmatpush1.msra.mxu0 %v2128
        %v2130 = vand.u32 %v1425, 4294901760
        %v2131 = vsub.f32 %v1425, %v2130
        %2132 = vmatprep.subr.mxu0 %v2131
        %v2133 = vand.u32 %v1424, 4294901760
        %v2134 = vsub.f32 %v1424, %v2133
        %2135 = vmatpush1.msra.mxu0 %v2134
        %v2136 = vand.u32 %v1427, 4294901760
        %v2137 = vsub.f32 %v1427, %v2136
        %2138 = vmatprep.subr.mxu0 %v2137
        %v2139 = vand.u32 %v1426, 4294901760
        %v2140 = vsub.f32 %v1426, %v2139
        %2141 = vmatpush1.msra.mxu0 %v2140
        %v2142 = vand.u32 %v1429, 4294901760
        %v2143 = vsub.f32 %v1429, %v2142
        %2144 = vmatprep.subr.mxu0 %v2143
        %v2145 = vand.u32 %v1428, 4294901760
        %v2146 = vsub.f32 %v1428, %v2145
        %2147 = vmatpush1.msra.mxu0 %v2146
        %v2148 = vand.u32 %v1431, 4294901760
        %v2149 = vsub.f32 %v1431, %v2148
        %2150 = vmatprep.subr.mxu0 %v2149
        %v2151 = vand.u32 %v1430, 4294901760
        %v2152 = vsub.f32 %v1430, %v2151
        %2153 = vmatpush1.msra.mxu0 %v2152
        %v2154 = vand.u32 %v1433, 4294901760
        %v2155 = vsub.f32 %v1433, %v2154
        %2156 = vmatprep.subr.mxu0 %v2155
        %v2157 = vand.u32 %v1432, 4294901760
        %v2158 = vsub.f32 %v1432, %v2157
        %2159 = vmatpush1.msra.mxu0 %v2158
        %v2160 = vand.u32 %v1435, 4294901760
        %v2161 = vsub.f32 %v1435, %v2160
        %2162 = vmatprep.subr.mxu0 %v2161
        %v2163 = vand.u32 %v1434, 4294901760
        %v2164 = vsub.f32 %v1434, %v2163
        %2165 = vmatpush1.msra.mxu0 %v2164
        %v2166 = vand.u32 %v1437, 4294901760
        %v2167 = vsub.f32 %v1437, %v2166
        %2168 = vmatprep.subr.mxu0 %v2167
        %v2169 = vand.u32 %v1436, 4294901760
        %v2170 = vsub.f32 %v1436, %v2169
        %2171 = vmatpush1.msra.mxu0 %v2170
        %v2172 = vand.u32 %v1439, 4294901760
        %v2173 = vsub.f32 %v1439, %v2172
        %2174 = vmatprep.subr.mxu0 %v2173
        %v2175 = vand.u32 %v1438, 4294901760
        %v2176 = vsub.f32 %v1438, %v2175
        %2177 = vmatpush1.msra.mxu0 %v2176
        %v2178 = vand.u32 %v1441, 4294901760
        %v2179 = vsub.f32 %v1441, %v2178
        %2180 = vmatprep.subr.mxu0 %v2179
        %v2181 = vand.u32 %v1440, 4294901760
        %v2182 = vsub.f32 %v1440, %v2181
        %2183 = vmatpush1.msra.mxu0 %v2182
        %v2184 = vand.u32 %v1443, 4294901760
        %v2185 = vsub.f32 %v1443, %v2184
        %2186 = vmatprep.subr.mxu0 %v2185
        %v2187 = vand.u32 %v1442, 4294901760
        %v2188 = vsub.f32 %v1442, %v2187
        %2189 = vmatpush1.msra.mxu0 %v2188
        %v2190 = vand.u32 %v1445, 4294901760
        %v2191 = vsub.f32 %v1445, %v2190
        %2192 = vmatprep.subr.mxu0 %v2191
        %v2193 = vand.u32 %v1444, 4294901760
        %v2194 = vsub.f32 %v1444, %v2193
        %2195 = vmatpush1.msra.mxu0 %v2194
        %v2196 = vand.u32 %v1447, 4294901760
        %v2197 = vsub.f32 %v1447, %v2196
        %2198 = vmatprep.subr.mxu0 %v2197
        %v2199 = vand.u32 %v1446, 4294901760
        %v2200 = vsub.f32 %v1446, %v2199
        %2201 = vmatpush1.msra.mxu0 %v2200
        %v2202 = vand.u32 %v1449, 4294901760
        %v2203 = vsub.f32 %v1449, %v2202
        %2204 = vmatprep.subr.mxu0 %v2203
        %v2205 = vand.u32 %v1448, 4294901760
        %v2206 = vsub.f32 %v1448, %v2205
        %2207 = vmatpush1.msra.mxu0 %v2206
        %v2208 = vand.u32 %v1451, 4294901760
        %v2209 = vsub.f32 %v1451, %v2208
        %2210 = vmatprep.subr.mxu0 %v2209
        %v2211 = vand.u32 %v1450, 4294901760
        %v2212 = vsub.f32 %v1450, %v2211
        %2213 = vmatpush1.msra.mxu0 %v2212
        %v2214 = vand.u32 %v1453, 4294901760
        %v2215 = vsub.f32 %v1453, %v2214
        %2216 = vmatprep.subr.mxu0 %v2215
        %v2217 = vand.u32 %v1452, 4294901760
        %v2218 = vsub.f32 %v1452, %v2217
        %2219 = vmatpush1.msra.mxu0 %v2218
        %v2220 = vand.u32 %v1455, 4294901760
        %v2221 = vsub.f32 %v1455, %v2220
        %2222 = vmatprep.subr.mxu0 %v2221
        %v2223 = vand.u32 %v1454, 4294901760
        %v2224 = vsub.f32 %v1454, %v2223
        %2225 = vmatpush1.msra.mxu0 %v2224
        %v2226 = vand.u32 %v1457, 4294901760
        %v2227 = vsub.f32 %v1457, %v2226
        %2228 = vmatprep.subr.mxu0 %v2227
        %v2229 = vand.u32 %v1456, 4294901760
        %v2230 = vsub.f32 %v1456, %v2229
        %2231 = vmatpush1.msra.mxu0 %v2230
        %v2232 = vand.u32 %v1459, 4294901760
        %v2233 = vsub.f32 %v1459, %v2232
        %2234 = vmatprep.subr.mxu0 %v2233
        %v2235 = vand.u32 %v1458, 4294901760
        %v2236 = vsub.f32 %v1458, %v2235
        %2237 = vmatpush1.msra.mxu0 %v2236
        %v2238 = vand.u32 %v1461, 4294901760
        %v2239 = vsub.f32 %v1461, %v2238
        %2240 = vmatprep.subr.mxu0 %v2239
        %v2241 = vand.u32 %v1460, 4294901760
        %v2242 = vsub.f32 %v1460, %v2241
        %2243 = vmatpush1.msra.mxu0 %v2242
        %v2244 = vand.u32 %v1463, 4294901760
        %v2245 = vsub.f32 %v1463, %v2244
        %2246 = vmatprep.subr.mxu0 %v2245
        %v2247 = vand.u32 %v1462, 4294901760
        %v2248 = vsub.f32 %v1462, %v2247
        %2249 = vmatpush1.msra.mxu0 %v2248
        %v2250 = vand.u32 %v1465, 4294901760
        %v2251 = vsub.f32 %v1465, %v2250
        %2252 = vmatprep.subr.mxu0 %v2251
        %v2253 = vand.u32 %v1464, 4294901760
        %v2254 = vsub.f32 %v1464, %v2253
        %2255 = vmatpush1.msra.mxu0 %v2254
        %v2256 = vand.u32 %v1467, 4294901760
        %v2257 = vsub.f32 %v1467, %v2256
        %2258 = vmatprep.subr.mxu0 %v2257
        %v2259 = vand.u32 %v1466, 4294901760
        %v2260 = vsub.f32 %v1466, %v2259
        %2261 = vmatpush1.msra.mxu0 %v2260
        %v2262 = vand.u32 %v1469, 4294901760
        %v2263 = vsub.f32 %v1469, %v2262
        %2264 = vmatprep.subr.mxu0 %v2263
        %v2265 = vand.u32 %v1468, 4294901760
        %v2266 = vsub.f32 %v1468, %v2265
        %2267 = vmatpush1.msra.mxu0 %v2266
        %v2268 = vand.u32 %v1471, 4294901760
        %v2269 = vsub.f32 %v1471, %v2268
        %2270 = vmatprep.subr.mxu0 %v2269
        %v2271 = vand.u32 %v1470, 4294901760
        %v2272 = vsub.f32 %v1470, %v2271
        %2273 = vmatpush1.msra.mxu0 %v2272
        %v2274 = vand.u32 %v1473, 4294901760
        %v2275 = vsub.f32 %v1473, %v2274
        %2276 = vmatprep.subr.mxu0 %v2275
        %v2277 = vand.u32 %v1472, 4294901760
        %v2278 = vsub.f32 %v1472, %v2277
        %2279 = vmatpush1.msra.mxu0 %v2278
        %v2280 = vand.u32 %v1475, 4294901760
        %v2281 = vsub.f32 %v1475, %v2280
        %2282 = vmatprep.subr.mxu0 %v2281
        %v2283 = vand.u32 %v1474, 4294901760
        %v2284 = vsub.f32 %v1474, %v2283
        %2285 = vmatpush1.msra.mxu0 %v2284
        %v2286 = vand.u32 %v1477, 4294901760
        %v2287 = vsub.f32 %v1477, %v2286
        %2288 = vmatprep.subr.mxu0 %v2287
        %v2289 = vand.u32 %v1476, 4294901760
        %v2290 = vsub.f32 %v1476, %v2289
        %2291 = vmatpush1.msra.mxu0 %v2290
        %v2292 = vand.u32 %v1407, 4294901760
        %v2293 = vsub.f32 %v1407, %v2292
        %2294 = vmatprep.mubr.f32.mxu0 %v2293
        %v2295 = vand.u32 %v1406, 4294901760
        %v2296 = vsub.f32 %v1406, %v2295
        %2297 = vmatmul.mubr.f32.gmra.mrb[0].mxu0 %v2296
        %v2298 = vpop.f32.mrb[0].mxu0
        %v2299 = vadd.f32 %v2072, %v2298
        %v2300 = vpop.f32.mrb[0].mxu0
        %v2301 = vadd.f32 %v2074, %v2300
        %v2302 = vand.u32 %v1409, 4294901760
        %v2303 = vsub.f32 %v1409, %v2302
        %2304 = vmatprep.mubr.f32.mxu0 %v2303
        %v2305 = vand.u32 %v1408, 4294901760
        %v2306 = vsub.f32 %v1408, %v2305
        %2307 = vmatmul.mubr.f32.gmra.mrb[0].mxu0 %v2306
        %v2308 = vpop.f32.mrb[0].mxu0
        %v2309 = vadd.f32 %v2080, %v2308
        %v2310 = vpop.f32.mrb[0].mxu0
        %v2311 = vadd.f32 %v2082, %v2310
        %v2312 = vand.u32 %v1411, 4294901760
        %v2313 = vsub.f32 %v1411, %v2312
        %2314 = vmatprep.mubr.f32.mxu0 %v2313
        %v2315 = vand.u32 %v1410, 4294901760
        %v2316 = vsub.f32 %v1410, %v2315
        %2317 = vmatmul.mubr.f32.gmra.mrb[0].mxu0 %v2316
        %v2318 = vpop.f32.mrb[0].mxu0
        %v2319 = vadd.f32 %v2088, %v2318
        %v2320 = vpop.f32.mrb[0].mxu0
        %v2321 = vadd.f32 %v2090, %v2320
        %v2322 = vand.u32 %v1413, 4294901760
        %v2323 = vsub.f32 %v1413, %v2322
        %2324 = vmatprep.mubr.f32.mxu0 %v2323
        %v2325 = vand.u32 %v1412, 4294901760
        %v2326 = vsub.f32 %v1412, %v2325
        %2327 = vmatmul.mubr.f32.gmra.mrb[0].mxu0 %v2326
        %v2328 = vpop.f32.mrb[0].mxu0
        %v2329 = vadd.f32 %v2096, %v2328
        %v2330 = vpop.f32.mrb[0].mxu0
        %v2331 = vadd.f32 %v2098, %v2330
        %2332 = vdwg.mxu0
        %v2333 = vand.u32 %v1415, 4294901760
        %2334 = vmatprep.subr.mxu0 %v2333
        %v2335 = vand.u32 %v1414, 4294901760
        %2336 = vmatpush1.msra.mxu0 %v2335
        %v2337 = vand.u32 %v1417, 4294901760
        %2338 = vmatprep.subr.mxu0 %v2337
        %v2339 = vand.u32 %v1416, 4294901760
        %2340 = vmatpush1.msra.mxu0 %v2339
        %v2341 = vand.u32 %v1419, 4294901760
        %2342 = vmatprep.subr.mxu0 %v2341
        %v2343 = vand.u32 %v1418, 4294901760
        %2344 = vmatpush1.msra.mxu0 %v2343
        %v2345 = vand.u32 %v1421, 4294901760
        %2346 = vmatprep.subr.mxu0 %v2345
        %v2347 = vand.u32 %v1420, 4294901760
        %2348 = vmatpush1.msra.mxu0 %v2347
        %v2349 = vand.u32 %v1423, 4294901760
        %2350 = vmatprep.subr.mxu0 %v2349
        %v2351 = vand.u32 %v1422, 4294901760
        %2352 = vmatpush1.msra.mxu0 %v2351
        %v2353 = vand.u32 %v1425, 4294901760
        %2354 = vmatprep.subr.mxu0 %v2353
        %v2355 = vand.u32 %v1424, 4294901760
        %2356 = vmatpush1.msra.mxu0 %v2355
        %v2357 = vand.u32 %v1427, 4294901760
        %2358 = vmatprep.subr.mxu0 %v2357
        %v2359 = vand.u32 %v1426, 4294901760
        %2360 = vmatpush1.msra.mxu0 %v2359
        %v2361 = vand.u32 %v1429, 4294901760
        %2362 = vmatprep.subr.mxu0 %v2361
        %v2363 = vand.u32 %v1428, 4294901760
        %2364 = vmatpush1.msra.mxu0 %v2363
        %v2365 = vand.u32 %v1431, 4294901760
        %2366 = vmatprep.subr.mxu0 %v2365
        %v2367 = vand.u32 %v1430, 4294901760
        %2368 = vmatpush1.msra.mxu0 %v2367
        %v2369 = vand.u32 %v1433, 4294901760
        %2370 = vmatprep.subr.mxu0 %v2369
        %v2371 = vand.u32 %v1432, 4294901760
        %2372 = vmatpush1.msra.mxu0 %v2371
        %v2373 = vand.u32 %v1435, 4294901760
        %2374 = vmatprep.subr.mxu0 %v2373
        %v2375 = vand.u32 %v1434, 4294901760
        %2376 = vmatpush1.msra.mxu0 %v2375
        %v2377 = vand.u32 %v1437, 4294901760
        %2378 = vmatprep.subr.mxu0 %v2377
        %v2379 = vand.u32 %v1436, 4294901760
        %2380 = vmatpush1.msra.mxu0 %v2379
        %v2381 = vand.u32 %v1439, 4294901760
        %2382 = vmatprep.subr.mxu0 %v2381
        %v2383 = vand.u32 %v1438, 4294901760
        %2384 = vmatpush1.msra.mxu0 %v2383
        %v2385 = vand.u32 %v1441, 4294901760
        %2386 = vmatprep.subr.mxu0 %v2385
        %v2387 = vand.u32 %v1440, 4294901760
        %2388 = vmatpush1.msra.mxu0 %v2387
        %v2389 = vand.u32 %v1443, 4294901760
        %2390 = vmatprep.subr.mxu0 %v2389
        %v2391 = vand.u32 %v1442, 4294901760
        %2392 = vmatpush1.msra.mxu0 %v2391
        %v2393 = vand.u32 %v1445, 4294901760
        %2394 = vmatprep.subr.mxu0 %v2393
        %v2395 = vand.u32 %v1444, 4294901760
        %2396 = vmatpush1.msra.mxu0 %v2395
        %v2397 = vand.u32 %v1447, 4294901760
        %2398 = vmatprep.subr.mxu0 %v2397
        %v2399 = vand.u32 %v1446, 4294901760
        %2400 = vmatpush1.msra.mxu0 %v2399
        %v2401 = vand.u32 %v1449, 4294901760
        %2402 = vmatprep.subr.mxu0 %v2401
        %v2403 = vand.u32 %v1448, 4294901760
        %2404 = vmatpush1.msra.mxu0 %v2403
        %v2405 = vand.u32 %v1451, 4294901760
        %2406 = vmatprep.subr.mxu0 %v2405
        %v2407 = vand.u32 %v1450, 4294901760
        %2408 = vmatpush1.msra.mxu0 %v2407
        %v2409 = vand.u32 %v1453, 4294901760
        %2410 = vmatprep.subr.mxu0 %v2409
        %v2411 = vand.u32 %v1452, 4294901760
        %2412 = vmatpush1.msra.mxu0 %v2411
        %v2413 = vand.u32 %v1455, 4294901760
        %2414 = vmatprep.subr.mxu0 %v2413
        %v2415 = vand.u32 %v1454, 4294901760
        %2416 = vmatpush1.msra.mxu0 %v2415
        %v2417 = vand.u32 %v1457, 4294901760
        %2418 = vmatprep.subr.mxu0 %v2417
        %v2419 = vand.u32 %v1456, 4294901760
        %2420 = vmatpush1.msra.mxu0 %v2419
        %v2421 = vand.u32 %v1459, 4294901760
        %2422 = vmatprep.subr.mxu0 %v2421
        %v2423 = vand.u32 %v1458, 4294901760
        %2424 = vmatpush1.msra.mxu0 %v2423
        %v2425 = vand.u32 %v1461, 4294901760
        %2426 = vmatprep.subr.mxu0 %v2425
        %v2427 = vand.u32 %v1460, 4294901760
        %2428 = vmatpush1.msra.mxu0 %v2427
        %v2429 = vand.u32 %v1463, 4294901760
        %2430 = vmatprep.subr.mxu0 %v2429
        %v2431 = vand.u32 %v1462, 4294901760
        %2432 = vmatpush1.msra.mxu0 %v2431
        %v2433 = vand.u32 %v1465, 4294901760
        %2434 = vmatprep.subr.mxu0 %v2433
        %v2435 = vand.u32 %v1464, 4294901760
        %2436 = vmatpush1.msra.mxu0 %v2435
        %v2437 = vand.u32 %v1467, 4294901760
        %2438 = vmatprep.subr.mxu0 %v2437
        %v2439 = vand.u32 %v1466, 4294901760
        %2440 = vmatpush1.msra.mxu0 %v2439
        %v2441 = vand.u32 %v1469, 4294901760
        %2442 = vmatprep.subr.mxu0 %v2441
        %v2443 = vand.u32 %v1468, 4294901760
        %2444 = vmatpush1.msra.mxu0 %v2443
        %v2445 = vand.u32 %v1471, 4294901760
        %2446 = vmatprep.subr.mxu0 %v2445
        %v2447 = vand.u32 %v1470, 4294901760
        %2448 = vmatpush1.msra.mxu0 %v2447
        %v2449 = vand.u32 %v1473, 4294901760
        %2450 = vmatprep.subr.mxu0 %v2449
        %v2451 = vand.u32 %v1472, 4294901760
        %2452 = vmatpush1.msra.mxu0 %v2451
        %v2453 = vand.u32 %v1475, 4294901760
        %2454 = vmatprep.subr.mxu0 %v2453
        %v2455 = vand.u32 %v1474, 4294901760
        %2456 = vmatpush1.msra.mxu0 %v2455
        %v2457 = vand.u32 %v1477, 4294901760
        %2458 = vmatprep.subr.mxu0 %v2457
        %v2459 = vand.u32 %v1476, 4294901760
        %2460 = vmatpush1.msra.mxu0 %v2459
        %v2461 = vand.u32 %v1407, 4294901760
        %v2462 = vsub.f32 %v1407, %v2461
        %v2463 = vand.u32 %v2462, 4294901760
        %2464 = vmatprep.mubr.f32.mxu0 %v2463
        %v2465 = vand.u32 %v1406, 4294901760
        %v2466 = vsub.f32 %v1406, %v2465
        %v2467 = vand.u32 %v2466, 4294901760
        %2468 = vmatmul.mubr.f32.gmra.mrb[0].mxu0 %v2467
        %v2469 = vpop.f32.mrb[0].mxu0
        %v2470 = vadd.f32 %v2299, %v2469
        %v2471 = vpop.f32.mrb[0].mxu0
        %v2472 = vadd.f32 %v2301, %v2471
        %v2473 = vand.u32 %v1409, 4294901760
        %v2474 = vsub.f32 %v1409, %v2473
        %v2475 = vand.u32 %v2474, 4294901760
        %2476 = vmatprep.mubr.f32.mxu0 %v2475
        %v2477 = vand.u32 %v1408, 4294901760
        %v2478 = vsub.f32 %v1408, %v2477
        %v2479 = vand.u32 %v2478, 4294901760
        %2480 = vmatmul.mubr.f32.gmra.mrb[0].mxu0 %v2479
        %v2481 = vpop.f32.mrb[0].mxu0
        %v2482 = vadd.f32 %v2309, %v2481
        %v2483 = vpop.f32.mrb[0].mxu0
        %v2484 = vadd.f32 %v2311, %v2483
        %v2485 = vand.u32 %v1411, 4294901760
        %v2486 = vsub.f32 %v1411, %v2485
        %v2487 = vand.u32 %v2486, 4294901760
        %2488 = vmatprep.mubr.f32.mxu0 %v2487
        %v2489 = vand.u32 %v1410, 4294901760
        %v2490 = vsub.f32 %v1410, %v2489
        %v2491 = vand.u32 %v2490, 4294901760
        %2492 = vmatmul.mubr.f32.gmra.mrb[0].mxu0 %v2491
        %v2493 = vpop.f32.mrb[0].mxu0
        %v2494 = vadd.f32 %v2319, %v2493
        %v2495 = vpop.f32.mrb[0].mxu0
        %v2496 = vadd.f32 %v2321, %v2495
        %v2497 = vand.u32 %v1413, 4294901760
        %v2498 = vsub.f32 %v1413, %v2497
        %v2499 = vand.u32 %v2498, 4294901760
        %2500 = vmatprep.mubr.f32.mxu0 %v2499
        %v2501 = vand.u32 %v1412, 4294901760
        %v2502 = vsub.f32 %v1412, %v2501
        %v2503 = vand.u32 %v2502, 4294901760
        %2504 = vmatmul.mubr.f32.gmra.mrb[0].mxu0 %v2503
        %v2505 = vpop.f32.mrb[0].mxu0
        %v2506 = vadd.f32 %v2329, %v2505
        %v2507 = vpop.f32.mrb[0].mxu0
        %v2508 = vadd.f32 %v2331, %v2507
        %2509 = vdwg.mxu0
        %v2510 = vand.u32 %v1415, 4294901760
        %v2511 = vsub.f32 %v1415, %v2510
        %v2512 = vand.u32 %v2511, 4294901760
        %2513 = vmatprep.subr.mxu0 %v2512
        %v2514 = vand.u32 %v1414, 4294901760
        %v2515 = vsub.f32 %v1414, %v2514
        %v2516 = vand.u32 %v2515, 4294901760
        %2517 = vmatpush1.msra.mxu0 %v2516
        %v2518 = vand.u32 %v1417, 4294901760
        %v2519 = vsub.f32 %v1417, %v2518
        %v2520 = vand.u32 %v2519, 4294901760
        %2521 = vmatprep.subr.mxu0 %v2520
        %v2522 = vand.u32 %v1416, 4294901760
        %v2523 = vsub.f32 %v1416, %v2522
        %v2524 = vand.u32 %v2523, 4294901760
        %2525 = vmatpush1.msra.mxu0 %v2524
        %v2526 = vand.u32 %v1419, 4294901760
        %v2527 = vsub.f32 %v1419, %v2526
        %v2528 = vand.u32 %v2527, 4294901760
        %2529 = vmatprep.subr.mxu0 %v2528
        %v2530 = vand.u32 %v1418, 4294901760
        %v2531 = vsub.f32 %v1418, %v2530
        %v2532 = vand.u32 %v2531, 4294901760
        %2533 = vmatpush1.msra.mxu0 %v2532
        %v2534 = vand.u32 %v1421, 4294901760
        %v2535 = vsub.f32 %v1421, %v2534
        %v2536 = vand.u32 %v2535, 4294901760
        %2537 = vmatprep.subr.mxu0 %v2536
        %v2538 = vand.u32 %v1420, 4294901760
        %v2539 = vsub.f32 %v1420, %v2538
        %v2540 = vand.u32 %v2539, 4294901760
        %2541 = vmatpush1.msra.mxu0 %v2540
        %v2542 = vand.u32 %v1423, 4294901760
        %v2543 = vsub.f32 %v1423, %v2542
        %v2544 = vand.u32 %v2543, 4294901760
        %2545 = vmatprep.subr.mxu0 %v2544
        %v2546 = vand.u32 %v1422, 4294901760
        %v2547 = vsub.f32 %v1422, %v2546
        %v2548 = vand.u32 %v2547, 4294901760
        %2549 = vmatpush1.msra.mxu0 %v2548
        %v2550 = vand.u32 %v1425, 4294901760
        %v2551 = vsub.f32 %v1425, %v2550
        %v2552 = vand.u32 %v2551, 4294901760
        %2553 = vmatprep.subr.mxu0 %v2552
        %v2554 = vand.u32 %v1424, 4294901760
        %v2555 = vsub.f32 %v1424, %v2554
        %v2556 = vand.u32 %v2555, 4294901760
        %2557 = vmatpush1.msra.mxu0 %v2556
        %v2558 = vand.u32 %v1427, 4294901760
        %v2559 = vsub.f32 %v1427, %v2558
        %v2560 = vand.u32 %v2559, 4294901760
        %2561 = vmatprep.subr.mxu0 %v2560
        %v2562 = vand.u32 %v1426, 4294901760
        %v2563 = vsub.f32 %v1426, %v2562
        %v2564 = vand.u32 %v2563, 4294901760
        %2565 = vmatpush1.msra.mxu0 %v2564
        %v2566 = vand.u32 %v1429, 4294901760
        %v2567 = vsub.f32 %v1429, %v2566
        %v2568 = vand.u32 %v2567, 4294901760
        %2569 = vmatprep.subr.mxu0 %v2568
        %v2570 = vand.u32 %v1428, 4294901760
        %v2571 = vsub.f32 %v1428, %v2570
        %v2572 = vand.u32 %v2571, 4294901760
        %2573 = vmatpush1.msra.mxu0 %v2572
        %v2574 = vand.u32 %v1431, 4294901760
        %v2575 = vsub.f32 %v1431, %v2574
        %v2576 = vand.u32 %v2575, 4294901760
        %2577 = vmatprep.subr.mxu0 %v2576
        %v2578 = vand.u32 %v1430, 4294901760
        %v2579 = vsub.f32 %v1430, %v2578
        %v2580 = vand.u32 %v2579, 4294901760
        %2581 = vmatpush1.msra.mxu0 %v2580
        %v2582 = vand.u32 %v1433, 4294901760
        %v2583 = vsub.f32 %v1433, %v2582
        %v2584 = vand.u32 %v2583, 4294901760
        %2585 = vmatprep.subr.mxu0 %v2584
        %v2586 = vand.u32 %v1432, 4294901760
        %v2587 = vsub.f32 %v1432, %v2586
        %v2588 = vand.u32 %v2587, 4294901760
        %2589 = vmatpush1.msra.mxu0 %v2588
        %v2590 = vand.u32 %v1435, 4294901760
        %v2591 = vsub.f32 %v1435, %v2590
        %v2592 = vand.u32 %v2591, 4294901760
        %2593 = vmatprep.subr.mxu0 %v2592
        %v2594 = vand.u32 %v1434, 4294901760
        %v2595 = vsub.f32 %v1434, %v2594
        %v2596 = vand.u32 %v2595, 4294901760
        %2597 = vmatpush1.msra.mxu0 %v2596
        %v2598 = vand.u32 %v1437, 4294901760
        %v2599 = vsub.f32 %v1437, %v2598
        %v2600 = vand.u32 %v2599, 4294901760
        %2601 = vmatprep.subr.mxu0 %v2600
        %v2602 = vand.u32 %v1436, 4294901760
        %v2603 = vsub.f32 %v1436, %v2602
        %v2604 = vand.u32 %v2603, 4294901760
        %2605 = vmatpush1.msra.mxu0 %v2604
        %v2606 = vand.u32 %v1439, 4294901760
        %v2607 = vsub.f32 %v1439, %v2606
        %v2608 = vand.u32 %v2607, 4294901760
        %2609 = vmatprep.subr.mxu0 %v2608
        %v2610 = vand.u32 %v1438, 4294901760
        %v2611 = vsub.f32 %v1438, %v2610
        %v2612 = vand.u32 %v2611, 4294901760
        %2613 = vmatpush1.msra.mxu0 %v2612
        %v2614 = vand.u32 %v1441, 4294901760
        %v2615 = vsub.f32 %v1441, %v2614
        %v2616 = vand.u32 %v2615, 4294901760
        %2617 = vmatprep.subr.mxu0 %v2616
        %v2618 = vand.u32 %v1440, 4294901760
        %v2619 = vsub.f32 %v1440, %v2618
        %v2620 = vand.u32 %v2619, 4294901760
        %2621 = vmatpush1.msra.mxu0 %v2620
        %v2622 = vand.u32 %v1443, 4294901760
        %v2623 = vsub.f32 %v1443, %v2622
        %v2624 = vand.u32 %v2623, 4294901760
        %2625 = vmatprep.subr.mxu0 %v2624
        %v2626 = vand.u32 %v1442, 4294901760
        %v2627 = vsub.f32 %v1442, %v2626
        %v2628 = vand.u32 %v2627, 4294901760
        %2629 = vmatpush1.msra.mxu0 %v2628
        %v2630 = vand.u32 %v1445, 4294901760
        %v2631 = vsub.f32 %v1445, %v2630
        %v2632 = vand.u32 %v2631, 4294901760
        %2633 = vmatprep.subr.mxu0 %v2632
        %v2634 = vand.u32 %v1444, 4294901760
        %v2635 = vsub.f32 %v1444, %v2634
        %v2636 = vand.u32 %v2635, 4294901760
        %2637 = vmatpush1.msra.mxu0 %v2636
        %v2638 = vand.u32 %v1447, 4294901760
        %v2639 = vsub.f32 %v1447, %v2638
        %v2640 = vand.u32 %v2639, 4294901760
        %2641 = vmatprep.subr.mxu0 %v2640
        %v2642 = vand.u32 %v1446, 4294901760
        %v2643 = vsub.f32 %v1446, %v2642
        %v2644 = vand.u32 %v2643, 4294901760
        %2645 = vmatpush1.msra.mxu0 %v2644
        %v2646 = vand.u32 %v1449, 4294901760
        %v2647 = vsub.f32 %v1449, %v2646
        %v2648 = vand.u32 %v2647, 4294901760
        %2649 = vmatprep.subr.mxu0 %v2648
        %v2650 = vand.u32 %v1448, 4294901760
        %v2651 = vsub.f32 %v1448, %v2650
        %v2652 = vand.u32 %v2651, 4294901760
        %2653 = vmatpush1.msra.mxu0 %v2652
        %v2654 = vand.u32 %v1451, 4294901760
        %v2655 = vsub.f32 %v1451, %v2654
        %v2656 = vand.u32 %v2655, 4294901760
        %2657 = vmatprep.subr.mxu0 %v2656
        %v2658 = vand.u32 %v1450, 4294901760
        %v2659 = vsub.f32 %v1450, %v2658
        %v2660 = vand.u32 %v2659, 4294901760
        %2661 = vmatpush1.msra.mxu0 %v2660
        %v2662 = vand.u32 %v1453, 4294901760
        %v2663 = vsub.f32 %v1453, %v2662
        %v2664 = vand.u32 %v2663, 4294901760
        %2665 = vmatprep.subr.mxu0 %v2664
        %v2666 = vand.u32 %v1452, 4294901760
        %v2667 = vsub.f32 %v1452, %v2666
        %v2668 = vand.u32 %v2667, 4294901760
        %2669 = vmatpush1.msra.mxu0 %v2668
        %v2670 = vand.u32 %v1455, 4294901760
        %v2671 = vsub.f32 %v1455, %v2670
        %v2672 = vand.u32 %v2671, 4294901760
        %2673 = vmatprep.subr.mxu0 %v2672
        %v2674 = vand.u32 %v1454, 4294901760
        %v2675 = vsub.f32 %v1454, %v2674
        %v2676 = vand.u32 %v2675, 4294901760
        %2677 = vmatpush1.msra.mxu0 %v2676
        %v2678 = vand.u32 %v1457, 4294901760
        %v2679 = vsub.f32 %v1457, %v2678
        %v2680 = vand.u32 %v2679, 4294901760
        %2681 = vmatprep.subr.mxu0 %v2680
        %v2682 = vand.u32 %v1456, 4294901760
        %v2683 = vsub.f32 %v1456, %v2682
        %v2684 = vand.u32 %v2683, 4294901760
        %2685 = vmatpush1.msra.mxu0 %v2684
        %v2686 = vand.u32 %v1459, 4294901760
        %v2687 = vsub.f32 %v1459, %v2686
        %v2688 = vand.u32 %v2687, 4294901760
        %2689 = vmatprep.subr.mxu0 %v2688
        %v2690 = vand.u32 %v1458, 4294901760
        %v2691 = vsub.f32 %v1458, %v2690
        %v2692 = vand.u32 %v2691, 4294901760
        %2693 = vmatpush1.msra.mxu0 %v2692
        %v2694 = vand.u32 %v1461, 4294901760
        %v2695 = vsub.f32 %v1461, %v2694
        %v2696 = vand.u32 %v2695, 4294901760
        %2697 = vmatprep.subr.mxu0 %v2696
        %v2698 = vand.u32 %v1460, 4294901760
        %v2699 = vsub.f32 %v1460, %v2698
        %v2700 = vand.u32 %v2699, 4294901760
        %2701 = vmatpush1.msra.mxu0 %v2700
        %v2702 = vand.u32 %v1463, 4294901760
        %v2703 = vsub.f32 %v1463, %v2702
        %v2704 = vand.u32 %v2703, 4294901760
        %2705 = vmatprep.subr.mxu0 %v2704
        %v2706 = vand.u32 %v1462, 4294901760
        %v2707 = vsub.f32 %v1462, %v2706
        %v2708 = vand.u32 %v2707, 4294901760
        %2709 = vmatpush1.msra.mxu0 %v2708
        %v2710 = vand.u32 %v1465, 4294901760
        %v2711 = vsub.f32 %v1465, %v2710
        %v2712 = vand.u32 %v2711, 4294901760
        %2713 = vmatprep.subr.mxu0 %v2712
        %v2714 = vand.u32 %v1464, 4294901760
        %v2715 = vsub.f32 %v1464, %v2714
        %v2716 = vand.u32 %v2715, 4294901760
        %2717 = vmatpush1.msra.mxu0 %v2716
        %v2718 = vand.u32 %v1467, 4294901760
        %v2719 = vsub.f32 %v1467, %v2718
        %v2720 = vand.u32 %v2719, 4294901760
        %2721 = vmatprep.subr.mxu0 %v2720
        %v2722 = vand.u32 %v1466, 4294901760
        %v2723 = vsub.f32 %v1466, %v2722
        %v2724 = vand.u32 %v2723, 4294901760
        %2725 = vmatpush1.msra.mxu0 %v2724
        %v2726 = vand.u32 %v1469, 4294901760
        %v2727 = vsub.f32 %v1469, %v2726
        %v2728 = vand.u32 %v2727, 4294901760
        %2729 = vmatprep.subr.mxu0 %v2728
        %v2730 = vand.u32 %v1468, 4294901760
        %v2731 = vsub.f32 %v1468, %v2730
        %v2732 = vand.u32 %v2731, 4294901760
        %2733 = vmatpush1.msra.mxu0 %v2732
        %v2734 = vand.u32 %v1471, 4294901760
        %v2735 = vsub.f32 %v1471, %v2734
        %v2736 = vand.u32 %v2735, 4294901760
        %2737 = vmatprep.subr.mxu0 %v2736
        %v2738 = vand.u32 %v1470, 4294901760
        %v2739 = vsub.f32 %v1470, %v2738
        %v2740 = vand.u32 %v2739, 4294901760
        %2741 = vmatpush1.msra.mxu0 %v2740
        %v2742 = vand.u32 %v1473, 4294901760
        %v2743 = vsub.f32 %v1473, %v2742
        %v2744 = vand.u32 %v2743, 4294901760
        %2745 = vmatprep.subr.mxu0 %v2744
        %v2746 = vand.u32 %v1472, 4294901760
        %v2747 = vsub.f32 %v1472, %v2746
        %v2748 = vand.u32 %v2747, 4294901760
        %2749 = vmatpush1.msra.mxu0 %v2748
        %v2750 = vand.u32 %v1475, 4294901760
        %v2751 = vsub.f32 %v1475, %v2750
        %v2752 = vand.u32 %v2751, 4294901760
        %2753 = vmatprep.subr.mxu0 %v2752
        %v2754 = vand.u32 %v1474, 4294901760
        %v2755 = vsub.f32 %v1474, %v2754
        %v2756 = vand.u32 %v2755, 4294901760
        %2757 = vmatpush1.msra.mxu0 %v2756
        %v2758 = vand.u32 %v1477, 4294901760
        %v2759 = vsub.f32 %v1477, %v2758
        %v2760 = vand.u32 %v2759, 4294901760
        %2761 = vmatprep.subr.mxu0 %v2760
        %v2762 = vand.u32 %v1476, 4294901760
        %v2763 = vsub.f32 %v1476, %v2762
        %v2764 = vand.u32 %v2763, 4294901760
        %2765 = vmatpush1.msra.mxu0 %v2764
        %v2766 = vand.u32 %v1407, 4294901760
        %2767 = vmatprep.mubr.f32.mxu0 %v2766
        %v2768 = vand.u32 %v1406, 4294901760
        %2769 = vmatmul.mubr.f32.gmra.mrb[0].mxu0 %v2768
        %v2770 = vpop.f32.mrb[0].mxu0
        %v2771 = vadd.f32 %v2470, %v2770
        %v2772 = vpop.f32.mrb[0].mxu0
        %v2773 = vadd.f32 %v2472, %v2772
        %v2774 = vand.u32 %v1409, 4294901760
        %2775 = vmatprep.mubr.f32.mxu0 %v2774
        %v2776 = vand.u32 %v1408, 4294901760
        %2777 = vmatmul.mubr.f32.gmra.mrb[0].mxu0 %v2776
        %v2778 = vpop.f32.mrb[0].mxu0
        %v2779 = vadd.f32 %v2482, %v2778
        %v2780 = vpop.f32.mrb[0].mxu0
        %v2781 = vadd.f32 %v2484, %v2780
        %v2782 = vand.u32 %v1411, 4294901760
        %2783 = vmatprep.mubr.f32.mxu0 %v2782
        %v2784 = vand.u32 %v1410, 4294901760
        %2785 = vmatmul.mubr.f32.gmra.mrb[0].mxu0 %v2784
        %v2786 = vpop.f32.mrb[0].mxu0
        %v2787 = vadd.f32 %v2494, %v2786
        %v2788 = vpop.f32.mrb[0].mxu0
        %v2789 = vadd.f32 %v2496, %v2788
        %v2790 = vand.u32 %v1413, 4294901760
        %2791 = vmatprep.mubr.f32.mxu0 %v2790
        %v2792 = vand.u32 %v1412, 4294901760
        %2793 = vmatmul.mubr.f32.gmra.mrb[0].mxu0 %v2792
        %v2794 = vpop.f32.mrb[0].mxu0
        %v2795 = vadd.f32 %v2506, %v2794
        %v2796 = vpop.f32.mrb[0].mxu0
        %v2797 = vadd.f32 %v2508, %v2796
        %2798 = vdwg.mxu0
        %v2799 = vand.u32 %v1415, 4294901760
        %2800 = vmatprep.subr.mxu0 %v2799
        %v2801 = vand.u32 %v1414, 4294901760
        %2802 = vmatpush1.msra.mxu0 %v2801
        %v2803 = vand.u32 %v1417, 4294901760
        %2804 = vmatprep.subr.mxu0 %v2803
        %v2805 = vand.u32 %v1416, 4294901760
        %2806 = vmatpush1.msra.mxu0 %v2805
        %v2807 = vand.u32 %v1419, 4294901760
        %2808 = vmatprep.subr.mxu0 %v2807
        %v2809 = vand.u32 %v1418, 4294901760
        %2810 = vmatpush1.msra.mxu0 %v2809
        %v2811 = vand.u32 %v1421, 4294901760
        %2812 = vmatprep.subr.mxu0 %v2811
        %v2813 = vand.u32 %v1420, 4294901760
        %2814 = vmatpush1.msra.mxu0 %v2813
        %v2815 = vand.u32 %v1423, 4294901760
        %2816 = vmatprep.subr.mxu0 %v2815
        %v2817 = vand.u32 %v1422, 4294901760
        %2818 = vmatpush1.msra.mxu0 %v2817
        %v2819 = vand.u32 %v1425, 4294901760
        %2820 = vmatprep.subr.mxu0 %v2819
        %v2821 = vand.u32 %v1424, 4294901760
        %2822 = vmatpush1.msra.mxu0 %v2821
        %v2823 = vand.u32 %v1427, 4294901760
        %2824 = vmatprep.subr.mxu0 %v2823
        %v2825 = vand.u32 %v1426, 4294901760
        %2826 = vmatpush1.msra.mxu0 %v2825
        %v2827 = vand.u32 %v1429, 4294901760
        %2828 = vmatprep.subr.mxu0 %v2827
        %v2829 = vand.u32 %v1428, 4294901760
        %2830 = vmatpush1.msra.mxu0 %v2829
        %v2831 = vand.u32 %v1431, 4294901760
        %2832 = vmatprep.subr.mxu0 %v2831
        %v2833 = vand.u32 %v1430, 4294901760
        %2834 = vmatpush1.msra.mxu0 %v2833
        %v2835 = vand.u32 %v1433, 4294901760
        %2836 = vmatprep.subr.mxu0 %v2835
        %v2837 = vand.u32 %v1432, 4294901760
        %2838 = vmatpush1.msra.mxu0 %v2837
        %v2839 = vand.u32 %v1435, 4294901760
        %2840 = vmatprep.subr.mxu0 %v2839
        %v2841 = vand.u32 %v1434, 4294901760
        %2842 = vmatpush1.msra.mxu0 %v2841
        %v2843 = vand.u32 %v1437, 4294901760
        %2844 = vmatprep.subr.mxu0 %v2843
        %v2845 = vand.u32 %v1436, 4294901760
        %2846 = vmatpush1.msra.mxu0 %v2845
        %v2847 = vand.u32 %v1439, 4294901760
        %2848 = vmatprep.subr.mxu0 %v2847
        %v2849 = vand.u32 %v1438, 4294901760
        %2850 = vmatpush1.msra.mxu0 %v2849
        %v2851 = vand.u32 %v1441, 4294901760
        %2852 = vmatprep.subr.mxu0 %v2851
        %v2853 = vand.u32 %v1440, 4294901760
        %2854 = vmatpush1.msra.mxu0 %v2853
        %v2855 = vand.u32 %v1443, 4294901760
        %2856 = vmatprep.subr.mxu0 %v2855
        %v2857 = vand.u32 %v1442, 4294901760
        %2858 = vmatpush1.msra.mxu0 %v2857
        %v2859 = vand.u32 %v1445, 4294901760
        %2860 = vmatprep.subr.mxu0 %v2859
        %v2861 = vand.u32 %v1444, 4294901760
        %2862 = vmatpush1.msra.mxu0 %v2861
        %v2863 = vand.u32 %v1447, 4294901760
        %2864 = vmatprep.subr.mxu0 %v2863
        %v2865 = vand.u32 %v1446, 4294901760
        %2866 = vmatpush1.msra.mxu0 %v2865
        %v2867 = vand.u32 %v1449, 4294901760
        %2868 = vmatprep.subr.mxu0 %v2867
        %v2869 = vand.u32 %v1448, 4294901760
        %2870 = vmatpush1.msra.mxu0 %v2869
        %v2871 = vand.u32 %v1451, 4294901760
        %2872 = vmatprep.subr.mxu0 %v2871
        %v2873 = vand.u32 %v1450, 4294901760
        %2874 = vmatpush1.msra.mxu0 %v2873
        %v2875 = vand.u32 %v1453, 4294901760
        %2876 = vmatprep.subr.mxu0 %v2875
        %v2877 = vand.u32 %v1452, 4294901760
        %2878 = vmatpush1.msra.mxu0 %v2877
        %v2879 = vand.u32 %v1455, 4294901760
        %2880 = vmatprep.subr.mxu0 %v2879
        %v2881 = vand.u32 %v1454, 4294901760
        %2882 = vmatpush1.msra.mxu0 %v2881
        %v2883 = vand.u32 %v1457, 4294901760
        %2884 = vmatprep.subr.mxu0 %v2883
        %v2885 = vand.u32 %v1456, 4294901760
        %2886 = vmatpush1.msra.mxu0 %v2885
        %v2887 = vand.u32 %v1459, 4294901760
        %2888 = vmatprep.subr.mxu0 %v2887
        %v2889 = vand.u32 %v1458, 4294901760
        %2890 = vmatpush1.msra.mxu0 %v2889
        %v2891 = vand.u32 %v1461, 4294901760
        %2892 = vmatprep.subr.mxu0 %v2891
        %v2893 = vand.u32 %v1460, 4294901760
        %2894 = vmatpush1.msra.mxu0 %v2893
        %v2895 = vand.u32 %v1463, 4294901760
        %2896 = vmatprep.subr.mxu0 %v2895
        %v2897 = vand.u32 %v1462, 4294901760
        %2898 = vmatpush1.msra.mxu0 %v2897
        %v2899 = vand.u32 %v1465, 4294901760
        %2900 = vmatprep.subr.mxu0 %v2899
        %v2901 = vand.u32 %v1464, 4294901760
        %2902 = vmatpush1.msra.mxu0 %v2901
        %v2903 = vand.u32 %v1467, 4294901760
        %2904 = vmatprep.subr.mxu0 %v2903
        %v2905 = vand.u32 %v1466, 4294901760
        %2906 = vmatpush1.msra.mxu0 %v2905
        %v2907 = vand.u32 %v1469, 4294901760
        %2908 = vmatprep.subr.mxu0 %v2907
        %v2909 = vand.u32 %v1468, 4294901760
        %2910 = vmatpush1.msra.mxu0 %v2909
        %v2911 = vand.u32 %v1471, 4294901760
        %2912 = vmatprep.subr.mxu0 %v2911
        %v2913 = vand.u32 %v1470, 4294901760
        %2914 = vmatpush1.msra.mxu0 %v2913
        %v2915 = vand.u32 %v1473, 4294901760
        %2916 = vmatprep.subr.mxu0 %v2915
        %v2917 = vand.u32 %v1472, 4294901760
        %2918 = vmatpush1.msra.mxu0 %v2917
        %v2919 = vand.u32 %v1475, 4294901760
        %2920 = vmatprep.subr.mxu0 %v2919
        %v2921 = vand.u32 %v1474, 4294901760
        %2922 = vmatpush1.msra.mxu0 %v2921
        %v2923 = vand.u32 %v1477, 4294901760
        %2924 = vmatprep.subr.mxu0 %v2923
        %v2925 = vand.u32 %v1476, 4294901760
        %2926 = vmatpush1.msra.mxu0 %v2925
        %v2927 = vand.u32 %v1407, 4294901760
        %2928 = vmatprep.mubr.f32.mxu0 %v2927
        %v2929 = vand.u32 %v1406, 4294901760
        %2930 = vmatmul.mubr.f32.gmra.mrb[0].mxu0 %v2929
        %v2931 = vpop.f32.mrb[0].mxu0
        %v2932 = vadd.f32 %v2771, %v2931
        %v2933 = vpop.f32.mrb[0].mxu0
        %v2934 = vadd.f32 %v2773, %v2933
        %v2935 = vand.u32 %v1409, 4294901760
        %2936 = vmatprep.mubr.f32.mxu0 %v2935
        %v2937 = vand.u32 %v1408, 4294901760
        %2938 = vmatmul.mubr.f32.gmra.mrb[0].mxu0 %v2937
        %v2939 = vpop.f32.mrb[0].mxu0
        %v2940 = vadd.f32 %v2779, %v2939
        %v2941 = vpop.f32.mrb[0].mxu0
        %v2942 = vadd.f32 %v2781, %v2941
        %v2943 = vand.u32 %v1411, 4294901760
        %2944 = vmatprep.mubr.f32.mxu0 %v2943
        %v2945 = vand.u32 %v1410, 4294901760
        %2946 = vmatmul.mubr.f32.gmra.mrb[0].mxu0 %v2945
        %v2947 = vpop.f32.mrb[0].mxu0
        %v2948 = vadd.f32 %v2787, %v2947
        %v2949 = vpop.f32.mrb[0].mxu0
        %v2950 = vadd.f32 %v2789, %v2949
        %v2951 = vand.u32 %v1413, 4294901760
        %2952 = vmatprep.mubr.f32.mxu0 %v2951
        %v2953 = vand.u32 %v1412, 4294901760
        %2954 = vmatmul.mubr.f32.gmra.mrb[0].mxu0 %v2953
        %v2955 = vpop.f32.mrb[0].mxu0
        %v2956 = vadd.f32 %v2795, %v2955
        %v2957 = vpop.f32.mrb[0].mxu0
        %v2958 = vadd.f32 %v2797, %v2957
        %2959 = vdwg.mxu0
        %v2960 = vmax.f32 %v2932, 0.0
        %v2961 = vmax.f32 %v2934, 0.0
        %v2962 = vmax.f32 %v2940, 0.0
        %v2963 = vmax.f32 %v2942, 0.0
        %v2964 = vmax.f32 %v2948, 0.0
        %v2965 = vmax.f32 %v2950, 0.0
        %v2966 = vmax.f32 %v2956, 0.0
        %v2967 = vmax.f32 %v2958, 0.0
        %v2968 = vld [vmem:[%s308] sm:$0xff]
        %v2969 = vld [vmem:[%s308 + $0x8] sm:$0xff]
        %v2970 = vld [vmem:[%s308 + $0x10] sm:$0xff]
        %v2971 = vld [vmem:[%s308 + $0x18] sm:$0xff]
        %v2972 = vand.u32 %v361, 4294901760
        %2973 = vmatprep.subr.mxu0 %v2972
        %v2974 = vand.u32 %v360, 4294901760
        %2975 = vmatpush1.msra.mxu0 %v2974
        %v2976 = vand.u32 %v363, 4294901760
        %2977 = vmatprep.subr.mxu0 %v2976
        %v2978 = vand.u32 %v362, 4294901760
        %2979 = vmatpush1.msra.mxu0 %v2978
        %v2980 = vand.u32 %v365, 4294901760
        %2981 = vmatprep.subr.mxu0 %v2980
        %v2982 = vand.u32 %v364, 4294901760
        %2983 = vmatpush1.msra.mxu0 %v2982
        %v2984 = vand.u32 %v367, 4294901760
        %2985 = vmatprep.subr.mxu0 %v2984
        %v2986 = vand.u32 %v366, 4294901760
        %2987 = vmatpush1.msra.mxu0 %v2986
        %v2988 = vand.u32 %v369, 4294901760
        %2989 = vmatprep.subr.mxu0 %v2988
        %v2990 = vand.u32 %v368, 4294901760
        %2991 = vmatpush1.msra.mxu0 %v2990
        %v2992 = vand.u32 %v371, 4294901760
        %2993 = vmatprep.subr.mxu0 %v2992
        %v2994 = vand.u32 %v370, 4294901760
        %2995 = vmatpush1.msra.mxu0 %v2994
        %v2996 = vand.u32 %v373, 4294901760
        %2997 = vmatprep.subr.mxu0 %v2996
        %v2998 = vand.u32 %v372, 4294901760
        %2999 = vmatpush1.msra.mxu0 %v2998
        %v3000 = vand.u32 %v375, 4294901760
        %3001 = vmatprep.subr.mxu0 %v3000
        %v3002 = vand.u32 %v374, 4294901760
        %3003 = vmatpush1.msra.mxu0 %v3002
        %v3004 = vand.u32 %v377, 4294901760
        %3005 = vmatprep.subr.mxu0 %v3004
        %v3006 = vand.u32 %v376, 4294901760
        %3007 = vmatpush1.msra.mxu0 %v3006
        %v3008 = vand.u32 %v379, 4294901760
        %3009 = vmatprep.subr.mxu0 %v3008
        %v3010 = vand.u32 %v378, 4294901760
        %3011 = vmatpush1.msra.mxu0 %v3010
        %v3012 = vand.u32 %v381, 4294901760
        %3013 = vmatprep.subr.mxu0 %v3012
        %v3014 = vand.u32 %v380, 4294901760
        %3015 = vmatpush1.msra.mxu0 %v3014
        %v3016 = vand.u32 %v383, 4294901760
        %3017 = vmatprep.subr.mxu0 %v3016
        %v3018 = vand.u32 %v382, 4294901760
        %3019 = vmatpush1.msra.mxu0 %v3018
        %v3020 = vand.u32 %v385, 4294901760
        %3021 = vmatprep.subr.mxu0 %v3020
        %v3022 = vand.u32 %v384, 4294901760
        %3023 = vmatpush1.msra.mxu0 %v3022
        %v3024 = vand.u32 %v387, 4294901760
        %3025 = vmatprep.subr.mxu0 %v3024
        %v3026 = vand.u32 %v386, 4294901760
        %3027 = vmatpush1.msra.mxu0 %v3026
        %v3028 = vand.u32 %v389, 4294901760
        %3029 = vmatprep.subr.mxu0 %v3028
        %v3030 = vand.u32 %v388, 4294901760
        %3031 = vmatpush1.msra.mxu0 %v3030
        %v3032 = vand.u32 %v391, 4294901760
        %3033 = vmatprep.subr.mxu0 %v3032
        %v3034 = vand.u32 %v390, 4294901760
        %3035 = vmatpush1.msra.mxu0 %v3034
        %3036 = vmatprep.subr.mxu0 0.0
        %3037 = vmatpush1.msra.mxu0 0.0
        %3038 = vmatprep.subr.mxu0 0.0
        %3039 = vmatpush1.msra.mxu0 0.0
        %3040 = vmatprep.subr.mxu0 0.0
        %3041 = vmatpush1.msra.mxu0 0.0
        %3042 = vmatprep.subr.mxu0 0.0
        %3043 = vmatpush1.msra.mxu0 0.0
        %3044 = vmatprep.subr.mxu0 0.0
        %3045 = vmatpush1.msra.mxu0 0.0
        %3046 = vmatprep.subr.mxu0 0.0
        %3047 = vmatpush1.msra.mxu0 0.0
        %3048 = vmatprep.subr.mxu0 0.0
        %3049 = vmatpush1.msra.mxu0 0.0
        %3050 = vmatprep.subr.mxu0 0.0
        %3051 = vmatpush1.msra.mxu0 0.0
        %3052 = vmatprep.subr.mxu0 0.0
        %3053 = vmatpush1.msra.mxu0 0.0
        %3054 = vmatprep.subr.mxu0 0.0
        %3055 = vmatpush1.msra.mxu0 0.0
        %3056 = vmatprep.subr.mxu0 0.0
        %3057 = vmatpush1.msra.mxu0 0.0
        %3058 = vmatprep.subr.mxu0 0.0
        %3059 = vmatpush1.msra.mxu0 0.0
        %3060 = vmatprep.subr.mxu0 0.0
        %3061 = vmatpush1.msra.mxu0 0.0
        %3062 = vmatprep.subr.mxu0 0.0
        %3063 = vmatpush1.msra.mxu0 0.0
        %3064 = vmatprep.subr.mxu0 0.0
        %3065 = vmatpush1.msra.mxu0 0.0
        %3066 = vmatprep.subr.mxu0 0.0
        %3067 = vmatpush1.msra.mxu0 0.0
        %3068 = vmatprep.mubr.f32.mxu0 0.0
        %v3069 = vand.u32 %v2968, 4294901760
        %v3070 = vsub.f32 %v2968, %v3069
        %v3071 = vand.u32 %v3070, 4294901760
        %v3072 = vsub.f32 %v3070, %v3071
        %v3073 = vand.u32 %v3072, 4294901760
        %3074 = vmatmul.mubr.f32.gmra.mrb[0].mxu0 %v3073
        %v3075 = vpop.f32.mrb[0].mxu0
        %v3076 = vadd.f32 %v397, %v3075
        %v3077 = vpop.f32.mrb[0].mxu0
        %v3078 = vadd.f32 %v401, %v3077
        %3079 = vmatprep.mubr.f32.mxu0 0.0
        %v3080 = vand.u32 %v2969, 4294901760
        %v3081 = vsub.f32 %v2969, %v3080
        %v3082 = vand.u32 %v3081, 4294901760
        %v3083 = vsub.f32 %v3081, %v3082
        %v3084 = vand.u32 %v3083, 4294901760
        %3085 = vmatmul.mubr.f32.gmra.mrb[0].mxu0 %v3084
        %v3086 = vpop.f32.mrb[0].mxu0
        %v3087 = vadd.f32 %v397, %v3086
        %v3088 = vpop.f32.mrb[0].mxu0
        %v3089 = vadd.f32 %v401, %v3088
        %3090 = vmatprep.mubr.f32.mxu0 0.0
        %v3091 = vand.u32 %v2970, 4294901760
        %v3092 = vsub.f32 %v2970, %v3091
        %v3093 = vand.u32 %v3092, 4294901760
        %v3094 = vsub.f32 %v3092, %v3093
        %v3095 = vand.u32 %v3094, 4294901760
        %3096 = vmatmul.mubr.f32.gmra.mrb[0].mxu0 %v3095
        %v3097 = vpop.f32.mrb[0].mxu0
        %v3098 = vadd.f32 %v397, %v3097
        %v3099 = vpop.f32.mrb[0].mxu0
        %v3100 = vadd.f32 %v401, %v3099
        %3101 = vmatprep.mubr.f32.mxu0 0.0
        %v3102 = vand.u32 %v2971, 4294901760
        %v3103 = vsub.f32 %v2971, %v3102
        %v3104 = vand.u32 %v3103, 4294901760
        %v3105 = vsub.f32 %v3103, %v3104
        %v3106 = vand.u32 %v3105, 4294901760
        %3107 = vmatmul.mubr.f32.gmra.mrb[0].mxu0 %v3106
        %v3108 = vpop.f32.mrb[0].mxu0
        %v3109 = vadd.f32 %v397, %v3108
        %v3110 = vpop.f32.mrb[0].mxu0
        %v3111 = vadd.f32 %v401, %v3110
        %3112 = vdwg.mxu0
        %v3113 = vand.u32 %v361, 4294901760
        %v3114 = vsub.f32 %v361, %v3113
        %v3115 = vand.u32 %v3114, 4294901760
        %v3116 = vsub.f32 %v3114, %v3115
        %v3117 = vand.u32 %v3116, 4294901760
        %3118 = vmatprep.subr.mxu0 %v3117
        %v3119 = vand.u32 %v360, 4294901760
        %v3120 = vsub.f32 %v360, %v3119
        %v3121 = vand.u32 %v3120, 4294901760
        %v3122 = vsub.f32 %v3120, %v3121
        %v3123 = vand.u32 %v3122, 4294901760
        %3124 = vmatpush1.msra.mxu0 %v3123
        %v3125 = vand.u32 %v363, 4294901760
        %v3126 = vsub.f32 %v363, %v3125
        %v3127 = vand.u32 %v3126, 4294901760
        %v3128 = vsub.f32 %v3126, %v3127
        %v3129 = vand.u32 %v3128, 4294901760
        %3130 = vmatprep.subr.mxu0 %v3129
        %v3131 = vand.u32 %v362, 4294901760
        %v3132 = vsub.f32 %v362, %v3131
        %v3133 = vand.u32 %v3132, 4294901760
        %v3134 = vsub.f32 %v3132, %v3133
        %v3135 = vand.u32 %v3134, 4294901760
        %3136 = vmatpush1.msra.mxu0 %v3135
        %v3137 = vand.u32 %v365, 4294901760
        %v3138 = vsub.f32 %v365, %v3137
        %v3139 = vand.u32 %v3138, 4294901760
        %v3140 = vsub.f32 %v3138, %v3139
        %v3141 = vand.u32 %v3140, 4294901760
        %3142 = vmatprep.subr.mxu0 %v3141
        %v3143 = vand.u32 %v364, 4294901760
        %v3144 = vsub.f32 %v364, %v3143
        %v3145 = vand.u32 %v3144, 4294901760
        %v3146 = vsub.f32 %v3144, %v3145
        %v3147 = vand.u32 %v3146, 4294901760
        %3148 = vmatpush1.msra.mxu0 %v3147
        %v3149 = vand.u32 %v367, 4294901760
        %v3150 = vsub.f32 %v367, %v3149
        %v3151 = vand.u32 %v3150, 4294901760
        %v3152 = vsub.f32 %v3150, %v3151
        %v3153 = vand.u32 %v3152, 4294901760
        %3154 = vmatprep.subr.mxu0 %v3153
        %v3155 = vand.u32 %v366, 4294901760
        %v3156 = vsub.f32 %v366, %v3155
        %v3157 = vand.u32 %v3156, 4294901760
        %v3158 = vsub.f32 %v3156, %v3157
        %v3159 = vand.u32 %v3158, 4294901760
        %3160 = vmatpush1.msra.mxu0 %v3159
        %v3161 = vand.u32 %v369, 4294901760
        %v3162 = vsub.f32 %v369, %v3161
        %v3163 = vand.u32 %v3162, 4294901760
        %v3164 = vsub.f32 %v3162, %v3163
        %v3165 = vand.u32 %v3164, 4294901760
        %3166 = vmatprep.subr.mxu0 %v3165
        %v3167 = vand.u32 %v368, 4294901760
        %v3168 = vsub.f32 %v368, %v3167
        %v3169 = vand.u32 %v3168, 4294901760
        %v3170 = vsub.f32 %v3168, %v3169
        %v3171 = vand.u32 %v3170, 4294901760
        %3172 = vmatpush1.msra.mxu0 %v3171
        %v3173 = vand.u32 %v371, 4294901760
        %v3174 = vsub.f32 %v371, %v3173
        %v3175 = vand.u32 %v3174, 4294901760
        %v3176 = vsub.f32 %v3174, %v3175
        %v3177 = vand.u32 %v3176, 4294901760
        %3178 = vmatprep.subr.mxu0 %v3177
        %v3179 = vand.u32 %v370, 4294901760
        %v3180 = vsub.f32 %v370, %v3179
        %v3181 = vand.u32 %v3180, 4294901760
        %v3182 = vsub.f32 %v3180, %v3181
        %v3183 = vand.u32 %v3182, 4294901760
        %3184 = vmatpush1.msra.mxu0 %v3183
        %v3185 = vand.u32 %v373, 4294901760
        %v3186 = vsub.f32 %v373, %v3185
        %v3187 = vand.u32 %v3186, 4294901760
        %v3188 = vsub.f32 %v3186, %v3187
        %v3189 = vand.u32 %v3188, 4294901760
        %3190 = vmatprep.subr.mxu0 %v3189
        %v3191 = vand.u32 %v372, 4294901760
        %v3192 = vsub.f32 %v372, %v3191
        %v3193 = vand.u32 %v3192, 4294901760
        %v3194 = vsub.f32 %v3192, %v3193
        %v3195 = vand.u32 %v3194, 4294901760
        %3196 = vmatpush1.msra.mxu0 %v3195
        %v3197 = vand.u32 %v375, 4294901760
        %v3198 = vsub.f32 %v375, %v3197
        %v3199 = vand.u32 %v3198, 4294901760
        %v3200 = vsub.f32 %v3198, %v3199
        %v3201 = vand.u32 %v3200, 4294901760
        %3202 = vmatprep.subr.mxu0 %v3201
        %v3203 = vand.u32 %v374, 4294901760
        %v3204 = vsub.f32 %v374, %v3203
        %v3205 = vand.u32 %v3204, 4294901760
        %v3206 = vsub.f32 %v3204, %v3205
        %v3207 = vand.u32 %v3206, 4294901760
        %3208 = vmatpush1.msra.mxu0 %v3207
        %v3209 = vand.u32 %v377, 4294901760
        %v3210 = vsub.f32 %v377, %v3209
        %v3211 = vand.u32 %v3210, 4294901760
        %v3212 = vsub.f32 %v3210, %v3211
        %v3213 = vand.u32 %v3212, 4294901760
        %3214 = vmatprep.subr.mxu0 %v3213
        %v3215 = vand.u32 %v376, 4294901760
        %v3216 = vsub.f32 %v376, %v3215
        %v3217 = vand.u32 %v3216, 4294901760
        %v3218 = vsub.f32 %v3216, %v3217
        %v3219 = vand.u32 %v3218, 4294901760
        %3220 = vmatpush1.msra.mxu0 %v3219
        %v3221 = vand.u32 %v379, 4294901760
        %v3222 = vsub.f32 %v379, %v3221
        %v3223 = vand.u32 %v3222, 4294901760
        %v3224 = vsub.f32 %v3222, %v3223
        %v3225 = vand.u32 %v3224, 4294901760
        %3226 = vmatprep.subr.mxu0 %v3225
        %v3227 = vand.u32 %v378, 4294901760
        %v3228 = vsub.f32 %v378, %v3227
        %v3229 = vand.u32 %v3228, 4294901760
        %v3230 = vsub.f32 %v3228, %v3229
        %v3231 = vand.u32 %v3230, 4294901760
        %3232 = vmatpush1.msra.mxu0 %v3231
        %v3233 = vand.u32 %v381, 4294901760
        %v3234 = vsub.f32 %v381, %v3233
        %v3235 = vand.u32 %v3234, 4294901760
        %v3236 = vsub.f32 %v3234, %v3235
        %v3237 = vand.u32 %v3236, 4294901760
        %3238 = vmatprep.subr.mxu0 %v3237
        %v3239 = vand.u32 %v380, 4294901760
        %v3240 = vsub.f32 %v380, %v3239
        %v3241 = vand.u32 %v3240, 4294901760
        %v3242 = vsub.f32 %v3240, %v3241
        %v3243 = vand.u32 %v3242, 4294901760
        %3244 = vmatpush1.msra.mxu0 %v3243
        %v3245 = vand.u32 %v383, 4294901760
        %v3246 = vsub.f32 %v383, %v3245
        %v3247 = vand.u32 %v3246, 4294901760
        %v3248 = vsub.f32 %v3246, %v3247
        %v3249 = vand.u32 %v3248, 4294901760
        %3250 = vmatprep.subr.mxu0 %v3249
        %v3251 = vand.u32 %v382, 4294901760
        %v3252 = vsub.f32 %v382, %v3251
        %v3253 = vand.u32 %v3252, 4294901760
        %v3254 = vsub.f32 %v3252, %v3253
        %v3255 = vand.u32 %v3254, 4294901760
        %3256 = vmatpush1.msra.mxu0 %v3255
        %v3257 = vand.u32 %v385, 4294901760
        %v3258 = vsub.f32 %v385, %v3257
        %v3259 = vand.u32 %v3258, 4294901760
        %v3260 = vsub.f32 %v3258, %v3259
        %v3261 = vand.u32 %v3260, 4294901760
        %3262 = vmatprep.subr.mxu0 %v3261
        %v3263 = vand.u32 %v384, 4294901760
        %v3264 = vsub.f32 %v384, %v3263
        %v3265 = vand.u32 %v3264, 4294901760
        %v3266 = vsub.f32 %v3264, %v3265
        %v3267 = vand.u32 %v3266, 4294901760
        %3268 = vmatpush1.msra.mxu0 %v3267
        %v3269 = vand.u32 %v387, 4294901760
        %v3270 = vsub.f32 %v387, %v3269
        %v3271 = vand.u32 %v3270, 4294901760
        %v3272 = vsub.f32 %v3270, %v3271
        %v3273 = vand.u32 %v3272, 4294901760
        %3274 = vmatprep.subr.mxu0 %v3273
        %v3275 = vand.u32 %v386, 4294901760
        %v3276 = vsub.f32 %v386, %v3275
        %v3277 = vand.u32 %v3276, 4294901760
        %v3278 = vsub.f32 %v3276, %v3277
        %v3279 = vand.u32 %v3278, 4294901760
        %3280 = vmatpush1.msra.mxu0 %v3279
        %v3281 = vand.u32 %v389, 4294901760
        %v3282 = vsub.f32 %v389, %v3281
        %v3283 = vand.u32 %v3282, 4294901760
        %v3284 = vsub.f32 %v3282, %v3283
        %v3285 = vand.u32 %v3284, 4294901760
        %3286 = vmatprep.subr.mxu0 %v3285
        %v3287 = vand.u32 %v388, 4294901760
        %v3288 = vsub.f32 %v388, %v3287
        %v3289 = vand.u32 %v3288, 4294901760
        %v3290 = vsub.f32 %v3288, %v3289
        %v3291 = vand.u32 %v3290, 4294901760
        %3292 = vmatpush1.msra.mxu0 %v3291
        %v3293 = vand.u32 %v391, 4294901760
        %v3294 = vsub.f32 %v391, %v3293
        %v3295 = vand.u32 %v3294, 4294901760
        %v3296 = vsub.f32 %v3294, %v3295
        %v3297 = vand.u32 %v3296, 4294901760
        %3298 = vmatprep.subr.mxu0 %v3297
        %v3299 = vand.u32 %v390, 4294901760
        %v3300 = vsub.f32 %v390, %v3299
        %v3301 = vand.u32 %v3300, 4294901760
        %v3302 = vsub.f32 %v3300, %v3301
        %v3303 = vand.u32 %v3302, 4294901760
        %3304 = vmatpush1.msra.mxu0 %v3303
        %3305 = vmatprep.subr.mxu0 0.0
        %3306 = vmatpush1.msra.mxu0 0.0
        %3307 = vmatprep.subr.mxu0 0.0
        %3308 = vmatpush1.msra.mxu0 0.0
        %3309 = vmatprep.subr.mxu0 0.0
        %3310 = vmatpush1.msra.mxu0 0.0
        %3311 = vmatprep.subr.mxu0 0.0
        %3312 = vmatpush1.msra.mxu0 0.0
        %3313 = vmatprep.subr.mxu0 0.0
        %3314 = vmatpush1.msra.mxu0 0.0
        %3315 = vmatprep.subr.mxu0 0.0
        %3316 = vmatpush1.msra.mxu0 0.0
        %3317 = vmatprep.subr.mxu0 0.0
        %3318 = vmatpush1.msra.mxu0 0.0
        %3319 = vmatprep.subr.mxu0 0.0
        %3320 = vmatpush1.msra.mxu0 0.0
        %3321 = vmatprep.subr.mxu0 0.0
        %3322 = vmatpush1.msra.mxu0 0.0
        %3323 = vmatprep.subr.mxu0 0.0
        %3324 = vmatpush1.msra.mxu0 0.0
        %3325 = vmatprep.subr.mxu0 0.0
        %3326 = vmatpush1.msra.mxu0 0.0
        %3327 = vmatprep.subr.mxu0 0.0
        %3328 = vmatpush1.msra.mxu0 0.0
        %3329 = vmatprep.subr.mxu0 0.0
        %3330 = vmatpush1.msra.mxu0 0.0
        %3331 = vmatprep.subr.mxu0 0.0
        %3332 = vmatpush1.msra.mxu0 0.0
        %3333 = vmatprep.subr.mxu0 0.0
        %3334 = vmatpush1.msra.mxu0 0.0
        %3335 = vmatprep.subr.mxu0 0.0
        %3336 = vmatpush1.msra.mxu0 0.0
        %3337 = vmatprep.mubr.f32.mxu0 0.0
        %v3338 = vand.u32 %v2968, 4294901760
        %3339 = vmatmul.mubr.f32.gmra.mrb[0].mxu0 %v3338
        %v3340 = vpop.f32.mrb[0].mxu0
        %v3341 = vadd.f32 %v3076, %v3340
        %v3342 = vpop.f32.mrb[0].mxu0
        %v3343 = vadd.f32 %v3078, %v3342
        %3344 = vmatprep.mubr.f32.mxu0 0.0
        %v3345 = vand.u32 %v2969, 4294901760
        %3346 = vmatmul.mubr.f32.gmra.mrb[0].mxu0 %v3345
        %v3347 = vpop.f32.mrb[0].mxu0
        %v3348 = vadd.f32 %v3087, %v3347
        %v3349 = vpop.f32.mrb[0].mxu0
        %v3350 = vadd.f32 %v3089, %v3349
        %3351 = vmatprep.mubr.f32.mxu0 0.0
        %v3352 = vand.u32 %v2970, 4294901760
        %3353 = vmatmul.mubr.f32.gmra.mrb[0].mxu0 %v3352
        %v3354 = vpop.f32.mrb[0].mxu0
        %v3355 = vadd.f32 %v3098, %v3354
        %v3356 = vpop.f32.mrb[0].mxu0
        %v3357 = vadd.f32 %v3100, %v3356
        %3358 = vmatprep.mubr.f32.mxu0 0.0
        %v3359 = vand.u32 %v2971, 4294901760
        %3360 = vmatmul.mubr.f32.gmra.mrb[0].mxu0 %v3359
        %v3361 = vpop.f32.mrb[0].mxu0
        %v3362 = vadd.f32 %v3109, %v3361
        %v3363 = vpop.f32.mrb[0].mxu0
        %v3364 = vadd.f32 %v3111, %v3363
        %3365 = vdwg.mxu0
        %v3366 = vand.u32 %v361, 4294901760
        %v3367 = vsub.f32 %v361, %v3366
        %3368 = vmatprep.subr.mxu0 %v3367
        %v3369 = vand.u32 %v360, 4294901760
        %v3370 = vsub.f32 %v360, %v3369
        %3371 = vmatpush1.msra.mxu0 %v3370
        %v3372 = vand.u32 %v363, 4294901760
        %v3373 = vsub.f32 %v363, %v3372
        %3374 = vmatprep.subr.mxu0 %v3373
        %v3375 = vand.u32 %v362, 4294901760
        %v3376 = vsub.f32 %v362, %v3375
        %3377 = vmatpush1.msra.mxu0 %v3376
        %v3378 = vand.u32 %v365, 4294901760
        %v3379 = vsub.f32 %v365, %v3378
        %3380 = vmatprep.subr.mxu0 %v3379
        %v3381 = vand.u32 %v364, 4294901760
        %v3382 = vsub.f32 %v364, %v3381
        %3383 = vmatpush1.msra.mxu0 %v3382
        %v3384 = vand.u32 %v367, 4294901760
        %v3385 = vsub.f32 %v367, %v3384
        %3386 = vmatprep.subr.mxu0 %v3385
        %v3387 = vand.u32 %v366, 4294901760
        %v3388 = vsub.f32 %v366, %v3387
        %3389 = vmatpush1.msra.mxu0 %v3388
        %v3390 = vand.u32 %v369, 4294901760
        %v3391 = vsub.f32 %v369, %v3390
        %3392 = vmatprep.subr.mxu0 %v3391
        %v3393 = vand.u32 %v368, 4294901760
        %v3394 = vsub.f32 %v368, %v3393
        %3395 = vmatpush1.msra.mxu0 %v3394
        %v3396 = vand.u32 %v371, 4294901760
        %v3397 = vsub.f32 %v371, %v3396
        %3398 = vmatprep.subr.mxu0 %v3397
        %v3399 = vand.u32 %v370, 4294901760
        %v3400 = vsub.f32 %v370, %v3399
        %3401 = vmatpush1.msra.mxu0 %v3400
        %v3402 = vand.u32 %v373, 4294901760
        %v3403 = vsub.f32 %v373, %v3402
        %3404 = vmatprep.subr.mxu0 %v3403
        %v3405 = vand.u32 %v372, 4294901760
        %v3406 = vsub.f32 %v372, %v3405
        %3407 = vmatpush1.msra.mxu0 %v3406
        %v3408 = vand.u32 %v375, 4294901760
        %v3409 = vsub.f32 %v375, %v3408
        %3410 = vmatprep.subr.mxu0 %v3409
        %v3411 = vand.u32 %v374, 4294901760
        %v3412 = vsub.f32 %v374, %v3411
        %3413 = vmatpush1.msra.mxu0 %v3412
        %v3414 = vand.u32 %v377, 4294901760
        %v3415 = vsub.f32 %v377, %v3414
        %3416 = vmatprep.subr.mxu0 %v3415
        %v3417 = vand.u32 %v376, 4294901760
        %v3418 = vsub.f32 %v376, %v3417
        %3419 = vmatpush1.msra.mxu0 %v3418
        %v3420 = vand.u32 %v379, 4294901760
        %v3421 = vsub.f32 %v379, %v3420
        %3422 = vmatprep.subr.mxu0 %v3421
        %v3423 = vand.u32 %v378, 4294901760
        %v3424 = vsub.f32 %v378, %v3423
        %3425 = vmatpush1.msra.mxu0 %v3424
        %v3426 = vand.u32 %v381, 4294901760
        %v3427 = vsub.f32 %v381, %v3426
        %3428 = vmatprep.subr.mxu0 %v3427
        %v3429 = vand.u32 %v380, 4294901760
        %v3430 = vsub.f32 %v380, %v3429
        %3431 = vmatpush1.msra.mxu0 %v3430
        %v3432 = vand.u32 %v383, 4294901760
        %v3433 = vsub.f32 %v383, %v3432
        %3434 = vmatprep.subr.mxu0 %v3433
        %v3435 = vand.u32 %v382, 4294901760
        %v3436 = vsub.f32 %v382, %v3435
        %3437 = vmatpush1.msra.mxu0 %v3436
        %v3438 = vand.u32 %v385, 4294901760
        %v3439 = vsub.f32 %v385, %v3438
        %3440 = vmatprep.subr.mxu0 %v3439
        %v3441 = vand.u32 %v384, 4294901760
        %v3442 = vsub.f32 %v384, %v3441
        %3443 = vmatpush1.msra.mxu0 %v3442
        %v3444 = vand.u32 %v387, 4294901760
        %v3445 = vsub.f32 %v387, %v3444
        %3446 = vmatprep.subr.mxu0 %v3445
        %v3447 = vand.u32 %v386, 4294901760
        %v3448 = vsub.f32 %v386, %v3447
        %3449 = vmatpush1.msra.mxu0 %v3448
        %v3450 = vand.u32 %v389, 4294901760
        %v3451 = vsub.f32 %v389, %v3450
        %3452 = vmatprep.subr.mxu0 %v3451
        %v3453 = vand.u32 %v388, 4294901760
        %v3454 = vsub.f32 %v388, %v3453
        %3455 = vmatpush1.msra.mxu0 %v3454
        %v3456 = vand.u32 %v391, 4294901760
        %v3457 = vsub.f32 %v391, %v3456
        %3458 = vmatprep.subr.mxu0 %v3457
        %v3459 = vand.u32 %v390, 4294901760
        %v3460 = vsub.f32 %v390, %v3459
        %3461 = vmatpush1.msra.mxu0 %v3460
        %3462 = vmatprep.subr.mxu0 0.0
        %3463 = vmatpush1.msra.mxu0 0.0
        %3464 = vmatprep.subr.mxu0 0.0
        %3465 = vmatpush1.msra.mxu0 0.0
        %3466 = vmatprep.subr.mxu0 0.0
        %3467 = vmatpush1.msra.mxu0 0.0
        %3468 = vmatprep.subr.mxu0 0.0
        %3469 = vmatpush1.msra.mxu0 0.0
        %3470 = vmatprep.subr.mxu0 0.0
        %3471 = vmatpush1.msra.mxu0 0.0
        %3472 = vmatprep.subr.mxu0 0.0
        %3473 = vmatpush1.msra.mxu0 0.0
        %3474 = vmatprep.subr.mxu0 0.0
        %3475 = vmatpush1.msra.mxu0 0.0
        %3476 = vmatprep.subr.mxu0 0.0
        %3477 = vmatpush1.msra.mxu0 0.0
        %3478 = vmatprep.subr.mxu0 0.0
        %3479 = vmatpush1.msra.mxu0 0.0
        %3480 = vmatprep.subr.mxu0 0.0
        %3481 = vmatpush1.msra.mxu0 0.0
        %3482 = vmatprep.subr.mxu0 0.0
        %3483 = vmatpush1.msra.mxu0 0.0
        %3484 = vmatprep.subr.mxu0 0.0
        %3485 = vmatpush1.msra.mxu0 0.0
        %3486 = vmatprep.subr.mxu0 0.0
        %3487 = vmatpush1.msra.mxu0 0.0
        %3488 = vmatprep.subr.mxu0 0.0
        %3489 = vmatpush1.msra.mxu0 0.0
        %3490 = vmatprep.subr.mxu0 0.0
        %3491 = vmatpush1.msra.mxu0 0.0
        %3492 = vmatprep.subr.mxu0 0.0
        %3493 = vmatpush1.msra.mxu0 0.0
        %3494 = vmatprep.mubr.f32.mxu0 0.0
        %v3495 = vand.u32 %v2968, 4294901760
        %v3496 = vsub.f32 %v2968, %v3495
        %3497 = vmatmul.mubr.f32.gmra.mrb[0].mxu0 %v3496
        %v3498 = vpop.f32.mrb[0].mxu0
        %v3499 = vadd.f32 %v3341, %v3498
        %v3500 = vpop.f32.mrb[0].mxu0
        %v3501 = vadd.f32 %v3343, %v3500
        %3502 = vmatprep.mubr.f32.mxu0 0.0
        %v3503 = vand.u32 %v2969, 4294901760
        %v3504 = vsub.f32 %v2969, %v3503
        %3505 = vmatmul.mubr.f32.gmra.mrb[0].mxu0 %v3504
        %v3506 = vpop.f32.mrb[0].mxu0
        %v3507 = vadd.f32 %v3348, %v3506
        %v3508 = vpop.f32.mrb[0].mxu0
        %v3509 = vadd.f32 %v3350, %v3508
        %3510 = vmatprep.mubr.f32.mxu0 0.0
        %v3511 = vand.u32 %v2970, 4294901760
        %v3512 = vsub.f32 %v2970, %v3511
        %3513 = vmatmul.mubr.f32.gmra.mrb[0].mxu0 %v3512
        %v3514 = vpop.f32.mrb[0].mxu0
        %v3515 = vadd.f32 %v3355, %v3514
        %v3516 = vpop.f32.mrb[0].mxu0
        %v3517 = vadd.f32 %v3357, %v3516
        %3518 = vmatprep.mubr.f32.mxu0 0.0
        %v3519 = vand.u32 %v2971, 4294901760
        %v3520 = vsub.f32 %v2971, %v3519
        %3521 = vmatmul.mubr.f32.gmra.mrb[0].mxu0 %v3520
        %v3522 = vpop.f32.mrb[0].mxu0
        %v3523 = vadd.f32 %v3362, %v3522
        %v3524 = vpop.f32.mrb[0].mxu0
        %v3525 = vadd.f32 %v3364, %v3524
        %3526 = vdwg.mxu0
        %v3527 = vand.u32 %v361, 4294901760
        %3528 = vmatprep.subr.mxu0 %v3527
        %v3529 = vand.u32 %v360, 4294901760
        %3530 = vmatpush1.msra.mxu0 %v3529
        %v3531 = vand.u32 %v363, 4294901760
        %3532 = vmatprep.subr.mxu0 %v3531
        %v3533 = vand.u32 %v362, 4294901760
        %3534 = vmatpush1.msra.mxu0 %v3533
        %v3535 = vand.u32 %v365, 4294901760
        %3536 = vmatprep.subr.mxu0 %v3535
        %v3537 = vand.u32 %v364, 4294901760
        %3538 = vmatpush1.msra.mxu0 %v3537
        %v3539 = vand.u32 %v367, 4294901760
        %3540 = vmatprep.subr.mxu0 %v3539
        %v3541 = vand.u32 %v366, 4294901760
        %3542 = vmatpush1.msra.mxu0 %v3541
        %v3543 = vand.u32 %v369, 4294901760
        %3544 = vmatprep.subr.mxu0 %v3543
        %v3545 = vand.u32 %v368, 4294901760
        %3546 = vmatpush1.msra.mxu0 %v3545
        %v3547 = vand.u32 %v371, 4294901760
        %3548 = vmatprep.subr.mxu0 %v3547
        %v3549 = vand.u32 %v370, 4294901760
        %3550 = vmatpush1.msra.mxu0 %v3549
        %v3551 = vand.u32 %v373, 4294901760
        %3552 = vmatprep.subr.mxu0 %v3551
        %v3553 = vand.u32 %v372, 4294901760
        %3554 = vmatpush1.msra.mxu0 %v3553
        %v3555 = vand.u32 %v375, 4294901760
        %3556 = vmatprep.subr.mxu0 %v3555
        %v3557 = vand.u32 %v374, 4294901760
        %3558 = vmatpush1.msra.mxu0 %v3557
        %v3559 = vand.u32 %v377, 4294901760
        %3560 = vmatprep.subr.mxu0 %v3559
        %v3561 = vand.u32 %v376, 4294901760
        %3562 = vmatpush1.msra.mxu0 %v3561
        %v3563 = vand.u32 %v379, 4294901760
        %3564 = vmatprep.subr.mxu0 %v3563
        %v3565 = vand.u32 %v378, 4294901760
        %3566 = vmatpush1.msra.mxu0 %v3565
        %v3567 = vand.u32 %v381, 4294901760
        %3568 = vmatprep.subr.mxu0 %v3567
        %v3569 = vand.u32 %v380, 4294901760
        %3570 = vmatpush1.msra.mxu0 %v3569
        %v3571 = vand.u32 %v383, 4294901760
        %3572 = vmatprep.subr.mxu0 %v3571
        %v3573 = vand.u32 %v382, 4294901760
        %3574 = vmatpush1.msra.mxu0 %v3573
        %v3575 = vand.u32 %v385, 4294901760
        %3576 = vmatprep.subr.mxu0 %v3575
        %v3577 = vand.u32 %v384, 4294901760
        %3578 = vmatpush1.msra.mxu0 %v3577
        %v3579 = vand.u32 %v387, 4294901760
        %3580 = vmatprep.subr.mxu0 %v3579
        %v3581 = vand.u32 %v386, 4294901760
        %3582 = vmatpush1.msra.mxu0 %v3581
        %v3583 = vand.u32 %v389, 4294901760
        %3584 = vmatprep.subr.mxu0 %v3583
        %v3585 = vand.u32 %v388, 4294901760
        %3586 = vmatpush1.msra.mxu0 %v3585
        %v3587 = vand.u32 %v391, 4294901760
        %3588 = vmatprep.subr.mxu0 %v3587
        %v3589 = vand.u32 %v390, 4294901760
        %3590 = vmatpush1.msra.mxu0 %v3589
        %3591 = vmatprep.subr.mxu0 0.0
        %3592 = vmatpush1.msra.mxu0 0.0
        %3593 = vmatprep.subr.mxu0 0.0
        %3594 = vmatpush1.msra.mxu0 0.0
        %3595 = vmatprep.subr.mxu0 0.0
        %3596 = vmatpush1.msra.mxu0 0.0
        %3597 = vmatprep.subr.mxu0 0.0
        %3598 = vmatpush1.msra.mxu0 0.0
        %3599 = vmatprep.subr.mxu0 0.0
        %3600 = vmatpush1.msra.mxu0 0.0
        %3601 = vmatprep.subr.mxu0 0.0
        %3602 = vmatpush1.msra.mxu0 0.0
        %3603 = vmatprep.subr.mxu0 0.0
        %3604 = vmatpush1.msra.mxu0 0.0
        %3605 = vmatprep.subr.mxu0 0.0
        %3606 = vmatpush1.msra.mxu0 0.0
        %3607 = vmatprep.subr.mxu0 0.0
        %3608 = vmatpush1.msra.mxu0 0.0
        %3609 = vmatprep.subr.mxu0 0.0
        %3610 = vmatpush1.msra.mxu0 0.0
        %3611 = vmatprep.subr.mxu0 0.0
        %3612 = vmatpush1.msra.mxu0 0.0
        %3613 = vmatprep.subr.mxu0 0.0
        %3614 = vmatpush1.msra.mxu0 0.0
        %3615 = vmatprep.subr.mxu0 0.0
        %3616 = vmatpush1.msra.mxu0 0.0
        %3617 = vmatprep.subr.mxu0 0.0
        %3618 = vmatpush1.msra.mxu0 0.0
        %3619 = vmatprep.subr.mxu0 0.0
        %3620 = vmatpush1.msra.mxu0 0.0
        %3621 = vmatprep.subr.mxu0 0.0
        %3622 = vmatpush1.msra.mxu0 0.0
        %3623 = vmatprep.mubr.f32.mxu0 0.0
        %v3624 = vand.u32 %v2968, 4294901760
        %v3625 = vsub.f32 %v2968, %v3624
        %v3626 = vand.u32 %v3625, 4294901760
        %3627 = vmatmul.mubr.f32.gmra.mrb[0].mxu0 %v3626
        %v3628 = vpop.f32.mrb[0].mxu0
        %v3629 = vadd.f32 %v3499, %v3628
        %v3630 = vpop.f32.mrb[0].mxu0
        %v3631 = vadd.f32 %v3501, %v3630
        %3632 = vmatprep.mubr.f32.mxu0 0.0
        %v3633 = vand.u32 %v2969, 4294901760
        %v3634 = vsub.f32 %v2969, %v3633
        %v3635 = vand.u32 %v3634, 4294901760
        %3636 = vmatmul.mubr.f32.gmra.mrb[0].mxu0 %v3635
        %v3637 = vpop.f32.mrb[0].mxu0
        %v3638 = vadd.f32 %v3507, %v3637
        %v3639 = vpop.f32.mrb[0].mxu0
        %v3640 = vadd.f32 %v3509, %v3639
        %3641 = vmatprep.mubr.f32.mxu0 0.0
        %v3642 = vand.u32 %v2970, 4294901760
        %v3643 = vsub.f32 %v2970, %v3642
        %v3644 = vand.u32 %v3643, 4294901760
        %3645 = vmatmul.mubr.f32.gmra.mrb[0].mxu0 %v3644
        %v3646 = vpop.f32.mrb[0].mxu0
        %v3647 = vadd.f32 %v3515, %v3646
        %v3648 = vpop.f32.mrb[0].mxu0
        %v3649 = vadd.f32 %v3517, %v3648
        %3650 = vmatprep.mubr.f32.mxu0 0.0
        %v3651 = vand.u32 %v2971, 4294901760
        %v3652 = vsub.f32 %v2971, %v3651
        %v3653 = vand.u32 %v3652, 4294901760
        %3654 = vmatmul.mubr.f32.gmra.mrb[0].mxu0 %v3653
        %v3655 = vpop.f32.mrb[0].mxu0
        %v3656 = vadd.f32 %v3523, %v3655
        %v3657 = vpop.f32.mrb[0].mxu0
        %v3658 = vadd.f32 %v3525, %v3657
        %3659 = vdwg.mxu0
        %v3660 = vand.u32 %v361, 4294901760
        %v3661 = vsub.f32 %v361, %v3660
        %v3662 = vand.u32 %v3661, 4294901760
        %3663 = vmatprep.subr.mxu0 %v3662
        %v3664 = vand.u32 %v360, 4294901760
        %v3665 = vsub.f32 %v360, %v3664
        %v3666 = vand.u32 %v3665, 4294901760
        %3667 = vmatpush1.msra.mxu0 %v3666
        %v3668 = vand.u32 %v363, 4294901760
        %v3669 = vsub.f32 %v363, %v3668
        %v3670 = vand.u32 %v3669, 4294901760
        %3671 = vmatprep.subr.mxu0 %v3670
        %v3672 = vand.u32 %v362, 4294901760
        %v3673 = vsub.f32 %v362, %v3672
        %v3674 = vand.u32 %v3673, 4294901760
        %3675 = vmatpush1.msra.mxu0 %v3674
        %v3676 = vand.u32 %v365, 4294901760
        %v3677 = vsub.f32 %v365, %v3676
        %v3678 = vand.u32 %v3677, 4294901760
        %3679 = vmatprep.subr.mxu0 %v3678
        %v3680 = vand.u32 %v364, 4294901760
        %v3681 = vsub.f32 %v364, %v3680
        %v3682 = vand.u32 %v3681, 4294901760
        %3683 = vmatpush1.msra.mxu0 %v3682
        %v3684 = vand.u32 %v367, 4294901760
        %v3685 = vsub.f32 %v367, %v3684
        %v3686 = vand.u32 %v3685, 4294901760
        %3687 = vmatprep.subr.mxu0 %v3686
        %v3688 = vand.u32 %v366, 4294901760
        %v3689 = vsub.f32 %v366, %v3688
        %v3690 = vand.u32 %v3689, 4294901760
        %3691 = vmatpush1.msra.mxu0 %v3690
        %v3692 = vand.u32 %v369, 4294901760
        %v3693 = vsub.f32 %v369, %v3692
        %v3694 = vand.u32 %v3693, 4294901760
        %3695 = vmatprep.subr.mxu0 %v3694
        %v3696 = vand.u32 %v368, 4294901760
        %v3697 = vsub.f32 %v368, %v3696
        %v3698 = vand.u32 %v3697, 4294901760
        %3699 = vmatpush1.msra.mxu0 %v3698
        %v3700 = vand.u32 %v371, 4294901760
        %v3701 = vsub.f32 %v371, %v3700
        %v3702 = vand.u32 %v3701, 4294901760
        %3703 = vmatprep.subr.mxu0 %v3702
        %v3704 = vand.u32 %v370, 4294901760
        %v3705 = vsub.f32 %v370, %v3704
        %v3706 = vand.u32 %v3705, 4294901760
        %3707 = vmatpush1.msra.mxu0 %v3706
        %v3708 = vand.u32 %v373, 4294901760
        %v3709 = vsub.f32 %v373, %v3708
        %v3710 = vand.u32 %v3709, 4294901760
        %3711 = vmatprep.subr.mxu0 %v3710
        %v3712 = vand.u32 %v372, 4294901760
        %v3713 = vsub.f32 %v372, %v3712
        %v3714 = vand.u32 %v3713, 4294901760
        %3715 = vmatpush1.msra.mxu0 %v3714
        %v3716 = vand.u32 %v375, 4294901760
        %v3717 = vsub.f32 %v375, %v3716
        %v3718 = vand.u32 %v3717, 4294901760
        %3719 = vmatprep.subr.mxu0 %v3718
        %v3720 = vand.u32 %v374, 4294901760
        %v3721 = vsub.f32 %v374, %v3720
        %v3722 = vand.u32 %v3721, 4294901760
        %3723 = vmatpush1.msra.mxu0 %v3722
        %v3724 = vand.u32 %v377, 4294901760
        %v3725 = vsub.f32 %v377, %v3724
        %v3726 = vand.u32 %v3725, 4294901760
        %3727 = vmatprep.subr.mxu0 %v3726
        %v3728 = vand.u32 %v376, 4294901760
        %v3729 = vsub.f32 %v376, %v3728
        %v3730 = vand.u32 %v3729, 4294901760
        %3731 = vmatpush1.msra.mxu0 %v3730
        %v3732 = vand.u32 %v379, 4294901760
        %v3733 = vsub.f32 %v379, %v3732
        %v3734 = vand.u32 %v3733, 4294901760
        %3735 = vmatprep.subr.mxu0 %v3734
        %v3736 = vand.u32 %v378, 4294901760
        %v3737 = vsub.f32 %v378, %v3736
        %v3738 = vand.u32 %v3737, 4294901760
        %3739 = vmatpush1.msra.mxu0 %v3738
        %v3740 = vand.u32 %v381, 4294901760
        %v3741 = vsub.f32 %v381, %v3740
        %v3742 = vand.u32 %v3741, 4294901760
        %3743 = vmatprep.subr.mxu0 %v3742
        %v3744 = vand.u32 %v380, 4294901760
        %v3745 = vsub.f32 %v380, %v3744
        %v3746 = vand.u32 %v3745, 4294901760
        %3747 = vmatpush1.msra.mxu0 %v3746
        %v3748 = vand.u32 %v383, 4294901760
        %v3749 = vsub.f32 %v383, %v3748
        %v3750 = vand.u32 %v3749, 4294901760
        %3751 = vmatprep.subr.mxu0 %v3750
        %v3752 = vand.u32 %v382, 4294901760
        %v3753 = vsub.f32 %v382, %v3752
        %v3754 = vand.u32 %v3753, 4294901760
        %3755 = vmatpush1.msra.mxu0 %v3754
        %v3756 = vand.u32 %v385, 4294901760
        %v3757 = vsub.f32 %v385, %v3756
        %v3758 = vand.u32 %v3757, 4294901760
        %3759 = vmatprep.subr.mxu0 %v3758
        %v3760 = vand.u32 %v384, 4294901760
        %v3761 = vsub.f32 %v384, %v3760
        %v3762 = vand.u32 %v3761, 4294901760
        %3763 = vmatpush1.msra.mxu0 %v3762
        %v3764 = vand.u32 %v387, 4294901760
        %v3765 = vsub.f32 %v387, %v3764
        %v3766 = vand.u32 %v3765, 4294901760
        %3767 = vmatprep.subr.mxu0 %v3766
        %v3768 = vand.u32 %v386, 4294901760
        %v3769 = vsub.f32 %v386, %v3768
        %v3770 = vand.u32 %v3769, 4294901760
        %3771 = vmatpush1.msra.mxu0 %v3770
        %v3772 = vand.u32 %v389, 4294901760
        %v3773 = vsub.f32 %v389, %v3772
        %v3774 = vand.u32 %v3773, 4294901760
        %3775 = vmatprep.subr.mxu0 %v3774
        %v3776 = vand.u32 %v388, 4294901760
        %v3777 = vsub.f32 %v388, %v3776
        %v3778 = vand.u32 %v3777, 4294901760
        %3779 = vmatpush1.msra.mxu0 %v3778
        %v3780 = vand.u32 %v391, 4294901760
        %v3781 = vsub.f32 %v391, %v3780
        %v3782 = vand.u32 %v3781, 4294901760
        %3783 = vmatprep.subr.mxu0 %v3782
        %v3784 = vand.u32 %v390, 4294901760
        %v3785 = vsub.f32 %v390, %v3784
        %v3786 = vand.u32 %v3785, 4294901760
        %3787 = vmatpush1.msra.mxu0 %v3786
        %3788 = vmatprep.subr.mxu0 0.0
        %3789 = vmatpush1.msra.mxu0 0.0
        %3790 = vmatprep.subr.mxu0 0.0
        %3791 = vmatpush1.msra.mxu0 0.0
        %3792 = vmatprep.subr.mxu0 0.0
        %3793 = vmatpush1.msra.mxu0 0.0
        %3794 = vmatprep.subr.mxu0 0.0
        %3795 = vmatpush1.msra.mxu0 0.0
        %3796 = vmatprep.subr.mxu0 0.0
        %3797 = vmatpush1.msra.mxu0 0.0
        %3798 = vmatprep.subr.mxu0 0.0
        %3799 = vmatpush1.msra.mxu0 0.0
        %3800 = vmatprep.subr.mxu0 0.0
        %3801 = vmatpush1.msra.mxu0 0.0
        %3802 = vmatprep.subr.mxu0 0.0
        %3803 = vmatpush1.msra.mxu0 0.0
        %3804 = vmatprep.subr.mxu0 0.0
        %3805 = vmatpush1.msra.mxu0 0.0
        %3806 = vmatprep.subr.mxu0 0.0
        %3807 = vmatpush1.msra.mxu0 0.0
        %3808 = vmatprep.subr.mxu0 0.0
        %3809 = vmatpush1.msra.mxu0 0.0
        %3810 = vmatprep.subr.mxu0 0.0
        %3811 = vmatpush1.msra.mxu0 0.0
        %3812 = vmatprep.subr.mxu0 0.0
        %3813 = vmatpush1.msra.mxu0 0.0
        %3814 = vmatprep.subr.mxu0 0.0
        %3815 = vmatpush1.msra.mxu0 0.0
        %3816 = vmatprep.subr.mxu0 0.0
        %3817 = vmatpush1.msra.mxu0 0.0
        %3818 = vmatprep.subr.mxu0 0.0
        %3819 = vmatpush1.msra.mxu0 0.0
        %3820 = vmatprep.mubr.f32.mxu0 0.0
        %v3821 = vand.u32 %v2968, 4294901760
        %3822 = vmatmul.mubr.f32.gmra.mrb[0].mxu0 %v3821
        %v3823 = vpop.f32.mrb[0].mxu0
        %v3824 = vadd.f32 %v3629, %v3823
        %v3825 = vpop.f32.mrb[0].mxu0
        %v3826 = vadd.f32 %v3631, %v3825
        %3827 = vmatprep.mubr.f32.mxu0 0.0
        %v3828 = vand.u32 %v2969, 4294901760
        %3829 = vmatmul.mubr.f32.gmra.mrb[0].mxu0 %v3828
        %v3830 = vpop.f32.mrb[0].mxu0
        %v3831 = vadd.f32 %v3638, %v3830
        %v3832 = vpop.f32.mrb[0].mxu0
        %v3833 = vadd.f32 %v3640, %v3832
        %3834 = vmatprep.mubr.f32.mxu0 0.0
        %v3835 = vand.u32 %v2970, 4294901760
        %3836 = vmatmul.mubr.f32.gmra.mrb[0].mxu0 %v3835
        %v3837 = vpop.f32.mrb[0].mxu0
        %v3838 = vadd.f32 %v3647, %v3837
        %v3839 = vpop.f32.mrb[0].mxu0
        %v3840 = vadd.f32 %v3649, %v3839
        %3841 = vmatprep.mubr.f32.mxu0 0.0
        %v3842 = vand.u32 %v2971, 4294901760
        %3843 = vmatmul.mubr.f32.gmra.mrb[0].mxu0 %v3842
        %v3844 = vpop.f32.mrb[0].mxu0
        %v3845 = vadd.f32 %v3656, %v3844
        %v3846 = vpop.f32.mrb[0].mxu0
        %v3847 = vadd.f32 %v3658, %v3846
        %3848 = vdwg.mxu0
        %v3849 = vand.u32 %v361, 4294901760
        %3850 = vmatprep.subr.mxu0 %v3849
        %v3851 = vand.u32 %v360, 4294901760
        %3852 = vmatpush1.msra.mxu0 %v3851
        %v3853 = vand.u32 %v363, 4294901760
        %3854 = vmatprep.subr.mxu0 %v3853
        %v3855 = vand.u32 %v362, 4294901760
        %3856 = vmatpush1.msra.mxu0 %v3855
        %v3857 = vand.u32 %v365, 4294901760
        %3858 = vmatprep.subr.mxu0 %v3857
        %v3859 = vand.u32 %v364, 4294901760
        %3860 = vmatpush1.msra.mxu0 %v3859
        %v3861 = vand.u32 %v367, 4294901760
        %3862 = vmatprep.subr.mxu0 %v3861
        %v3863 = vand.u32 %v366, 4294901760
        %3864 = vmatpush1.msra.mxu0 %v3863
        %v3865 = vand.u32 %v369, 4294901760
        %3866 = vmatprep.subr.mxu0 %v3865
        %v3867 = vand.u32 %v368, 4294901760
        %3868 = vmatpush1.msra.mxu0 %v3867
        %v3869 = vand.u32 %v371, 4294901760
        %3870 = vmatprep.subr.mxu0 %v3869
        %v3871 = vand.u32 %v370, 4294901760
        %3872 = vmatpush1.msra.mxu0 %v3871
        %v3873 = vand.u32 %v373, 4294901760
        %3874 = vmatprep.subr.mxu0 %v3873
        %v3875 = vand.u32 %v372, 4294901760
        %3876 = vmatpush1.msra.mxu0 %v3875
        %v3877 = vand.u32 %v375, 4294901760
        %3878 = vmatprep.subr.mxu0 %v3877
        %v3879 = vand.u32 %v374, 4294901760
        %3880 = vmatpush1.msra.mxu0 %v3879
        %v3881 = vand.u32 %v377, 4294901760
        %3882 = vmatprep.subr.mxu0 %v3881
        %v3883 = vand.u32 %v376, 4294901760
        %3884 = vmatpush1.msra.mxu0 %v3883
        %v3885 = vand.u32 %v379, 4294901760
        %3886 = vmatprep.subr.mxu0 %v3885
        %v3887 = vand.u32 %v378, 4294901760
        %3888 = vmatpush1.msra.mxu0 %v3887
        %v3889 = vand.u32 %v381, 4294901760
        %3890 = vmatprep.subr.mxu0 %v3889
        %v3891 = vand.u32 %v380, 4294901760
        %3892 = vmatpush1.msra.mxu0 %v3891
        %v3893 = vand.u32 %v383, 4294901760
        %3894 = vmatprep.subr.mxu0 %v3893
        %v3895 = vand.u32 %v382, 4294901760
        %3896 = vmatpush1.msra.mxu0 %v3895
        %v3897 = vand.u32 %v385, 4294901760
        %3898 = vmatprep.subr.mxu0 %v3897
        %v3899 = vand.u32 %v384, 4294901760
        %3900 = vmatpush1.msra.mxu0 %v3899
        %v3901 = vand.u32 %v387, 4294901760
        %3902 = vmatprep.subr.mxu0 %v3901
        %v3903 = vand.u32 %v386, 4294901760
        %3904 = vmatpush1.msra.mxu0 %v3903
        %v3905 = vand.u32 %v389, 4294901760
        %3906 = vmatprep.subr.mxu0 %v3905
        %v3907 = vand.u32 %v388, 4294901760
        %3908 = vmatpush1.msra.mxu0 %v3907
        %v3909 = vand.u32 %v391, 4294901760
        %3910 = vmatprep.subr.mxu0 %v3909
        %v3911 = vand.u32 %v390, 4294901760
        %3912 = vmatpush1.msra.mxu0 %v3911
        %3913 = vmatprep.subr.mxu0 0.0
        %3914 = vmatpush1.msra.mxu0 0.0
        %3915 = vmatprep.subr.mxu0 0.0
        %3916 = vmatpush1.msra.mxu0 0.0
        %3917 = vmatprep.subr.mxu0 0.0
        %3918 = vmatpush1.msra.mxu0 0.0
        %3919 = vmatprep.subr.mxu0 0.0
        %3920 = vmatpush1.msra.mxu0 0.0
        %3921 = vmatprep.subr.mxu0 0.0
        %3922 = vmatpush1.msra.mxu0 0.0
        %3923 = vmatprep.subr.mxu0 0.0
        %3924 = vmatpush1.msra.mxu0 0.0
        %3925 = vmatprep.subr.mxu0 0.0
        %3926 = vmatpush1.msra.mxu0 0.0
        %3927 = vmatprep.subr.mxu0 0.0
        %3928 = vmatpush1.msra.mxu0 0.0
        %3929 = vmatprep.subr.mxu0 0.0
        %3930 = vmatpush1.msra.mxu0 0.0
        %3931 = vmatprep.subr.mxu0 0.0
        %3932 = vmatpush1.msra.mxu0 0.0
        %3933 = vmatprep.subr.mxu0 0.0
        %3934 = vmatpush1.msra.mxu0 0.0
        %3935 = vmatprep.subr.mxu0 0.0
        %3936 = vmatpush1.msra.mxu0 0.0
        %3937 = vmatprep.subr.mxu0 0.0
        %3938 = vmatpush1.msra.mxu0 0.0
        %3939 = vmatprep.subr.mxu0 0.0
        %3940 = vmatpush1.msra.mxu0 0.0
        %3941 = vmatprep.subr.mxu0 0.0
        %3942 = vmatpush1.msra.mxu0 0.0
        %3943 = vmatprep.subr.mxu0 0.0
        %3944 = vmatpush1.msra.mxu0 0.0
        %3945 = vmatprep.mubr.f32.mxu0 0.0
        %v3946 = vand.u32 %v2968, 4294901760
        %3947 = vmatmul.mubr.f32.gmra.mrb[0].mxu0 %v3946
        %v3948 = vpop.f32.mrb[0].mxu0
        %v3949 = vadd.f32 %v3824, %v3948
        %v3950 = vpop.f32.mrb[0].mxu0
        %v3951 = vadd.f32 %v3826, %v3950
        %3952 = vmatprep.mubr.f32.mxu0 0.0
        %v3953 = vand.u32 %v2969, 4294901760
        %3954 = vmatmul.mubr.f32.gmra.mrb[0].mxu0 %v3953
        %v3955 = vpop.f32.mrb[0].mxu0
        %v3956 = vadd.f32 %v3831, %v3955
        %v3957 = vpop.f32.mrb[0].mxu0
        %v3958 = vadd.f32 %v3833, %v3957
        %3959 = vmatprep.mubr.f32.mxu0 0.0
        %v3960 = vand.u32 %v2970, 4294901760
        %3961 = vmatmul.mubr.f32.gmra.mrb[0].mxu0 %v3960
        %v3962 = vpop.f32.mrb[0].mxu0
        %v3963 = vadd.f32 %v3838, %v3962
        %v3964 = vpop.f32.mrb[0].mxu0
        %v3965 = vadd.f32 %v3840, %v3964
        %3966 = vmatprep.mubr.f32.mxu0 0.0
        %v3967 = vand.u32 %v2971, 4294901760
        %3968 = vmatmul.mubr.f32.gmra.mrb[0].mxu0 %v3967
        %v3969 = vpop.f32.mrb[0].mxu0
        %v3970 = vadd.f32 %v3845, %v3969
        %v3971 = vpop.f32.mrb[0].mxu0
        %v3972 = vadd.f32 %v3847, %v3971
        %3973 = vdwg.mxu0
        %v3974 = vmax.f32 %v3949, 0.0
        %v3975 = vmax.f32 %v3951, 0.0
        %v3976 = vmax.f32 %v3956, 0.0
        %v3977 = vmax.f32 %v3958, 0.0
        %v3978 = vmax.f32 %v3963, 0.0
        %v3979 = vmax.f32 %v3965, 0.0
        %v3980 = vmax.f32 %v3970, 0.0
        %v3981 = vmax.f32 %v3972, 0.0
        %v3982 = vand.u32 %v1415, 4294901760
        %3983 = vmatprep.subr.mxu0 %v3982
        %v3984 = vand.u32 %v1414, 4294901760
        %3985 = vmatpush1.msra.mxu0 %v3984
        %v3986 = vand.u32 %v1417, 4294901760
        %3987 = vmatprep.subr.mxu0 %v3986
        %v3988 = vand.u32 %v1416, 4294901760
        %3989 = vmatpush1.msra.mxu0 %v3988
        %v3990 = vand.u32 %v1419, 4294901760
        %3991 = vmatprep.subr.mxu0 %v3990
        %v3992 = vand.u32 %v1418, 4294901760
        %3993 = vmatpush1.msra.mxu0 %v3992
        %v3994 = vand.u32 %v1421, 4294901760
        %3995 = vmatprep.subr.mxu0 %v3994
        %v3996 = vand.u32 %v1420, 4294901760
        %3997 = vmatpush1.msra.mxu0 %v3996
        %v3998 = vand.u32 %v1423, 4294901760
        %3999 = vmatprep.subr.mxu0 %v3998
        %v4000 = vand.u32 %v1422, 4294901760
        %4001 = vmatpush1.msra.mxu0 %v4000
        %v4002 = vand.u32 %v1425, 4294901760
        %4003 = vmatprep.subr.mxu0 %v4002
        %v4004 = vand.u32 %v1424, 4294901760
        %4005 = vmatpush1.msra.mxu0 %v4004
        %v4006 = vand.u32 %v1427, 4294901760
        %4007 = vmatprep.subr.mxu0 %v4006
        %v4008 = vand.u32 %v1426, 4294901760
        %4009 = vmatpush1.msra.mxu0 %v4008
        %v4010 = vand.u32 %v1429, 4294901760
        %4011 = vmatprep.subr.mxu0 %v4010
        %v4012 = vand.u32 %v1428, 4294901760
        %4013 = vmatpush1.msra.mxu0 %v4012
        %v4014 = vand.u32 %v1431, 4294901760
        %4015 = vmatprep.subr.mxu0 %v4014
        %v4016 = vand.u32 %v1430, 4294901760
        %4017 = vmatpush1.msra.mxu0 %v4016
        %v4018 = vand.u32 %v1433, 4294901760
        %4019 = vmatprep.subr.mxu0 %v4018
        %v4020 = vand.u32 %v1432, 4294901760
        %4021 = vmatpush1.msra.mxu0 %v4020
        %v4022 = vand.u32 %v1435, 4294901760
        %4023 = vmatprep.subr.mxu0 %v4022
        %v4024 = vand.u32 %v1434, 4294901760
        %4025 = vmatpush1.msra.mxu0 %v4024
        %v4026 = vand.u32 %v1437, 4294901760
        %4027 = vmatprep.subr.mxu0 %v4026
        %v4028 = vand.u32 %v1436, 4294901760
        %4029 = vmatpush1.msra.mxu0 %v4028
        %v4030 = vand.u32 %v1439, 4294901760
        %4031 = vmatprep.subr.mxu0 %v4030
        %v4032 = vand.u32 %v1438, 4294901760
        %4033 = vmatpush1.msra.mxu0 %v4032
        %v4034 = vand.u32 %v1441, 4294901760
        %4035 = vmatprep.subr.mxu0 %v4034
        %v4036 = vand.u32 %v1440, 4294901760
        %4037 = vmatpush1.msra.mxu0 %v4036
        %v4038 = vand.u32 %v1443, 4294901760
        %4039 = vmatprep.subr.mxu0 %v4038
        %v4040 = vand.u32 %v1442, 4294901760
        %4041 = vmatpush1.msra.mxu0 %v4040
        %v4042 = vand.u32 %v1445, 4294901760
        %4043 = vmatprep.subr.mxu0 %v4042
        %v4044 = vand.u32 %v1444, 4294901760
        %4045 = vmatpush1.msra.mxu0 %v4044
        %v4046 = vand.u32 %v1447, 4294901760
        %4047 = vmatprep.subr.mxu0 %v4046
        %v4048 = vand.u32 %v1446, 4294901760
        %4049 = vmatpush1.msra.mxu0 %v4048
        %v4050 = vand.u32 %v1449, 4294901760
        %4051 = vmatprep.subr.mxu0 %v4050
        %v4052 = vand.u32 %v1448, 4294901760
        %4053 = vmatpush1.msra.mxu0 %v4052
        %v4054 = vand.u32 %v1451, 4294901760
        %4055 = vmatprep.subr.mxu0 %v4054
        %v4056 = vand.u32 %v1450, 4294901760
        %4057 = vmatpush1.msra.mxu0 %v4056
        %v4058 = vand.u32 %v1453, 4294901760
        %4059 = vmatprep.subr.mxu0 %v4058
        %v4060 = vand.u32 %v1452, 4294901760
        %4061 = vmatpush1.msra.mxu0 %v4060
        %v4062 = vand.u32 %v1455, 4294901760
        %4063 = vmatprep.subr.mxu0 %v4062
        %v4064 = vand.u32 %v1454, 4294901760
        %4065 = vmatpush1.msra.mxu0 %v4064
        %v4066 = vand.u32 %v1457, 4294901760
        %4067 = vmatprep.subr.mxu0 %v4066
        %v4068 = vand.u32 %v1456, 4294901760
        %4069 = vmatpush1.msra.mxu0 %v4068
        %v4070 = vand.u32 %v1459, 4294901760
        %4071 = vmatprep.subr.mxu0 %v4070
        %v4072 = vand.u32 %v1458, 4294901760
        %4073 = vmatpush1.msra.mxu0 %v4072
        %v4074 = vand.u32 %v1461, 4294901760
        %4075 = vmatprep.subr.mxu0 %v4074
        %v4076 = vand.u32 %v1460, 4294901760
        %4077 = vmatpush1.msra.mxu0 %v4076
        %v4078 = vand.u32 %v1463, 4294901760
        %4079 = vmatprep.subr.mxu0 %v4078
        %v4080 = vand.u32 %v1462, 4294901760
        %4081 = vmatpush1.msra.mxu0 %v4080
        %v4082 = vand.u32 %v1465, 4294901760
        %4083 = vmatprep.subr.mxu0 %v4082
        %v4084 = vand.u32 %v1464, 4294901760
        %4085 = vmatpush1.msra.mxu0 %v4084
        %v4086 = vand.u32 %v1467, 4294901760
        %4087 = vmatprep.subr.mxu0 %v4086
        %v4088 = vand.u32 %v1466, 4294901760
        %4089 = vmatpush1.msra.mxu0 %v4088
        %v4090 = vand.u32 %v1469, 4294901760
        %4091 = vmatprep.subr.mxu0 %v4090
        %v4092 = vand.u32 %v1468, 4294901760
        %4093 = vmatpush1.msra.mxu0 %v4092
        %v4094 = vand.u32 %v1471, 4294901760
        %4095 = vmatprep.subr.mxu0 %v4094
        %v4096 = vand.u32 %v1470, 4294901760
        %4097 = vmatpush1.msra.mxu0 %v4096
        %v4098 = vand.u32 %v1473, 4294901760
        %4099 = vmatprep.subr.mxu0 %v4098
        %v4100 = vand.u32 %v1472, 4294901760
        %4101 = vmatpush1.msra.mxu0 %v4100
        %v4102 = vand.u32 %v1475, 4294901760
        %4103 = vmatprep.subr.mxu0 %v4102
        %v4104 = vand.u32 %v1474, 4294901760
        %4105 = vmatpush1.msra.mxu0 %v4104
        %v4106 = vand.u32 %v1477, 4294901760
        %4107 = vmatprep.subr.mxu0 %v4106
        %v4108 = vand.u32 %v1476, 4294901760
        %4109 = vmatpush1.msra.mxu0 %v4108
        %v4110 = vand.u32 %v3975, 4294901760
        %v4111 = vsub.f32 %v3975, %v4110
        %v4112 = vand.u32 %v4111, 4294901760
        %v4113 = vsub.f32 %v4111, %v4112
        %v4114 = vand.u32 %v4113, 4294901760
        %4115 = vmatprep.mubr.f32.mxu0 %v4114
        %v4116 = vand.u32 %v3974, 4294901760
        %v4117 = vsub.f32 %v3974, %v4116
        %v4118 = vand.u32 %v4117, 4294901760
        %v4119 = vsub.f32 %v4117, %v4118
        %v4120 = vand.u32 %v4119, 4294901760
        %4121 = vmatmul.mubr.f32.gmra.mrb[0].mxu0 %v4120
        %v4122 = vpop.f32.mrb[0].mxu0
        %v4123 = vadd.f32 %v1483, %v4122
        %v4124 = vpop.f32.mrb[0].mxu0
        %v4125 = vadd.f32 %v1487, %v4124
        %v4126 = vand.u32 %v3977, 4294901760
        %v4127 = vsub.f32 %v3977, %v4126
        %v4128 = vand.u32 %v4127, 4294901760
        %v4129 = vsub.f32 %v4127, %v4128
        %v4130 = vand.u32 %v4129, 4294901760
        %4131 = vmatprep.mubr.f32.mxu0 %v4130
        %v4132 = vand.u32 %v3976, 4294901760
        %v4133 = vsub.f32 %v3976, %v4132
        %v4134 = vand.u32 %v4133, 4294901760
        %v4135 = vsub.f32 %v4133, %v4134
        %v4136 = vand.u32 %v4135, 4294901760
        %4137 = vmatmul.mubr.f32.gmra.mrb[0].mxu0 %v4136
        %v4138 = vpop.f32.mrb[0].mxu0
        %v4139 = vadd.f32 %v1483, %v4138
        %v4140 = vpop.f32.mrb[0].mxu0
        %v4141 = vadd.f32 %v1487, %v4140
        %v4142 = vand.u32 %v3979, 4294901760
        %v4143 = vsub.f32 %v3979, %v4142
        %v4144 = vand.u32 %v4143, 4294901760
        %v4145 = vsub.f32 %v4143, %v4144
        %v4146 = vand.u32 %v4145, 4294901760
        %4147 = vmatprep.mubr.f32.mxu0 %v4146
        %v4148 = vand.u32 %v3978, 4294901760
        %v4149 = vsub.f32 %v3978, %v4148
        %v4150 = vand.u32 %v4149, 4294901760
        %v4151 = vsub.f32 %v4149, %v4150
        %v4152 = vand.u32 %v4151, 4294901760
        %4153 = vmatmul.mubr.f32.gmra.mrb[0].mxu0 %v4152
        %v4154 = vpop.f32.mrb[0].mxu0
        %v4155 = vadd.f32 %v1483, %v4154
        %v4156 = vpop.f32.mrb[0].mxu0
        %v4157 = vadd.f32 %v1487, %v4156
        %v4158 = vand.u32 %v3981, 4294901760
        %v4159 = vsub.f32 %v3981, %v4158
        %v4160 = vand.u32 %v4159, 4294901760
        %v4161 = vsub.f32 %v4159, %v4160
        %v4162 = vand.u32 %v4161, 4294901760
        %4163 = vmatprep.mubr.f32.mxu0 %v4162
        %v4164 = vand.u32 %v3980, 4294901760
        %v4165 = vsub.f32 %v3980, %v4164
        %v4166 = vand.u32 %v4165, 4294901760
        %v4167 = vsub.f32 %v4165, %v4166
        %v4168 = vand.u32 %v4167, 4294901760
        %4169 = vmatmul.mubr.f32.gmra.mrb[0].mxu0 %v4168
        %v4170 = vpop.f32.mrb[0].mxu0
        %v4171 = vadd.f32 %v1483, %v4170
        %v4172 = vpop.f32.mrb[0].mxu0
        %v4173 = vadd.f32 %v1487, %v4172
        %4174 = vdwg.mxu0
        %v4175 = vand.u32 %v1415, 4294901760
        %v4176 = vsub.f32 %v1415, %v4175
        %v4177 = vand.u32 %v4176, 4294901760
        %v4178 = vsub.f32 %v4176, %v4177
        %v4179 = vand.u32 %v4178, 4294901760
        %4180 = vmatprep.subr.mxu0 %v4179
        %v4181 = vand.u32 %v1414, 4294901760
        %v4182 = vsub.f32 %v1414, %v4181
        %v4183 = vand.u32 %v4182, 4294901760
        %v4184 = vsub.f32 %v4182, %v4183
        %v4185 = vand.u32 %v4184, 4294901760
        %4186 = vmatpush1.msra.mxu0 %v4185
        %v4187 = vand.u32 %v1417, 4294901760
        %v4188 = vsub.f32 %v1417, %v4187
        %v4189 = vand.u32 %v4188, 4294901760
        %v4190 = vsub.f32 %v4188, %v4189
        %v4191 = vand.u32 %v4190, 4294901760
        %4192 = vmatprep.subr.mxu0 %v4191
        %v4193 = vand.u32 %v1416, 4294901760
        %v4194 = vsub.f32 %v1416, %v4193
        %v4195 = vand.u32 %v4194, 4294901760
        %v4196 = vsub.f32 %v4194, %v4195
        %v4197 = vand.u32 %v4196, 4294901760
        %4198 = vmatpush1.msra.mxu0 %v4197
        %v4199 = vand.u32 %v1419, 4294901760
        %v4200 = vsub.f32 %v1419, %v4199
        %v4201 = vand.u32 %v4200, 4294901760
        %v4202 = vsub.f32 %v4200, %v4201
        %v4203 = vand.u32 %v4202, 4294901760
        %4204 = vmatprep.subr.mxu0 %v4203
        %v4205 = vand.u32 %v1418, 4294901760
        %v4206 = vsub.f32 %v1418, %v4205
        %v4207 = vand.u32 %v4206, 4294901760
        %v4208 = vsub.f32 %v4206, %v4207
        %v4209 = vand.u32 %v4208, 4294901760
        %4210 = vmatpush1.msra.mxu0 %v4209
        %v4211 = vand.u32 %v1421, 4294901760
        %v4212 = vsub.f32 %v1421, %v4211
        %v4213 = vand.u32 %v4212, 4294901760
        %v4214 = vsub.f32 %v4212, %v4213
        %v4215 = vand.u32 %v4214, 4294901760
        %4216 = vmatprep.subr.mxu0 %v4215
        %v4217 = vand.u32 %v1420, 4294901760
        %v4218 = vsub.f32 %v1420, %v4217
        %v4219 = vand.u32 %v4218, 4294901760
        %v4220 = vsub.f32 %v4218, %v4219
        %v4221 = vand.u32 %v4220, 4294901760
        %4222 = vmatpush1.msra.mxu0 %v4221
        %v4223 = vand.u32 %v1423, 4294901760
        %v4224 = vsub.f32 %v1423, %v4223
        %v4225 = vand.u32 %v4224, 4294901760
        %v4226 = vsub.f32 %v4224, %v4225
        %v4227 = vand.u32 %v4226, 4294901760
        %4228 = vmatprep.subr.mxu0 %v4227
        %v4229 = vand.u32 %v1422, 4294901760
        %v4230 = vsub.f32 %v1422, %v4229
        %v4231 = vand.u32 %v4230, 4294901760
        %v4232 = vsub.f32 %v4230, %v4231
        %v4233 = vand.u32 %v4232, 4294901760
        %4234 = vmatpush1.msra.mxu0 %v4233
        %v4235 = vand.u32 %v1425, 4294901760
        %v4236 = vsub.f32 %v1425, %v4235
        %v4237 = vand.u32 %v4236, 4294901760
        %v4238 = vsub.f32 %v4236, %v4237
        %v4239 = vand.u32 %v4238, 4294901760
        %4240 = vmatprep.subr.mxu0 %v4239
        %v4241 = vand.u32 %v1424, 4294901760
        %v4242 = vsub.f32 %v1424, %v4241
        %v4243 = vand.u32 %v4242, 4294901760
        %v4244 = vsub.f32 %v4242, %v4243
        %v4245 = vand.u32 %v4244, 4294901760
        %4246 = vmatpush1.msra.mxu0 %v4245
        %v4247 = vand.u32 %v1427, 4294901760
        %v4248 = vsub.f32 %v1427, %v4247
        %v4249 = vand.u32 %v4248, 4294901760
        %v4250 = vsub.f32 %v4248, %v4249
        %v4251 = vand.u32 %v4250, 4294901760
        %4252 = vmatprep.subr.mxu0 %v4251
        %v4253 = vand.u32 %v1426, 4294901760
        %v4254 = vsub.f32 %v1426, %v4253
        %v4255 = vand.u32 %v4254, 4294901760
        %v4256 = vsub.f32 %v4254, %v4255
        %v4257 = vand.u32 %v4256, 4294901760
        %4258 = vmatpush1.msra.mxu0 %v4257
        %v4259 = vand.u32 %v1429, 4294901760
        %v4260 = vsub.f32 %v1429, %v4259
        %v4261 = vand.u32 %v4260, 4294901760
        %v4262 = vsub.f32 %v4260, %v4261
        %v4263 = vand.u32 %v4262, 4294901760
        %4264 = vmatprep.subr.mxu0 %v4263
        %v4265 = vand.u32 %v1428, 4294901760
        %v4266 = vsub.f32 %v1428, %v4265
        %v4267 = vand.u32 %v4266, 4294901760
        %v4268 = vsub.f32 %v4266, %v4267
        %v4269 = vand.u32 %v4268, 4294901760
        %4270 = vmatpush1.msra.mxu0 %v4269
        %v4271 = vand.u32 %v1431, 4294901760
        %v4272 = vsub.f32 %v1431, %v4271
        %v4273 = vand.u32 %v4272, 4294901760
        %v4274 = vsub.f32 %v4272, %v4273
        %v4275 = vand.u32 %v4274, 4294901760
        %4276 = vmatprep.subr.mxu0 %v4275
        %v4277 = vand.u32 %v1430, 4294901760
        %v4278 = vsub.f32 %v1430, %v4277
        %v4279 = vand.u32 %v4278, 4294901760
        %v4280 = vsub.f32 %v4278, %v4279
        %v4281 = vand.u32 %v4280, 4294901760
        %4282 = vmatpush1.msra.mxu0 %v4281
        %v4283 = vand.u32 %v1433, 4294901760
        %v4284 = vsub.f32 %v1433, %v4283
        %v4285 = vand.u32 %v4284, 4294901760
        %v4286 = vsub.f32 %v4284, %v4285
        %v4287 = vand.u32 %v4286, 4294901760
        %4288 = vmatprep.subr.mxu0 %v4287
        %v4289 = vand.u32 %v1432, 4294901760
        %v4290 = vsub.f32 %v1432, %v4289
        %v4291 = vand.u32 %v4290, 4294901760
        %v4292 = vsub.f32 %v4290, %v4291
        %v4293 = vand.u32 %v4292, 4294901760
        %4294 = vmatpush1.msra.mxu0 %v4293
        %v4295 = vand.u32 %v1435, 4294901760
        %v4296 = vsub.f32 %v1435, %v4295
        %v4297 = vand.u32 %v4296, 4294901760
        %v4298 = vsub.f32 %v4296, %v4297
        %v4299 = vand.u32 %v4298, 4294901760
        %4300 = vmatprep.subr.mxu0 %v4299
        %v4301 = vand.u32 %v1434, 4294901760
        %v4302 = vsub.f32 %v1434, %v4301
        %v4303 = vand.u32 %v4302, 4294901760
        %v4304 = vsub.f32 %v4302, %v4303
        %v4305 = vand.u32 %v4304, 4294901760
        %4306 = vmatpush1.msra.mxu0 %v4305
        %v4307 = vand.u32 %v1437, 4294901760
        %v4308 = vsub.f32 %v1437, %v4307
        %v4309 = vand.u32 %v4308, 4294901760
        %v4310 = vsub.f32 %v4308, %v4309
        %v4311 = vand.u32 %v4310, 4294901760
        %4312 = vmatprep.subr.mxu0 %v4311
        %v4313 = vand.u32 %v1436, 4294901760
        %v4314 = vsub.f32 %v1436, %v4313
        %v4315 = vand.u32 %v4314, 4294901760
        %v4316 = vsub.f32 %v4314, %v4315
        %v4317 = vand.u32 %v4316, 4294901760
        %4318 = vmatpush1.msra.mxu0 %v4317
        %v4319 = vand.u32 %v1439, 4294901760
        %v4320 = vsub.f32 %v1439, %v4319
        %v4321 = vand.u32 %v4320, 4294901760
        %v4322 = vsub.f32 %v4320, %v4321
        %v4323 = vand.u32 %v4322, 4294901760
        %4324 = vmatprep.subr.mxu0 %v4323
        %v4325 = vand.u32 %v1438, 4294901760
        %v4326 = vsub.f32 %v1438, %v4325
        %v4327 = vand.u32 %v4326, 4294901760
        %v4328 = vsub.f32 %v4326, %v4327
        %v4329 = vand.u32 %v4328, 4294901760
        %4330 = vmatpush1.msra.mxu0 %v4329
        %v4331 = vand.u32 %v1441, 4294901760
        %v4332 = vsub.f32 %v1441, %v4331
        %v4333 = vand.u32 %v4332, 4294901760
        %v4334 = vsub.f32 %v4332, %v4333
        %v4335 = vand.u32 %v4334, 4294901760
        %4336 = vmatprep.subr.mxu0 %v4335
        %v4337 = vand.u32 %v1440, 4294901760
        %v4338 = vsub.f32 %v1440, %v4337
        %v4339 = vand.u32 %v4338, 4294901760
        %v4340 = vsub.f32 %v4338, %v4339
        %v4341 = vand.u32 %v4340, 4294901760
        %4342 = vmatpush1.msra.mxu0 %v4341
        %v4343 = vand.u32 %v1443, 4294901760
        %v4344 = vsub.f32 %v1443, %v4343
        %v4345 = vand.u32 %v4344, 4294901760
        %v4346 = vsub.f32 %v4344, %v4345
        %v4347 = vand.u32 %v4346, 4294901760
        %4348 = vmatprep.subr.mxu0 %v4347
        %v4349 = vand.u32 %v1442, 4294901760
        %v4350 = vsub.f32 %v1442, %v4349
        %v4351 = vand.u32 %v4350, 4294901760
        %v4352 = vsub.f32 %v4350, %v4351
        %v4353 = vand.u32 %v4352, 4294901760
        %4354 = vmatpush1.msra.mxu0 %v4353
        %v4355 = vand.u32 %v1445, 4294901760
        %v4356 = vsub.f32 %v1445, %v4355
        %v4357 = vand.u32 %v4356, 4294901760
        %v4358 = vsub.f32 %v4356, %v4357
        %v4359 = vand.u32 %v4358, 4294901760
        %4360 = vmatprep.subr.mxu0 %v4359
        %v4361 = vand.u32 %v1444, 4294901760
        %v4362 = vsub.f32 %v1444, %v4361
        %v4363 = vand.u32 %v4362, 4294901760
        %v4364 = vsub.f32 %v4362, %v4363
        %v4365 = vand.u32 %v4364, 4294901760
        %4366 = vmatpush1.msra.mxu0 %v4365
        %v4367 = vand.u32 %v1447, 4294901760
        %v4368 = vsub.f32 %v1447, %v4367
        %v4369 = vand.u32 %v4368, 4294901760
        %v4370 = vsub.f32 %v4368, %v4369
        %v4371 = vand.u32 %v4370, 4294901760
        %4372 = vmatprep.subr.mxu0 %v4371
        %v4373 = vand.u32 %v1446, 4294901760
        %v4374 = vsub.f32 %v1446, %v4373
        %v4375 = vand.u32 %v4374, 4294901760
        %v4376 = vsub.f32 %v4374, %v4375
        %v4377 = vand.u32 %v4376, 4294901760
        %4378 = vmatpush1.msra.mxu0 %v4377
        %v4379 = vand.u32 %v1449, 4294901760
        %v4380 = vsub.f32 %v1449, %v4379
        %v4381 = vand.u32 %v4380, 4294901760
        %v4382 = vsub.f32 %v4380, %v4381
        %v4383 = vand.u32 %v4382, 4294901760
        %4384 = vmatprep.subr.mxu0 %v4383
        %v4385 = vand.u32 %v1448, 4294901760
        %v4386 = vsub.f32 %v1448, %v4385
        %v4387 = vand.u32 %v4386, 4294901760
        %v4388 = vsub.f32 %v4386, %v4387
        %v4389 = vand.u32 %v4388, 4294901760
        %4390 = vmatpush1.msra.mxu0 %v4389
        %v4391 = vand.u32 %v1451, 4294901760
        %v4392 = vsub.f32 %v1451, %v4391
        %v4393 = vand.u32 %v4392, 4294901760
        %v4394 = vsub.f32 %v4392, %v4393
        %v4395 = vand.u32 %v4394, 4294901760
        %4396 = vmatprep.subr.mxu0 %v4395
        %v4397 = vand.u32 %v1450, 4294901760
        %v4398 = vsub.f32 %v1450, %v4397
        %v4399 = vand.u32 %v4398, 4294901760
        %v4400 = vsub.f32 %v4398, %v4399
        %v4401 = vand.u32 %v4400, 4294901760
        %4402 = vmatpush1.msra.mxu0 %v4401
        %v4403 = vand.u32 %v1453, 4294901760
        %v4404 = vsub.f32 %v1453, %v4403
        %v4405 = vand.u32 %v4404, 4294901760
        %v4406 = vsub.f32 %v4404, %v4405
        %v4407 = vand.u32 %v4406, 4294901760
        %4408 = vmatprep.subr.mxu0 %v4407
        %v4409 = vand.u32 %v1452, 4294901760
        %v4410 = vsub.f32 %v1452, %v4409
        %v4411 = vand.u32 %v4410, 4294901760
        %v4412 = vsub.f32 %v4410, %v4411
        %v4413 = vand.u32 %v4412, 4294901760
        %4414 = vmatpush1.msra.mxu0 %v4413
        %v4415 = vand.u32 %v1455, 4294901760
        %v4416 = vsub.f32 %v1455, %v4415
        %v4417 = vand.u32 %v4416, 4294901760
        %v4418 = vsub.f32 %v4416, %v4417
        %v4419 = vand.u32 %v4418, 4294901760
        %4420 = vmatprep.subr.mxu0 %v4419
        %v4421 = vand.u32 %v1454, 4294901760
        %v4422 = vsub.f32 %v1454, %v4421
        %v4423 = vand.u32 %v4422, 4294901760
        %v4424 = vsub.f32 %v4422, %v4423
        %v4425 = vand.u32 %v4424, 4294901760
        %4426 = vmatpush1.msra.mxu0 %v4425
        %v4427 = vand.u32 %v1457, 4294901760
        %v4428 = vsub.f32 %v1457, %v4427
        %v4429 = vand.u32 %v4428, 4294901760
        %v4430 = vsub.f32 %v4428, %v4429
        %v4431 = vand.u32 %v4430, 4294901760
        %4432 = vmatprep.subr.mxu0 %v4431
        %v4433 = vand.u32 %v1456, 4294901760
        %v4434 = vsub.f32 %v1456, %v4433
        %v4435 = vand.u32 %v4434, 4294901760
        %v4436 = vsub.f32 %v4434, %v4435
        %v4437 = vand.u32 %v4436, 4294901760
        %4438 = vmatpush1.msra.mxu0 %v4437
        %v4439 = vand.u32 %v1459, 4294901760
        %v4440 = vsub.f32 %v1459, %v4439
        %v4441 = vand.u32 %v4440, 4294901760
        %v4442 = vsub.f32 %v4440, %v4441
        %v4443 = vand.u32 %v4442, 4294901760
        %4444 = vmatprep.subr.mxu0 %v4443
        %v4445 = vand.u32 %v1458, 4294901760
        %v4446 = vsub.f32 %v1458, %v4445
        %v4447 = vand.u32 %v4446, 4294901760
        %v4448 = vsub.f32 %v4446, %v4447
        %v4449 = vand.u32 %v4448, 4294901760
        %4450 = vmatpush1.msra.mxu0 %v4449
        %v4451 = vand.u32 %v1461, 4294901760
        %v4452 = vsub.f32 %v1461, %v4451
        %v4453 = vand.u32 %v4452, 4294901760
        %v4454 = vsub.f32 %v4452, %v4453
        %v4455 = vand.u32 %v4454, 4294901760
        %4456 = vmatprep.subr.mxu0 %v4455
        %v4457 = vand.u32 %v1460, 4294901760
        %v4458 = vsub.f32 %v1460, %v4457
        %v4459 = vand.u32 %v4458, 4294901760
        %v4460 = vsub.f32 %v4458, %v4459
        %v4461 = vand.u32 %v4460, 4294901760
        %4462 = vmatpush1.msra.mxu0 %v4461
        %v4463 = vand.u32 %v1463, 4294901760
        %v4464 = vsub.f32 %v1463, %v4463
        %v4465 = vand.u32 %v4464, 4294901760
        %v4466 = vsub.f32 %v4464, %v4465
        %v4467 = vand.u32 %v4466, 4294901760
        %4468 = vmatprep.subr.mxu0 %v4467
        %v4469 = vand.u32 %v1462, 4294901760
        %v4470 = vsub.f32 %v1462, %v4469
        %v4471 = vand.u32 %v4470, 4294901760
        %v4472 = vsub.f32 %v4470, %v4471
        %v4473 = vand.u32 %v4472, 4294901760
        %4474 = vmatpush1.msra.mxu0 %v4473
        %v4475 = vand.u32 %v1465, 4294901760
        %v4476 = vsub.f32 %v1465, %v4475
        %v4477 = vand.u32 %v4476, 4294901760
        %v4478 = vsub.f32 %v4476, %v4477
        %v4479 = vand.u32 %v4478, 4294901760
        %4480 = vmatprep.subr.mxu0 %v4479
        %v4481 = vand.u32 %v1464, 4294901760
        %v4482 = vsub.f32 %v1464, %v4481
        %v4483 = vand.u32 %v4482, 4294901760
        %v4484 = vsub.f32 %v4482, %v4483
        %v4485 = vand.u32 %v4484, 4294901760
        %4486 = vmatpush1.msra.mxu0 %v4485
        %v4487 = vand.u32 %v1467, 4294901760
        %v4488 = vsub.f32 %v1467, %v4487
        %v4489 = vand.u32 %v4488, 4294901760
        %v4490 = vsub.f32 %v4488, %v4489
        %v4491 = vand.u32 %v4490, 4294901760
        %4492 = vmatprep.subr.mxu0 %v4491
        %v4493 = vand.u32 %v1466, 4294901760
        %v4494 = vsub.f32 %v1466, %v4493
        %v4495 = vand.u32 %v4494, 4294901760
        %v4496 = vsub.f32 %v4494, %v4495
        %v4497 = vand.u32 %v4496, 4294901760
        %4498 = vmatpush1.msra.mxu0 %v4497
        %v4499 = vand.u32 %v1469, 4294901760
        %v4500 = vsub.f32 %v1469, %v4499
        %v4501 = vand.u32 %v4500, 4294901760
        %v4502 = vsub.f32 %v4500, %v4501
        %v4503 = vand.u32 %v4502, 4294901760
        %4504 = vmatprep.subr.mxu0 %v4503
        %v4505 = vand.u32 %v1468, 4294901760
        %v4506 = vsub.f32 %v1468, %v4505
        %v4507 = vand.u32 %v4506, 4294901760
        %v4508 = vsub.f32 %v4506, %v4507
        %v4509 = vand.u32 %v4508, 4294901760
        %4510 = vmatpush1.msra.mxu0 %v4509
        %v4511 = vand.u32 %v1471, 4294901760
        %v4512 = vsub.f32 %v1471, %v4511
        %v4513 = vand.u32 %v4512, 4294901760
        %v4514 = vsub.f32 %v4512, %v4513
        %v4515 = vand.u32 %v4514, 4294901760
        %4516 = vmatprep.subr.mxu0 %v4515
        %v4517 = vand.u32 %v1470, 4294901760
        %v4518 = vsub.f32 %v1470, %v4517
        %v4519 = vand.u32 %v4518, 4294901760
        %v4520 = vsub.f32 %v4518, %v4519
        %v4521 = vand.u32 %v4520, 4294901760
        %4522 = vmatpush1.msra.mxu0 %v4521
        %v4523 = vand.u32 %v1473, 4294901760
        %v4524 = vsub.f32 %v1473, %v4523
        %v4525 = vand.u32 %v4524, 4294901760
        %v4526 = vsub.f32 %v4524, %v4525
        %v4527 = vand.u32 %v4526, 4294901760
        %4528 = vmatprep.subr.mxu0 %v4527
        %v4529 = vand.u32 %v1472, 4294901760
        %v4530 = vsub.f32 %v1472, %v4529
        %v4531 = vand.u32 %v4530, 4294901760
        %v4532 = vsub.f32 %v4530, %v4531
        %v4533 = vand.u32 %v4532, 4294901760
        %4534 = vmatpush1.msra.mxu0 %v4533
        %v4535 = vand.u32 %v1475, 4294901760
        %v4536 = vsub.f32 %v1475, %v4535
        %v4537 = vand.u32 %v4536, 4294901760
        %v4538 = vsub.f32 %v4536, %v4537
        %v4539 = vand.u32 %v4538, 4294901760
        %4540 = vmatprep.subr.mxu0 %v4539
        %v4541 = vand.u32 %v1474, 4294901760
        %v4542 = vsub.f32 %v1474, %v4541
        %v4543 = vand.u32 %v4542, 4294901760
        %v4544 = vsub.f32 %v4542, %v4543
        %v4545 = vand.u32 %v4544, 4294901760
        %4546 = vmatpush1.msra.mxu0 %v4545
        %v4547 = vand.u32 %v1477, 4294901760
        %v4548 = vsub.f32 %v1477, %v4547
        %v4549 = vand.u32 %v4548, 4294901760
        %v4550 = vsub.f32 %v4548, %v4549
        %v4551 = vand.u32 %v4550, 4294901760
        %4552 = vmatprep.subr.mxu0 %v4551
        %v4553 = vand.u32 %v1476, 4294901760
        %v4554 = vsub.f32 %v1476, %v4553
        %v4555 = vand.u32 %v4554, 4294901760
        %v4556 = vsub.f32 %v4554, %v4555
        %v4557 = vand.u32 %v4556, 4294901760
        %4558 = vmatpush1.msra.mxu0 %v4557
        %v4559 = vand.u32 %v3975, 4294901760
        %4560 = vmatprep.mubr.f32.mxu0 %v4559
        %v4561 = vand.u32 %v3974, 4294901760
        %4562 = vmatmul.mubr.f32.gmra.mrb[0].mxu0 %v4561
        %v4563 = vpop.f32.mrb[0].mxu0
        %v4564 = vadd.f32 %v4123, %v4563
        %v4565 = vpop.f32.mrb[0].mxu0
        %v4566 = vadd.f32 %v4125, %v4565
        %v4567 = vand.u32 %v3977, 4294901760
        %4568 = vmatprep.mubr.f32.mxu0 %v4567
        %v4569 = vand.u32 %v3976, 4294901760
        %4570 = vmatmul.mubr.f32.gmra.mrb[0].mxu0 %v4569
        %v4571 = vpop.f32.mrb[0].mxu0
        %v4572 = vadd.f32 %v4139, %v4571
        %v4573 = vpop.f32.mrb[0].mxu0
        %v4574 = vadd.f32 %v4141, %v4573
        %v4575 = vand.u32 %v3979, 4294901760
        %4576 = vmatprep.mubr.f32.mxu0 %v4575
        %v4577 = vand.u32 %v3978, 4294901760
        %4578 = vmatmul.mubr.f32.gmra.mrb[0].mxu0 %v4577
        %v4579 = vpop.f32.mrb[0].mxu0
        %v4580 = vadd.f32 %v4155, %v4579
        %v4581 = vpop.f32.mrb[0].mxu0
        %v4582 = vadd.f32 %v4157, %v4581
        %v4583 = vand.u32 %v3981, 4294901760
        %4584 = vmatprep.mubr.f32.mxu0 %v4583
        %v4585 = vand.u32 %v3980, 4294901760
        %4586 = vmatmul.mubr.f32.gmra.mrb[0].mxu0 %v4585
        %v4587 = vpop.f32.mrb[0].mxu0
        %v4588 = vadd.f32 %v4171, %v4587
        %v4589 = vpop.f32.mrb[0].mxu0
        %v4590 = vadd.f32 %v4173, %v4589
        %4591 = vdwg.mxu0
        %v4592 = vand.u32 %v1415, 4294901760
        %v4593 = vsub.f32 %v1415, %v4592
        %4594 = vmatprep.subr.mxu0 %v4593
        %v4595 = vand.u32 %v1414, 4294901760
        %v4596 = vsub.f32 %v1414, %v4595
        %4597 = vmatpush1.msra.mxu0 %v4596
        %v4598 = vand.u32 %v1417, 4294901760
        %v4599 = vsub.f32 %v1417, %v4598
        %4600 = vmatprep.subr.mxu0 %v4599
        %v4601 = vand.u32 %v1416, 4294901760
        %v4602 = vsub.f32 %v1416, %v4601
        %4603 = vmatpush1.msra.mxu0 %v4602
        %v4604 = vand.u32 %v1419, 4294901760
        %v4605 = vsub.f32 %v1419, %v4604
        %4606 = vmatprep.subr.mxu0 %v4605
        %v4607 = vand.u32 %v1418, 4294901760
        %v4608 = vsub.f32 %v1418, %v4607
        %4609 = vmatpush1.msra.mxu0 %v4608
        %v4610 = vand.u32 %v1421, 4294901760
        %v4611 = vsub.f32 %v1421, %v4610
        %4612 = vmatprep.subr.mxu0 %v4611
        %v4613 = vand.u32 %v1420, 4294901760
        %v4614 = vsub.f32 %v1420, %v4613
        %4615 = vmatpush1.msra.mxu0 %v4614
        %v4616 = vand.u32 %v1423, 4294901760
        %v4617 = vsub.f32 %v1423, %v4616
        %4618 = vmatprep.subr.mxu0 %v4617
        %v4619 = vand.u32 %v1422, 4294901760
        %v4620 = vsub.f32 %v1422, %v4619
        %4621 = vmatpush1.msra.mxu0 %v4620
        %v4622 = vand.u32 %v1425, 4294901760
        %v4623 = vsub.f32 %v1425, %v4622
        %4624 = vmatprep.subr.mxu0 %v4623
        %v4625 = vand.u32 %v1424, 4294901760
        %v4626 = vsub.f32 %v1424, %v4625
        %4627 = vmatpush1.msra.mxu0 %v4626
        %v4628 = vand.u32 %v1427, 4294901760
        %v4629 = vsub.f32 %v1427, %v4628
        %4630 = vmatprep.subr.mxu0 %v4629
        %v4631 = vand.u32 %v1426, 4294901760
        %v4632 = vsub.f32 %v1426, %v4631
        %4633 = vmatpush1.msra.mxu0 %v4632
        %v4634 = vand.u32 %v1429, 4294901760
        %v4635 = vsub.f32 %v1429, %v4634
        %4636 = vmatprep.subr.mxu0 %v4635
        %v4637 = vand.u32 %v1428, 4294901760
        %v4638 = vsub.f32 %v1428, %v4637
        %4639 = vmatpush1.msra.mxu0 %v4638
        %v4640 = vand.u32 %v1431, 4294901760
        %v4641 = vsub.f32 %v1431, %v4640
        %4642 = vmatprep.subr.mxu0 %v4641
        %v4643 = vand.u32 %v1430, 4294901760
        %v4644 = vsub.f32 %v1430, %v4643
        %4645 = vmatpush1.msra.mxu0 %v4644
        %v4646 = vand.u32 %v1433, 4294901760
        %v4647 = vsub.f32 %v1433, %v4646
        %4648 = vmatprep.subr.mxu0 %v4647
        %v4649 = vand.u32 %v1432, 4294901760
        %v4650 = vsub.f32 %v1432, %v4649
        %4651 = vmatpush1.msra.mxu0 %v4650
        %v4652 = vand.u32 %v1435, 4294901760
        %v4653 = vsub.f32 %v1435, %v4652
        %4654 = vmatprep.subr.mxu0 %v4653
        %v4655 = vand.u32 %v1434, 4294901760
        %v4656 = vsub.f32 %v1434, %v4655
        %4657 = vmatpush1.msra.mxu0 %v4656
        %v4658 = vand.u32 %v1437, 4294901760
        %v4659 = vsub.f32 %v1437, %v4658
        %4660 = vmatprep.subr.mxu0 %v4659
        %v4661 = vand.u32 %v1436, 4294901760
        %v4662 = vsub.f32 %v1436, %v4661
        %4663 = vmatpush1.msra.mxu0 %v4662
        %v4664 = vand.u32 %v1439, 4294901760
        %v4665 = vsub.f32 %v1439, %v4664
        %4666 = vmatprep.subr.mxu0 %v4665
        %v4667 = vand.u32 %v1438, 4294901760
        %v4668 = vsub.f32 %v1438, %v4667
        %4669 = vmatpush1.msra.mxu0 %v4668
        %v4670 = vand.u32 %v1441, 4294901760
        %v4671 = vsub.f32 %v1441, %v4670
        %4672 = vmatprep.subr.mxu0 %v4671
        %v4673 = vand.u32 %v1440, 4294901760
        %v4674 = vsub.f32 %v1440, %v4673
        %4675 = vmatpush1.msra.mxu0 %v4674
        %v4676 = vand.u32 %v1443, 4294901760
        %v4677 = vsub.f32 %v1443, %v4676
        %4678 = vmatprep.subr.mxu0 %v4677
        %v4679 = vand.u32 %v1442, 4294901760
        %v4680 = vsub.f32 %v1442, %v4679
        %4681 = vmatpush1.msra.mxu0 %v4680
        %v4682 = vand.u32 %v1445, 4294901760
        %v4683 = vsub.f32 %v1445, %v4682
        %4684 = vmatprep.subr.mxu0 %v4683
        %v4685 = vand.u32 %v1444, 4294901760
        %v4686 = vsub.f32 %v1444, %v4685
        %4687 = vmatpush1.msra.mxu0 %v4686
        %v4688 = vand.u32 %v1447, 4294901760
        %v4689 = vsub.f32 %v1447, %v4688
        %4690 = vmatprep.subr.mxu0 %v4689
        %v4691 = vand.u32 %v1446, 4294901760
        %v4692 = vsub.f32 %v1446, %v4691
        %4693 = vmatpush1.msra.mxu0 %v4692
        %v4694 = vand.u32 %v1449, 4294901760
        %v4695 = vsub.f32 %v1449, %v4694
        %4696 = vmatprep.subr.mxu0 %v4695
        %v4697 = vand.u32 %v1448, 4294901760
        %v4698 = vsub.f32 %v1448, %v4697
        %4699 = vmatpush1.msra.mxu0 %v4698
        %v4700 = vand.u32 %v1451, 4294901760
        %v4701 = vsub.f32 %v1451, %v4700
        %4702 = vmatprep.subr.mxu0 %v4701
        %v4703 = vand.u32 %v1450, 4294901760
        %v4704 = vsub.f32 %v1450, %v4703
        %4705 = vmatpush1.msra.mxu0 %v4704
        %v4706 = vand.u32 %v1453, 4294901760
        %v4707 = vsub.f32 %v1453, %v4706
        %4708 = vmatprep.subr.mxu0 %v4707
        %v4709 = vand.u32 %v1452, 4294901760
        %v4710 = vsub.f32 %v1452, %v4709
        %4711 = vmatpush1.msra.mxu0 %v4710
        %v4712 = vand.u32 %v1455, 4294901760
        %v4713 = vsub.f32 %v1455, %v4712
        %4714 = vmatprep.subr.mxu0 %v4713
        %v4715 = vand.u32 %v1454, 4294901760
        %v4716 = vsub.f32 %v1454, %v4715
        %4717 = vmatpush1.msra.mxu0 %v4716
        %v4718 = vand.u32 %v1457, 4294901760
        %v4719 = vsub.f32 %v1457, %v4718
        %4720 = vmatprep.subr.mxu0 %v4719
        %v4721 = vand.u32 %v1456, 4294901760
        %v4722 = vsub.f32 %v1456, %v4721
        %4723 = vmatpush1.msra.mxu0 %v4722
        %v4724 = vand.u32 %v1459, 4294901760
        %v4725 = vsub.f32 %v1459, %v4724
        %4726 = vmatprep.subr.mxu0 %v4725
        %v4727 = vand.u32 %v1458, 4294901760
        %v4728 = vsub.f32 %v1458, %v4727
        %4729 = vmatpush1.msra.mxu0 %v4728
        %v4730 = vand.u32 %v1461, 4294901760
        %v4731 = vsub.f32 %v1461, %v4730
        %4732 = vmatprep.subr.mxu0 %v4731
        %v4733 = vand.u32 %v1460, 4294901760
        %v4734 = vsub.f32 %v1460, %v4733
        %4735 = vmatpush1.msra.mxu0 %v4734
        %v4736 = vand.u32 %v1463, 4294901760
        %v4737 = vsub.f32 %v1463, %v4736
        %4738 = vmatprep.subr.mxu0 %v4737
        %v4739 = vand.u32 %v1462, 4294901760
        %v4740 = vsub.f32 %v1462, %v4739
        %4741 = vmatpush1.msra.mxu0 %v4740
        %v4742 = vand.u32 %v1465, 4294901760
        %v4743 = vsub.f32 %v1465, %v4742
        %4744 = vmatprep.subr.mxu0 %v4743
        %v4745 = vand.u32 %v1464, 4294901760
        %v4746 = vsub.f32 %v1464, %v4745
        %4747 = vmatpush1.msra.mxu0 %v4746
        %v4748 = vand.u32 %v1467, 4294901760
        %v4749 = vsub.f32 %v1467, %v4748
        %4750 = vmatprep.subr.mxu0 %v4749
        %v4751 = vand.u32 %v1466, 4294901760
        %v4752 = vsub.f32 %v1466, %v4751
        %4753 = vmatpush1.msra.mxu0 %v4752
        %v4754 = vand.u32 %v1469, 4294901760
        %v4755 = vsub.f32 %v1469, %v4754
        %4756 = vmatprep.subr.mxu0 %v4755
        %v4757 = vand.u32 %v1468, 4294901760
        %v4758 = vsub.f32 %v1468, %v4757
        %4759 = vmatpush1.msra.mxu0 %v4758
        %v4760 = vand.u32 %v1471, 4294901760
        %v4761 = vsub.f32 %v1471, %v4760
        %4762 = vmatprep.subr.mxu0 %v4761
        %v4763 = vand.u32 %v1470, 4294901760
        %v4764 = vsub.f32 %v1470, %v4763
        %4765 = vmatpush1.msra.mxu0 %v4764
        %v4766 = vand.u32 %v1473, 4294901760
        %v4767 = vsub.f32 %v1473, %v4766
        %4768 = vmatprep.subr.mxu0 %v4767
        %v4769 = vand.u32 %v1472, 4294901760
        %v4770 = vsub.f32 %v1472, %v4769
        %4771 = vmatpush1.msra.mxu0 %v4770
        %v4772 = vand.u32 %v1475, 4294901760
        %v4773 = vsub.f32 %v1475, %v4772
        %4774 = vmatprep.subr.mxu0 %v4773
        %v4775 = vand.u32 %v1474, 4294901760
        %v4776 = vsub.f32 %v1474, %v4775
        %4777 = vmatpush1.msra.mxu0 %v4776
        %v4778 = vand.u32 %v1477, 4294901760
        %v4779 = vsub.f32 %v1477, %v4778
        %4780 = vmatprep.subr.mxu0 %v4779
        %v4781 = vand.u32 %v1476, 4294901760
        %v4782 = vsub.f32 %v1476, %v4781
        %4783 = vmatpush1.msra.mxu0 %v4782
        %v4784 = vand.u32 %v3975, 4294901760
        %v4785 = vsub.f32 %v3975, %v4784
        %4786 = vmatprep.mubr.f32.mxu0 %v4785
        %v4787 = vand.u32 %v3974, 4294901760
        %v4788 = vsub.f32 %v3974, %v4787
        %4789 = vmatmul.mubr.f32.gmra.mrb[0].mxu0 %v4788
        %v4790 = vpop.f32.mrb[0].mxu0
        %v4791 = vadd.f32 %v4564, %v4790
        %v4792 = vpop.f32.mrb[0].mxu0
        %v4793 = vadd.f32 %v4566, %v4792
        %v4794 = vand.u32 %v3977, 4294901760
        %v4795 = vsub.f32 %v3977, %v4794
        %4796 = vmatprep.mubr.f32.mxu0 %v4795
        %v4797 = vand.u32 %v3976, 4294901760
        %v4798 = vsub.f32 %v3976, %v4797
        %4799 = vmatmul.mubr.f32.gmra.mrb[0].mxu0 %v4798
        %v4800 = vpop.f32.mrb[0].mxu0
        %v4801 = vadd.f32 %v4572, %v4800
        %v4802 = vpop.f32.mrb[0].mxu0
        %v4803 = vadd.f32 %v4574, %v4802
        %v4804 = vand.u32 %v3979, 4294901760
        %v4805 = vsub.f32 %v3979, %v4804
        %4806 = vmatprep.mubr.f32.mxu0 %v4805
        %v4807 = vand.u32 %v3978, 4294901760
        %v4808 = vsub.f32 %v3978, %v4807
        %4809 = vmatmul.mubr.f32.gmra.mrb[0].mxu0 %v4808
        %v4810 = vpop.f32.mrb[0].mxu0
        %v4811 = vadd.f32 %v4580, %v4810
        %v4812 = vpop.f32.mrb[0].mxu0
        %v4813 = vadd.f32 %v4582, %v4812
        %v4814 = vand.u32 %v3981, 4294901760
        %v4815 = vsub.f32 %v3981, %v4814
        %4816 = vmatprep.mubr.f32.mxu0 %v4815
        %v4817 = vand.u32 %v3980, 4294901760
        %v4818 = vsub.f32 %v3980, %v4817
        %4819 = vmatmul.mubr.f32.gmra.mrb[0].mxu0 %v4818
        %v4820 = vpop.f32.mrb[0].mxu0
        %v4821 = vadd.f32 %v4588, %v4820
        %v4822 = vpop.f32.mrb[0].mxu0
        %v4823 = vadd.f32 %v4590, %v4822
        %4824 = vdwg.mxu0
        %v4825 = vand.u32 %v1415, 4294901760
        %4826 = vmatprep.subr.mxu0 %v4825
        %v4827 = vand.u32 %v1414, 4294901760
        %4828 = vmatpush1.msra.mxu0 %v4827
        %v4829 = vand.u32 %v1417, 4294901760
        %4830 = vmatprep.subr.mxu0 %v4829
        %v4831 = vand.u32 %v1416, 4294901760
        %4832 = vmatpush1.msra.mxu0 %v4831
        %v4833 = vand.u32 %v1419, 4294901760
        %4834 = vmatprep.subr.mxu0 %v4833
        %v4835 = vand.u32 %v1418, 4294901760
        %4836 = vmatpush1.msra.mxu0 %v4835
        %v4837 = vand.u32 %v1421, 4294901760
        %4838 = vmatprep.subr.mxu0 %v4837
        %v4839 = vand.u32 %v1420, 4294901760
        %4840 = vmatpush1.msra.mxu0 %v4839
        %v4841 = vand.u32 %v1423, 4294901760
        %4842 = vmatprep.subr.mxu0 %v4841
        %v4843 = vand.u32 %v1422, 4294901760
        %4844 = vmatpush1.msra.mxu0 %v4843
        %v4845 = vand.u32 %v1425, 4294901760
        %4846 = vmatprep.subr.mxu0 %v4845
        %v4847 = vand.u32 %v1424, 4294901760
        %4848 = vmatpush1.msra.mxu0 %v4847
        %v4849 = vand.u32 %v1427, 4294901760
        %4850 = vmatprep.subr.mxu0 %v4849
        %v4851 = vand.u32 %v1426, 4294901760
        %4852 = vmatpush1.msra.mxu0 %v4851
        %v4853 = vand.u32 %v1429, 4294901760
        %4854 = vmatprep.subr.mxu0 %v4853
        %v4855 = vand.u32 %v1428, 4294901760
        %4856 = vmatpush1.msra.mxu0 %v4855
        %v4857 = vand.u32 %v1431, 4294901760
        %4858 = vmatprep.subr.mxu0 %v4857
        %v4859 = vand.u32 %v1430, 4294901760
        %4860 = vmatpush1.msra.mxu0 %v4859
        %v4861 = vand.u32 %v1433, 4294901760
        %4862 = vmatprep.subr.mxu0 %v4861
        %v4863 = vand.u32 %v1432, 4294901760
        %4864 = vmatpush1.msra.mxu0 %v4863
        %v4865 = vand.u32 %v1435, 4294901760
        %4866 = vmatprep.subr.mxu0 %v4865
        %v4867 = vand.u32 %v1434, 4294901760
        %4868 = vmatpush1.msra.mxu0 %v4867
        %v4869 = vand.u32 %v1437, 4294901760
        %4870 = vmatprep.subr.mxu0 %v4869
        %v4871 = vand.u32 %v1436, 4294901760
        %4872 = vmatpush1.msra.mxu0 %v4871
        %v4873 = vand.u32 %v1439, 4294901760
        %4874 = vmatprep.subr.mxu0 %v4873
        %v4875 = vand.u32 %v1438, 4294901760
        %4876 = vmatpush1.msra.mxu0 %v4875
        %v4877 = vand.u32 %v1441, 4294901760
        %4878 = vmatprep.subr.mxu0 %v4877
        %v4879 = vand.u32 %v1440, 4294901760
        %4880 = vmatpush1.msra.mxu0 %v4879
        %v4881 = vand.u32 %v1443, 4294901760
        %4882 = vmatprep.subr.mxu0 %v4881
        %v4883 = vand.u32 %v1442, 4294901760
        %4884 = vmatpush1.msra.mxu0 %v4883
        %v4885 = vand.u32 %v1445, 4294901760
        %4886 = vmatprep.subr.mxu0 %v4885
        %v4887 = vand.u32 %v1444, 4294901760
        %4888 = vmatpush1.msra.mxu0 %v4887
        %v4889 = vand.u32 %v1447, 4294901760
        %4890 = vmatprep.subr.mxu0 %v4889
        %v4891 = vand.u32 %v1446, 4294901760
        %4892 = vmatpush1.msra.mxu0 %v4891
        %v4893 = vand.u32 %v1449, 4294901760
        %4894 = vmatprep.subr.mxu0 %v4893
        %v4895 = vand.u32 %v1448, 4294901760
        %4896 = vmatpush1.msra.mxu0 %v4895
        %v4897 = vand.u32 %v1451, 4294901760
        %4898 = vmatprep.subr.mxu0 %v4897
        %v4899 = vand.u32 %v1450, 4294901760
        %4900 = vmatpush1.msra.mxu0 %v4899
        %v4901 = vand.u32 %v1453, 4294901760
        %4902 = vmatprep.subr.mxu0 %v4901
        %v4903 = vand.u32 %v1452, 4294901760
        %4904 = vmatpush1.msra.mxu0 %v4903
        %v4905 = vand.u32 %v1455, 4294901760
        %4906 = vmatprep.subr.mxu0 %v4905
        %v4907 = vand.u32 %v1454, 4294901760
        %4908 = vmatpush1.msra.mxu0 %v4907
        %v4909 = vand.u32 %v1457, 4294901760
        %4910 = vmatprep.subr.mxu0 %v4909
        %v4911 = vand.u32 %v1456, 4294901760
        %4912 = vmatpush1.msra.mxu0 %v4911
        %v4913 = vand.u32 %v1459, 4294901760
        %4914 = vmatprep.subr.mxu0 %v4913
        %v4915 = vand.u32 %v1458, 4294901760
        %4916 = vmatpush1.msra.mxu0 %v4915
        %v4917 = vand.u32 %v1461, 4294901760
        %4918 = vmatprep.subr.mxu0 %v4917
        %v4919 = vand.u32 %v1460, 4294901760
        %4920 = vmatpush1.msra.mxu0 %v4919
        %v4921 = vand.u32 %v1463, 4294901760
        %4922 = vmatprep.subr.mxu0 %v4921
        %v4923 = vand.u32 %v1462, 4294901760
        %4924 = vmatpush1.msra.mxu0 %v4923
        %v4925 = vand.u32 %v1465, 4294901760
        %4926 = vmatprep.subr.mxu0 %v4925
        %v4927 = vand.u32 %v1464, 4294901760
        %4928 = vmatpush1.msra.mxu0 %v4927
        %v4929 = vand.u32 %v1467, 4294901760
        %4930 = vmatprep.subr.mxu0 %v4929
        %v4931 = vand.u32 %v1466, 4294901760
        %4932 = vmatpush1.msra.mxu0 %v4931
        %v4933 = vand.u32 %v1469, 4294901760
        %4934 = vmatprep.subr.mxu0 %v4933
        %v4935 = vand.u32 %v1468, 4294901760
        %4936 = vmatpush1.msra.mxu0 %v4935
        %v4937 = vand.u32 %v1471, 4294901760
        %4938 = vmatprep.subr.mxu0 %v4937
        %v4939 = vand.u32 %v1470, 4294901760
        %4940 = vmatpush1.msra.mxu0 %v4939
        %v4941 = vand.u32 %v1473, 4294901760
        %4942 = vmatprep.subr.mxu0 %v4941
        %v4943 = vand.u32 %v1472, 4294901760
        %4944 = vmatpush1.msra.mxu0 %v4943
        %v4945 = vand.u32 %v1475, 4294901760
        %4946 = vmatprep.subr.mxu0 %v4945
        %v4947 = vand.u32 %v1474, 4294901760
        %4948 = vmatpush1.msra.mxu0 %v4947
        %v4949 = vand.u32 %v1477, 4294901760
        %4950 = vmatprep.subr.mxu0 %v4949
        %v4951 = vand.u32 %v1476, 4294901760
        %4952 = vmatpush1.msra.mxu0 %v4951
        %v4953 = vand.u32 %v3975, 4294901760
        %v4954 = vsub.f32 %v3975, %v4953
        %v4955 = vand.u32 %v4954, 4294901760
        %4956 = vmatprep.mubr.f32.mxu0 %v4955
        %v4957 = vand.u32 %v3974, 4294901760
        %v4958 = vsub.f32 %v3974, %v4957
        %v4959 = vand.u32 %v4958, 4294901760
        %4960 = vmatmul.mubr.f32.gmra.mrb[0].mxu0 %v4959
        %v4961 = vpop.f32.mrb[0].mxu0
        %v4962 = vadd.f32 %v4791, %v4961
        %v4963 = vpop.f32.mrb[0].mxu0
        %v4964 = vadd.f32 %v4793, %v4963
        %v4965 = vand.u32 %v3977, 4294901760
        %v4966 = vsub.f32 %v3977, %v4965
        %v4967 = vand.u32 %v4966, 4294901760
        %4968 = vmatprep.mubr.f32.mxu0 %v4967
        %v4969 = vand.u32 %v3976, 4294901760
        %v4970 = vsub.f32 %v3976, %v4969
        %v4971 = vand.u32 %v4970, 4294901760
        %4972 = vmatmul.mubr.f32.gmra.mrb[0].mxu0 %v4971
        %v4973 = vpop.f32.mrb[0].mxu0
        %v4974 = vadd.f32 %v4801, %v4973
        %v4975 = vpop.f32.mrb[0].mxu0
        %v4976 = vadd.f32 %v4803, %v4975
        %v4977 = vand.u32 %v3979, 4294901760
        %v4978 = vsub.f32 %v3979, %v4977
        %v4979 = vand.u32 %v4978, 4294901760
        %4980 = vmatprep.mubr.f32.mxu0 %v4979
        %v4981 = vand.u32 %v3978, 4294901760
        %v4982 = vsub.f32 %v3978, %v4981
        %v4983 = vand.u32 %v4982, 4294901760
        %4984 = vmatmul.mubr.f32.gmra.mrb[0].mxu0 %v4983
        %v4985 = vpop.f32.mrb[0].mxu0
        %v4986 = vadd.f32 %v4811, %v4985
        %v4987 = vpop.f32.mrb[0].mxu0
        %v4988 = vadd.f32 %v4813, %v4987
        %v4989 = vand.u32 %v3981, 4294901760
        %v4990 = vsub.f32 %v3981, %v4989
        %v4991 = vand.u32 %v4990, 4294901760
        %4992 = vmatprep.mubr.f32.mxu0 %v4991
        %v4993 = vand.u32 %v3980, 4294901760
        %v4994 = vsub.f32 %v3980, %v4993
        %v4995 = vand.u32 %v4994, 4294901760
        %4996 = vmatmul.mubr.f32.gmra.mrb[0].mxu0 %v4995
        %v4997 = vpop.f32.mrb[0].mxu0
        %v4998 = vadd.f32 %v4821, %v4997
        %v4999 = vpop.f32.mrb[0].mxu0
        %v5000 = vadd.f32 %v4823, %v4999
        %5001 = vdwg.mxu0
        %v5002 = vand.u32 %v1415, 4294901760
        %v5003 = vsub.f32 %v1415, %v5002
        %v5004 = vand.u32 %v5003, 4294901760
        %5005 = vmatprep.subr.mxu0 %v5004
        %v5006 = vand.u32 %v1414, 4294901760
        %v5007 = vsub.f32 %v1414, %v5006
        %v5008 = vand.u32 %v5007, 4294901760
        %5009 = vmatpush1.msra.mxu0 %v5008
        %v5010 = vand.u32 %v1417, 4294901760
        %v5011 = vsub.f32 %v1417, %v5010
        %v5012 = vand.u32 %v5011, 4294901760
        %5013 = vmatprep.subr.mxu0 %v5012
        %v5014 = vand.u32 %v1416, 4294901760
        %v5015 = vsub.f32 %v1416, %v5014
        %v5016 = vand.u32 %v5015, 4294901760
        %5017 = vmatpush1.msra.mxu0 %v5016
        %v5018 = vand.u32 %v1419, 4294901760
        %v5019 = vsub.f32 %v1419, %v5018
        %v5020 = vand.u32 %v5019, 4294901760
        %5021 = vmatprep.subr.mxu0 %v5020
        %v5022 = vand.u32 %v1418, 4294901760
        %v5023 = vsub.f32 %v1418, %v5022
        %v5024 = vand.u32 %v5023, 4294901760
        %5025 = vmatpush1.msra.mxu0 %v5024
        %v5026 = vand.u32 %v1421, 4294901760
        %v5027 = vsub.f32 %v1421, %v5026
        %v5028 = vand.u32 %v5027, 4294901760
        %5029 = vmatprep.subr.mxu0 %v5028
        %v5030 = vand.u32 %v1420, 4294901760
        %v5031 = vsub.f32 %v1420, %v5030
        %v5032 = vand.u32 %v5031, 4294901760
        %5033 = vmatpush1.msra.mxu0 %v5032
        %v5034 = vand.u32 %v1423, 4294901760
        %v5035 = vsub.f32 %v1423, %v5034
        %v5036 = vand.u32 %v5035, 4294901760
        %5037 = vmatprep.subr.mxu0 %v5036
        %v5038 = vand.u32 %v1422, 4294901760
        %v5039 = vsub.f32 %v1422, %v5038
        %v5040 = vand.u32 %v5039, 4294901760
        %5041 = vmatpush1.msra.mxu0 %v5040
        %v5042 = vand.u32 %v1425, 4294901760
        %v5043 = vsub.f32 %v1425, %v5042
        %v5044 = vand.u32 %v5043, 4294901760
        %5045 = vmatprep.subr.mxu0 %v5044
        %v5046 = vand.u32 %v1424, 4294901760
        %v5047 = vsub.f32 %v1424, %v5046
        %v5048 = vand.u32 %v5047, 4294901760
        %5049 = vmatpush1.msra.mxu0 %v5048
        %v5050 = vand.u32 %v1427, 4294901760
        %v5051 = vsub.f32 %v1427, %v5050
        %v5052 = vand.u32 %v5051, 4294901760
        %5053 = vmatprep.subr.mxu0 %v5052
        %v5054 = vand.u32 %v1426, 4294901760
        %v5055 = vsub.f32 %v1426, %v5054
        %v5056 = vand.u32 %v5055, 4294901760
        %5057 = vmatpush1.msra.mxu0 %v5056
        %v5058 = vand.u32 %v1429, 4294901760
        %v5059 = vsub.f32 %v1429, %v5058
        %v5060 = vand.u32 %v5059, 4294901760
        %5061 = vmatprep.subr.mxu0 %v5060
        %v5062 = vand.u32 %v1428, 4294901760
        %v5063 = vsub.f32 %v1428, %v5062
        %v5064 = vand.u32 %v5063, 4294901760
        %5065 = vmatpush1.msra.mxu0 %v5064
        %v5066 = vand.u32 %v1431, 4294901760
        %v5067 = vsub.f32 %v1431, %v5066
        %v5068 = vand.u32 %v5067, 4294901760
        %5069 = vmatprep.subr.mxu0 %v5068
        %v5070 = vand.u32 %v1430, 4294901760
        %v5071 = vsub.f32 %v1430, %v5070
        %v5072 = vand.u32 %v5071, 4294901760
        %5073 = vmatpush1.msra.mxu0 %v5072
        %v5074 = vand.u32 %v1433, 4294901760
        %v5075 = vsub.f32 %v1433, %v5074
        %v5076 = vand.u32 %v5075, 4294901760
        %5077 = vmatprep.subr.mxu0 %v5076
        %v5078 = vand.u32 %v1432, 4294901760
        %v5079 = vsub.f32 %v1432, %v5078
        %v5080 = vand.u32 %v5079, 4294901760
        %5081 = vmatpush1.msra.mxu0 %v5080
        %v5082 = vand.u32 %v1435, 4294901760
        %v5083 = vsub.f32 %v1435, %v5082
        %v5084 = vand.u32 %v5083, 4294901760
        %5085 = vmatprep.subr.mxu0 %v5084
        %v5086 = vand.u32 %v1434, 4294901760
        %v5087 = vsub.f32 %v1434, %v5086
        %v5088 = vand.u32 %v5087, 4294901760
        %5089 = vmatpush1.msra.mxu0 %v5088
        %v5090 = vand.u32 %v1437, 4294901760
        %v5091 = vsub.f32 %v1437, %v5090
        %v5092 = vand.u32 %v5091, 4294901760
        %5093 = vmatprep.subr.mxu0 %v5092
        %v5094 = vand.u32 %v1436, 4294901760
        %v5095 = vsub.f32 %v1436, %v5094
        %v5096 = vand.u32 %v5095, 4294901760
        %5097 = vmatpush1.msra.mxu0 %v5096
        %v5098 = vand.u32 %v1439, 4294901760
        %v5099 = vsub.f32 %v1439, %v5098
        %v5100 = vand.u32 %v5099, 4294901760
        %5101 = vmatprep.subr.mxu0 %v5100
        %v5102 = vand.u32 %v1438, 4294901760
        %v5103 = vsub.f32 %v1438, %v5102
        %v5104 = vand.u32 %v5103, 4294901760
        %5105 = vmatpush1.msra.mxu0 %v5104
        %v5106 = vand.u32 %v1441, 4294901760
        %v5107 = vsub.f32 %v1441, %v5106
        %v5108 = vand.u32 %v5107, 4294901760
        %5109 = vmatprep.subr.mxu0 %v5108
        %v5110 = vand.u32 %v1440, 4294901760
        %v5111 = vsub.f32 %v1440, %v5110
        %v5112 = vand.u32 %v5111, 4294901760
        %5113 = vmatpush1.msra.mxu0 %v5112
        %v5114 = vand.u32 %v1443, 4294901760
        %v5115 = vsub.f32 %v1443, %v5114
        %v5116 = vand.u32 %v5115, 4294901760
        %5117 = vmatprep.subr.mxu0 %v5116
        %v5118 = vand.u32 %v1442, 4294901760
        %v5119 = vsub.f32 %v1442, %v5118
        %v5120 = vand.u32 %v5119, 4294901760
        %5121 = vmatpush1.msra.mxu0 %v5120
        %v5122 = vand.u32 %v1445, 4294901760
        %v5123 = vsub.f32 %v1445, %v5122
        %v5124 = vand.u32 %v5123, 4294901760
        %5125 = vmatprep.subr.mxu0 %v5124
        %v5126 = vand.u32 %v1444, 4294901760
        %v5127 = vsub.f32 %v1444, %v5126
        %v5128 = vand.u32 %v5127, 4294901760
        %5129 = vmatpush1.msra.mxu0 %v5128
        %v5130 = vand.u32 %v1447, 4294901760
        %v5131 = vsub.f32 %v1447, %v5130
        %v5132 = vand.u32 %v5131, 4294901760
        %5133 = vmatprep.subr.mxu0 %v5132
        %v5134 = vand.u32 %v1446, 4294901760
        %v5135 = vsub.f32 %v1446, %v5134
        %v5136 = vand.u32 %v5135, 4294901760
        %5137 = vmatpush1.msra.mxu0 %v5136
        %v5138 = vand.u32 %v1449, 4294901760
        %v5139 = vsub.f32 %v1449, %v5138
        %v5140 = vand.u32 %v5139, 4294901760
        %5141 = vmatprep.subr.mxu0 %v5140
        %v5142 = vand.u32 %v1448, 4294901760
        %v5143 = vsub.f32 %v1448, %v5142
        %v5144 = vand.u32 %v5143, 4294901760
        %5145 = vmatpush1.msra.mxu0 %v5144
        %v5146 = vand.u32 %v1451, 4294901760
        %v5147 = vsub.f32 %v1451, %v5146
        %v5148 = vand.u32 %v5147, 4294901760
        %5149 = vmatprep.subr.mxu0 %v5148
        %v5150 = vand.u32 %v1450, 4294901760
        %v5151 = vsub.f32 %v1450, %v5150
        %v5152 = vand.u32 %v5151, 4294901760
        %5153 = vmatpush1.msra.mxu0 %v5152
        %v5154 = vand.u32 %v1453, 4294901760
        %v5155 = vsub.f32 %v1453, %v5154
        %v5156 = vand.u32 %v5155, 4294901760
        %5157 = vmatprep.subr.mxu0 %v5156
        %v5158 = vand.u32 %v1452, 4294901760
        %v5159 = vsub.f32 %v1452, %v5158
        %v5160 = vand.u32 %v5159, 4294901760
        %5161 = vmatpush1.msra.mxu0 %v5160
        %v5162 = vand.u32 %v1455, 4294901760
        %v5163 = vsub.f32 %v1455, %v5162
        %v5164 = vand.u32 %v5163, 4294901760
        %5165 = vmatprep.subr.mxu0 %v5164
        %v5166 = vand.u32 %v1454, 4294901760
        %v5167 = vsub.f32 %v1454, %v5166
        %v5168 = vand.u32 %v5167, 4294901760
        %5169 = vmatpush1.msra.mxu0 %v5168
        %v5170 = vand.u32 %v1457, 4294901760
        %v5171 = vsub.f32 %v1457, %v5170
        %v5172 = vand.u32 %v5171, 4294901760
        %5173 = vmatprep.subr.mxu0 %v5172
        %v5174 = vand.u32 %v1456, 4294901760
        %v5175 = vsub.f32 %v1456, %v5174
        %v5176 = vand.u32 %v5175, 4294901760
        %5177 = vmatpush1.msra.mxu0 %v5176
        %v5178 = vand.u32 %v1459, 4294901760
        %v5179 = vsub.f32 %v1459, %v5178
        %v5180 = vand.u32 %v5179, 4294901760
        %5181 = vmatprep.subr.mxu0 %v5180
        %v5182 = vand.u32 %v1458, 4294901760
        %v5183 = vsub.f32 %v1458, %v5182
        %v5184 = vand.u32 %v5183, 4294901760
        %5185 = vmatpush1.msra.mxu0 %v5184
        %v5186 = vand.u32 %v1461, 4294901760
        %v5187 = vsub.f32 %v1461, %v5186
        %v5188 = vand.u32 %v5187, 4294901760
        %5189 = vmatprep.subr.mxu0 %v5188
        %v5190 = vand.u32 %v1460, 4294901760
        %v5191 = vsub.f32 %v1460, %v5190
        %v5192 = vand.u32 %v5191, 4294901760
        %5193 = vmatpush1.msra.mxu0 %v5192
        %v5194 = vand.u32 %v1463, 4294901760
        %v5195 = vsub.f32 %v1463, %v5194
        %v5196 = vand.u32 %v5195, 4294901760
        %5197 = vmatprep.subr.mxu0 %v5196
        %v5198 = vand.u32 %v1462, 4294901760
        %v5199 = vsub.f32 %v1462, %v5198
        %v5200 = vand.u32 %v5199, 4294901760
        %5201 = vmatpush1.msra.mxu0 %v5200
        %v5202 = vand.u32 %v1465, 4294901760
        %v5203 = vsub.f32 %v1465, %v5202
        %v5204 = vand.u32 %v5203, 4294901760
        %5205 = vmatprep.subr.mxu0 %v5204
        %v5206 = vand.u32 %v1464, 4294901760
        %v5207 = vsub.f32 %v1464, %v5206
        %v5208 = vand.u32 %v5207, 4294901760
        %5209 = vmatpush1.msra.mxu0 %v5208
        %v5210 = vand.u32 %v1467, 4294901760
        %v5211 = vsub.f32 %v1467, %v5210
        %v5212 = vand.u32 %v5211, 4294901760
        %5213 = vmatprep.subr.mxu0 %v5212
        %v5214 = vand.u32 %v1466, 4294901760
        %v5215 = vsub.f32 %v1466, %v5214
        %v5216 = vand.u32 %v5215, 4294901760
        %5217 = vmatpush1.msra.mxu0 %v5216
        %v5218 = vand.u32 %v1469, 4294901760
        %v5219 = vsub.f32 %v1469, %v5218
        %v5220 = vand.u32 %v5219, 4294901760
        %5221 = vmatprep.subr.mxu0 %v5220
        %v5222 = vand.u32 %v1468, 4294901760
        %v5223 = vsub.f32 %v1468, %v5222
        %v5224 = vand.u32 %v5223, 4294901760
        %5225 = vmatpush1.msra.mxu0 %v5224
        %v5226 = vand.u32 %v1471, 4294901760
        %v5227 = vsub.f32 %v1471, %v5226
        %v5228 = vand.u32 %v5227, 4294901760
        %5229 = vmatprep.subr.mxu0 %v5228
        %v5230 = vand.u32 %v1470, 4294901760
        %v5231 = vsub.f32 %v1470, %v5230
        %v5232 = vand.u32 %v5231, 4294901760
        %5233 = vmatpush1.msra.mxu0 %v5232
        %v5234 = vand.u32 %v1473, 4294901760
        %v5235 = vsub.f32 %v1473, %v5234
        %v5236 = vand.u32 %v5235, 4294901760
        %5237 = vmatprep.subr.mxu0 %v5236
        %v5238 = vand.u32 %v1472, 4294901760
        %v5239 = vsub.f32 %v1472, %v5238
        %v5240 = vand.u32 %v5239, 4294901760
        %5241 = vmatpush1.msra.mxu0 %v5240
        %v5242 = vand.u32 %v1475, 4294901760
        %v5243 = vsub.f32 %v1475, %v5242
        %v5244 = vand.u32 %v5243, 4294901760
        %5245 = vmatprep.subr.mxu0 %v5244
        %v5246 = vand.u32 %v1474, 4294901760
        %v5247 = vsub.f32 %v1474, %v5246
        %v5248 = vand.u32 %v5247, 4294901760
        %5249 = vmatpush1.msra.mxu0 %v5248
        %v5250 = vand.u32 %v1477, 4294901760
        %v5251 = vsub.f32 %v1477, %v5250
        %v5252 = vand.u32 %v5251, 4294901760
        %5253 = vmatprep.subr.mxu0 %v5252
        %v5254 = vand.u32 %v1476, 4294901760
        %v5255 = vsub.f32 %v1476, %v5254
        %v5256 = vand.u32 %v5255, 4294901760
        %5257 = vmatpush1.msra.mxu0 %v5256
        %v5258 = vand.u32 %v3975, 4294901760
        %5259 = vmatprep.mubr.f32.mxu0 %v5258
        %v5260 = vand.u32 %v3974, 4294901760
        %5261 = vmatmul.mubr.f32.gmra.mrb[0].mxu0 %v5260
        %v5262 = vpop.f32.mrb[0].mxu0
        %v5263 = vadd.f32 %v4962, %v5262
        %v5264 = vpop.f32.mrb[0].mxu0
        %v5265 = vadd.f32 %v4964, %v5264
        %v5266 = vand.u32 %v3977, 4294901760
        %5267 = vmatprep.mubr.f32.mxu0 %v5266
        %v5268 = vand.u32 %v3976, 4294901760
        %5269 = vmatmul.mubr.f32.gmra.mrb[0].mxu0 %v5268
        %v5270 = vpop.f32.mrb[0].mxu0
        %v5271 = vadd.f32 %v4974, %v5270
        %v5272 = vpop.f32.mrb[0].mxu0
        %v5273 = vadd.f32 %v4976, %v5272
        %v5274 = vand.u32 %v3979, 4294901760
        %5275 = vmatprep.mubr.f32.mxu0 %v5274
        %v5276 = vand.u32 %v3978, 4294901760
        %5277 = vmatmul.mubr.f32.gmra.mrb[0].mxu0 %v5276
        %v5278 = vpop.f32.mrb[0].mxu0
        %v5279 = vadd.f32 %v4986, %v5278
        %v5280 = vpop.f32.mrb[0].mxu0
        %v5281 = vadd.f32 %v4988, %v5280
        %v5282 = vand.u32 %v3981, 4294901760
        %5283 = vmatprep.mubr.f32.mxu0 %v5282
        %v5284 = vand.u32 %v3980, 4294901760
        %5285 = vmatmul.mubr.f32.gmra.mrb[0].mxu0 %v5284
        %v5286 = vpop.f32.mrb[0].mxu0
        %v5287 = vadd.f32 %v4998, %v5286
        %v5288 = vpop.f32.mrb[0].mxu0
        %v5289 = vadd.f32 %v5000, %v5288
        %5290 = vdwg.mxu0
        %v5291 = vand.u32 %v1415, 4294901760
        %5292 = vmatprep.subr.mxu0 %v5291
        %v5293 = vand.u32 %v1414, 4294901760
        %5294 = vmatpush1.msra.mxu0 %v5293
        %v5295 = vand.u32 %v1417, 4294901760
        %5296 = vmatprep.subr.mxu0 %v5295
        %v5297 = vand.u32 %v1416, 4294901760
        %5298 = vmatpush1.msra.mxu0 %v5297
        %v5299 = vand.u32 %v1419, 4294901760
        %5300 = vmatprep.subr.mxu0 %v5299
        %v5301 = vand.u32 %v1418, 4294901760
        %5302 = vmatpush1.msra.mxu0 %v5301
        %v5303 = vand.u32 %v1421, 4294901760
        %5304 = vmatprep.subr.mxu0 %v5303
        %v5305 = vand.u32 %v1420, 4294901760
        %5306 = vmatpush1.msra.mxu0 %v5305
        %v5307 = vand.u32 %v1423, 4294901760
        %5308 = vmatprep.subr.mxu0 %v5307
        %v5309 = vand.u32 %v1422, 4294901760
        %5310 = vmatpush1.msra.mxu0 %v5309
        %v5311 = vand.u32 %v1425, 4294901760
        %5312 = vmatprep.subr.mxu0 %v5311
        %v5313 = vand.u32 %v1424, 4294901760
        %5314 = vmatpush1.msra.mxu0 %v5313
        %v5315 = vand.u32 %v1427, 4294901760
        %5316 = vmatprep.subr.mxu0 %v5315
        %v5317 = vand.u32 %v1426, 4294901760
        %5318 = vmatpush1.msra.mxu0 %v5317
        %v5319 = vand.u32 %v1429, 4294901760
        %5320 = vmatprep.subr.mxu0 %v5319
        %v5321 = vand.u32 %v1428, 4294901760
        %5322 = vmatpush1.msra.mxu0 %v5321
        %v5323 = vand.u32 %v1431, 4294901760
        %5324 = vmatprep.subr.mxu0 %v5323
        %v5325 = vand.u32 %v1430, 4294901760
        %5326 = vmatpush1.msra.mxu0 %v5325
        %v5327 = vand.u32 %v1433, 4294901760
        %5328 = vmatprep.subr.mxu0 %v5327
        %v5329 = vand.u32 %v1432, 4294901760
        %5330 = vmatpush1.msra.mxu0 %v5329
        %v5331 = vand.u32 %v1435, 4294901760
        %5332 = vmatprep.subr.mxu0 %v5331
        %v5333 = vand.u32 %v1434, 4294901760
        %5334 = vmatpush1.msra.mxu0 %v5333
        %v5335 = vand.u32 %v1437, 4294901760
        %5336 = vmatprep.subr.mxu0 %v5335
        %v5337 = vand.u32 %v1436, 4294901760
        %5338 = vmatpush1.msra.mxu0 %v5337
        %v5339 = vand.u32 %v1439, 4294901760
        %5340 = vmatprep.subr.mxu0 %v5339
        %v5341 = vand.u32 %v1438, 4294901760
        %5342 = vmatpush1.msra.mxu0 %v5341
        %v5343 = vand.u32 %v1441, 4294901760
        %5344 = vmatprep.subr.mxu0 %v5343
        %v5345 = vand.u32 %v1440, 4294901760
        %5346 = vmatpush1.msra.mxu0 %v5345
        %v5347 = vand.u32 %v1443, 4294901760
        %5348 = vmatprep.subr.mxu0 %v5347
        %v5349 = vand.u32 %v1442, 4294901760
        %5350 = vmatpush1.msra.mxu0 %v5349
        %v5351 = vand.u32 %v1445, 4294901760
        %5352 = vmatprep.subr.mxu0 %v5351
        %v5353 = vand.u32 %v1444, 4294901760
        %5354 = vmatpush1.msra.mxu0 %v5353
        %v5355 = vand.u32 %v1447, 4294901760
        %5356 = vmatprep.subr.mxu0 %v5355
        %v5357 = vand.u32 %v1446, 4294901760
        %5358 = vmatpush1.msra.mxu0 %v5357
        %v5359 = vand.u32 %v1449, 4294901760
        %5360 = vmatprep.subr.mxu0 %v5359
        %v5361 = vand.u32 %v1448, 4294901760
        %5362 = vmatpush1.msra.mxu0 %v5361
        %v5363 = vand.u32 %v1451, 4294901760
        %5364 = vmatprep.subr.mxu0 %v5363
        %v5365 = vand.u32 %v1450, 4294901760
        %5366 = vmatpush1.msra.mxu0 %v5365
        %v5367 = vand.u32 %v1453, 4294901760
        %5368 = vmatprep.subr.mxu0 %v5367
        %v5369 = vand.u32 %v1452, 4294901760
        %5370 = vmatpush1.msra.mxu0 %v5369
        %v5371 = vand.u32 %v1455, 4294901760
        %5372 = vmatprep.subr.mxu0 %v5371
        %v5373 = vand.u32 %v1454, 4294901760
        %5374 = vmatpush1.msra.mxu0 %v5373
        %v5375 = vand.u32 %v1457, 4294901760
        %5376 = vmatprep.subr.mxu0 %v5375
        %v5377 = vand.u32 %v1456, 4294901760
        %5378 = vmatpush1.msra.mxu0 %v5377
        %v5379 = vand.u32 %v1459, 4294901760
        %5380 = vmatprep.subr.mxu0 %v5379
        %v5381 = vand.u32 %v1458, 4294901760
        %5382 = vmatpush1.msra.mxu0 %v5381
        %v5383 = vand.u32 %v1461, 4294901760
        %5384 = vmatprep.subr.mxu0 %v5383
        %v5385 = vand.u32 %v1460, 4294901760
        %5386 = vmatpush1.msra.mxu0 %v5385
        %v5387 = vand.u32 %v1463, 4294901760
        %5388 = vmatprep.subr.mxu0 %v5387
        %v5389 = vand.u32 %v1462, 4294901760
        %5390 = vmatpush1.msra.mxu0 %v5389
        %v5391 = vand.u32 %v1465, 4294901760
        %5392 = vmatprep.subr.mxu0 %v5391
        %v5393 = vand.u32 %v1464, 4294901760
        %5394 = vmatpush1.msra.mxu0 %v5393
        %v5395 = vand.u32 %v1467, 4294901760
        %5396 = vmatprep.subr.mxu0 %v5395
        %v5397 = vand.u32 %v1466, 4294901760
        %5398 = vmatpush1.msra.mxu0 %v5397
        %v5399 = vand.u32 %v1469, 4294901760
        %5400 = vmatprep.subr.mxu0 %v5399
        %v5401 = vand.u32 %v1468, 4294901760
        %5402 = vmatpush1.msra.mxu0 %v5401
        %v5403 = vand.u32 %v1471, 4294901760
        %5404 = vmatprep.subr.mxu0 %v5403
        %v5405 = vand.u32 %v1470, 4294901760
        %5406 = vmatpush1.msra.mxu0 %v5405
        %v5407 = vand.u32 %v1473, 4294901760
        %5408 = vmatprep.subr.mxu0 %v5407
        %v5409 = vand.u32 %v1472, 4294901760
        %5410 = vmatpush1.msra.mxu0 %v5409
        %v5411 = vand.u32 %v1475, 4294901760
        %5412 = vmatprep.subr.mxu0 %v5411
        %v5413 = vand.u32 %v1474, 4294901760
        %5414 = vmatpush1.msra.mxu0 %v5413
        %v5415 = vand.u32 %v1477, 4294901760
        %5416 = vmatprep.subr.mxu0 %v5415
        %v5417 = vand.u32 %v1476, 4294901760
        %5418 = vmatpush1.msra.mxu0 %v5417
        %v5419 = vand.u32 %v3975, 4294901760
        %5420 = vmatprep.mubr.f32.mxu0 %v5419
        %v5421 = vand.u32 %v3974, 4294901760
        %5422 = vmatmul.mubr.f32.gmra.mrb[0].mxu0 %v5421
        %v5423 = vpop.f32.mrb[0].mxu0
        %v5424 = vadd.f32 %v5263, %v5423
        %v5425 = vpop.f32.mrb[0].mxu0
        %v5426 = vadd.f32 %v5265, %v5425
        %v5427 = vand.u32 %v3977, 4294901760
        %5428 = vmatprep.mubr.f32.mxu0 %v5427
        %v5429 = vand.u32 %v3976, 4294901760
        %5430 = vmatmul.mubr.f32.gmra.mrb[0].mxu0 %v5429
        %v5431 = vpop.f32.mrb[0].mxu0
        %v5432 = vadd.f32 %v5271, %v5431
        %v5433 = vpop.f32.mrb[0].mxu0
        %v5434 = vadd.f32 %v5273, %v5433
        %v5435 = vand.u32 %v3979, 4294901760
        %5436 = vmatprep.mubr.f32.mxu0 %v5435
        %v5437 = vand.u32 %v3978, 4294901760
        %5438 = vmatmul.mubr.f32.gmra.mrb[0].mxu0 %v5437
        %v5439 = vpop.f32.mrb[0].mxu0
        %v5440 = vadd.f32 %v5279, %v5439
        %v5441 = vpop.f32.mrb[0].mxu0
        %v5442 = vadd.f32 %v5281, %v5441
        %v5443 = vand.u32 %v3981, 4294901760
        %5444 = vmatprep.mubr.f32.mxu0 %v5443
        %v5445 = vand.u32 %v3980, 4294901760
        %5446 = vmatmul.mubr.f32.gmra.mrb[0].mxu0 %v5445
        %v5447 = vpop.f32.mrb[0].mxu0
        %v5448 = vadd.f32 %v5287, %v5447
        %v5449 = vpop.f32.mrb[0].mxu0
        %v5450 = vadd.f32 %v5289, %v5449
        %5451 = vdwg.mxu0
        %v5452 = vmax.f32 %v5424, 0.0
        %v5453 = vmax.f32 %v5426, 0.0
        %v5454 = vmax.f32 %v5432, 0.0
        %v5455 = vmax.f32 %v5434, 0.0
        %v5456 = vmax.f32 %v5440, 0.0
        %v5457 = vmax.f32 %v5442, 0.0
        %v5458 = vmax.f32 %v5448, 0.0
        %v5459 = vmax.f32 %v5450, 0.0
        %v5460 = vmul.f32 %v2960, %v5452
        %v5461 = vmul.f32 %v2961, %v5453
        %v5462 = vmul.f32 %v2962, %v5454
        %v5463 = vmul.f32 %v2963, %v5455
        %v5464 = vmul.f32 %v2964, %v5456
        %v5465 = vmul.f32 %v2965, %v5457
        %v5466 = vmul.f32 %v2966, %v5458
        %v5467 = vmul.f32 %v2967, %v5459
        %v5468 = vld [vmem:[%s6] sm:$0xff]
        %v5469 = vld [vmem:[%s6 + $0x8] sm:$0xff]
        %v5470 = vld [vmem:[%s6 + $0x10] sm:$0xff]
        %v5471 = vld [vmem:[%s6 + $0x18] sm:$0xff]
        %v5472 = vld [vmem:[%s6 + $0x20] sm:$0xff]
        %v5473 = vld [vmem:[%s6 + $0x28] sm:$0xff]
        %v5474 = vld [vmem:[%s6 + $0x30] sm:$0xff]
        %v5475 = vld [vmem:[%s6 + $0x38] sm:$0xff]
        %v5476 = vld [vmem:[%s6 + $0x40] sm:$0xff]
        %v5477 = vld [vmem:[%s6 + $0x48] sm:$0xff]
        %v5478 = vld [vmem:[%s6 + $0x50] sm:$0xff]
        %v5479 = vld [vmem:[%s6 + $0x58] sm:$0xff]
        %v5480 = vld [vmem:[%s6 + $0x60] sm:$0xff]
        %v5481 = vld [vmem:[%s6 + $0x68] sm:$0xff]
        %v5482 = vld [vmem:[%s6 + $0x70] sm:$0xff]
        %v5483 = vld [vmem:[%s6 + $0x78] sm:$0xff]
        %v5484 = vld [vmem:[%s6 + $0x80] sm:$0xff]
        %v5485 = vld [vmem:[%s6 + $0x88] sm:$0xff]
        %v5486 = vld [vmem:[%s6 + $0x90] sm:$0xff]
        %v5487 = vld [vmem:[%s6 + $0x98] sm:$0xff]
        %v5488 = vld [vmem:[%s6 + $0xa0] sm:$0xff]
        %v5489 = vld [vmem:[%s6 + $0xa8] sm:$0xff]
        %v5490 = vld [vmem:[%s6 + $0xb0] sm:$0xff]
        %v5491 = vld [vmem:[%s6 + $0xb8] sm:$0xff]
        %v5492 = vld [vmem:[%s6 + $0xc0] sm:$0xff]
        %v5493 = vld [vmem:[%s6 + $0xc8] sm:$0xff]
        %v5494 = vld [vmem:[%s6 + $0xd0] sm:$0xff]
        %v5495 = vld [vmem:[%s6 + $0xd8] sm:$0xff]
        %v5496 = vld [vmem:[%s6 + $0xe0] sm:$0xff]
        %v5497 = vld [vmem:[%s6 + $0xe8] sm:$0xff]
        %v5498 = vld [vmem:[%s6 + $0xf0] sm:$0xff]
        %v5499 = vld [vmem:[%s6 + $0xf8] sm:$0xff]
        %5500 = vmatprep.subr.mxu0 0.0
        %v5501 = vand.u32 %v5468, 4294901760
        %5502 = vmatpush1.msra.mxu0 %v5501
        %5503 = vmatprep.subr.mxu0 0.0
        %v5504 = vand.u32 %v5469, 4294901760
        %5505 = vmatpush1.msra.mxu0 %v5504
        %5506 = vmatprep.subr.mxu0 0.0
        %v5507 = vand.u32 %v5470, 4294901760
        %5508 = vmatpush1.msra.mxu0 %v5507
        %5509 = vmatprep.subr.mxu0 0.0
        %v5510 = vand.u32 %v5471, 4294901760
        %5511 = vmatpush1.msra.mxu0 %v5510
        %5512 = vmatprep.subr.mxu0 0.0
        %v5513 = vand.u32 %v5472, 4294901760
        %5514 = vmatpush1.msra.mxu0 %v5513
        %5515 = vmatprep.subr.mxu0 0.0
        %v5516 = vand.u32 %v5473, 4294901760
        %5517 = vmatpush1.msra.mxu0 %v5516
        %5518 = vmatprep.subr.mxu0 0.0
        %v5519 = vand.u32 %v5474, 4294901760
        %5520 = vmatpush1.msra.mxu0 %v5519
        %5521 = vmatprep.subr.mxu0 0.0
        %v5522 = vand.u32 %v5475, 4294901760
        %5523 = vmatpush1.msra.mxu0 %v5522
        %5524 = vmatprep.subr.mxu0 0.0
        %v5525 = vand.u32 %v5476, 4294901760
        %5526 = vmatpush1.msra.mxu0 %v5525
        %5527 = vmatprep.subr.mxu0 0.0
        %v5528 = vand.u32 %v5477, 4294901760
        %5529 = vmatpush1.msra.mxu0 %v5528
        %5530 = vmatprep.subr.mxu0 0.0
        %v5531 = vand.u32 %v5478, 4294901760
        %5532 = vmatpush1.msra.mxu0 %v5531
        %5533 = vmatprep.subr.mxu0 0.0
        %v5534 = vand.u32 %v5479, 4294901760
        %5535 = vmatpush1.msra.mxu0 %v5534
        %5536 = vmatprep.subr.mxu0 0.0
        %v5537 = vand.u32 %v5480, 4294901760
        %5538 = vmatpush1.msra.mxu0 %v5537
        %5539 = vmatprep.subr.mxu0 0.0
        %v5540 = vand.u32 %v5481, 4294901760
        %5541 = vmatpush1.msra.mxu0 %v5540
        %5542 = vmatprep.subr.mxu0 0.0
        %v5543 = vand.u32 %v5482, 4294901760
        %5544 = vmatpush1.msra.mxu0 %v5543
        %5545 = vmatprep.subr.mxu0 0.0
        %v5546 = vand.u32 %v5483, 4294901760
        %5547 = vmatpush1.msra.mxu0 %v5546
        %5548 = vmatprep.subr.mxu0 0.0
        %v5549 = vand.u32 %v5484, 4294901760
        %5550 = vmatpush1.msra.mxu0 %v5549
        %5551 = vmatprep.subr.mxu0 0.0
        %v5552 = vand.u32 %v5485, 4294901760
        %5553 = vmatpush1.msra.mxu0 %v5552
        %5554 = vmatprep.subr.mxu0 0.0
        %v5555 = vand.u32 %v5486, 4294901760
        %5556 = vmatpush1.msra.mxu0 %v5555
        %5557 = vmatprep.subr.mxu0 0.0
        %v5558 = vand.u32 %v5487, 4294901760
        %5559 = vmatpush1.msra.mxu0 %v5558
        %5560 = vmatprep.subr.mxu0 0.0
        %v5561 = vand.u32 %v5488, 4294901760
        %5562 = vmatpush1.msra.mxu0 %v5561
        %5563 = vmatprep.subr.mxu0 0.0
        %v5564 = vand.u32 %v5489, 4294901760
        %5565 = vmatpush1.msra.mxu0 %v5564
        %5566 = vmatprep.subr.mxu0 0.0
        %v5567 = vand.u32 %v5490, 4294901760
        %5568 = vmatpush1.msra.mxu0 %v5567
        %5569 = vmatprep.subr.mxu0 0.0
        %v5570 = vand.u32 %v5491, 4294901760
        %5571 = vmatpush1.msra.mxu0 %v5570
        %5572 = vmatprep.subr.mxu0 0.0
        %v5573 = vand.u32 %v5492, 4294901760
        %5574 = vmatpush1.msra.mxu0 %v5573
        %5575 = vmatprep.subr.mxu0 0.0
        %v5576 = vand.u32 %v5493, 4294901760
        %5577 = vmatpush1.msra.mxu0 %v5576
        %5578 = vmatprep.subr.mxu0 0.0
        %v5579 = vand.u32 %v5494, 4294901760
        %5580 = vmatpush1.msra.mxu0 %v5579
        %5581 = vmatprep.subr.mxu0 0.0
        %v5582 = vand.u32 %v5495, 4294901760
        %5583 = vmatpush1.msra.mxu0 %v5582
        %5584 = vmatprep.subr.mxu0 0.0
        %v5585 = vand.u32 %v5496, 4294901760
        %5586 = vmatpush1.msra.mxu0 %v5585
        %5587 = vmatprep.subr.mxu0 0.0
        %v5588 = vand.u32 %v5497, 4294901760
        %5589 = vmatpush1.msra.mxu0 %v5588
        %5590 = vmatprep.subr.mxu0 0.0
        %v5591 = vand.u32 %v5498, 4294901760
        %5592 = vmatpush1.msra.mxu0 %v5591
        %5593 = vmatprep.subr.mxu0 0.0
        %v5594 = vand.u32 %v5499, 4294901760
        %5595 = vmatpush1.msra.mxu0 %v5594
        %v5596 = vand.u32 %v5461, 4294901760
        %v5597 = vsub.f32 %v5461, %v5596
        %v5598 = vand.u32 %v5597, 4294901760
        %v5599 = vsub.f32 %v5597, %v5598
        %v5600 = vand.u32 %v5599, 4294901760
        %5601 = vmatprep.mubr.f32.mxu0 %v5600
        %v5602 = vand.u32 %v5460, 4294901760
        %v5603 = vsub.f32 %v5460, %v5602
        %v5604 = vand.u32 %v5603, 4294901760
        %v5605 = vsub.f32 %v5603, %v5604
        %v5606 = vand.u32 %v5605, 4294901760
        %5607 = vmatmul.mubr.f32.gmra.mrb[0].mxu0 %v5606
        %v5608 = vpop.f32.mrb[0].mxu0
        %v5609 = vadd.f32 0.0, %v5608
        %v5610 = vpop.f32.mrb[0].mxu0
        %v5611 = vand.u32 %v5463, 4294901760
        %v5612 = vsub.f32 %v5463, %v5611
        %v5613 = vand.u32 %v5612, 4294901760
        %v5614 = vsub.f32 %v5612, %v5613
        %v5615 = vand.u32 %v5614, 4294901760
        %5616 = vmatprep.mubr.f32.mxu0 %v5615
        %v5617 = vand.u32 %v5462, 4294901760
        %v5618 = vsub.f32 %v5462, %v5617
        %v5619 = vand.u32 %v5618, 4294901760
        %v5620 = vsub.f32 %v5618, %v5619
        %v5621 = vand.u32 %v5620, 4294901760
        %5622 = vmatmul.mubr.f32.gmra.mrb[0].mxu0 %v5621
        %v5623 = vpop.f32.mrb[0].mxu0
        %v5624 = vadd.f32 0.0, %v5623
        %v5625 = vpop.f32.mrb[0].mxu0
        %v5626 = vand.u32 %v5465, 4294901760
        %v5627 = vsub.f32 %v5465, %v5626
        %v5628 = vand.u32 %v5627, 4294901760
        %v5629 = vsub.f32 %v5627, %v5628
        %v5630 = vand.u32 %v5629, 4294901760
        %5631 = vmatprep.mubr.f32.mxu0 %v5630
        %v5632 = vand.u32 %v5464, 4294901760
        %v5633 = vsub.f32 %v5464, %v5632
        %v5634 = vand.u32 %v5633, 4294901760
        %v5635 = vsub.f32 %v5633, %v5634
        %v5636 = vand.u32 %v5635, 4294901760
        %5637 = vmatmul.mubr.f32.gmra.mrb[0].mxu0 %v5636
        %v5638 = vpop.f32.mrb[0].mxu0
        %v5639 = vadd.f32 0.0, %v5638
        %v5640 = vpop.f32.mrb[0].mxu0
        %v5641 = vand.u32 %v5467, 4294901760
        %v5642 = vsub.f32 %v5467, %v5641
        %v5643 = vand.u32 %v5642, 4294901760
        %v5644 = vsub.f32 %v5642, %v5643
        %v5645 = vand.u32 %v5644, 4294901760
        %5646 = vmatprep.mubr.f32.mxu0 %v5645
        %v5647 = vand.u32 %v5466, 4294901760
        %v5648 = vsub.f32 %v5466, %v5647
        %v5649 = vand.u32 %v5648, 4294901760
        %v5650 = vsub.f32 %v5648, %v5649
        %v5651 = vand.u32 %v5650, 4294901760
        %5652 = vmatmul.mubr.f32.gmra.mrb[0].mxu0 %v5651
        %v5653 = vpop.f32.mrb[0].mxu0
        %v5654 = vadd.f32 0.0, %v5653
        %v5655 = vpop.f32.mrb[0].mxu0
        %5656 = vdwg.mxu0
        %5657 = vmatprep.subr.mxu0 0.0
        %v5658 = vand.u32 %v5468, 4294901760
        %v5659 = vsub.f32 %v5468, %v5658
        %v5660 = vand.u32 %v5659, 4294901760
        %v5661 = vsub.f32 %v5659, %v5660
        %v5662 = vand.u32 %v5661, 4294901760
        %5663 = vmatpush1.msra.mxu0 %v5662
        %5664 = vmatprep.subr.mxu0 0.0
        %v5665 = vand.u32 %v5469, 4294901760
        %v5666 = vsub.f32 %v5469, %v5665
        %v5667 = vand.u32 %v5666, 4294901760
        %v5668 = vsub.f32 %v5666, %v5667
        %v5669 = vand.u32 %v5668, 4294901760
        %5670 = vmatpush1.msra.mxu0 %v5669
        %5671 = vmatprep.subr.mxu0 0.0
        %v5672 = vand.u32 %v5470, 4294901760
        %v5673 = vsub.f32 %v5470, %v5672
        %v5674 = vand.u32 %v5673, 4294901760
        %v5675 = vsub.f32 %v5673, %v5674
        %v5676 = vand.u32 %v5675, 4294901760
        %5677 = vmatpush1.msra.mxu0 %v5676
        %5678 = vmatprep.subr.mxu0 0.0
        %v5679 = vand.u32 %v5471, 4294901760
        %v5680 = vsub.f32 %v5471, %v5679
        %v5681 = vand.u32 %v5680, 4294901760
        %v5682 = vsub.f32 %v5680, %v5681
        %v5683 = vand.u32 %v5682, 4294901760
        %5684 = vmatpush1.msra.mxu0 %v5683
        %5685 = vmatprep.subr.mxu0 0.0
        %v5686 = vand.u32 %v5472, 4294901760
        %v5687 = vsub.f32 %v5472, %v5686
        %v5688 = vand.u32 %v5687, 4294901760
        %v5689 = vsub.f32 %v5687, %v5688
        %v5690 = vand.u32 %v5689, 4294901760
        %5691 = vmatpush1.msra.mxu0 %v5690
        %5692 = vmatprep.subr.mxu0 0.0
        %v5693 = vand.u32 %v5473, 4294901760
        %v5694 = vsub.f32 %v5473, %v5693
        %v5695 = vand.u32 %v5694, 4294901760
        %v5696 = vsub.f32 %v5694, %v5695
        %v5697 = vand.u32 %v5696, 4294901760
        %5698 = vmatpush1.msra.mxu0 %v5697
        %5699 = vmatprep.subr.mxu0 0.0
        %v5700 = vand.u32 %v5474, 4294901760
        %v5701 = vsub.f32 %v5474, %v5700
        %v5702 = vand.u32 %v5701, 4294901760
        %v5703 = vsub.f32 %v5701, %v5702
        %v5704 = vand.u32 %v5703, 4294901760
        %5705 = vmatpush1.msra.mxu0 %v5704
        %5706 = vmatprep.subr.mxu0 0.0
        %v5707 = vand.u32 %v5475, 4294901760
        %v5708 = vsub.f32 %v5475, %v5707
        %v5709 = vand.u32 %v5708, 4294901760
        %v5710 = vsub.f32 %v5708, %v5709
        %v5711 = vand.u32 %v5710, 4294901760
        %5712 = vmatpush1.msra.mxu0 %v5711
        %5713 = vmatprep.subr.mxu0 0.0
        %v5714 = vand.u32 %v5476, 4294901760
        %v5715 = vsub.f32 %v5476, %v5714
        %v5716 = vand.u32 %v5715, 4294901760
        %v5717 = vsub.f32 %v5715, %v5716
        %v5718 = vand.u32 %v5717, 4294901760
        %5719 = vmatpush1.msra.mxu0 %v5718
        %5720 = vmatprep.subr.mxu0 0.0
        %v5721 = vand.u32 %v5477, 4294901760
        %v5722 = vsub.f32 %v5477, %v5721
        %v5723 = vand.u32 %v5722, 4294901760
        %v5724 = vsub.f32 %v5722, %v5723
        %v5725 = vand.u32 %v5724, 4294901760
        %5726 = vmatpush1.msra.mxu0 %v5725
        %5727 = vmatprep.subr.mxu0 0.0
        %v5728 = vand.u32 %v5478, 4294901760
        %v5729 = vsub.f32 %v5478, %v5728
        %v5730 = vand.u32 %v5729, 4294901760
        %v5731 = vsub.f32 %v5729, %v5730
        %v5732 = vand.u32 %v5731, 4294901760
        %5733 = vmatpush1.msra.mxu0 %v5732
        %5734 = vmatprep.subr.mxu0 0.0
        %v5735 = vand.u32 %v5479, 4294901760
        %v5736 = vsub.f32 %v5479, %v5735
        %v5737 = vand.u32 %v5736, 4294901760
        %v5738 = vsub.f32 %v5736, %v5737
        %v5739 = vand.u32 %v5738, 4294901760
        %5740 = vmatpush1.msra.mxu0 %v5739
        %5741 = vmatprep.subr.mxu0 0.0
        %v5742 = vand.u32 %v5480, 4294901760
        %v5743 = vsub.f32 %v5480, %v5742
        %v5744 = vand.u32 %v5743, 4294901760
        %v5745 = vsub.f32 %v5743, %v5744
        %v5746 = vand.u32 %v5745, 4294901760
        %5747 = vmatpush1.msra.mxu0 %v5746
        %5748 = vmatprep.subr.mxu0 0.0
        %v5749 = vand.u32 %v5481, 4294901760
        %v5750 = vsub.f32 %v5481, %v5749
        %v5751 = vand.u32 %v5750, 4294901760
        %v5752 = vsub.f32 %v5750, %v5751
        %v5753 = vand.u32 %v5752, 4294901760
        %5754 = vmatpush1.msra.mxu0 %v5753
        %5755 = vmatprep.subr.mxu0 0.0
        %v5756 = vand.u32 %v5482, 4294901760
        %v5757 = vsub.f32 %v5482, %v5756
        %v5758 = vand.u32 %v5757, 4294901760
        %v5759 = vsub.f32 %v5757, %v5758
        %v5760 = vand.u32 %v5759, 4294901760
        %5761 = vmatpush1.msra.mxu0 %v5760
        %5762 = vmatprep.subr.mxu0 0.0
        %v5763 = vand.u32 %v5483, 4294901760
        %v5764 = vsub.f32 %v5483, %v5763
        %v5765 = vand.u32 %v5764, 4294901760
        %v5766 = vsub.f32 %v5764, %v5765
        %v5767 = vand.u32 %v5766, 4294901760
        %5768 = vmatpush1.msra.mxu0 %v5767
        %5769 = vmatprep.subr.mxu0 0.0
        %v5770 = vand.u32 %v5484, 4294901760
        %v5771 = vsub.f32 %v5484, %v5770
        %v5772 = vand.u32 %v5771, 4294901760
        %v5773 = vsub.f32 %v5771, %v5772
        %v5774 = vand.u32 %v5773, 4294901760
        %5775 = vmatpush1.msra.mxu0 %v5774
        %5776 = vmatprep.subr.mxu0 0.0
        %v5777 = vand.u32 %v5485, 4294901760
        %v5778 = vsub.f32 %v5485, %v5777
        %v5779 = vand.u32 %v5778, 4294901760
        %v5780 = vsub.f32 %v5778, %v5779
        %v5781 = vand.u32 %v5780, 4294901760
        %5782 = vmatpush1.msra.mxu0 %v5781
        %5783 = vmatprep.subr.mxu0 0.0
        %v5784 = vand.u32 %v5486, 4294901760
        %v5785 = vsub.f32 %v5486, %v5784
        %v5786 = vand.u32 %v5785, 4294901760
        %v5787 = vsub.f32 %v5785, %v5786
        %v5788 = vand.u32 %v5787, 4294901760
        %5789 = vmatpush1.msra.mxu0 %v5788
        %5790 = vmatprep.subr.mxu0 0.0
        %v5791 = vand.u32 %v5487, 4294901760
        %v5792 = vsub.f32 %v5487, %v5791
        %v5793 = vand.u32 %v5792, 4294901760
        %v5794 = vsub.f32 %v5792, %v5793
        %v5795 = vand.u32 %v5794, 4294901760
        %5796 = vmatpush1.msra.mxu0 %v5795
        %5797 = vmatprep.subr.mxu0 0.0
        %v5798 = vand.u32 %v5488, 4294901760
        %v5799 = vsub.f32 %v5488, %v5798
        %v5800 = vand.u32 %v5799, 4294901760
        %v5801 = vsub.f32 %v5799, %v5800
        %v5802 = vand.u32 %v5801, 4294901760
        %5803 = vmatpush1.msra.mxu0 %v5802
        %5804 = vmatprep.subr.mxu0 0.0
        %v5805 = vand.u32 %v5489, 4294901760
        %v5806 = vsub.f32 %v5489, %v5805
        %v5807 = vand.u32 %v5806, 4294901760
        %v5808 = vsub.f32 %v5806, %v5807
        %v5809 = vand.u32 %v5808, 4294901760
        %5810 = vmatpush1.msra.mxu0 %v5809
        %5811 = vmatprep.subr.mxu0 0.0
        %v5812 = vand.u32 %v5490, 4294901760
        %v5813 = vsub.f32 %v5490, %v5812
        %v5814 = vand.u32 %v5813, 4294901760
        %v5815 = vsub.f32 %v5813, %v5814
        %v5816 = vand.u32 %v5815, 4294901760
        %5817 = vmatpush1.msra.mxu0 %v5816
        %5818 = vmatprep.subr.mxu0 0.0
        %v5819 = vand.u32 %v5491, 4294901760
        %v5820 = vsub.f32 %v5491, %v5819
        %v5821 = vand.u32 %v5820, 4294901760
        %v5822 = vsub.f32 %v5820, %v5821
        %v5823 = vand.u32 %v5822, 4294901760
        %5824 = vmatpush1.msra.mxu0 %v5823
        %5825 = vmatprep.subr.mxu0 0.0
        %v5826 = vand.u32 %v5492, 4294901760
        %v5827 = vsub.f32 %v5492, %v5826
        %v5828 = vand.u32 %v5827, 4294901760
        %v5829 = vsub.f32 %v5827, %v5828
        %v5830 = vand.u32 %v5829, 4294901760
        %5831 = vmatpush1.msra.mxu0 %v5830
        %5832 = vmatprep.subr.mxu0 0.0
        %v5833 = vand.u32 %v5493, 4294901760
        %v5834 = vsub.f32 %v5493, %v5833
        %v5835 = vand.u32 %v5834, 4294901760
        %v5836 = vsub.f32 %v5834, %v5835
        %v5837 = vand.u32 %v5836, 4294901760
        %5838 = vmatpush1.msra.mxu0 %v5837
        %5839 = vmatprep.subr.mxu0 0.0
        %v5840 = vand.u32 %v5494, 4294901760
        %v5841 = vsub.f32 %v5494, %v5840
        %v5842 = vand.u32 %v5841, 4294901760
        %v5843 = vsub.f32 %v5841, %v5842
        %v5844 = vand.u32 %v5843, 4294901760
        %5845 = vmatpush1.msra.mxu0 %v5844
        %5846 = vmatprep.subr.mxu0 0.0
        %v5847 = vand.u32 %v5495, 4294901760
        %v5848 = vsub.f32 %v5495, %v5847
        %v5849 = vand.u32 %v5848, 4294901760
        %v5850 = vsub.f32 %v5848, %v5849
        %v5851 = vand.u32 %v5850, 4294901760
        %5852 = vmatpush1.msra.mxu0 %v5851
        %5853 = vmatprep.subr.mxu0 0.0
        %v5854 = vand.u32 %v5496, 4294901760
        %v5855 = vsub.f32 %v5496, %v5854
        %v5856 = vand.u32 %v5855, 4294901760
        %v5857 = vsub.f32 %v5855, %v5856
        %v5858 = vand.u32 %v5857, 4294901760
        %5859 = vmatpush1.msra.mxu0 %v5858
        %5860 = vmatprep.subr.mxu0 0.0
        %v5861 = vand.u32 %v5497, 4294901760
        %v5862 = vsub.f32 %v5497, %v5861
        %v5863 = vand.u32 %v5862, 4294901760
        %v5864 = vsub.f32 %v5862, %v5863
        %v5865 = vand.u32 %v5864, 4294901760
        %5866 = vmatpush1.msra.mxu0 %v5865
        %5867 = vmatprep.subr.mxu0 0.0
        %v5868 = vand.u32 %v5498, 4294901760
        %v5869 = vsub.f32 %v5498, %v5868
        %v5870 = vand.u32 %v5869, 4294901760
        %v5871 = vsub.f32 %v5869, %v5870
        %v5872 = vand.u32 %v5871, 4294901760
        %5873 = vmatpush1.msra.mxu0 %v5872
        %5874 = vmatprep.subr.mxu0 0.0
        %v5875 = vand.u32 %v5499, 4294901760
        %v5876 = vsub.f32 %v5499, %v5875
        %v5877 = vand.u32 %v5876, 4294901760
        %v5878 = vsub.f32 %v5876, %v5877
        %v5879 = vand.u32 %v5878, 4294901760
        %5880 = vmatpush1.msra.mxu0 %v5879
        %v5881 = vand.u32 %v5461, 4294901760
        %5882 = vmatprep.mubr.f32.mxu0 %v5881
        %v5883 = vand.u32 %v5460, 4294901760
        %5884 = vmatmul.mubr.f32.gmra.mrb[0].mxu0 %v5883
        %v5885 = vpop.f32.mrb[0].mxu0
        %v5886 = vadd.f32 %v5609, %v5885
        %v5887 = vpop.f32.mrb[0].mxu0
        %v5888 = vand.u32 %v5463, 4294901760
        %5889 = vmatprep.mubr.f32.mxu0 %v5888
        %v5890 = vand.u32 %v5462, 4294901760
        %5891 = vmatmul.mubr.f32.gmra.mrb[0].mxu0 %v5890
        %v5892 = vpop.f32.mrb[0].mxu0
        %v5893 = vadd.f32 %v5624, %v5892
        %v5894 = vpop.f32.mrb[0].mxu0
        %v5895 = vand.u32 %v5465, 4294901760
        %5896 = vmatprep.mubr.f32.mxu0 %v5895
        %v5897 = vand.u32 %v5464, 4294901760
        %5898 = vmatmul.mubr.f32.gmra.mrb[0].mxu0 %v5897
        %v5899 = vpop.f32.mrb[0].mxu0
        %v5900 = vadd.f32 %v5639, %v5899
        %v5901 = vpop.f32.mrb[0].mxu0
        %v5902 = vand.u32 %v5467, 4294901760
        %5903 = vmatprep.mubr.f32.mxu0 %v5902
        %v5904 = vand.u32 %v5466, 4294901760
        %5905 = vmatmul.mubr.f32.gmra.mrb[0].mxu0 %v5904
        %v5906 = vpop.f32.mrb[0].mxu0
        %v5907 = vadd.f32 %v5654, %v5906
        %v5908 = vpop.f32.mrb[0].mxu0
        %5909 = vdwg.mxu0
        %5910 = vmatprep.subr.mxu0 0.0
        %v5911 = vand.u32 %v5468, 4294901760
        %v5912 = vsub.f32 %v5468, %v5911
        %5913 = vmatpush1.msra.mxu0 %v5912
        %5914 = vmatprep.subr.mxu0 0.0
        %v5915 = vand.u32 %v5469, 4294901760
        %v5916 = vsub.f32 %v5469, %v5915
        %5917 = vmatpush1.msra.mxu0 %v5916
        %5918 = vmatprep.subr.mxu0 0.0
        %v5919 = vand.u32 %v5470, 4294901760
        %v5920 = vsub.f32 %v5470, %v5919
        %5921 = vmatpush1.msra.mxu0 %v5920
        %5922 = vmatprep.subr.mxu0 0.0
        %v5923 = vand.u32 %v5471, 4294901760
        %v5924 = vsub.f32 %v5471, %v5923
        %5925 = vmatpush1.msra.mxu0 %v5924
        %5926 = vmatprep.subr.mxu0 0.0
        %v5927 = vand.u32 %v5472, 4294901760
        %v5928 = vsub.f32 %v5472, %v5927
        %5929 = vmatpush1.msra.mxu0 %v5928
        %5930 = vmatprep.subr.mxu0 0.0
        %v5931 = vand.u32 %v5473, 4294901760
        %v5932 = vsub.f32 %v5473, %v5931
        %5933 = vmatpush1.msra.mxu0 %v5932
        %5934 = vmatprep.subr.mxu0 0.0
        %v5935 = vand.u32 %v5474, 4294901760
        %v5936 = vsub.f32 %v5474, %v5935
        %5937 = vmatpush1.msra.mxu0 %v5936
        %5938 = vmatprep.subr.mxu0 0.0
        %v5939 = vand.u32 %v5475, 4294901760
        %v5940 = vsub.f32 %v5475, %v5939
        %5941 = vmatpush1.msra.mxu0 %v5940
        %5942 = vmatprep.subr.mxu0 0.0
        %v5943 = vand.u32 %v5476, 4294901760
        %v5944 = vsub.f32 %v5476, %v5943
        %5945 = vmatpush1.msra.mxu0 %v5944
        %5946 = vmatprep.subr.mxu0 0.0
        %v5947 = vand.u32 %v5477, 4294901760
        %v5948 = vsub.f32 %v5477, %v5947
        %5949 = vmatpush1.msra.mxu0 %v5948
        %5950 = vmatprep.subr.mxu0 0.0
        %v5951 = vand.u32 %v5478, 4294901760
        %v5952 = vsub.f32 %v5478, %v5951
        %5953 = vmatpush1.msra.mxu0 %v5952
        %5954 = vmatprep.subr.mxu0 0.0
        %v5955 = vand.u32 %v5479, 4294901760
        %v5956 = vsub.f32 %v5479, %v5955
        %5957 = vmatpush1.msra.mxu0 %v5956
        %5958 = vmatprep.subr.mxu0 0.0
        %v5959 = vand.u32 %v5480, 4294901760
        %v5960 = vsub.f32 %v5480, %v5959
        %5961 = vmatpush1.msra.mxu0 %v5960
        %5962 = vmatprep.subr.mxu0 0.0
        %v5963 = vand.u32 %v5481, 4294901760
        %v5964 = vsub.f32 %v5481, %v5963
        %5965 = vmatpush1.msra.mxu0 %v5964
        %5966 = vmatprep.subr.mxu0 0.0
        %v5967 = vand.u32 %v5482, 4294901760
        %v5968 = vsub.f32 %v5482, %v5967
        %5969 = vmatpush1.msra.mxu0 %v5968
        %5970 = vmatprep.subr.mxu0 0.0
        %v5971 = vand.u32 %v5483, 4294901760
        %v5972 = vsub.f32 %v5483, %v5971
        %5973 = vmatpush1.msra.mxu0 %v5972
        %5974 = vmatprep.subr.mxu0 0.0
        %v5975 = vand.u32 %v5484, 4294901760
        %v5976 = vsub.f32 %v5484, %v5975
        %5977 = vmatpush1.msra.mxu0 %v5976
        %5978 = vmatprep.subr.mxu0 0.0
        %v5979 = vand.u32 %v5485, 4294901760
        %v5980 = vsub.f32 %v5485, %v5979
        %5981 = vmatpush1.msra.mxu0 %v5980
        %5982 = vmatprep.subr.mxu0 0.0
        %v5983 = vand.u32 %v5486, 4294901760
        %v5984 = vsub.f32 %v5486, %v5983
        %5985 = vmatpush1.msra.mxu0 %v5984
        %5986 = vmatprep.subr.mxu0 0.0
        %v5987 = vand.u32 %v5487, 4294901760
        %v5988 = vsub.f32 %v5487, %v5987
        %5989 = vmatpush1.msra.mxu0 %v5988
        %5990 = vmatprep.subr.mxu0 0.0
        %v5991 = vand.u32 %v5488, 4294901760
        %v5992 = vsub.f32 %v5488, %v5991
        %5993 = vmatpush1.msra.mxu0 %v5992
        %5994 = vmatprep.subr.mxu0 0.0
        %v5995 = vand.u32 %v5489, 4294901760
        %v5996 = vsub.f32 %v5489, %v5995
        %5997 = vmatpush1.msra.mxu0 %v5996
        %5998 = vmatprep.subr.mxu0 0.0
        %v5999 = vand.u32 %v5490, 4294901760
        %v6000 = vsub.f32 %v5490, %v5999
        %6001 = vmatpush1.msra.mxu0 %v6000
        %6002 = vmatprep.subr.mxu0 0.0
        %v6003 = vand.u32 %v5491, 4294901760
        %v6004 = vsub.f32 %v5491, %v6003
        %6005 = vmatpush1.msra.mxu0 %v6004
        %6006 = vmatprep.subr.mxu0 0.0
        %v6007 = vand.u32 %v5492, 4294901760
        %v6008 = vsub.f32 %v5492, %v6007
        %6009 = vmatpush1.msra.mxu0 %v6008
        %6010 = vmatprep.subr.mxu0 0.0
        %v6011 = vand.u32 %v5493, 4294901760
        %v6012 = vsub.f32 %v5493, %v6011
        %6013 = vmatpush1.msra.mxu0 %v6012
        %6014 = vmatprep.subr.mxu0 0.0
        %v6015 = vand.u32 %v5494, 4294901760
        %v6016 = vsub.f32 %v5494, %v6015
        %6017 = vmatpush1.msra.mxu0 %v6016
        %6018 = vmatprep.subr.mxu0 0.0
        %v6019 = vand.u32 %v5495, 4294901760
        %v6020 = vsub.f32 %v5495, %v6019
        %6021 = vmatpush1.msra.mxu0 %v6020
        %6022 = vmatprep.subr.mxu0 0.0
        %v6023 = vand.u32 %v5496, 4294901760
        %v6024 = vsub.f32 %v5496, %v6023
        %6025 = vmatpush1.msra.mxu0 %v6024
        %6026 = vmatprep.subr.mxu0 0.0
        %v6027 = vand.u32 %v5497, 4294901760
        %v6028 = vsub.f32 %v5497, %v6027
        %6029 = vmatpush1.msra.mxu0 %v6028
        %6030 = vmatprep.subr.mxu0 0.0
        %v6031 = vand.u32 %v5498, 4294901760
        %v6032 = vsub.f32 %v5498, %v6031
        %6033 = vmatpush1.msra.mxu0 %v6032
        %6034 = vmatprep.subr.mxu0 0.0
        %v6035 = vand.u32 %v5499, 4294901760
        %v6036 = vsub.f32 %v5499, %v6035
        %6037 = vmatpush1.msra.mxu0 %v6036
        %v6038 = vand.u32 %v5461, 4294901760
        %v6039 = vsub.f32 %v5461, %v6038
        %6040 = vmatprep.mubr.f32.mxu0 %v6039
        %v6041 = vand.u32 %v5460, 4294901760
        %v6042 = vsub.f32 %v5460, %v6041
        %6043 = vmatmul.mubr.f32.gmra.mrb[0].mxu0 %v6042
        %v6044 = vpop.f32.mrb[0].mxu0
        %v6045 = vadd.f32 %v5886, %v6044
        %v6046 = vpop.f32.mrb[0].mxu0
        %v6047 = vand.u32 %v5463, 4294901760
        %v6048 = vsub.f32 %v5463, %v6047
        %6049 = vmatprep.mubr.f32.mxu0 %v6048
        %v6050 = vand.u32 %v5462, 4294901760
        %v6051 = vsub.f32 %v5462, %v6050
        %6052 = vmatmul.mubr.f32.gmra.mrb[0].mxu0 %v6051
        %v6053 = vpop.f32.mrb[0].mxu0
        %v6054 = vadd.f32 %v5893, %v6053
        %v6055 = vpop.f32.mrb[0].mxu0
        %v6056 = vand.u32 %v5465, 4294901760
        %v6057 = vsub.f32 %v5465, %v6056
        %6058 = vmatprep.mubr.f32.mxu0 %v6057
        %v6059 = vand.u32 %v5464, 4294901760
        %v6060 = vsub.f32 %v5464, %v6059
        %6061 = vmatmul.mubr.f32.gmra.mrb[0].mxu0 %v6060
        %v6062 = vpop.f32.mrb[0].mxu0
        %v6063 = vadd.f32 %v5900, %v6062
        %v6064 = vpop.f32.mrb[0].mxu0
        %v6065 = vand.u32 %v5467, 4294901760
        %v6066 = vsub.f32 %v5467, %v6065
        %6067 = vmatprep.mubr.f32.mxu0 %v6066
        %v6068 = vand.u32 %v5466, 4294901760
        %v6069 = vsub.f32 %v5466, %v6068
        %6070 = vmatmul.mubr.f32.gmra.mrb[0].mxu0 %v6069
        %v6071 = vpop.f32.mrb[0].mxu0
        %v6072 = vadd.f32 %v5907, %v6071
        %v6073 = vpop.f32.mrb[0].mxu0
        %6074 = vdwg.mxu0
        %6075 = vmatprep.subr.mxu0 0.0
        %v6076 = vand.u32 %v5468, 4294901760
        %6077 = vmatpush1.msra.mxu0 %v6076
        %6078 = vmatprep.subr.mxu0 0.0
        %v6079 = vand.u32 %v5469, 4294901760
        %6080 = vmatpush1.msra.mxu0 %v6079
        %6081 = vmatprep.subr.mxu0 0.0
        %v6082 = vand.u32 %v5470, 4294901760
        %6083 = vmatpush1.msra.mxu0 %v6082
        %6084 = vmatprep.subr.mxu0 0.0
        %v6085 = vand.u32 %v5471, 4294901760
        %6086 = vmatpush1.msra.mxu0 %v6085
        %6087 = vmatprep.subr.mxu0 0.0
        %v6088 = vand.u32 %v5472, 4294901760
        %6089 = vmatpush1.msra.mxu0 %v6088
        %6090 = vmatprep.subr.mxu0 0.0
        %v6091 = vand.u32 %v5473, 4294901760
        %6092 = vmatpush1.msra.mxu0 %v6091
        %6093 = vmatprep.subr.mxu0 0.0
        %v6094 = vand.u32 %v5474, 4294901760
        %6095 = vmatpush1.msra.mxu0 %v6094
        %6096 = vmatprep.subr.mxu0 0.0
        %v6097 = vand.u32 %v5475, 4294901760
        %6098 = vmatpush1.msra.mxu0 %v6097
        %6099 = vmatprep.subr.mxu0 0.0
        %v6100 = vand.u32 %v5476, 4294901760
        %6101 = vmatpush1.msra.mxu0 %v6100
        %6102 = vmatprep.subr.mxu0 0.0
        %v6103 = vand.u32 %v5477, 4294901760
        %6104 = vmatpush1.msra.mxu0 %v6103
        %6105 = vmatprep.subr.mxu0 0.0
        %v6106 = vand.u32 %v5478, 4294901760
        %6107 = vmatpush1.msra.mxu0 %v6106
        %6108 = vmatprep.subr.mxu0 0.0
        %v6109 = vand.u32 %v5479, 4294901760
        %6110 = vmatpush1.msra.mxu0 %v6109
        %6111 = vmatprep.subr.mxu0 0.0
        %v6112 = vand.u32 %v5480, 4294901760
        %6113 = vmatpush1.msra.mxu0 %v6112
        %6114 = vmatprep.subr.mxu0 0.0
        %v6115 = vand.u32 %v5481, 4294901760
        %6116 = vmatpush1.msra.mxu0 %v6115
        %6117 = vmatprep.subr.mxu0 0.0
        %v6118 = vand.u32 %v5482, 4294901760
        %6119 = vmatpush1.msra.mxu0 %v6118
        %6120 = vmatprep.subr.mxu0 0.0
        %v6121 = vand.u32 %v5483, 4294901760
        %6122 = vmatpush1.msra.mxu0 %v6121
        %6123 = vmatprep.subr.mxu0 0.0
        %v6124 = vand.u32 %v5484, 4294901760
        %6125 = vmatpush1.msra.mxu0 %v6124
        %6126 = vmatprep.subr.mxu0 0.0
        %v6127 = vand.u32 %v5485, 4294901760
        %6128 = vmatpush1.msra.mxu0 %v6127
        %6129 = vmatprep.subr.mxu0 0.0
        %v6130 = vand.u32 %v5486, 4294901760
        %6131 = vmatpush1.msra.mxu0 %v6130
        %6132 = vmatprep.subr.mxu0 0.0
        %v6133 = vand.u32 %v5487, 4294901760
        %6134 = vmatpush1.msra.mxu0 %v6133
        %6135 = vmatprep.subr.mxu0 0.0
        %v6136 = vand.u32 %v5488, 4294901760
        %6137 = vmatpush1.msra.mxu0 %v6136
        %6138 = vmatprep.subr.mxu0 0.0
        %v6139 = vand.u32 %v5489, 4294901760
        %6140 = vmatpush1.msra.mxu0 %v6139
        %6141 = vmatprep.subr.mxu0 0.0
        %v6142 = vand.u32 %v5490, 4294901760
        %6143 = vmatpush1.msra.mxu0 %v6142
        %6144 = vmatprep.subr.mxu0 0.0
        %v6145 = vand.u32 %v5491, 4294901760
        %6146 = vmatpush1.msra.mxu0 %v6145
        %6147 = vmatprep.subr.mxu0 0.0
        %v6148 = vand.u32 %v5492, 4294901760
        %6149 = vmatpush1.msra.mxu0 %v6148
        %6150 = vmatprep.subr.mxu0 0.0
        %v6151 = vand.u32 %v5493, 4294901760
        %6152 = vmatpush1.msra.mxu0 %v6151
        %6153 = vmatprep.subr.mxu0 0.0
        %v6154 = vand.u32 %v5494, 4294901760
        %6155 = vmatpush1.msra.mxu0 %v6154
        %6156 = vmatprep.subr.mxu0 0.0
        %v6157 = vand.u32 %v5495, 4294901760
        %6158 = vmatpush1.msra.mxu0 %v6157
        %6159 = vmatprep.subr.mxu0 0.0
        %v6160 = vand.u32 %v5496, 4294901760
        %6161 = vmatpush1.msra.mxu0 %v6160
        %6162 = vmatprep.subr.mxu0 0.0
        %v6163 = vand.u32 %v5497, 4294901760
        %6164 = vmatpush1.msra.mxu0 %v6163
        %6165 = vmatprep.subr.mxu0 0.0
        %v6166 = vand.u32 %v5498, 4294901760
        %6167 = vmatpush1.msra.mxu0 %v6166
        %6168 = vmatprep.subr.mxu0 0.0
        %v6169 = vand.u32 %v5499, 4294901760
        %6170 = vmatpush1.msra.mxu0 %v6169
        %v6171 = vand.u32 %v5461, 4294901760
        %v6172 = vsub.f32 %v5461, %v6171
        %v6173 = vand.u32 %v6172, 4294901760
        %6174 = vmatprep.mubr.f32.mxu0 %v6173
        %v6175 = vand.u32 %v5460, 4294901760
        %v6176 = vsub.f32 %v5460, %v6175
        %v6177 = vand.u32 %v6176, 4294901760
        %6178 = vmatmul.mubr.f32.gmra.mrb[0].mxu0 %v6177
        %v6179 = vpop.f32.mrb[0].mxu0
        %v6180 = vadd.f32 %v6045, %v6179
        %v6181 = vpop.f32.mrb[0].mxu0
        %v6182 = vand.u32 %v5463, 4294901760
        %v6183 = vsub.f32 %v5463, %v6182
        %v6184 = vand.u32 %v6183, 4294901760
        %6185 = vmatprep.mubr.f32.mxu0 %v6184
        %v6186 = vand.u32 %v5462, 4294901760
        %v6187 = vsub.f32 %v5462, %v6186
        %v6188 = vand.u32 %v6187, 4294901760
        %6189 = vmatmul.mubr.f32.gmra.mrb[0].mxu0 %v6188
        %v6190 = vpop.f32.mrb[0].mxu0
        %v6191 = vadd.f32 %v6054, %v6190
        %v6192 = vpop.f32.mrb[0].mxu0
        %v6193 = vand.u32 %v5465, 4294901760
        %v6194 = vsub.f32 %v5465, %v6193
        %v6195 = vand.u32 %v6194, 4294901760
        %6196 = vmatprep.mubr.f32.mxu0 %v6195
        %v6197 = vand.u32 %v5464, 4294901760
        %v6198 = vsub.f32 %v5464, %v6197
        %v6199 = vand.u32 %v6198, 4294901760
        %6200 = vmatmul.mubr.f32.gmra.mrb[0].mxu0 %v6199
        %v6201 = vpop.f32.mrb[0].mxu0
        %v6202 = vadd.f32 %v6063, %v6201
        %v6203 = vpop.f32.mrb[0].mxu0
        %v6204 = vand.u32 %v5467, 4294901760
        %v6205 = vsub.f32 %v5467, %v6204
        %v6206 = vand.u32 %v6205, 4294901760
        %6207 = vmatprep.mubr.f32.mxu0 %v6206
        %v6208 = vand.u32 %v5466, 4294901760
        %v6209 = vsub.f32 %v5466, %v6208
        %v6210 = vand.u32 %v6209, 4294901760
        %6211 = vmatmul.mubr.f32.gmra.mrb[0].mxu0 %v6210
        %v6212 = vpop.f32.mrb[0].mxu0
        %v6213 = vadd.f32 %v6072, %v6212
        %v6214 = vpop.f32.mrb[0].mxu0
        %6215 = vdwg.mxu0
        %6216 = vmatprep.subr.mxu0 0.0
        %v6217 = vand.u32 %v5468, 4294901760
        %v6218 = vsub.f32 %v5468, %v6217
        %v6219 = vand.u32 %v6218, 4294901760
        %6220 = vmatpush1.msra.mxu0 %v6219
        %6221 = vmatprep.subr.mxu0 0.0
        %v6222 = vand.u32 %v5469, 4294901760
        %v6223 = vsub.f32 %v5469, %v6222
        %v6224 = vand.u32 %v6223, 4294901760
        %6225 = vmatpush1.msra.mxu0 %v6224
        %6226 = vmatprep.subr.mxu0 0.0
        %v6227 = vand.u32 %v5470, 4294901760
        %v6228 = vsub.f32 %v5470, %v6227
        %v6229 = vand.u32 %v6228, 4294901760
        %6230 = vmatpush1.msra.mxu0 %v6229
        %6231 = vmatprep.subr.mxu0 0.0
        %v6232 = vand.u32 %v5471, 4294901760
        %v6233 = vsub.f32 %v5471, %v6232
        %v6234 = vand.u32 %v6233, 4294901760
        %6235 = vmatpush1.msra.mxu0 %v6234
        %6236 = vmatprep.subr.mxu0 0.0
        %v6237 = vand.u32 %v5472, 4294901760
        %v6238 = vsub.f32 %v5472, %v6237
        %v6239 = vand.u32 %v6238, 4294901760
        %6240 = vmatpush1.msra.mxu0 %v6239
        %6241 = vmatprep.subr.mxu0 0.0
        %v6242 = vand.u32 %v5473, 4294901760
        %v6243 = vsub.f32 %v5473, %v6242
        %v6244 = vand.u32 %v6243, 4294901760
        %6245 = vmatpush1.msra.mxu0 %v6244
        %6246 = vmatprep.subr.mxu0 0.0
        %v6247 = vand.u32 %v5474, 4294901760
        %v6248 = vsub.f32 %v5474, %v6247
        %v6249 = vand.u32 %v6248, 4294901760
        %6250 = vmatpush1.msra.mxu0 %v6249
        %6251 = vmatprep.subr.mxu0 0.0
        %v6252 = vand.u32 %v5475, 4294901760
        %v6253 = vsub.f32 %v5475, %v6252
        %v6254 = vand.u32 %v6253, 4294901760
        %6255 = vmatpush1.msra.mxu0 %v6254
        %6256 = vmatprep.subr.mxu0 0.0
        %v6257 = vand.u32 %v5476, 4294901760
        %v6258 = vsub.f32 %v5476, %v6257
        %v6259 = vand.u32 %v6258, 4294901760
        %6260 = vmatpush1.msra.mxu0 %v6259
        %6261 = vmatprep.subr.mxu0 0.0
        %v6262 = vand.u32 %v5477, 4294901760
        %v6263 = vsub.f32 %v5477, %v6262
        %v6264 = vand.u32 %v6263, 4294901760
        %6265 = vmatpush1.msra.mxu0 %v6264
        %6266 = vmatprep.subr.mxu0 0.0
        %v6267 = vand.u32 %v5478, 4294901760
        %v6268 = vsub.f32 %v5478, %v6267
        %v6269 = vand.u32 %v6268, 4294901760
        %6270 = vmatpush1.msra.mxu0 %v6269
        %6271 = vmatprep.subr.mxu0 0.0
        %v6272 = vand.u32 %v5479, 4294901760
        %v6273 = vsub.f32 %v5479, %v6272
        %v6274 = vand.u32 %v6273, 4294901760
        %6275 = vmatpush1.msra.mxu0 %v6274
        %6276 = vmatprep.subr.mxu0 0.0
        %v6277 = vand.u32 %v5480, 4294901760
        %v6278 = vsub.f32 %v5480, %v6277
        %v6279 = vand.u32 %v6278, 4294901760
        %6280 = vmatpush1.msra.mxu0 %v6279
        %6281 = vmatprep.subr.mxu0 0.0
        %v6282 = vand.u32 %v5481, 4294901760
        %v6283 = vsub.f32 %v5481, %v6282
        %v6284 = vand.u32 %v6283, 4294901760
        %6285 = vmatpush1.msra.mxu0 %v6284
        %6286 = vmatprep.subr.mxu0 0.0
        %v6287 = vand.u32 %v5482, 4294901760
        %v6288 = vsub.f32 %v5482, %v6287
        %v6289 = vand.u32 %v6288, 4294901760
        %6290 = vmatpush1.msra.mxu0 %v6289
        %6291 = vmatprep.subr.mxu0 0.0
        %v6292 = vand.u32 %v5483, 4294901760
        %v6293 = vsub.f32 %v5483, %v6292
        %v6294 = vand.u32 %v6293, 4294901760
        %6295 = vmatpush1.msra.mxu0 %v6294
        %6296 = vmatprep.subr.mxu0 0.0
        %v6297 = vand.u32 %v5484, 4294901760
        %v6298 = vsub.f32 %v5484, %v6297
        %v6299 = vand.u32 %v6298, 4294901760
        %6300 = vmatpush1.msra.mxu0 %v6299
        %6301 = vmatprep.subr.mxu0 0.0
        %v6302 = vand.u32 %v5485, 4294901760
        %v6303 = vsub.f32 %v5485, %v6302
        %v6304 = vand.u32 %v6303, 4294901760
        %6305 = vmatpush1.msra.mxu0 %v6304
        %6306 = vmatprep.subr.mxu0 0.0
        %v6307 = vand.u32 %v5486, 4294901760
        %v6308 = vsub.f32 %v5486, %v6307
        %v6309 = vand.u32 %v6308, 4294901760
        %6310 = vmatpush1.msra.mxu0 %v6309
        %6311 = vmatprep.subr.mxu0 0.0
        %v6312 = vand.u32 %v5487, 4294901760
        %v6313 = vsub.f32 %v5487, %v6312
        %v6314 = vand.u32 %v6313, 4294901760
        %6315 = vmatpush1.msra.mxu0 %v6314
        %6316 = vmatprep.subr.mxu0 0.0
        %v6317 = vand.u32 %v5488, 4294901760
        %v6318 = vsub.f32 %v5488, %v6317
        %v6319 = vand.u32 %v6318, 4294901760
        %6320 = vmatpush1.msra.mxu0 %v6319
        %6321 = vmatprep.subr.mxu0 0.0
        %v6322 = vand.u32 %v5489, 4294901760
        %v6323 = vsub.f32 %v5489, %v6322
        %v6324 = vand.u32 %v6323, 4294901760
        %6325 = vmatpush1.msra.mxu0 %v6324
        %6326 = vmatprep.subr.mxu0 0.0
        %v6327 = vand.u32 %v5490, 4294901760
        %v6328 = vsub.f32 %v5490, %v6327
        %v6329 = vand.u32 %v6328, 4294901760
        %6330 = vmatpush1.msra.mxu0 %v6329
        %6331 = vmatprep.subr.mxu0 0.0
        %v6332 = vand.u32 %v5491, 4294901760
        %v6333 = vsub.f32 %v5491, %v6332
        %v6334 = vand.u32 %v6333, 4294901760
        %6335 = vmatpush1.msra.mxu0 %v6334
        %6336 = vmatprep.subr.mxu0 0.0
        %v6337 = vand.u32 %v5492, 4294901760
        %v6338 = vsub.f32 %v5492, %v6337
        %v6339 = vand.u32 %v6338, 4294901760
        %6340 = vmatpush1.msra.mxu0 %v6339
        %6341 = vmatprep.subr.mxu0 0.0
        %v6342 = vand.u32 %v5493, 4294901760
        %v6343 = vsub.f32 %v5493, %v6342
        %v6344 = vand.u32 %v6343, 4294901760
        %6345 = vmatpush1.msra.mxu0 %v6344
        %6346 = vmatprep.subr.mxu0 0.0
        %v6347 = vand.u32 %v5494, 4294901760
        %v6348 = vsub.f32 %v5494, %v6347
        %v6349 = vand.u32 %v6348, 4294901760
        %6350 = vmatpush1.msra.mxu0 %v6349
        %6351 = vmatprep.subr.mxu0 0.0
        %v6352 = vand.u32 %v5495, 4294901760
        %v6353 = vsub.f32 %v5495, %v6352
        %v6354 = vand.u32 %v6353, 4294901760
        %6355 = vmatpush1.msra.mxu0 %v6354
        %6356 = vmatprep.subr.mxu0 0.0
        %v6357 = vand.u32 %v5496, 4294901760
        %v6358 = vsub.f32 %v5496, %v6357
        %v6359 = vand.u32 %v6358, 4294901760
        %6360 = vmatpush1.msra.mxu0 %v6359
        %6361 = vmatprep.subr.mxu0 0.0
        %v6362 = vand.u32 %v5497, 4294901760
        %v6363 = vsub.f32 %v5497, %v6362
        %v6364 = vand.u32 %v6363, 4294901760
        %6365 = vmatpush1.msra.mxu0 %v6364
        %6366 = vmatprep.subr.mxu0 0.0
        %v6367 = vand.u32 %v5498, 4294901760
        %v6368 = vsub.f32 %v5498, %v6367
        %v6369 = vand.u32 %v6368, 4294901760
        %6370 = vmatpush1.msra.mxu0 %v6369
        %6371 = vmatprep.subr.mxu0 0.0
        %v6372 = vand.u32 %v5499, 4294901760
        %v6373 = vsub.f32 %v5499, %v6372
        %v6374 = vand.u32 %v6373, 4294901760
        %6375 = vmatpush1.msra.mxu0 %v6374
        %v6376 = vand.u32 %v5461, 4294901760
        %6377 = vmatprep.mubr.f32.mxu0 %v6376
        %v6378 = vand.u32 %v5460, 4294901760
        %6379 = vmatmul.mubr.f32.gmra.mrb[0].mxu0 %v6378
        %v6380 = vpop.f32.mrb[0].mxu0
        %v6381 = vadd.f32 %v6180, %v6380
        %v6382 = vpop.f32.mrb[0].mxu0
        %v6383 = vand.u32 %v5463, 4294901760
        %6384 = vmatprep.mubr.f32.mxu0 %v6383
        %v6385 = vand.u32 %v5462, 4294901760
        %6386 = vmatmul.mubr.f32.gmra.mrb[0].mxu0 %v6385
        %v6387 = vpop.f32.mrb[0].mxu0
        %v6388 = vadd.f32 %v6191, %v6387
        %v6389 = vpop.f32.mrb[0].mxu0
        %v6390 = vand.u32 %v5465, 4294901760
        %6391 = vmatprep.mubr.f32.mxu0 %v6390
        %v6392 = vand.u32 %v5464, 4294901760
        %6393 = vmatmul.mubr.f32.gmra.mrb[0].mxu0 %v6392
        %v6394 = vpop.f32.mrb[0].mxu0
        %v6395 = vadd.f32 %v6202, %v6394
        %v6396 = vpop.f32.mrb[0].mxu0
        %v6397 = vand.u32 %v5467, 4294901760
        %6398 = vmatprep.mubr.f32.mxu0 %v6397
        %v6399 = vand.u32 %v5466, 4294901760
        %6400 = vmatmul.mubr.f32.gmra.mrb[0].mxu0 %v6399
        %v6401 = vpop.f32.mrb[0].mxu0
        %v6402 = vadd.f32 %v6213, %v6401
        %v6403 = vpop.f32.mrb[0].mxu0
        %6404 = vdwg.mxu0
        %6405 = vmatprep.subr.mxu0 0.0
        %v6406 = vand.u32 %v5468, 4294901760
        %6407 = vmatpush1.msra.mxu0 %v6406
        %6408 = vmatprep.subr.mxu0 0.0
        %v6409 = vand.u32 %v5469, 4294901760
        %6410 = vmatpush1.msra.mxu0 %v6409
        %6411 = vmatprep.subr.mxu0 0.0
        %v6412 = vand.u32 %v5470, 4294901760
        %6413 = vmatpush1.msra.mxu0 %v6412
        %6414 = vmatprep.subr.mxu0 0.0
        %v6415 = vand.u32 %v5471, 4294901760
        %6416 = vmatpush1.msra.mxu0 %v6415
        %6417 = vmatprep.subr.mxu0 0.0
        %v6418 = vand.u32 %v5472, 4294901760
        %6419 = vmatpush1.msra.mxu0 %v6418
        %6420 = vmatprep.subr.mxu0 0.0
        %v6421 = vand.u32 %v5473, 4294901760
        %6422 = vmatpush1.msra.mxu0 %v6421
        %6423 = vmatprep.subr.mxu0 0.0
        %v6424 = vand.u32 %v5474, 4294901760
        %6425 = vmatpush1.msra.mxu0 %v6424
        %6426 = vmatprep.subr.mxu0 0.0
        %v6427 = vand.u32 %v5475, 4294901760
        %6428 = vmatpush1.msra.mxu0 %v6427
        %6429 = vmatprep.subr.mxu0 0.0
        %v6430 = vand.u32 %v5476, 4294901760
        %6431 = vmatpush1.msra.mxu0 %v6430
        %6432 = vmatprep.subr.mxu0 0.0
        %v6433 = vand.u32 %v5477, 4294901760
        %6434 = vmatpush1.msra.mxu0 %v6433
        %6435 = vmatprep.subr.mxu0 0.0
        %v6436 = vand.u32 %v5478, 4294901760
        %6437 = vmatpush1.msra.mxu0 %v6436
        %6438 = vmatprep.subr.mxu0 0.0
        %v6439 = vand.u32 %v5479, 4294901760
        %6440 = vmatpush1.msra.mxu0 %v6439
        %6441 = vmatprep.subr.mxu0 0.0
        %v6442 = vand.u32 %v5480, 4294901760
        %6443 = vmatpush1.msra.mxu0 %v6442
        %6444 = vmatprep.subr.mxu0 0.0
        %v6445 = vand.u32 %v5481, 4294901760
        %6446 = vmatpush1.msra.mxu0 %v6445
        %6447 = vmatprep.subr.mxu0 0.0
        %v6448 = vand.u32 %v5482, 4294901760
        %6449 = vmatpush1.msra.mxu0 %v6448
        %6450 = vmatprep.subr.mxu0 0.0
        %v6451 = vand.u32 %v5483, 4294901760
        %6452 = vmatpush1.msra.mxu0 %v6451
        %6453 = vmatprep.subr.mxu0 0.0
        %v6454 = vand.u32 %v5484, 4294901760
        %6455 = vmatpush1.msra.mxu0 %v6454
        %6456 = vmatprep.subr.mxu0 0.0
        %v6457 = vand.u32 %v5485, 4294901760
        %6458 = vmatpush1.msra.mxu0 %v6457
        %6459 = vmatprep.subr.mxu0 0.0
        %v6460 = vand.u32 %v5486, 4294901760
        %6461 = vmatpush1.msra.mxu0 %v6460
        %6462 = vmatprep.subr.mxu0 0.0
        %v6463 = vand.u32 %v5487, 4294901760
        %6464 = vmatpush1.msra.mxu0 %v6463
        %6465 = vmatprep.subr.mxu0 0.0
        %v6466 = vand.u32 %v5488, 4294901760
        %6467 = vmatpush1.msra.mxu0 %v6466
        %6468 = vmatprep.subr.mxu0 0.0
        %v6469 = vand.u32 %v5489, 4294901760
        %6470 = vmatpush1.msra.mxu0 %v6469
        %6471 = vmatprep.subr.mxu0 0.0
        %v6472 = vand.u32 %v5490, 4294901760
        %6473 = vmatpush1.msra.mxu0 %v6472
        %6474 = vmatprep.subr.mxu0 0.0
        %v6475 = vand.u32 %v5491, 4294901760
        %6476 = vmatpush1.msra.mxu0 %v6475
        %6477 = vmatprep.subr.mxu0 0.0
        %v6478 = vand.u32 %v5492, 4294901760
        %6479 = vmatpush1.msra.mxu0 %v6478
        %6480 = vmatprep.subr.mxu0 0.0
        %v6481 = vand.u32 %v5493, 4294901760
        %6482 = vmatpush1.msra.mxu0 %v6481
        %6483 = vmatprep.subr.mxu0 0.0
        %v6484 = vand.u32 %v5494, 4294901760
        %6485 = vmatpush1.msra.mxu0 %v6484
        %6486 = vmatprep.subr.mxu0 0.0
        %v6487 = vand.u32 %v5495, 4294901760
        %6488 = vmatpush1.msra.mxu0 %v6487
        %6489 = vmatprep.subr.mxu0 0.0
        %v6490 = vand.u32 %v5496, 4294901760
        %6491 = vmatpush1.msra.mxu0 %v6490
        %6492 = vmatprep.subr.mxu0 0.0
        %v6493 = vand.u32 %v5497, 4294901760
        %6494 = vmatpush1.msra.mxu0 %v6493
        %6495 = vmatprep.subr.mxu0 0.0
        %v6496 = vand.u32 %v5498, 4294901760
        %6497 = vmatpush1.msra.mxu0 %v6496
        %6498 = vmatprep.subr.mxu0 0.0
        %v6499 = vand.u32 %v5499, 4294901760
        %6500 = vmatpush1.msra.mxu0 %v6499
        %v6501 = vand.u32 %v5461, 4294901760
        %6502 = vmatprep.mubr.f32.mxu0 %v6501
        %v6503 = vand.u32 %v5460, 4294901760
        %6504 = vmatmul.mubr.f32.gmra.mrb[0].mxu0 %v6503
        %v6505 = vpop.f32.mrb[0].mxu0
        %v6506 = vadd.f32 %v6381, %v6505
        %v6507 = vpop.f32.mrb[0].mxu0
        %v6508 = vand.u32 %v5463, 4294901760
        %6509 = vmatprep.mubr.f32.mxu0 %v6508
        %v6510 = vand.u32 %v5462, 4294901760
        %6511 = vmatmul.mubr.f32.gmra.mrb[0].mxu0 %v6510
        %v6512 = vpop.f32.mrb[0].mxu0
        %v6513 = vadd.f32 %v6388, %v6512
        %v6514 = vpop.f32.mrb[0].mxu0
        %v6515 = vand.u32 %v5465, 4294901760
        %6516 = vmatprep.mubr.f32.mxu0 %v6515
        %v6517 = vand.u32 %v5464, 4294901760
        %6518 = vmatmul.mubr.f32.gmra.mrb[0].mxu0 %v6517
        %v6519 = vpop.f32.mrb[0].mxu0
        %v6520 = vadd.f32 %v6395, %v6519
        %v6521 = vpop.f32.mrb[0].mxu0
        %v6522 = vand.u32 %v5467, 4294901760
        %6523 = vmatprep.mubr.f32.mxu0 %v6522
        %v6524 = vand.u32 %v5466, 4294901760
        %6525 = vmatmul.mubr.f32.gmra.mrb[0].mxu0 %v6524
        %v6526 = vpop.f32.mrb[0].mxu0
        %v6527 = vadd.f32 %v6402, %v6526
        %v6528 = vpop.f32.mrb[0].mxu0
        %6529 = vdwg.mxu0
        %vm6530 = vcmask 64512
        %6531 = vst.msk [vmem:[%s354] sm:$0xff] %vm6530, %v6506
        %6532 = vst.msk [vmem:[%s354 + $0x8] sm:$0xff] %vm6530, %v6513
        %6533 = vst.msk [vmem:[%s354 + $0x10] sm:$0xff] %vm6530, %v6520
        %6534 = vst.msk [vmem:[%s354 + $0x18] sm:$0xff] %vm6530, %v6527
        %s6535 = smul.u32 4, %s24
        %p6536 = scmp.lt.s32.totalorder %s6535, 15
        %s6537 = scalar_select %p6536, %s6535, 15
        %s6538 = smul.addr %s6537, 8
        %s6539 = scalar_lea.vmem %s7, %s6538
        // Predicated region
        $region61: #{tpu_custom_call.1} parent=47 // pred_check
          %p6540 = pneg %p199
        $region62: #{tpu_custom_call.1} parent=47 // pred_check_branch
          %6542 = sbr.rel (%p6540) target = $region64
        $region63: #{tpu_custom_call.1} parent=47 // pred_region
          %s6543 = smul.u32 4, %s24
        $region64: #{tpu_custom_call.1} parent=47 // pred_fallthru
          _
      $region48: #{tpu_custom_call.1} parent=5 // pred_fallthru
        _
      %p6544 = scmp.le.s32.totalorder 2, %s19
      // Predicated region
      $region65: #{tpu_custom_call.1} parent=5 // pred_check
        %p6545 = pneg %p6544
      $region66: #{tpu_custom_call.1} parent=5 // pred_check_branch
        %6547 = sbr.rel (%p6545) target = $region68
      $region67: #{tpu_custom_call.1} parent=5 // pred_region
        %s6548 = ssub.s32 %s19, 2
        // Predicated region
        $region69: #{tpu_custom_call.1} parent=67 // pred_check
          %p6549 = pneg %p205
        $region70: #{tpu_custom_call.1} parent=67 // pred_check_branch
          %6551 = sbr.rel (%p6549) target = $region72
        $region71: #{tpu_custom_call.1} parent=67 // pred_region
          %s6552 = smul.u32 4, %s25
          %p6553 = scmp.lt.s32.totalorder %s6552, 15
          %s6554 = scalar_select %p6553, %s6552, 15
          %s6555 = smul.addr %s6554, 8
          %s6556 = scalar_lea.vmem %s7, %s6555
        $region72: #{tpu_custom_call.1} parent=67 // pred_fallthru
          _
      $region68: #{tpu_custom_call.1} parent=5 // pred_fallthru
        _
    $region6: #{tpu_custom_call.1} parent=1 // loop_footer
      %s23 = sadd.s32 1, %s19
    $region7: #{tpu_custom_call.1} parent=1 // loop_footer_branch
      %18 = sbr.rel target = $region3
    $region8: #{tpu_custom_call.1} parent=1 // loop_exit
      _
    %6557 = vsyncpa [#allocation3], 1
    %s6558 = scalar_lea.sflag [#allocation3], 1
    %6559 = vsyncpa %s6558, 1
    %6560 = vsyncpa [#allocation5], 1
    %s6561 = scalar_lea.sflag [#allocation5], 1
    %6562 = vsyncpa %s6561, 1

</llo_original>
